<compile_context>
chip_gen: v7x
topology: tpu7x:2x2x1
jax: 0.10.0
libtpu: 0.0.40
codegen_flags: <defaults>
</compile_context>

<pallas_src>
import functools

import jax
import jax.numpy as jnp
from jax import lax
from jax.experimental import pallas as pl
from jax.experimental.pallas import tpu as pltpu

EPS = 1e-5
LANE = 128
_VMEM_LIMIT_BYTES = 32 * 1024 * 1024


def _round_up(x, m):
    return (x + m - 1) // m * m


def _pick_row_tile(m, cap=512):
    t = min(cap, m)
    while t >= 8:
        if m % t == 0 and t % 8 == 0:
            return t
        t -= 1
    return m  # single full block (legal: equals full dim)


# ----------------------------------------------------------------------------------------------
# Kernel 1: direct 3x3x3 conv (pad=1, stride=1) + per-step BatchNorm partial statistics.
# Grid = (N, D); every step computes one output depth slice (H*Wp flattened rows).
# ----------------------------------------------------------------------------------------------
def _conv3d_stats_kernel(x0_ref, x1_ref, x2_ref, w_ref, y_ref, sum_ref, sq_ref,
                         *, W, Wp, Rv, Cout_p):
    # x*_ref : (1, 1, Hp*Wp, Cin_p) bf16 -- padded depth slices d, d+1, d+2
    # w_ref  : (27, Cin_p, Cout_p)  bf16 -- resident across the whole grid
    # y_ref  : (1, 1, Rv, Cout_p)   f32  -- conv output rows (flattened h*Wp + w)
    # sum/sq : (1, 1, 1, Cout_p)    f32  -- per-step partial BN sums (finalized in JAX)
    acc = jnp.zeros((Rv, Cout_p), jnp.float32)
    slabs = (x0_ref[0, 0], x1_ref[0, 0], x2_ref[0, 0])
    for kd in range(3):
        xs = slabs[kd]
        for kh in range(3):
            for kw in range(3):
                off = kh * Wp + kw
                tap = (kd * 3 + kh) * 3 + kw
                acc = acc + jnp.dot(xs[off:off + Rv, :], w_ref[tap],
                                    preferred_element_type=jnp.float32)
    # zero the 2 zero-pad columns (w in [W, Wp)) so they never enter the BN statistics
    col = lax.broadcasted_iota(jnp.int32, (Rv, Cout_p), 0) % Wp
    acc = jnp.where(col < W, acc, 0.0)
    y_ref[0, 0] = acc
    sum_ref[0, 0] = jnp.sum(acc, axis=0, keepdims=True)
    sq_ref[0, 0] = jnp.sum(acc * acc, axis=0, keepdims=True)


def conv3x3x3_with_stats(xp_flat, w_flat, *, H, W, Wp):
    # xp_flat: (N, D+2, (H+3)*(W+2), Cin_p) bf16, zero padded; w_flat: (27, Cin_p, Cout_p) bf16
    N, Dp, HWp, Cin_p = xp_flat.shape
    D = Dp - 2
    Rv = H * Wp
    Cout_p = w_flat.shape[2]
    kernel = functools.partial(_conv3d_stats_kernel, W=W, Wp=Wp, Rv=Rv, Cout_p=Cout_p)

    def x_spec(kd):
        return pl.BlockSpec((1, 1, HWp, Cin_p), lambda n, d, kd=kd: (n, d + kd, 0, 0))

    return pl.pallas_call(
        kernel,
        out_shape=(
            jax.ShapeDtypeStruct((N, D, Rv, Cout_p), jnp.float32),
            jax.ShapeDtypeStruct((N, D, 1, Cout_p), jnp.float32),
            jax.ShapeDtypeStruct((N, D, 1, Cout_p), jnp.float32),
        ),
        grid=(N, D),
        in_specs=[
            x_spec(0), x_spec(1), x_spec(2),
            pl.BlockSpec((27, Cin_p, Cout_p), lambda n, d: (0, 0, 0)),  # resident weights
        ],
        out_specs=(
            pl.BlockSpec((1, 1, Rv, Cout_p), lambda n, d: (n, d, 0, 0)),
            pl.BlockSpec((1, 1, 1, Cout_p), lambda n, d: (n, d, 0, 0)),
            pl.BlockSpec((1, 1, 1, Cout_p), lambda n, d: (n, d, 0, 0)),
        ),
        compiler_params=pltpu.CompilerParams(
            dimension_semantics=("parallel", "parallel"),
            vmem_limit_bytes=_VMEM_LIMIT_BYTES,
        ),
    )(xp_flat, xp_flat, xp_flat, w_flat)


# ----------------------------------------------------------------------------------------------
# Kernel 2: BN (precomputed scale/shift) [+ identity residual] + ReLU, row-tiled over M.
# ----------------------------------------------------------------------------------------------
def _bn_relu_kernel(y_ref, scale_ref, shift_ref, o_ref):
    o_ref[...] = jnp.maximum(
        y_ref[...] * scale_ref[...] + shift_ref[...], 0.0).astype(o_ref.dtype)


def _bn_add_relu_kernel(y_ref, scale_ref, shift_ref, r_ref, o_ref):
    o_ref[...] = jnp.maximum(
        y_ref[...] * scale_ref[...] + shift_ref[...] + r_ref[...].astype(jnp.float32),
        0.0).astype(o_ref.dtype)


def bn_relu(y2d, scale, shift, residual=None, out_dtype=jnp.float32, row_cap=512):
    M, Cp = y2d.shape
    tm = _pick_row_tile(M, row_cap)
    row_spec = pl.BlockSpec((tm, Cp), lambda i: (i, 0))
    vec_spec = pl.BlockSpec((1, Cp), lambda i: (0, 0))
    if residual is None:
        kernel = _bn_relu_kernel
        in_specs = [row_spec, vec_spec, vec_spec]
        args = (y2d, scale, shift)
    else:
        kernel = _bn_add_relu_kernel
        in_specs = [row_spec, vec_spec, vec_spec, row_spec]
        args = (y2d, scale, shift, residual)
    return pl.pallas_call(
        kernel,
        out_shape=jax.ShapeDtypeStruct((M, Cp), out_dtype),
        grid=(M // tm,),
        in_specs=in_specs,
        out_specs=row_spec,
        compiler_params=pltpu.CompilerParams(
            dimension_semantics=("parallel",),
            vmem_limit_bytes=_VMEM_LIMIT_BYTES,
        ),
    )(*args)


# ----------------------------------------------------------------------------------------------
# JAX-level glue.
# ----------------------------------------------------------------------------------------------
def _bn_scale_shift(ssum, ssq, gamma_p, beta_p, count):
    s = jnp.sum(ssum, axis=(0, 1)).reshape(-1)
    q = jnp.sum(ssq, axis=(0, 1)).reshape(-1)
    mean = s / count
    var = jnp.maximum(q / count - mean * mean, 0.0)      # biased variance (train-mode BN)
    scale = gamma_p * lax.rsqrt(var + EPS)               # padded lanes: gamma=0 -> scale=shift=0
    shift = beta_p - mean * scale
    return scale.reshape(1, -1), shift.reshape(1, -1)


def _pad_and_flatten(x_ndhwc):
    # zero-pad D by (1,1), H by (1,2), W by (1,1); flatten each depth slice to rows h*Wp + w.
    xp = jnp.pad(x_ndhwc, ((0, 0), (1, 1), (1, 2), (1, 1), (0, 0)))
    N, Dp, Hp, Wp, Cp = xp.shape
    return xp.reshape(N, Dp, Hp * Wp, Cp).astype(jnp.bfloat16)


def basic_block_forward(x_ncdhw, params):
    N, C, D, H, W = x_ncdhw.shape
    Cp = params["w1"].shape[1]
    Wp = W + 2
    Rv = H * Wp
    count = float(N * D * H * W)

    x = jnp.transpose(x_ncdhw, (0, 2, 3, 4, 1))                  # NCDHW -> NDHWC (f32)
    x = jnp.pad(x, [(0, 0)] * 4 + [(0, Cp - C)])                 # lane-pad channels

    # identity residual on the same flattened (h*Wp + w) row grid as the conv outputs
    res_rows = jnp.pad(x, ((0, 0), (0, 0), (0, 0), (0, 2), (0, 0))).reshape(N * D * Rv, Cp)

    # ---- stage 1: conv1 -> bn1(batch stats) -> relu ----
    y1, s1, q1 = conv3x3x3_with_stats(_pad_and_flatten(x), params["w1"], H=H, W=W, Wp=Wp)
    scale1, shift1 = _bn_scale_shift(s1, q1, params["g1"], params["b1"], count)
    out1 = bn_relu(y1.reshape(N * D * Rv, Cp), scale1, shift1, out_dtype=jnp.bfloat16)
    out1 = out1.reshape(N, D, H, Wp, Cp)[:, :, :, :W, :]         # drop the 2 pad columns

    # ---- stage 2: conv2 -> bn2(batch stats) -> + identity -> relu ----
    y2, s2, q2 = conv3x3x3_with_stats(_pad_and_flatten(out1), params["w2"], H=H, W=W, Wp=Wp)
    scale2, shift2 = _bn_scale_shift(s2, q2, params["g2"], params["b2"], count)
    out2 = bn_relu(y2.reshape(N * D * Rv, Cp), scale2, shift2,
                   residual=res_rows, out_dtype=jnp.float32)

    out2 = out2.reshape(N, D, H, Wp, Cp)[:, :, :, :W, :C]
    return jnp.transpose(out2, (0, 4, 1, 2, 3))                  # back to NCDHW


# ----------------------------------------------------------------------------------------------
# Parameters + pure-JAX reference.
# ----------------------------------------------------------------------------------------------
def make_raw_params(key, in_planes, planes):
    k1, k2, k3, k4, k5, k6 = jax.random.split(key, 6)
    w1 = jax.random.normal(k1, (3, 3, 3, in_planes, planes), jnp.float32) / jnp.sqrt(27.0 * in_planes)
    w2 = jax.random.normal(k2, (3, 3, 3, planes, planes), jnp.float32) / jnp.sqrt(27.0 * planes)
    return {
        "w1": w1, "w2": w2,
        "g1": 1.0 + 0.1 * jax.random.normal(k3, (planes,), jnp.float32),
        "b1": 0.1 * jax.random.normal(k4, (planes,), jnp.float32),
        "g2": 1.0 + 0.1 * jax.random.normal(k5, (planes,), jnp.float32),
        "b2": 0.1 * jax.random.normal(k6, (planes,), jnp.float32),
    }


def pack_params(raw):
    def pack_w(w):
        _, _, _, ci, co = w.shape
        ci_p, co_p = _round_up(ci, LANE), _round_up(co, LANE)
        wp = jnp.zeros((27, ci_p, co_p), jnp.float32)
        wp = wp.at[:, :ci, :co].set(w.reshape(27, ci, co))
        return wp.astype(jnp.bfloat16)                           # bf16 MXU operand

    def pack_vec(v):
        cp = _round_up(v.shape[0], LANE)
        return jnp.zeros((cp,), jnp.float32).at[:v.shape[0]].set(v)

    return {
        "w1": pack_w(raw["w1"]), "w2": pack_w(raw["w2"]),
        "g1": pack_vec(raw["g1"]), "b1": pack_vec(raw["b1"]),
        "g2": pack_vec(raw["g2"]), "b2": pack_vec(raw["b2"]),
    }


def reference_forward(x_ncdhw, raw):
    x = jnp.transpose(x_ncdhw, (0, 2, 3, 4, 1))

    def conv(v, w):
        return lax.conv_general_dilated(v, w, (1, 1, 1), [(1, 1)] * 3,
                                        dimension_numbers=("NDHWC", "DHWIO", "NDHWC"))

    def bn(v, g, b):
        mean = jnp.mean(v, axis=(0, 1, 2, 3))
        var = jnp.mean(jnp.square(v - mean), axis=(0, 1, 2, 3))
        return (v - mean) * lax.rsqrt(var + EPS) * g + b

    out = jnp.maximum(bn(conv(x, raw["w1"]), raw["g1"], raw["b1"]), 0.0)
    out = bn(conv(out, raw["w2"]), raw["g2"], raw["b2"]) + x
    return jnp.transpose(jnp.maximum(out, 0.0), (0, 4, 1, 2, 3))


if __name__ == "__main__":
    key = jax.random.PRNGKey(0)
    kx, kp = jax.random.split(key)

    # BasicBlock with in_planes == planes, stride=1, downsample=None (identity residual).
    N, C, D, H, W = 2, 4, 8, 8, 8
    x = jax.random.normal(kx, (N, C, D, H, W), jnp.float32)      # PyTorch NCDHW layout

    raw = make_raw_params(kp, C, C)
    params = pack_params(raw)

    fwd = jax.jit(basic_block_forward)
    out = jax.block_until_ready(fwd(x, params))

    assert out.shape == (N, C, D, H, W)
    assert bool(jnp.all(out >= 0.0))                             # final ReLU
    ref = reference_forward(x, raw)                              # f32 XLA reference
    max_err = float(jnp.max(jnp.abs(out - ref)))
    assert max_err < 0.1, f"mismatch vs reference: max|err|={max_err}"
    print("KERNEL_OK")
</pallas_src>

<mosaic_0001>
module attributes {stable_mosaic.version = 11 : i64} {
  func.func @_conv3d_stats_kernel(%arg0: i32, %arg1: i32, %arg2: memref<1x1x110x128xbf16, #tpu.memory_space<vmem>>, %arg3: memref<1x1x110x128xbf16, #tpu.memory_space<vmem>>, %arg4: memref<1x1x110x128xbf16, #tpu.memory_space<vmem>>, %arg5: memref<27x128x128xbf16, #tpu.memory_space<vmem>>, %arg6: memref<1x1x80x128xf32, #tpu.memory_space<vmem>>, %arg7: memref<1x1x1x128xf32, #tpu.memory_space<vmem>>, %arg8: memref<1x1x1x128xf32, #tpu.memory_space<vmem>>) attributes {dimension_semantics = [#tpu.dimension_semantics<parallel>, #tpu.dimension_semantics<parallel>], iteration_bounds = array<i64: 2, 8>, scalar_prefetch = 0 : i64, scratch_operands = 0 : i64, tpu.core_type = #tpu.core_type<tc>, window_params = [{transform_indices = @transform_0, window_bounds = array<i64: 1, 1, 110, 128>}, {transform_indices = @transform_1, window_bounds = array<i64: 1, 1, 110, 128>}, {transform_indices = @transform_2, window_bounds = array<i64: 1, 1, 110, 128>}, {pipeline_mode = #tpu.pipeline_mode<synchronous>, transform_indices = @transform_3, window_bounds = array<i64: 27, 128, 128>}, {transform_indices = @transform_4, window_bounds = array<i64: 1, 1, 80, 128>}, {transform_indices = @transform_5, window_bounds = array<i64: 1, 1, 1, 128>}, {transform_indices = @transform_6, window_bounds = array<i64: 1, 1, 1, 128>}]} {
    %cst = arith.constant 0.000000e+00 : f32
    %0 = vector.broadcast %cst : f32 to vector<80x128xf32>
    %c0 = arith.constant 0 : index
    %c0_0 = arith.constant 0 : index
    %c0_1 = arith.constant 0 : index
    %c0_2 = arith.constant 0 : index
    %1 = vector.load %arg2[%c0, %c0_0, %c0_1, %c0_2] : memref<1x1x110x128xbf16, #tpu.memory_space<vmem>>, vector<1x1x110x128xbf16>
    %2 = vector.shape_cast %1 : vector<1x1x110x128xbf16> to vector<110x128xbf16>
    %c0_3 = arith.constant 0 : index
    %c0_4 = arith.constant 0 : index
    %c0_5 = arith.constant 0 : index
    %c0_6 = arith.constant 0 : index
    %3 = vector.load %arg3[%c0_3, %c0_4, %c0_5, %c0_6] : memref<1x1x110x128xbf16, #tpu.memory_space<vmem>>, vector<1x1x110x128xbf16>
    %4 = vector.shape_cast %3 : vector<1x1x110x128xbf16> to vector<110x128xbf16>
    %c0_7 = arith.constant 0 : index
    %c0_8 = arith.constant 0 : index
    %c0_9 = arith.constant 0 : index
    %c0_10 = arith.constant 0 : index
    %5 = vector.load %arg4[%c0_7, %c0_8, %c0_9, %c0_10] : memref<1x1x110x128xbf16, #tpu.memory_space<vmem>>, vector<1x1x110x128xbf16>
    %6 = vector.shape_cast %5 : vector<1x1x110x128xbf16> to vector<110x128xbf16>
    %7 = vector.extract_strided_slice %2 {offsets = [0, 0], sizes = [80, 128], strides = [1, 1]} : vector<110x128xbf16> to vector<80x128xbf16>
    %c0_11 = arith.constant 0 : index
    %c0_12 = arith.constant 0 : index
    %c0_13 = arith.constant 0 : index
    %8 = vector.load %arg5[%c0_11, %c0_12, %c0_13] : memref<27x128x128xbf16, #tpu.memory_space<vmem>>, vector<1x128x128xbf16>
    %9 = vector.shape_cast %8 : vector<1x128x128xbf16> to vector<128x128xbf16>
    %cst_14 = arith.constant dense<0.000000e+00> : vector<80x128xf32>
    %10 = tpu.matmul %7, %9, %cst_14 {dimension_numbers = #tpu.dot_dimension_numbers<[1], [0], [0], [1], [0, 0, 1, 1], [], []>} : vector<80x128xbf16>, vector<128x128xbf16>, vector<80x128xf32> -> vector<80x128xf32>
    %11 = arith.addf %0, %10 : vector<80x128xf32>
    %12 = vector.extract_strided_slice %2 {offsets = [1, 0], sizes = [80, 128], strides = [1, 1]} : vector<110x128xbf16> to vector<80x128xbf16>
    %c1 = arith.constant 1 : index
    %c0_15 = arith.constant 0 : index
    %c0_16 = arith.constant 0 : index
    %13 = vector.load %arg5[%c1, %c0_15, %c0_16] : memref<27x128x128xbf16, #tpu.memory_space<vmem>>, vector<1x128x128xbf16>
    %14 = vector.shape_cast %13 : vector<1x128x128xbf16> to vector<128x128xbf16>
    %cst_17 = arith.constant dense<0.000000e+00> : vector<80x128xf32>
    %15 = tpu.matmul %12, %14, %cst_17 {dimension_numbers = #tpu.dot_dimension_numbers<[1], [0], [0], [1], [0, 0, 1, 1], [], []>} : vector<80x128xbf16>, vector<128x128xbf16>, vector<80x128xf32> -> vector<80x128xf32>
    %16 = arith.addf %11, %15 : vector<80x128xf32>
    %17 = vector.extract_strided_slice %2 {offsets = [2, 0], sizes = [80, 128], strides = [1, 1]} : vector<110x128xbf16> to vector<80x128xbf16>
    %c2 = arith.constant 2 : index
    %c0_18 = arith.constant 0 : index
    %c0_19 = arith.constant 0 : index
    %18 = vector.load %arg5[%c2, %c0_18, %c0_19] : memref<27x128x128xbf16, #tpu.memory_space<vmem>>, vector<1x128x128xbf16>
    %19 = vector.shape_cast %18 : vector<1x128x128xbf16> to vector<128x128xbf16>
    %cst_20 = arith.constant dense<0.000000e+00> : vector<80x128xf32>
    %20 = tpu.matmul %17, %19, %cst_20 {dimension_numbers = #tpu.dot_dimension_numbers<[1], [0], [0], [1], [0, 0, 1, 1], [], []>} : vector<80x128xbf16>, vector<128x128xbf16>, vector<80x128xf32> -> vector<80x128xf32>
    %21 = arith.addf %16, %20 : vector<80x128xf32>
    %22 = vector.extract_strided_slice %2 {offsets = [10, 0], sizes = [80, 128], strides = [1, 1]} : vector<110x128xbf16> to vector<80x128xbf16>
    %c3 = arith.constant 3 : index
    %c0_21 = arith.constant 0 : index
    %c0_22 = arith.constant 0 : index
    %23 = vector.load %arg5[%c3, %c0_21, %c0_22] : memref<27x128x128xbf16, #tpu.memory_space<vmem>>, vector<1x128x128xbf16>
    %24 = vector.shape_cast %23 : vector<1x128x128xbf16> to vector<128x128xbf16>
    %cst_23 = arith.constant dense<0.000000e+00> : vector<80x128xf32>
    %25 = tpu.matmul %22, %24, %cst_23 {dimension_numbers = #tpu.dot_dimension_numbers<[1], [0], [0], [1], [0, 0, 1, 1], [], []>} : vector<80x128xbf16>, vector<128x128xbf16>, vector<80x128xf32> -> vector<80x128xf32>
    %26 = arith.addf %21, %25 : vector<80x128xf32>
    %27 = vector.extract_strided_slice %2 {offsets = [11, 0], sizes = [80, 128], strides = [1, 1]} : vector<110x128xbf16> to vector<80x128xbf16>
    %c4 = arith.constant 4 : index
    %c0_24 = arith.constant 0 : index
    %c0_25 = arith.constant 0 : index
    %28 = vector.load %arg5[%c4, %c0_24, %c0_25] : memref<27x128x128xbf16, #tpu.memory_space<vmem>>, vector<1x128x128xbf16>
    %29 = vector.shape_cast %28 : vector<1x128x128xbf16> to vector<128x128xbf16>
    %cst_26 = arith.constant dense<0.000000e+00> : vector<80x128xf32>
    %30 = tpu.matmul %27, %29, %cst_26 {dimension_numbers = #tpu.dot_dimension_numbers<[1], [0], [0], [1], [0, 0, 1, 1], [], []>} : vector<80x128xbf16>, vector<128x128xbf16>, vector<80x128xf32> -> vector<80x128xf32>
    %31 = arith.addf %26, %30 : vector<80x128xf32>
    %32 = vector.extract_strided_slice %2 {offsets = [12, 0], sizes = [80, 128], strides = [1, 1]} : vector<110x128xbf16> to vector<80x128xbf16>
    %c5 = arith.constant 5 : index
    %c0_27 = arith.constant 0 : index
    %c0_28 = arith.constant 0 : index
    %33 = vector.load %arg5[%c5, %c0_27, %c0_28] : memref<27x128x128xbf16, #tpu.memory_space<vmem>>, vector<1x128x128xbf16>
    %34 = vector.shape_cast %33 : vector<1x128x128xbf16> to vector<128x128xbf16>
    %cst_29 = arith.constant dense<0.000000e+00> : vector<80x128xf32>
    %35 = tpu.matmul %32, %34, %cst_29 {dimension_numbers = #tpu.dot_dimension_numbers<[1], [0], [0], [1], [0, 0, 1, 1], [], []>} : vector<80x128xbf16>, vector<128x128xbf16>, vector<80x128xf32> -> vector<80x128xf32>
    %36 = arith.addf %31, %35 : vector<80x128xf32>
    %37 = vector.extract_strided_slice %2 {offsets = [20, 0], sizes = [80, 128], strides = [1, 1]} : vector<110x128xbf16> to vector<80x128xbf16>
    %c6 = arith.constant 6 : index
    %c0_30 = arith.constant 0 : index
    %c0_31 = arith.constant 0 : index
    %38 = vector.load %arg5[%c6, %c0_30, %c0_31] : memref<27x128x128xbf16, #tpu.memory_space<vmem>>, vector<1x128x128xbf16>
    %39 = vector.shape_cast %38 : vector<1x128x128xbf16> to vector<128x128xbf16>
    %cst_32 = arith.constant dense<0.000000e+00> : vector<80x128xf32>
    %40 = tpu.matmul %37, %39, %cst_32 {dimension_numbers = #tpu.dot_dimension_numbers<[1], [0], [0], [1], [0, 0, 1, 1], [], []>} : vector<80x128xbf16>, vector<128x128xbf16>, vector<80x128xf32> -> vector<80x128xf32>
    %41 = arith.addf %36, %40 : vector<80x128xf32>
    %42 = vector.extract_strided_slice %2 {offsets = [21, 0], sizes = [80, 128], strides = [1, 1]} : vector<110x128xbf16> to vector<80x128xbf16>
    %c7 = arith.constant 7 : index
    %c0_33 = arith.constant 0 : index
    %c0_34 = arith.constant 0 : index
    %43 = vector.load %arg5[%c7, %c0_33, %c0_34] : memref<27x128x128xbf16, #tpu.memory_space<vmem>>, vector<1x128x128xbf16>
    %44 = vector.shape_cast %43 : vector<1x128x128xbf16> to vector<128x128xbf16>
    %cst_35 = arith.constant dense<0.000000e+00> : vector<80x128xf32>
    %45 = tpu.matmul %42, %44, %cst_35 {dimension_numbers = #tpu.dot_dimension_numbers<[1], [0], [0], [1], [0, 0, 1, 1], [], []>} : vector<80x128xbf16>, vector<128x128xbf16>, vector<80x128xf32> -> vector<80x128xf32>
    %46 = arith.addf %41, %45 : vector<80x128xf32>
    %47 = vector.extract_strided_slice %2 {offsets = [22, 0], sizes = [80, 128], strides = [1, 1]} : vector<110x128xbf16> to vector<80x128xbf16>
    %c8 = arith.constant 8 : index
    %c0_36 = arith.constant 0 : index
    %c0_37 = arith.constant 0 : index
    %48 = vector.load %arg5[%c8, %c0_36, %c0_37] : memref<27x128x128xbf16, #tpu.memory_space<vmem>>, vector<1x128x128xbf16>
    %49 = vector.shape_cast %48 : vector<1x128x128xbf16> to vector<128x128xbf16>
    %cst_38 = arith.constant dense<0.000000e+00> : vector<80x128xf32>
    %50 = tpu.matmul %47, %49, %cst_38 {dimension_numbers = #tpu.dot_dimension_numbers<[1], [0], [0], [1], [0, 0, 1, 1], [], []>} : vector<80x128xbf16>, vector<128x128xbf16>, vector<80x128xf32> -> vector<80x128xf32>
    %51 = arith.addf %46, %50 : vector<80x128xf32>
    %52 = vector.extract_strided_slice %4 {offsets = [0, 0], sizes = [80, 128], strides = [1, 1]} : vector<110x128xbf16> to vector<80x128xbf16>
    %c9 = arith.constant 9 : index
    %c0_39 = arith.constant 0 : index
    %c0_40 = arith.constant 0 : index
    %53 = vector.load %arg5[%c9, %c0_39, %c0_40] : memref<27x128x128xbf16, #tpu.memory_space<vmem>>, vector<1x128x128xbf16>
    %54 = vector.shape_cast %53 : vector<1x128x128xbf16> to vector<128x128xbf16>
    %cst_41 = arith.constant dense<0.000000e+00> : vector<80x128xf32>
    %55 = tpu.matmul %52, %54, %cst_41 {dimension_numbers = #tpu.dot_dimension_numbers<[1], [0], [0], [1], [0, 0, 1, 1], [], []>} : vector<80x128xbf16>, vector<128x128xbf16>, vector<80x128xf32> -> vector<80x128xf32>
    %56 = arith.addf %51, %55 : vector<80x128xf32>
    %57 = vector.extract_strided_slice %4 {offsets = [1, 0], sizes = [80, 128], strides = [1, 1]} : vector<110x128xbf16> to vector<80x128xbf16>
    %c10 = arith.constant 10 : index
    %c0_42 = arith.constant 0 : index
    %c0_43 = arith.constant 0 : index
    %58 = vector.load %arg5[%c10, %c0_42, %c0_43] : memref<27x128x128xbf16, #tpu.memory_space<vmem>>, vector<1x128x128xbf16>
    %59 = vector.shape_cast %58 : vector<1x128x128xbf16> to vector<128x128xbf16>
    %cst_44 = arith.constant dense<0.000000e+00> : vector<80x128xf32>
    %60 = tpu.matmul %57, %59, %cst_44 {dimension_numbers = #tpu.dot_dimension_numbers<[1], [0], [0], [1], [0, 0, 1, 1], [], []>} : vector<80x128xbf16>, vector<128x128xbf16>, vector<80x128xf32> -> vector<80x128xf32>
    %61 = arith.addf %56, %60 : vector<80x128xf32>
    %62 = vector.extract_strided_slice %4 {offsets = [2, 0], sizes = [80, 128], strides = [1, 1]} : vector<110x128xbf16> to vector<80x128xbf16>
    %c11 = arith.constant 11 : index
    %c0_45 = arith.constant 0 : index
    %c0_46 = arith.constant 0 : index
    %63 = vector.load %arg5[%c11, %c0_45, %c0_46] : memref<27x128x128xbf16, #tpu.memory_space<vmem>>, vector<1x128x128xbf16>
    %64 = vector.shape_cast %63 : vector<1x128x128xbf16> to vector<128x128xbf16>
    %cst_47 = arith.constant dense<0.000000e+00> : vector<80x128xf32>
    %65 = tpu.matmul %62, %64, %cst_47 {dimension_numbers = #tpu.dot_dimension_numbers<[1], [0], [0], [1], [0, 0, 1, 1], [], []>} : vector<80x128xbf16>, vector<128x128xbf16>, vector<80x128xf32> -> vector<80x128xf32>
    %66 = arith.addf %61, %65 : vector<80x128xf32>
    %67 = vector.extract_strided_slice %4 {offsets = [10, 0], sizes = [80, 128], strides = [1, 1]} : vector<110x128xbf16> to vector<80x128xbf16>
    %c12 = arith.constant 12 : index
    %c0_48 = arith.constant 0 : index
    %c0_49 = arith.constant 0 : index
    %68 = vector.load %arg5[%c12, %c0_48, %c0_49] : memref<27x128x128xbf16, #tpu.memory_space<vmem>>, vector<1x128x128xbf16>
    %69 = vector.shape_cast %68 : vector<1x128x128xbf16> to vector<128x128xbf16>
    %cst_50 = arith.constant dense<0.000000e+00> : vector<80x128xf32>
    %70 = tpu.matmul %67, %69, %cst_50 {dimension_numbers = #tpu.dot_dimension_numbers<[1], [0], [0], [1], [0, 0, 1, 1], [], []>} : vector<80x128xbf16>, vector<128x128xbf16>, vector<80x128xf32> -> vector<80x128xf32>
    %71 = arith.addf %66, %70 : vector<80x128xf32>
    %72 = vector.extract_strided_slice %4 {offsets = [11, 0], sizes = [80, 128], strides = [1, 1]} : vector<110x128xbf16> to vector<80x128xbf16>
    %c13 = arith.constant 13 : index
    %c0_51 = arith.constant 0 : index
    %c0_52 = arith.constant 0 : index
    %73 = vector.load %arg5[%c13, %c0_51, %c0_52] : memref<27x128x128xbf16, #tpu.memory_space<vmem>>, vector<1x128x128xbf16>
    %74 = vector.shape_cast %73 : vector<1x128x128xbf16> to vector<128x128xbf16>
    %cst_53 = arith.constant dense<0.000000e+00> : vector<80x128xf32>
    %75 = tpu.matmul %72, %74, %cst_53 {dimension_numbers = #tpu.dot_dimension_numbers<[1], [0], [0], [1], [0, 0, 1, 1], [], []>} : vector<80x128xbf16>, vector<128x128xbf16>, vector<80x128xf32> -> vector<80x128xf32>
    %76 = arith.addf %71, %75 : vector<80x128xf32>
    %77 = vector.extract_strided_slice %4 {offsets = [12, 0], sizes = [80, 128], strides = [1, 1]} : vector<110x128xbf16> to vector<80x128xbf16>
    %c14 = arith.constant 14 : index
    %c0_54 = arith.constant 0 : index
    %c0_55 = arith.constant 0 : index
    %78 = vector.load %arg5[%c14, %c0_54, %c0_55] : memref<27x128x128xbf16, #tpu.memory_space<vmem>>, vector<1x128x128xbf16>
    %79 = vector.shape_cast %78 : vector<1x128x128xbf16> to vector<128x128xbf16>
    %cst_56 = arith.constant dense<0.000000e+00> : vector<80x128xf32>
    %80 = tpu.matmul %77, %79, %cst_56 {dimension_numbers = #tpu.dot_dimension_numbers<[1], [0], [0], [1], [0, 0, 1, 1], [], []>} : vector<80x128xbf16>, vector<128x128xbf16>, vector<80x128xf32> -> vector<80x128xf32>
    %81 = arith.addf %76, %80 : vector<80x128xf32>
    %82 = vector.extract_strided_slice %4 {offsets = [20, 0], sizes = [80, 128], strides = [1, 1]} : vector<110x128xbf16> to vector<80x128xbf16>
    %c15 = arith.constant 15 : index
    %c0_57 = arith.constant 0 : index
    %c0_58 = arith.constant 0 : index
    %83 = vector.load %arg5[%c15, %c0_57, %c0_58] : memref<27x128x128xbf16, #tpu.memory_space<vmem>>, vector<1x128x128xbf16>
    %84 = vector.shape_cast %83 : vector<1x128x128xbf16> to vector<128x128xbf16>
    %cst_59 = arith.constant dense<0.000000e+00> : vector<80x128xf32>
    %85 = tpu.matmul %82, %84, %cst_59 {dimension_numbers = #tpu.dot_dimension_numbers<[1], [0], [0], [1], [0, 0, 1, 1], [], []>} : vector<80x128xbf16>, vector<128x128xbf16>, vector<80x128xf32> -> vector<80x128xf32>
    %86 = arith.addf %81, %85 : vector<80x128xf32>
    %87 = vector.extract_strided_slice %4 {offsets = [21, 0], sizes = [80, 128], strides = [1, 1]} : vector<110x128xbf16> to vector<80x128xbf16>
    %c16 = arith.constant 16 : index
    %c0_60 = arith.constant 0 : index
    %c0_61 = arith.constant 0 : index
    %88 = vector.load %arg5[%c16, %c0_60, %c0_61] : memref<27x128x128xbf16, #tpu.memory_space<vmem>>, vector<1x128x128xbf16>
    %89 = vector.shape_cast %88 : vector<1x128x128xbf16> to vector<128x128xbf16>
    %cst_62 = arith.constant dense<0.000000e+00> : vector<80x128xf32>
    %90 = tpu.matmul %87, %89, %cst_62 {dimension_numbers = #tpu.dot_dimension_numbers<[1], [0], [0], [1], [0, 0, 1, 1], [], []>} : vector<80x128xbf16>, vector<128x128xbf16>, vector<80x128xf32> -> vector<80x128xf32>
    %91 = arith.addf %86, %90 : vector<80x128xf32>
    %92 = vector.extract_strided_slice %4 {offsets = [22, 0], sizes = [80, 128], strides = [1, 1]} : vector<110x128xbf16> to vector<80x128xbf16>
    %c17 = arith.constant 17 : index
    %c0_63 = arith.constant 0 : index
    %c0_64 = arith.constant 0 : index
    %93 = vector.load %arg5[%c17, %c0_63, %c0_64] : memref<27x128x128xbf16, #tpu.memory_space<vmem>>, vector<1x128x128xbf16>
    %94 = vector.shape_cast %93 : vector<1x128x128xbf16> to vector<128x128xbf16>
    %cst_65 = arith.constant dense<0.000000e+00> : vector<80x128xf32>
    %95 = tpu.matmul %92, %94, %cst_65 {dimension_numbers = #tpu.dot_dimension_numbers<[1], [0], [0], [1], [0, 0, 1, 1], [], []>} : vector<80x128xbf16>, vector<128x128xbf16>, vector<80x128xf32> -> vector<80x128xf32>
    %96 = arith.addf %91, %95 : vector<80x128xf32>
    %97 = vector.extract_strided_slice %6 {offsets = [0, 0], sizes = [80, 128], strides = [1, 1]} : vector<110x128xbf16> to vector<80x128xbf16>
    %c18 = arith.constant 18 : index
    %c0_66 = arith.constant 0 : index
    %c0_67 = arith.constant 0 : index
    %98 = vector.load %arg5[%c18, %c0_66, %c0_67] : memref<27x128x128xbf16, #tpu.memory_space<vmem>>, vector<1x128x128xbf16>
    %99 = vector.shape_cast %98 : vector<1x128x128xbf16> to vector<128x128xbf16>
    %cst_68 = arith.constant dense<0.000000e+00> : vector<80x128xf32>
    %100 = tpu.matmul %97, %99, %cst_68 {dimension_numbers = #tpu.dot_dimension_numbers<[1], [0], [0], [1], [0, 0, 1, 1], [], []>} : vector<80x128xbf16>, vector<128x128xbf16>, vector<80x128xf32> -> vector<80x128xf32>
    %101 = arith.addf %96, %100 : vector<80x128xf32>
    %102 = vector.extract_strided_slice %6 {offsets = [1, 0], sizes = [80, 128], strides = [1, 1]} : vector<110x128xbf16> to vector<80x128xbf16>
    %c19 = arith.constant 19 : index
    %c0_69 = arith.constant 0 : index
    %c0_70 = arith.constant 0 : index
    %103 = vector.load %arg5[%c19, %c0_69, %c0_70] : memref<27x128x128xbf16, #tpu.memory_space<vmem>>, vector<1x128x128xbf16>
    %104 = vector.shape_cast %103 : vector<1x128x128xbf16> to vector<128x128xbf16>
    %cst_71 = arith.constant dense<0.000000e+00> : vector<80x128xf32>
    %105 = tpu.matmul %102, %104, %cst_71 {dimension_numbers = #tpu.dot_dimension_numbers<[1], [0], [0], [1], [0, 0, 1, 1], [], []>} : vector<80x128xbf16>, vector<128x128xbf16>, vector<80x128xf32> -> vector<80x128xf32>
    %106 = arith.addf %101, %105 : vector<80x128xf32>
    %107 = vector.extract_strided_slice %6 {offsets = [2, 0], sizes = [80, 128], strides = [1, 1]} : vector<110x128xbf16> to vector<80x128xbf16>
    %c20 = arith.constant 20 : index
    %c0_72 = arith.constant 0 : index
    %c0_73 = arith.constant 0 : index
    %108 = vector.load %arg5[%c20, %c0_72, %c0_73] : memref<27x128x128xbf16, #tpu.memory_space<vmem>>, vector<1x128x128xbf16>
    %109 = vector.shape_cast %108 : vector<1x128x128xbf16> to vector<128x128xbf16>
    %cst_74 = arith.constant dense<0.000000e+00> : vector<80x128xf32>
    %110 = tpu.matmul %107, %109, %cst_74 {dimension_numbers = #tpu.dot_dimension_numbers<[1], [0], [0], [1], [0, 0, 1, 1], [], []>} : vector<80x128xbf16>, vector<128x128xbf16>, vector<80x128xf32> -> vector<80x128xf32>
    %111 = arith.addf %106, %110 : vector<80x128xf32>
    %112 = vector.extract_strided_slice %6 {offsets = [10, 0], sizes = [80, 128], strides = [1, 1]} : vector<110x128xbf16> to vector<80x128xbf16>
    %c21 = arith.constant 21 : index
    %c0_75 = arith.constant 0 : index
    %c0_76 = arith.constant 0 : index
    %113 = vector.load %arg5[%c21, %c0_75, %c0_76] : memref<27x128x128xbf16, #tpu.memory_space<vmem>>, vector<1x128x128xbf16>
    %114 = vector.shape_cast %113 : vector<1x128x128xbf16> to vector<128x128xbf16>
    %cst_77 = arith.constant dense<0.000000e+00> : vector<80x128xf32>
    %115 = tpu.matmul %112, %114, %cst_77 {dimension_numbers = #tpu.dot_dimension_numbers<[1], [0], [0], [1], [0, 0, 1, 1], [], []>} : vector<80x128xbf16>, vector<128x128xbf16>, vector<80x128xf32> -> vector<80x128xf32>
    %116 = arith.addf %111, %115 : vector<80x128xf32>
    %117 = vector.extract_strided_slice %6 {offsets = [11, 0], sizes = [80, 128], strides = [1, 1]} : vector<110x128xbf16> to vector<80x128xbf16>
    %c22 = arith.constant 22 : index
    %c0_78 = arith.constant 0 : index
    %c0_79 = arith.constant 0 : index
    %118 = vector.load %arg5[%c22, %c0_78, %c0_79] : memref<27x128x128xbf16, #tpu.memory_space<vmem>>, vector<1x128x128xbf16>
    %119 = vector.shape_cast %118 : vector<1x128x128xbf16> to vector<128x128xbf16>
    %cst_80 = arith.constant dense<0.000000e+00> : vector<80x128xf32>
    %120 = tpu.matmul %117, %119, %cst_80 {dimension_numbers = #tpu.dot_dimension_numbers<[1], [0], [0], [1], [0, 0, 1, 1], [], []>} : vector<80x128xbf16>, vector<128x128xbf16>, vector<80x128xf32> -> vector<80x128xf32>
    %121 = arith.addf %116, %120 : vector<80x128xf32>
    %122 = vector.extract_strided_slice %6 {offsets = [12, 0], sizes = [80, 128], strides = [1, 1]} : vector<110x128xbf16> to vector<80x128xbf16>
    %c23 = arith.constant 23 : index
    %c0_81 = arith.constant 0 : index
    %c0_82 = arith.constant 0 : index
    %123 = vector.load %arg5[%c23, %c0_81, %c0_82] : memref<27x128x128xbf16, #tpu.memory_space<vmem>>, vector<1x128x128xbf16>
    %124 = vector.shape_cast %123 : vector<1x128x128xbf16> to vector<128x128xbf16>
    %cst_83 = arith.constant dense<0.000000e+00> : vector<80x128xf32>
    %125 = tpu.matmul %122, %124, %cst_83 {dimension_numbers = #tpu.dot_dimension_numbers<[1], [0], [0], [1], [0, 0, 1, 1], [], []>} : vector<80x128xbf16>, vector<128x128xbf16>, vector<80x128xf32> -> vector<80x128xf32>
    %126 = arith.addf %121, %125 : vector<80x128xf32>
    %127 = vector.extract_strided_slice %6 {offsets = [20, 0], sizes = [80, 128], strides = [1, 1]} : vector<110x128xbf16> to vector<80x128xbf16>
    %c24 = arith.constant 24 : index
    %c0_84 = arith.constant 0 : index
    %c0_85 = arith.constant 0 : index
    %128 = vector.load %arg5[%c24, %c0_84, %c0_85] : memref<27x128x128xbf16, #tpu.memory_space<vmem>>, vector<1x128x128xbf16>
    %129 = vector.shape_cast %128 : vector<1x128x128xbf16> to vector<128x128xbf16>
    %cst_86 = arith.constant dense<0.000000e+00> : vector<80x128xf32>
    %130 = tpu.matmul %127, %129, %cst_86 {dimension_numbers = #tpu.dot_dimension_numbers<[1], [0], [0], [1], [0, 0, 1, 1], [], []>} : vector<80x128xbf16>, vector<128x128xbf16>, vector<80x128xf32> -> vector<80x128xf32>
    %131 = arith.addf %126, %130 : vector<80x128xf32>
    %132 = vector.extract_strided_slice %6 {offsets = [21, 0], sizes = [80, 128], strides = [1, 1]} : vector<110x128xbf16> to vector<80x128xbf16>
    %c25 = arith.constant 25 : index
    %c0_87 = arith.constant 0 : index
    %c0_88 = arith.constant 0 : index
    %133 = vector.load %arg5[%c25, %c0_87, %c0_88] : memref<27x128x128xbf16, #tpu.memory_space<vmem>>, vector<1x128x128xbf16>
    %134 = vector.shape_cast %133 : vector<1x128x128xbf16> to vector<128x128xbf16>
    %cst_89 = arith.constant dense<0.000000e+00> : vector<80x128xf32>
    %135 = tpu.matmul %132, %134, %cst_89 {dimension_numbers = #tpu.dot_dimension_numbers<[1], [0], [0], [1], [0, 0, 1, 1], [], []>} : vector<80x128xbf16>, vector<128x128xbf16>, vector<80x128xf32> -> vector<80x128xf32>
    %136 = arith.addf %131, %135 : vector<80x128xf32>
    %137 = vector.extract_strided_slice %6 {offsets = [22, 0], sizes = [80, 128], strides = [1, 1]} : vector<110x128xbf16> to vector<80x128xbf16>
    %c26 = arith.constant 26 : index
    %c0_90 = arith.constant 0 : index
    %c0_91 = arith.constant 0 : index
    %138 = vector.load %arg5[%c26, %c0_90, %c0_91] : memref<27x128x128xbf16, #tpu.memory_space<vmem>>, vector<1x128x128xbf16>
    %139 = vector.shape_cast %138 : vector<1x128x128xbf16> to vector<128x128xbf16>
    %cst_92 = arith.constant dense<0.000000e+00> : vector<80x128xf32>
    %140 = tpu.matmul %137, %139, %cst_92 {dimension_numbers = #tpu.dot_dimension_numbers<[1], [0], [0], [1], [0, 0, 1, 1], [], []>} : vector<80x128xbf16>, vector<128x128xbf16>, vector<80x128xf32> -> vector<80x128xf32>
    %141 = arith.addf %136, %140 : vector<80x128xf32>
    %142 = tpu.iota {dimensions = array<i32: 0>} : vector<80x128xi32>
    %c10_i32 = arith.constant 10 : i32
    %c0_i32 = arith.constant 0 : i32
    %143 = arith.cmpi eq, %c10_i32, %c0_i32 : i32
    %c1_i32 = arith.constant 1 : i32
    %144 = arith.select %143, %c1_i32, %c10_i32 : i32
    %145 = vector.broadcast %144 : i32 to vector<80x128xi32>
    %146 = arith.remsi %142, %145 : vector<80x128xi32>
    %c0_i32_93 = arith.constant 0 : i32
    %147 = vector.broadcast %c0_i32_93 : i32 to vector<80x128xi32>
    %148 = arith.cmpi ne, %146, %147 : vector<80x128xi32>
    %c0_i32_94 = arith.constant 0 : i32
    %149 = vector.broadcast %c0_i32_94 : i32 to vector<80x128xi32>
    %150 = arith.cmpi slt, %146, %149 : vector<80x128xi32>
    %c0_i32_95 = arith.constant 0 : i32
    %151 = arith.cmpi slt, %144, %c0_i32_95 : i32
    %152 = vector.broadcast %151 : i1 to vector<80x128xi1>
    %153 = vector.broadcast %152 : vector<80x128xi1> to vector<80x128xi1>
    %154 = arith.xori %150, %153 : vector<80x128xi1>
    %155 = arith.andi %154, %148 : vector<80x128xi1>
    %156 = vector.broadcast %144 : i32 to vector<80x128xi32>
    %157 = arith.addi %146, %156 : vector<80x128xi32>
    %158 = arith.select %155, %157, %146 : vector<80x128xi1>, vector<80x128xi32>
    %c8_i32 = arith.constant 8 : i32
    %159 = vector.broadcast %c8_i32 : i32 to vector<80x128xi32>
    %160 = arith.cmpi slt, %158, %159 : vector<80x128xi32>
    %cst_96 = arith.constant 0.000000e+00 : f32
    %161 = vector.broadcast %cst_96 : f32 to vector<80x128xf32>
    %162 = arith.select %160, %141, %161 : vector<80x128xi1>, vector<80x128xf32>
    %c0_97 = arith.constant 0 : index
    %c0_98 = arith.constant 0 : index
    %c0_99 = arith.constant 0 : index
    %c0_100 = arith.constant 0 : index
    %163 = vector.load %arg6[%c0_97, %c0_98, %c0_99, %c0_100] : memref<1x1x80x128xf32, #tpu.memory_space<vmem>>, vector<1x1x80x128xf32>
    %164 = vector.shape_cast %163 : vector<1x1x80x128xf32> to vector<80x128xf32>
    %165 = vector.shape_cast %162 : vector<80x128xf32> to vector<1x1x80x128xf32>
    tpu.vector_store %arg6[%c0_97, %c0_98, %c0_99, %c0_100], %165 {strides = array<i32>} : memref<1x1x80x128xf32, #tpu.memory_space<vmem>>, vector<1x1x80x128xf32>,
    %cst_101 = arith.constant dense<0.000000e+00> : vector<128xf32>
    %166 = vector.multi_reduction <add>, %162, %cst_101 [0] : vector<80x128xf32> to vector<128xf32>
    %167 = vector.shape_cast %166 : vector<128xf32> to vector<1x128xf32>
    %c0_102 = arith.constant 0 : index
    %c0_103 = arith.constant 0 : index
    %c0_104 = arith.constant 0 : index
    %c0_105 = arith.constant 0 : index
    %168 = vector.load %arg7[%c0_102, %c0_103, %c0_104, %c0_105] : memref<1x1x1x128xf32, #tpu.memory_space<vmem>>, vector<1x1x1x128xf32>
    %169 = vector.shape_cast %168 : vector<1x1x1x128xf32> to vector<1x128xf32>
    %170 = vector.shape_cast %167 : vector<1x128xf32> to vector<1x1x1x128xf32>
    tpu.vector_store %arg7[%c0_102, %c0_103, %c0_104, %c0_105], %170 {strides = array<i32>} : memref<1x1x1x128xf32, #tpu.memory_space<vmem>>, vector<1x1x1x128xf32>,
    %171 = arith.mulf %162, %162 : vector<80x128xf32>
    %cst_106 = arith.constant dense<0.000000e+00> : vector<128xf32>
    %172 = vector.multi_reduction <add>, %171, %cst_106 [0] : vector<80x128xf32> to vector<128xf32>
    %173 = vector.shape_cast %172 : vector<128xf32> to vector<1x128xf32>
    %c0_107 = arith.constant 0 : index
    %c0_108 = arith.constant 0 : index
    %c0_109 = arith.constant 0 : index
    %c0_110 = arith.constant 0 : index
    %174 = vector.load %arg8[%c0_107, %c0_108, %c0_109, %c0_110] : memref<1x1x1x128xf32, #tpu.memory_space<vmem>>, vector<1x1x1x128xf32>
    %175 = vector.shape_cast %174 : vector<1x1x1x128xf32> to vector<1x128xf32>
    %176 = vector.shape_cast %173 : vector<1x128xf32> to vector<1x1x1x128xf32>
    tpu.vector_store %arg8[%c0_107, %c0_108, %c0_109, %c0_110], %176 {strides = array<i32>} : memref<1x1x1x128xf32, #tpu.memory_space<vmem>>, vector<1x1x1x128xf32>,
    return
  }
  func.func @transform_0(%arg0: i32, %arg1: i32) -> (i32, i32, i32, i32) {
    %c0_i32 = arith.constant 0 : i32
    %0 = arith.addi %arg1, %c0_i32 : i32
    %c0_i32_0 = arith.constant 0 : i32
    %c0_i32_1 = arith.constant 0 : i32
    %c0_i32_2 = arith.constant 0 : i32
    return %arg0, %0, %c0_i32_0, %c0_i32_1 : i32, i32, i32, i32
  }
  func.func @transform_1(%arg0: i32, %arg1: i32) -> (i32, i32, i32, i32) {
    %c1_i32 = arith.constant 1 : i32
    %0 = arith.addi %arg1, %c1_i32 : i32
    %c0_i32 = arith.constant 0 : i32
    %c0_i32_0 = arith.constant 0 : i32
    %c0_i32_1 = arith.constant 0 : i32
    return %arg0, %0, %c0_i32, %c0_i32_0 : i32, i32, i32, i32
  }
  func.func @transform_2(%arg0: i32, %arg1: i32) -> (i32, i32, i32, i32) {
    %c2_i32 = arith.constant 2 : i32
    %0 = arith.addi %arg1, %c2_i32 : i32
    %c0_i32 = arith.constant 0 : i32
    %c0_i32_0 = arith.constant 0 : i32
    %c0_i32_1 = arith.constant 0 : i32
    return %arg0, %0, %c0_i32, %c0_i32_0 : i32, i32, i32, i32
  }
  func.func @transform_3(%arg0: i32, %arg1: i32) -> (i32, i32, i32) {
    %c0_i32 = arith.constant 0 : i32
    %c0_i32_0 = arith.constant 0 : i32
    %c0_i32_1 = arith.constant 0 : i32
    %c0_i32_2 = arith.constant 0 : i32
    return %c0_i32, %c0_i32_0, %c0_i32_1 : i32, i32, i32
  }
  func.func @transform_4(%arg0: i32, %arg1: i32) -> (i32, i32, i32, i32) {
    %c0_i32 = arith.constant 0 : i32
    %c0_i32_0 = arith.constant 0 : i32
    %c0_i32_1 = arith.constant 0 : i32
    return %arg0, %arg1, %c0_i32, %c0_i32_0 : i32, i32, i32, i32
  }
  func.func @transform_5(%arg0: i32, %arg1: i32) -> (i32, i32, i32, i32) {
    %c0_i32 = arith.constant 0 : i32
    %c0_i32_0 = arith.constant 0 : i32
    %c0_i32_1 = arith.constant 0 : i32
    return %arg0, %arg1, %c0_i32, %c0_i32_0 : i32, i32, i32, i32
  }
  func.func @transform_6(%arg0: i32, %arg1: i32) -> (i32, i32, i32, i32) {
    %c0_i32 = arith.constant 0 : i32
    %c0_i32_0 = arith.constant 0 : i32
    %c0_i32_1 = arith.constant 0 : i32
    return %arg0, %arg1, %c0_i32, %c0_i32_0 : i32, i32, i32, i32
  }
}

module attributes {stable_mosaic.version = 11 : i64} {
  func.func @_bn_relu_kernel(%arg0: i32, %arg1: memref<320x128xf32, #tpu.memory_space<vmem>>, %arg2: memref<1x128xf32, #tpu.memory_space<vmem>>, %arg3: memref<1x128xf32, #tpu.memory_space<vmem>>, %arg4: memref<320x128xbf16, #tpu.memory_space<vmem>>) attributes {dimension_semantics = [#tpu.dimension_semantics<parallel>], iteration_bounds = array<i64: 4>, scalar_prefetch = 0 : i64, scratch_operands = 0 : i64, tpu.core_type = #tpu.core_type<tc>, window_params = [{transform_indices = @transform_0, window_bounds = array<i64: 320, 128>}, {pipeline_mode = #tpu.pipeline_mode<synchronous>, transform_indices = @transform_1, window_bounds = array<i64: 1, 128>}, {pipeline_mode = #tpu.pipeline_mode<synchronous>, transform_indices = @transform_2, window_bounds = array<i64: 1, 128>}, {transform_indices = @transform_3, window_bounds = array<i64: 320, 128>}]} {
    %c0 = arith.constant 0 : index
    %c0_0 = arith.constant 0 : index
    %0 = vector.load %arg1[%c0, %c0_0] : memref<320x128xf32, #tpu.memory_space<vmem>>, vector<320x128xf32>
    %c0_1 = arith.constant 0 : index
    %c0_2 = arith.constant 0 : index
    %1 = vector.load %arg2[%c0_1, %c0_2] : memref<1x128xf32, #tpu.memory_space<vmem>>, vector<1x128xf32>
    %2 = vector.broadcast %1 : vector<1x128xf32> to vector<320x128xf32>
    %3 = arith.mulf %0, %2 : vector<320x128xf32>
    %c0_3 = arith.constant 0 : index
    %c0_4 = arith.constant 0 : index
    %4 = vector.load %arg3[%c0_3, %c0_4] : memref<1x128xf32, #tpu.memory_space<vmem>>, vector<1x128xf32>
    %5 = vector.broadcast %4 : vector<1x128xf32> to vector<320x128xf32>
    %6 = arith.addf %3, %5 : vector<320x128xf32>
    %cst = arith.constant 0.000000e+00 : f32
    %7 = vector.broadcast %cst : f32 to vector<320x128xf32>
    %8 = arith.maximumf %6, %7 : vector<320x128xf32>
    %9 = arith.truncf %8 : vector<320x128xf32> to vector<320x128xbf16>
    %c0_5 = arith.constant 0 : index
    %c0_6 = arith.constant 0 : index
    %10 = vector.load %arg4[%c0_5, %c0_6] : memref<320x128xbf16, #tpu.memory_space<vmem>>, vector<320x128xbf16>
    tpu.vector_store %arg4[%c0_5, %c0_6], %9 {strides = array<i32>} : memref<320x128xbf16, #tpu.memory_space<vmem>>, vector<320x128xbf16>,
    return
  }
  func.func @transform_0(%arg0: i32) -> (i32, i32) {
    %c0_i32 = arith.constant 0 : i32
    %c0_i32_0 = arith.constant 0 : i32
    return %arg0, %c0_i32 : i32, i32
  }
  func.func @transform_1(%arg0: i32) -> (i32, i32) {
    %c0_i32 = arith.constant 0 : i32
    %c0_i32_0 = arith.constant 0 : i32
    %c0_i32_1 = arith.constant 0 : i32
    return %c0_i32, %c0_i32_0 : i32, i32
  }
  func.func @transform_2(%arg0: i32) -> (i32, i32) {
    %c0_i32 = arith.constant 0 : i32
    %c0_i32_0 = arith.constant 0 : i32
    %c0_i32_1 = arith.constant 0 : i32
    return %c0_i32, %c0_i32_0 : i32, i32
  }
  func.func @transform_3(%arg0: i32) -> (i32, i32) {
    %c0_i32 = arith.constant 0 : i32
    %c0_i32_0 = arith.constant 0 : i32
    return %arg0, %c0_i32 : i32, i32
  }
}

module attributes {stable_mosaic.version = 11 : i64} {
  func.func @_bn_add_relu_kernel(%arg0: i32, %arg1: memref<320x128xf32, #tpu.memory_space<vmem>>, %arg2: memref<1x128xf32, #tpu.memory_space<vmem>>, %arg3: memref<1x128xf32, #tpu.memory_space<vmem>>, %arg4: memref<320x128xf32, #tpu.memory_space<vmem>>, %arg5: memref<320x128xf32, #tpu.memory_space<vmem>>) attributes {dimension_semantics = [#tpu.dimension_semantics<parallel>], iteration_bounds = array<i64: 4>, scalar_prefetch = 0 : i64, scratch_operands = 0 : i64, tpu.core_type = #tpu.core_type<tc>, window_params = [{transform_indices = @transform_0, window_bounds = array<i64: 320, 128>}, {pipeline_mode = #tpu.pipeline_mode<synchronous>, transform_indices = @transform_1, window_bounds = array<i64: 1, 128>}, {pipeline_mode = #tpu.pipeline_mode<synchronous>, transform_indices = @transform_2, window_bounds = array<i64: 1, 128>}, {transform_indices = @transform_3, window_bounds = array<i64: 320, 128>}, {transform_indices = @transform_4, window_bounds = array<i64: 320, 128>}]} {
    %c0 = arith.constant 0 : index
    %c0_0 = arith.constant 0 : index
    %0 = vector.load %arg1[%c0, %c0_0] : memref<320x128xf32, #tpu.memory_space<vmem>>, vector<320x128xf32>
    %c0_1 = arith.constant 0 : index
    %c0_2 = arith.constant 0 : index
    %1 = vector.load %arg2[%c0_1, %c0_2] : memref<1x128xf32, #tpu.memory_space<vmem>>, vector<1x128xf32>
    %2 = vector.broadcast %1 : vector<1x128xf32> to vector<320x128xf32>
    %3 = arith.mulf %0, %2 : vector<320x128xf32>
    %c0_3 = arith.constant 0 : index
    %c0_4 = arith.constant 0 : index
    %4 = vector.load %arg3[%c0_3, %c0_4] : memref<1x128xf32, #tpu.memory_space<vmem>>, vector<1x128xf32>
    %5 = vector.broadcast %4 : vector<1x128xf32> to vector<320x128xf32>
    %6 = arith.addf %3, %5 : vector<320x128xf32>
    %c0_5 = arith.constant 0 : index
    %c0_6 = arith.constant 0 : index
    %7 = vector.load %arg4[%c0_5, %c0_6] : memref<320x128xf32, #tpu.memory_space<vmem>>, vector<320x128xf32>
    %8 = arith.addf %6, %7 : vector<320x128xf32>
    %cst = arith.constant 0.000000e+00 : f32
    %9 = vector.broadcast %cst : f32 to vector<320x128xf32>
    %10 = arith.maximumf %8, %9 : vector<320x128xf32>
    %c0_7 = arith.constant 0 : index
    %c0_8 = arith.constant 0 : index
    %11 = vector.load %arg5[%c0_7, %c0_8] : memref<320x128xf32, #tpu.memory_space<vmem>>, vector<320x128xf32>
    tpu.vector_store %arg5[%c0_7, %c0_8], %10 {strides = array<i32>} : memref<320x128xf32, #tpu.memory_space<vmem>>, vector<320x128xf32>,
    return
  }
  func.func @transform_0(%arg0: i32) -> (i32, i32) {
    %c0_i32 = arith.constant 0 : i32
    %c0_i32_0 = arith.constant 0 : i32
    return %arg0, %c0_i32 : i32, i32
  }
  func.func @transform_1(%arg0: i32) -> (i32, i32) {
    %c0_i32 = arith.constant 0 : i32
    %c0_i32_0 = arith.constant 0 : i32
    %c0_i32_1 = arith.constant 0 : i32
    return %c0_i32, %c0_i32_0 : i32, i32
  }
  func.func @transform_2(%arg0: i32) -> (i32, i32) {
    %c0_i32 = arith.constant 0 : i32
    %c0_i32_0 = arith.constant 0 : i32
    %c0_i32_1 = arith.constant 0 : i32
    return %c0_i32, %c0_i32_0 : i32, i32
  }
  func.func @transform_3(%arg0: i32) -> (i32, i32) {
    %c0_i32 = arith.constant 0 : i32
    %c0_i32_0 = arith.constant 0 : i32
    return %arg0, %c0_i32 : i32, i32
  }
  func.func @transform_4(%arg0: i32) -> (i32, i32) {
    %c0_i32 = arith.constant 0 : i32
    %c0_i32_0 = arith.constant 0 : i32
    return %arg0, %c0_i32 : i32, i32
  }
}

</mosaic_0001>

<llo_original>
// kernel: basic_block_forward.5
$region0: #{basic_block_forward.5}
  #allocation0 [shape = 'u32[]', space=smem, size = 0x4, offset = 0x4, fixed_abs, tag = 'smem constant byte address 0x4 - core index']
  #allocation1 [shape = 'u32[144,128]{1,0:T(1,128)}', space=vmem, size = 0x12000, scoped, tag = 'internal scratch']
  %s0 = inlined_call_operand.vmem [shape: f32[1280,128], index: 0, kind: input, shape index: {}]
  %s1 = inlined_call_operand.vmem [shape: f32[1,128], index: 1, kind: input, shape index: {}]
  %s2 = inlined_call_operand.vmem [shape: f32[1,128], index: 2, kind: input, shape index: {}]
  %s3 = inlined_call_operand.vmem [shape: bf16[1280,128], index: 3, kind: output, shape index: {}]
  %s4 = sld [smem:[#allocation0]]
  $region45: #{basic_block_forward.5} parent=0
    _
  %s6 = ssub.s32 1, %s4
  %s7 = scalar_select 0, %s6, %s4
  loop: start=0, step=1, limit=6
  $region2: #{basic_block_forward.5} parent=0 // loop_pre_header
    _
  $region3: #{basic_block_forward.5} parent=0 // loop_header
    %s9 = sphi 0, %s13
    %p10 = scmp.ge.s32.totalorder %s9, 6
    %s19 = sphi 0, %s21
    %s22 = sphi 0, %s19
    %s23 = sphi 0, %s22
    %s39 = sphi 0, %s23
    %s43 = sphi 0, %s43
    %s45 = sphi 0, %s43
    %s46 = sphi 0, %s45
    %s60 = sphi 0, %s46
    %s64 = sphi 0, %s64
    %s66 = sphi 0, %s64
    %s67 = sphi 0, %s66
    %s81 = sphi 0, %s67
    %s87 = sphi 0, %s89
    %s90 = sphi 0, %s87
    %s91 = sphi 0, %s90
    %s107 = sphi 0, %s91
  $region4: #{basic_block_forward.5} parent=0 // loop_header_branch
    %12 = sbr.rel (%p10) target = $region8
  $region5: #{basic_block_forward.5} parent=0 // loop_body
    %s14 = ssub.s32 %s9, 1
    %s15 = ssub.s32 %s9, 2
    %s16 = sadd.s32 %s9, 1
    %s17 = ssub.s32 %s9, %s16
    %p18 = scmp.eq.s32.totalorder %s17, 0
    %s20 = sadd.s32 %s19, 1
    %s21 = scalar_select %p18, %s19, %s20
    %p24 = pneg %p18
    %p25 = scmp.eq.s32.totalorder %s9, 3
    %p26 = por %p24, %p25
    %p27 = scmp.ne.s32.totalorder %s19, %s22
    %p28 = scmp.eq.s32.totalorder %s9, 0
    %p29 = por %p27, %p28
    %p30 = scmp.ne.s32.totalorder %s19, %s22
    %p31 = scmp.eq.s32.totalorder %s14, 3
    %p32 = por %p30, %p31
    %p33 = scmp.ne.s32.totalorder %s22, %s23
    %p34 = scmp.eq.s32.totalorder %s14, 0
    %p35 = por %p33, %p34
    %p36 = scmp.ne.s32.totalorder %s22, %s23
    %p37 = scmp.eq.s32.totalorder %s15, 3
    %p38 = por %p36, %p37
    %p40 = scmp.ne.s32.totalorder %s23, %s39
    %p41 = scmp.eq.s32.totalorder %s15, 0
    %p42 = por %p40, %p41
    %s44 = sadd.s32 %s43, 1
    %p47 = scmp.eq.s32.totalorder %s9, 3
    %p48 = scmp.ne.s32.totalorder %s43, %s45
    %p49 = scmp.eq.s32.totalorder %s9, 0
    %p50 = por %p48, %p49
    %p51 = scmp.ne.s32.totalorder %s43, %s45
    %p52 = scmp.eq.s32.totalorder %s14, 3
    %p53 = por %p51, %p52
    %p54 = scmp.ne.s32.totalorder %s45, %s46
    %p55 = scmp.eq.s32.totalorder %s14, 0
    %p56 = por %p54, %p55
    %p57 = scmp.ne.s32.totalorder %s45, %s46
    %p58 = scmp.eq.s32.totalorder %s15, 3
    %p59 = por %p57, %p58
    %p61 = scmp.ne.s32.totalorder %s46, %s60
    %p62 = scmp.eq.s32.totalorder %s15, 0
    %p63 = por %p61, %p62
    %s65 = sadd.s32 %s64, 1
    %p68 = scmp.eq.s32.totalorder %s9, 3
    %p69 = scmp.ne.s32.totalorder %s64, %s66
    %p70 = scmp.eq.s32.totalorder %s9, 0
    %p71 = por %p69, %p70
    %p72 = scmp.ne.s32.totalorder %s64, %s66
    %p73 = scmp.eq.s32.totalorder %s14, 3
    %p74 = por %p72, %p73
    %p75 = scmp.ne.s32.totalorder %s66, %s67
    %p76 = scmp.eq.s32.totalorder %s14, 0
    %p77 = por %p75, %p76
    %p78 = scmp.ne.s32.totalorder %s66, %s67
    %p79 = scmp.eq.s32.totalorder %s15, 3
    %p80 = por %p78, %p79
    %p82 = scmp.ne.s32.totalorder %s67, %s81
    %p83 = scmp.eq.s32.totalorder %s15, 0
    %p84 = por %p82, %p83
    %s85 = ssub.s32 %s9, %s16
    %p86 = scmp.eq.s32.totalorder %s85, 0
    %s88 = sadd.s32 %s87, 1
    %s89 = scalar_select %p86, %s87, %s88
    %p92 = pneg %p86
    %p93 = scmp.eq.s32.totalorder %s9, 3
    %p94 = por %p92, %p93
    %p95 = scmp.ne.s32.totalorder %s87, %s90
    %p96 = scmp.eq.s32.totalorder %s9, 0
    %p97 = por %p95, %p96
    %p98 = scmp.ne.s32.totalorder %s87, %s90
    %p99 = scmp.eq.s32.totalorder %s14, 3
    %p100 = por %p98, %p99
    %p101 = scmp.ne.s32.totalorder %s90, %s91
    %p102 = scmp.eq.s32.totalorder %s14, 0
    %p103 = por %p101, %p102
    %p104 = scmp.ne.s32.totalorder %s90, %s91
    %p105 = scmp.eq.s32.totalorder %s15, 3
    %p106 = por %p104, %p105
    %p108 = scmp.ne.s32.totalorder %s91, %s107
    %p109 = scmp.eq.s32.totalorder %s15, 0
    %p110 = por %p108, %p109
    %p111 = scmp.le.s32.totalorder 1, %s9
    %p112 = scmp.lt.s32.totalorder %s9, 5
    %p113 = pnand %p111, %p112
    %p114 = pneg %p113
    // Predicated region
    $region9: #{basic_block_forward.5} parent=5 // pred_check
      _
    $region10: #{basic_block_forward.5} parent=5 // pred_check_branch
      %116 = sbr.rel (%p113) target = $region12
    $region11: #{basic_block_forward.5} parent=5 // pred_region
      %s117 = ssub.s32 %s9, 1
      // Predicated region
      $region13: #{basic_block_forward.5} parent=11 // pred_check
        %p118 = pneg %p56
      $region14: #{basic_block_forward.5} parent=11 // pred_check_branch
        %120 = sbr.rel (%p118) target = $region16
      $region15: #{basic_block_forward.5} parent=11 // pred_region
        _
      $region16: #{basic_block_forward.5} parent=11 // pred_fallthru
        _
      // Predicated region
      $region17: #{basic_block_forward.5} parent=11 // pred_check
        %p121 = pneg %p77
      $region18: #{basic_block_forward.5} parent=11 // pred_check_branch
        %123 = sbr.rel (%p121) target = $region20
      $region19: #{basic_block_forward.5} parent=11 // pred_region
        _
      $region20: #{basic_block_forward.5} parent=11 // pred_fallthru
        _
    $region12: #{basic_block_forward.5} parent=5 // pred_fallthru
      _
    %p124 = scmp.lt.s32.totalorder %s9, 4
    // Predicated region
    $region21: #{basic_block_forward.5} parent=5 // pred_check
      %p125 = pneg %p124
    $region22: #{basic_block_forward.5} parent=5 // pred_check_branch
      %127 = sbr.rel (%p125) target = $region24
    $region23: #{basic_block_forward.5} parent=5 // pred_region
      // Predicated region
      $region25: #{basic_block_forward.5} parent=23 // pred_check
        %p128 = pneg %p29
      $region26: #{basic_block_forward.5} parent=23 // pred_check_branch
        %130 = sbr.rel (%p128) target = $region28
      $region27: #{basic_block_forward.5} parent=23 // pred_region
        %s131 = smul.u32 40, %s9
        %p132 = scmp.lt.s32.totalorder %s131, 159
        %s133 = scalar_select %p132, %s131, 159
        %s134 = smul.addr %s133, 8
        %s135 = scalar_lea.vmem %s0, %s134
        %s136 = smul.u32 40, %s9
      $region28: #{basic_block_forward.5} parent=23 // pred_fallthru
        _
    $region24: #{basic_block_forward.5} parent=5 // pred_fallthru
      _
    %p137 = scmp.le.s32.totalorder 1, %s9
    %p138 = scmp.lt.s32.totalorder %s9, 5
    %p139 = pnand %p137, %p138
    %p140 = pneg %p139
    // Predicated region
    $region29: #{basic_block_forward.5} parent=5 // pred_check
      _
    $region30: #{basic_block_forward.5} parent=5 // pred_check_branch
      %142 = sbr.rel (%p139) target = $region32
    $region31: #{basic_block_forward.5} parent=5 // pred_region
      %s143 = ssub.s32 %s9, 1
      %s144 = smul.u32 40, %s14
      %p145 = scmp.lt.s32.totalorder %s144, 159
      %s146 = scalar_select %p145, %s144, 159
      %s147 = smul.addr %s146, 8
      %s148 = scalar_lea.vmem %s0, %s147
      %p149 = pneg %p35
      %p150 = pneg %p32
      %p151 = pneg %p56
      %p152 = pneg %p53
      %p153 = pneg %p77
      %p154 = pneg %p74
      %p155 = pneg %p103
      %p156 = pneg %p100
      %s157 = smul.u32 40, %s14
      %p158 = scmp.lt.s32.totalorder %s157, 159
      %s159 = scalar_select %p158, %s157, 159
      %s160 = smul.addr %s159, 4
      %s161 = scalar_lea.vmem %s3, %s160
      %s162 = smul.u32 40, %s14
      %p163 = scmp.lt.s32.totalorder %s162, 159
      %s164 = scalar_select %p163, %s162, 159
      %s165 = smul.addr %s164, 8
      %s166 = scalar_lea.vmem %s0, %s165
      %s167 = smul.u32 40, %s14
      %s168 = smul.u32 40, %s14
      %p169 = scmp.lt.s32.totalorder %s168, 159
      %s170 = scalar_select %p169, %s168, 159
      %s171 = smul.addr %s170, 4
      %s172 = scalar_lea.vmem %s3, %s171
      %s173 = smul.u32 40, %s14
      %v174 = vld [vmem:[%s166] sm:$0xff]
      %v175 = vld [vmem:[%s166 + $0x8] sm:$0xff]
      %v176 = vld [vmem:[%s166 + $0x10] sm:$0xff]
      %v177 = vld [vmem:[%s166 + $0x18] sm:$0xff]
      %v178 = vld [vmem:[%s166 + $0x20] sm:$0xff]
      %v179 = vld [vmem:[%s166 + $0x28] sm:$0xff]
      %v180 = vld [vmem:[%s166 + $0x30] sm:$0xff]
      %v181 = vld [vmem:[%s166 + $0x38] sm:$0xff]
      %v182 = vld [vmem:[%s166 + $0x40] sm:$0xff]
      %v183 = vld [vmem:[%s166 + $0x48] sm:$0xff]
      %v184 = vld [vmem:[%s166 + $0x50] sm:$0xff]
      %v185 = vld [vmem:[%s166 + $0x58] sm:$0xff]
      %v186 = vld [vmem:[%s166 + $0x60] sm:$0xff]
      %v187 = vld [vmem:[%s166 + $0x68] sm:$0xff]
      %v188 = vld [vmem:[%s166 + $0x70] sm:$0xff]
      %v189 = vld [vmem:[%s166 + $0x78] sm:$0xff]
      %v190 = vld [vmem:[%s166 + $0x80] sm:$0xff]
      %v191 = vld [vmem:[%s166 + $0x88] sm:$0xff]
      %v192 = vld [vmem:[%s166 + $0x90] sm:$0xff]
      %v193 = vld [vmem:[%s166 + $0x98] sm:$0xff]
      %v194 = vld [vmem:[%s166 + $0xa0] sm:$0xff]
      %v195 = vld [vmem:[%s166 + $0xa8] sm:$0xff]
      %v196 = vld [vmem:[%s166 + $0xb0] sm:$0xff]
      %v197 = vld [vmem:[%s166 + $0xb8] sm:$0xff]
      %v198 = vld [vmem:[%s166 + $0xc0] sm:$0xff]
      %v199 = vld [vmem:[%s166 + $0xc8] sm:$0xff]
      %v200 = vld [vmem:[%s166 + $0xd0] sm:$0xff]
      %v201 = vld [vmem:[%s166 + $0xd8] sm:$0xff]
      %v202 = vld [vmem:[%s166 + $0xe0] sm:$0xff]
      %v203 = vld [vmem:[%s166 + $0xe8] sm:$0xff]
      %v204 = vld [vmem:[%s166 + $0xf0] sm:$0xff]
      %v205 = vld [vmem:[%s166 + $0xf8] sm:$0xff]
      %v206 = vld [vmem:[%s166 + $0x100] sm:$0xff]
      %v207 = vld [vmem:[%s166 + $0x108] sm:$0xff]
      %v208 = vld [vmem:[%s166 + $0x110] sm:$0xff]
      %v209 = vld [vmem:[%s166 + $0x118] sm:$0xff]
      %v210 = vld [vmem:[%s166 + $0x120] sm:$0xff]
      %v211 = vld [vmem:[%s166 + $0x128] sm:$0xff]
      %v212 = vld [vmem:[%s166 + $0x130] sm:$0xff]
      %v213 = vld [vmem:[%s166 + $0x138] sm:$0xff]
      %v214 = vld [vmem:[%s1] sm:$0x1]
      %v216 = vlaneseq
      %v217 = vshrl.u32 %v216, 7
      %v218 = vsub.s32 0, %v217
      %v219 = vrot.slane %v214, %v218
      %v221 = vmul.f32 %v174, %v219
      %v222 = vmul.f32 %v175, %v219
      %v223 = vmul.f32 %v176, %v219
      %v224 = vmul.f32 %v177, %v219
      %v225 = vmul.f32 %v178, %v219
      %v226 = vmul.f32 %v179, %v219
      %v227 = vmul.f32 %v180, %v219
      %v228 = vmul.f32 %v181, %v219
      %v229 = vmul.f32 %v182, %v219
      %v230 = vmul.f32 %v183, %v219
      %v231 = vmul.f32 %v184, %v219
      %v232 = vmul.f32 %v185, %v219
      %v233 = vmul.f32 %v186, %v219
      %v234 = vmul.f32 %v187, %v219
      %v235 = vmul.f32 %v188, %v219
      %v236 = vmul.f32 %v189, %v219
      %v237 = vmul.f32 %v190, %v219
      %v238 = vmul.f32 %v191, %v219
      %v239 = vmul.f32 %v192, %v219
      %v240 = vmul.f32 %v193, %v219
      %v241 = vmul.f32 %v194, %v219
      %v242 = vmul.f32 %v195, %v219
      %v243 = vmul.f32 %v196, %v219
      %v244 = vmul.f32 %v197, %v219
      %v245 = vmul.f32 %v198, %v219
      %v246 = vmul.f32 %v199, %v219
      %v247 = vmul.f32 %v200, %v219
      %v248 = vmul.f32 %v201, %v219
      %v249 = vmul.f32 %v202, %v219
      %v250 = vmul.f32 %v203, %v219
      %v251 = vmul.f32 %v204, %v219
      %v252 = vmul.f32 %v205, %v219
      %v253 = vmul.f32 %v206, %v219
      %v254 = vmul.f32 %v207, %v219
      %v255 = vmul.f32 %v208, %v219
      %v256 = vmul.f32 %v209, %v219
      %v257 = vmul.f32 %v210, %v219
      %v258 = vmul.f32 %v211, %v219
      %v259 = vmul.f32 %v212, %v219
      %v260 = vmul.f32 %v213, %v219
      %v261 = vld [vmem:[%s2] sm:$0x1]
      %v263 = vlaneseq
      %v264 = vshrl.u32 %v263, 7
      %v265 = vsub.s32 0, %v264
      %v266 = vrot.slane %v261, %v265
      %v268 = vadd.f32 %v221, %v266
      %v269 = vadd.f32 %v222, %v266
      %v270 = vadd.f32 %v223, %v266
      %v271 = vadd.f32 %v224, %v266
      %v272 = vadd.f32 %v225, %v266
      %v273 = vadd.f32 %v226, %v266
      %v274 = vadd.f32 %v227, %v266
      %v275 = vadd.f32 %v228, %v266
      %v276 = vadd.f32 %v229, %v266
      %v277 = vadd.f32 %v230, %v266
      %v278 = vadd.f32 %v231, %v266
      %v279 = vadd.f32 %v232, %v266
      %v280 = vadd.f32 %v233, %v266
      %v281 = vadd.f32 %v234, %v266
      %v282 = vadd.f32 %v235, %v266
      %v283 = vadd.f32 %v236, %v266
      %v284 = vadd.f32 %v237, %v266
      %v285 = vadd.f32 %v238, %v266
      %v286 = vadd.f32 %v239, %v266
      %v287 = vadd.f32 %v240, %v266
      %v288 = vadd.f32 %v241, %v266
      %v289 = vadd.f32 %v242, %v266
      %v290 = vadd.f32 %v243, %v266
      %v291 = vadd.f32 %v244, %v266
      %v292 = vadd.f32 %v245, %v266
      %v293 = vadd.f32 %v246, %v266
      %v294 = vadd.f32 %v247, %v266
      %v295 = vadd.f32 %v248, %v266
      %v296 = vadd.f32 %v249, %v266
      %v297 = vadd.f32 %v250, %v266
      %v298 = vadd.f32 %v251, %v266
      %v299 = vadd.f32 %v252, %v266
      %v300 = vadd.f32 %v253, %v266
      %v301 = vadd.f32 %v254, %v266
      %v302 = vadd.f32 %v255, %v266
      %v303 = vadd.f32 %v256, %v266
      %v304 = vadd.f32 %v257, %v266
      %v305 = vadd.f32 %v258, %v266
      %v306 = vadd.f32 %v259, %v266
      %v307 = vadd.f32 %v260, %v266
      %v308 = vmax.f32 %v268, 0.0
      %v309 = vmax.f32 %v269, 0.0
      %v310 = vmax.f32 %v270, 0.0
      %v311 = vmax.f32 %v271, 0.0
      %v312 = vmax.f32 %v272, 0.0
      %v313 = vmax.f32 %v273, 0.0
      %v314 = vmax.f32 %v274, 0.0
      %v315 = vmax.f32 %v275, 0.0
      %v316 = vmax.f32 %v276, 0.0
      %v317 = vmax.f32 %v277, 0.0
      %v318 = vmax.f32 %v278, 0.0
      %v319 = vmax.f32 %v279, 0.0
      %v320 = vmax.f32 %v280, 0.0
      %v321 = vmax.f32 %v281, 0.0
      %v322 = vmax.f32 %v282, 0.0
      %v323 = vmax.f32 %v283, 0.0
      %v324 = vmax.f32 %v284, 0.0
      %v325 = vmax.f32 %v285, 0.0
      %v326 = vmax.f32 %v286, 0.0
      %v327 = vmax.f32 %v287, 0.0
      %v328 = vmax.f32 %v288, 0.0
      %v329 = vmax.f32 %v289, 0.0
      %v330 = vmax.f32 %v290, 0.0
      %v331 = vmax.f32 %v291, 0.0
      %v332 = vmax.f32 %v292, 0.0
      %v333 = vmax.f32 %v293, 0.0
      %v334 = vmax.f32 %v294, 0.0
      %v335 = vmax.f32 %v295, 0.0
      %v336 = vmax.f32 %v296, 0.0
      %v337 = vmax.f32 %v297, 0.0
      %v338 = vmax.f32 %v298, 0.0
      %v339 = vmax.f32 %v299, 0.0
      %v340 = vmax.f32 %v300, 0.0
      %v341 = vmax.f32 %v301, 0.0
      %v342 = vmax.f32 %v302, 0.0
      %v343 = vmax.f32 %v303, 0.0
      %v344 = vmax.f32 %v304, 0.0
      %v345 = vmax.f32 %v305, 0.0
      %v346 = vmax.f32 %v306, 0.0
      %v347 = vmax.f32 %v307, 0.0
      %v348 = vpack.c.bf16 %v309, %v308
      %v349 = vpack.c.bf16 %v311, %v310
      %v350 = vpack.c.bf16 %v313, %v312
      %v351 = vpack.c.bf16 %v315, %v314
      %v352 = vpack.c.bf16 %v317, %v316
      %v353 = vpack.c.bf16 %v319, %v318
      %v354 = vpack.c.bf16 %v321, %v320
      %v355 = vpack.c.bf16 %v323, %v322
      %v356 = vpack.c.bf16 %v325, %v324
      %v357 = vpack.c.bf16 %v327, %v326
      %v358 = vpack.c.bf16 %v329, %v328
      %v359 = vpack.c.bf16 %v331, %v330
      %v360 = vpack.c.bf16 %v333, %v332
      %v361 = vpack.c.bf16 %v335, %v334
      %v362 = vpack.c.bf16 %v337, %v336
      %v363 = vpack.c.bf16 %v339, %v338
      %v364 = vpack.c.bf16 %v341, %v340
      %v365 = vpack.c.bf16 %v343, %v342
      %v366 = vpack.c.bf16 %v345, %v344
      %v367 = vpack.c.bf16 %v347, %v346
      %v388 = vunpack.c.l.b16 %v348
      %v389 = vunpack.c.h.b16 %v348
      %v390 = vunpack.c.l.b16 %v349
      %v391 = vunpack.c.h.b16 %v349
      %v392 = vunpack.c.l.b16 %v350
      %v393 = vunpack.c.h.b16 %v350
      %v394 = vunpack.c.l.b16 %v351
      %v395 = vunpack.c.h.b16 %v351
      %v396 = vunpack.c.l.b16 %v352
      %v397 = vunpack.c.h.b16 %v352
      %v398 = vunpack.c.l.b16 %v353
      %v399 = vunpack.c.h.b16 %v353
      %v400 = vunpack.c.l.b16 %v354
      %v401 = vunpack.c.h.b16 %v354
      %v402 = vunpack.c.l.b16 %v355
      %v403 = vunpack.c.h.b16 %v355
      %v404 = vunpack.c.l.b16 %v356
      %v405 = vunpack.c.h.b16 %v356
      %v406 = vunpack.c.l.b16 %v357
      %v407 = vunpack.c.h.b16 %v357
      %v408 = vunpack.c.l.b16 %v358
      %v409 = vunpack.c.h.b16 %v358
      %v410 = vunpack.c.l.b16 %v359
      %v411 = vunpack.c.h.b16 %v359
      %v412 = vunpack.c.l.b16 %v360
      %v413 = vunpack.c.h.b16 %v360
      %v414 = vunpack.c.l.b16 %v361
      %v415 = vunpack.c.h.b16 %v361
      %v416 = vunpack.c.l.b16 %v362
      %v417 = vunpack.c.h.b16 %v362
      %v418 = vunpack.c.l.b16 %v363
      %v419 = vunpack.c.h.b16 %v363
      %v420 = vunpack.c.l.b16 %v364
      %v421 = vunpack.c.h.b16 %v364
      %v422 = vunpack.c.l.b16 %v365
      %v423 = vunpack.c.h.b16 %v365
      %v424 = vunpack.c.l.b16 %v366
      %v425 = vunpack.c.h.b16 %v366
      %v426 = vunpack.c.l.b16 %v367
      %v427 = vunpack.c.h.b16 %v367
      %v428 = vpack.c.b16 %v388, %v388
      %v429 = vpack.c.b16 %v389, %v389
      %v430 = vpack.c.b16 %v390, %v390
      %v431 = vpack.c.b16 %v391, %v391
      %v432 = vpack.c.b16 %v392, %v392
      %v433 = vpack.c.b16 %v393, %v393
      %v434 = vpack.c.b16 %v394, %v394
      %v435 = vpack.c.b16 %v395, %v395
      %v436 = vpack.c.b16 %v396, %v396
      %v437 = vpack.c.b16 %v397, %v397
      %v438 = vpack.c.b16 %v398, %v398
      %v439 = vpack.c.b16 %v399, %v399
      %v440 = vpack.c.b16 %v400, %v400
      %v441 = vpack.c.b16 %v401, %v401
      %v442 = vpack.c.b16 %v402, %v402
      %v443 = vpack.c.b16 %v403, %v403
      %v444 = vpack.c.b16 %v404, %v404
      %v445 = vpack.c.b16 %v405, %v405
      %v446 = vpack.c.b16 %v406, %v406
      %v447 = vpack.c.b16 %v407, %v407
      %v448 = vpack.c.b16 %v408, %v408
      %v449 = vpack.c.b16 %v409, %v409
      %v450 = vpack.c.b16 %v410, %v410
      %v451 = vpack.c.b16 %v411, %v411
      %v452 = vpack.c.b16 %v412, %v412
      %v453 = vpack.c.b16 %v413, %v413
      %v454 = vpack.c.b16 %v414, %v414
      %v455 = vpack.c.b16 %v415, %v415
      %v456 = vpack.c.b16 %v416, %v416
      %v457 = vpack.c.b16 %v417, %v417
      %v458 = vpack.c.b16 %v418, %v418
      %v459 = vpack.c.b16 %v419, %v419
      %v460 = vpack.c.b16 %v420, %v420
      %v461 = vpack.c.b16 %v421, %v421
      %v462 = vpack.c.b16 %v422, %v422
      %v463 = vpack.c.b16 %v423, %v423
      %v464 = vpack.c.b16 %v424, %v424
      %v465 = vpack.c.b16 %v425, %v425
      %v466 = vpack.c.b16 %v426, %v426
      %v467 = vpack.c.b16 %v427, %v427
      %508 = vst [vmem:[%s172] sm:$0xf] %v428
      %509 = vst [vmem:[%s172 + $0x4] sm:$0xf] %v429
      %510 = vst [vmem:[%s172 + $0x8] sm:$0xf] %v430
      %511 = vst [vmem:[%s172 + $0xc] sm:$0xf] %v431
      %512 = vst [vmem:[%s172 + $0x10] sm:$0xf] %v432
      %513 = vst [vmem:[%s172 + $0x14] sm:$0xf] %v433
      %514 = vst [vmem:[%s172 + $0x18] sm:$0xf] %v434
      %515 = vst [vmem:[%s172 + $0x1c] sm:$0xf] %v435
      %516 = vst [vmem:[%s172 + $0x20] sm:$0xf] %v436
      %517 = vst [vmem:[%s172 + $0x24] sm:$0xf] %v437
      %518 = vst [vmem:[%s172 + $0x28] sm:$0xf] %v438
      %519 = vst [vmem:[%s172 + $0x2c] sm:$0xf] %v439
      %520 = vst [vmem:[%s172 + $0x30] sm:$0xf] %v440
      %521 = vst [vmem:[%s172 + $0x34] sm:$0xf] %v441
      %522 = vst [vmem:[%s172 + $0x38] sm:$0xf] %v442
      %523 = vst [vmem:[%s172 + $0x3c] sm:$0xf] %v443
      %524 = vst [vmem:[%s172 + $0x40] sm:$0xf] %v444
      %525 = vst [vmem:[%s172 + $0x44] sm:$0xf] %v445
      %526 = vst [vmem:[%s172 + $0x48] sm:$0xf] %v446
      %527 = vst [vmem:[%s172 + $0x4c] sm:$0xf] %v447
      %528 = vst [vmem:[%s172 + $0x50] sm:$0xf] %v448
      %529 = vst [vmem:[%s172 + $0x54] sm:$0xf] %v449
      %530 = vst [vmem:[%s172 + $0x58] sm:$0xf] %v450
      %531 = vst [vmem:[%s172 + $0x5c] sm:$0xf] %v451
      %532 = vst [vmem:[%s172 + $0x60] sm:$0xf] %v452
      %533 = vst [vmem:[%s172 + $0x64] sm:$0xf] %v453
      %534 = vst [vmem:[%s172 + $0x68] sm:$0xf] %v454
      %535 = vst [vmem:[%s172 + $0x6c] sm:$0xf] %v455
      %536 = vst [vmem:[%s172 + $0x70] sm:$0xf] %v456
      %537 = vst [vmem:[%s172 + $0x74] sm:$0xf] %v457
      %538 = vst [vmem:[%s172 + $0x78] sm:$0xf] %v458
      %539 = vst [vmem:[%s172 + $0x7c] sm:$0xf] %v459
      %540 = vst [vmem:[%s172 + $0x80] sm:$0xf] %v460
      %541 = vst [vmem:[%s172 + $0x84] sm:$0xf] %v461
      %542 = vst [vmem:[%s172 + $0x88] sm:$0xf] %v462
      %543 = vst [vmem:[%s172 + $0x8c] sm:$0xf] %v463
      %544 = vst [vmem:[%s172 + $0x90] sm:$0xf] %v464
      %545 = vst [vmem:[%s172 + $0x94] sm:$0xf] %v465
      %546 = vst [vmem:[%s172 + $0x98] sm:$0xf] %v466
      %547 = vst [vmem:[%s172 + $0x9c] sm:$0xf] %v467
      %s548 = smul.u32 40, %s14
      %p549 = scmp.lt.s32.totalorder %s548, 159
      %s550 = scalar_select %p549, %s548, 159
      %s551 = smul.addr %s550, 4
      %s552 = scalar_lea.vmem %s3, %s551
      // Predicated region
      $region33: #{basic_block_forward.5} parent=31 // pred_check
        %p553 = pneg %p100
      $region34: #{basic_block_forward.5} parent=31 // pred_check_branch
        %555 = sbr.rel (%p553) target = $region36
      $region35: #{basic_block_forward.5} parent=31 // pred_region
        %s556 = smul.u32 40, %s14
      $region36: #{basic_block_forward.5} parent=31 // pred_fallthru
        _
    $region32: #{basic_block_forward.5} parent=5 // pred_fallthru
      _
    %p557 = scmp.le.s32.totalorder 2, %s9
    // Predicated region
    $region37: #{basic_block_forward.5} parent=5 // pred_check
      %p558 = pneg %p557
    $region38: #{basic_block_forward.5} parent=5 // pred_check_branch
      %560 = sbr.rel (%p558) target = $region40
    $region39: #{basic_block_forward.5} parent=5 // pred_region
      %s561 = ssub.s32 %s9, 2
      // Predicated region
      $region41: #{basic_block_forward.5} parent=39 // pred_check
        %p562 = pneg %p106
      $region42: #{basic_block_forward.5} parent=39 // pred_check_branch
        %564 = sbr.rel (%p562) target = $region44
      $region43: #{basic_block_forward.5} parent=39 // pred_region
        %s565 = smul.u32 40, %s15
        %p566 = scmp.lt.s32.totalorder %s565, 159
        %s567 = scalar_select %p566, %s565, 159
        %s568 = smul.addr %s567, 4
        %s569 = scalar_lea.vmem %s3, %s568
      $region44: #{basic_block_forward.5} parent=39 // pred_fallthru
        _
    $region40: #{basic_block_forward.5} parent=5 // pred_fallthru
      _
  $region6: #{basic_block_forward.5} parent=0 // loop_footer
    %s13 = sadd.s32 1, %s9
  $region7: #{basic_block_forward.5} parent=0 // loop_footer_branch
    %8 = sbr.rel target = $region3
  $region8: #{basic_block_forward.5} parent=0 // loop_exit
    _

// kernel: basic_block_forward.4
$region0: #{basic_block_forward.4}
  #allocation0 [shape = 'u32[]', space=smem, size = 0x4, offset = 0x4, fixed_abs, tag = 'smem constant byte address 0x4 - core index']
  #allocation1 [shape = 'u32[144,128]{1,0:T(1,128)}', space=vmem, size = 0x12000, scoped, tag = 'internal scratch']
  %s0 = inlined_call_operand.vmem [shape: bf16[2,10,110,128], index: 0, kind: input, shape index: {}, may-alias: {0,1,2}]
  %s1 = inlined_call_operand.vmem [shape: bf16[2,10,110,128], index: 1, kind: input, shape index: {}, may-alias: {0,1,2}]
  %s2 = inlined_call_operand.vmem [shape: bf16[2,10,110,128], index: 2, kind: input, shape index: {}, may-alias: {0,1,2}]
  %s3 = inlined_call_operand.vmem [shape: bf16[27,128,128], index: 3, kind: input, shape index: {}]
  %s4 = inlined_call_operand.vmem [shape: f32[2,8,80,128], index: 4, kind: output, shape index: {0}]
  %s5 = inlined_call_operand.vmem [shape: f32[2,8,1,128], index: 5, kind: output, shape index: {1}]
  %s6 = inlined_call_operand.vmem [shape: f32[2,8,1,128], index: 6, kind: output, shape index: {2}]
  %7 = xla_tuple %s4, %s5, %s6
  %s8 = sld [smem:[#allocation0]]
  $region65: #{basic_block_forward.4} parent=0
    _
  %s10 = ssub.s32 1, %s8
  %s11 = scalar_select 0, %s10, %s8
  loop: start=0, step=1, limit=18
  $region2: #{basic_block_forward.4} parent=0 // loop_pre_header
    _
  $region3: #{basic_block_forward.4} parent=0 // loop_header
    %s13 = sphi 0, %s17
    %p14 = scmp.ge.s32.totalorder %s13, 18
    %s20 = sphi 0, %s32
    %s21 = sphi 0, %s28
    %s22 = sphi 0, %s20
    %s23 = sphi 0, %s21
    %s24 = sphi 0, %s22
    %s25 = sphi 0, %s23
    %s37 = sphi 0, %s39
    %s40 = sphi 0, %s37
    %s41 = sphi 0, %s40
    %s57 = sphi 0, %s41
    %s67 = sphi 0, %s69
    %s70 = sphi 0, %s67
    %s71 = sphi 0, %s70
    %s87 = sphi 0, %s71
    %s97 = sphi 0, %s99
    %s100 = sphi 0, %s97
    %s101 = sphi 0, %s100
    %s117 = sphi 0, %s101
    %s121 = sphi 0, %s121
    %s123 = sphi 0, %s121
    %s124 = sphi 0, %s123
    %s138 = sphi 0, %s124
    %s146 = sphi 0, %s148
    %s149 = sphi 0, %s146
    %s150 = sphi 0, %s149
    %s166 = sphi 0, %s150
    %s174 = sphi 0, %s176
    %s177 = sphi 0, %s174
    %s178 = sphi 0, %s177
    %s194 = sphi 0, %s178
    %s202 = sphi 0, %s204
    %s205 = sphi 0, %s202
    %s206 = sphi 0, %s205
    %s222 = sphi 0, %s206
  $region4: #{basic_block_forward.4} parent=0 // loop_header_branch
    %16 = sbr.rel (%p14) target = $region8
  $region5: #{basic_block_forward.4} parent=0 // loop_body
    %s18 = ssub.s32 %s13, 1
    %s19 = ssub.s32 %s13, 2
    %s26 = sadd.s32 1, %s21
    %p27 = scmp.ge.s32.totalorder %s26, 8
    %s28 = scalar_select %p27, 0, %s26
    %s29 = sadd.s32 1, %s20
    %s30 = scalar_select %p27, %s29, %s20
    %p31 = scmp.ge.s32.totalorder %s30, 2
    %s32 = scalar_select %p31, 0, %s30
    %s33 = ssub.s32 %s20, %s32
    %s34 = ssub.s32 %s21, %s28
    %s35 = sor.u32 %s33, %s34
    %p36 = scmp.eq.s32.totalorder %s35, 0
    %s38 = sadd.s32 %s37, 1
    %s39 = scalar_select %p36, %s37, %s38
    %p42 = pneg %p36
    %p43 = scmp.eq.s32.totalorder %s13, 15
    %p44 = por %p42, %p43
    %p45 = scmp.ne.s32.totalorder %s37, %s40
    %p46 = scmp.eq.s32.totalorder %s13, 0
    %p47 = por %p45, %p46
    %p48 = scmp.ne.s32.totalorder %s37, %s40
    %p49 = scmp.eq.s32.totalorder %s18, 15
    %p50 = por %p48, %p49
    %p51 = scmp.ne.s32.totalorder %s40, %s41
    %p52 = scmp.eq.s32.totalorder %s18, 0
    %p53 = por %p51, %p52
    %p54 = scmp.ne.s32.totalorder %s40, %s41
    %p55 = scmp.eq.s32.totalorder %s19, 15
    %p56 = por %p54, %p55
    %p58 = scmp.ne.s32.totalorder %s41, %s57
    %p59 = scmp.eq.s32.totalorder %s19, 0
    %p60 = por %p58, %p59
    %s61 = sadd.s32 %s21, 1
    %s62 = sadd.s32 %s28, 1
    %s63 = ssub.s32 %s20, %s32
    %s64 = ssub.s32 %s61, %s62
    %s65 = sor.u32 %s63, %s64
    %p66 = scmp.eq.s32.totalorder %s65, 0
    %s68 = sadd.s32 %s67, 1
    %s69 = scalar_select %p66, %s67, %s68
    %p72 = pneg %p66
    %p73 = scmp.eq.s32.totalorder %s13, 15
    %p74 = por %p72, %p73
    %p75 = scmp.ne.s32.totalorder %s67, %s70
    %p76 = scmp.eq.s32.totalorder %s13, 0
    %p77 = por %p75, %p76
    %p78 = scmp.ne.s32.totalorder %s67, %s70
    %p79 = scmp.eq.s32.totalorder %s18, 15
    %p80 = por %p78, %p79
    %p81 = scmp.ne.s32.totalorder %s70, %s71
    %p82 = scmp.eq.s32.totalorder %s18, 0
    %p83 = por %p81, %p82
    %p84 = scmp.ne.s32.totalorder %s70, %s71
    %p85 = scmp.eq.s32.totalorder %s19, 15
    %p86 = por %p84, %p85
    %p88 = scmp.ne.s32.totalorder %s71, %s87
    %p89 = scmp.eq.s32.totalorder %s19, 0
    %p90 = por %p88, %p89
    %s91 = sadd.s32 %s21, 2
    %s92 = sadd.s32 %s28, 2
    %s93 = ssub.s32 %s20, %s32
    %s94 = ssub.s32 %s91, %s92
    %s95 = sor.u32 %s93, %s94
    %p96 = scmp.eq.s32.totalorder %s95, 0
    %s98 = sadd.s32 %s97, 1
    %s99 = scalar_select %p96, %s97, %s98
    %p102 = pneg %p96
    %p103 = scmp.eq.s32.totalorder %s13, 15
    %p104 = por %p102, %p103
    %p105 = scmp.ne.s32.totalorder %s97, %s100
    %p106 = scmp.eq.s32.totalorder %s13, 0
    %p107 = por %p105, %p106
    %p108 = scmp.ne.s32.totalorder %s97, %s100
    %p109 = scmp.eq.s32.totalorder %s18, 15
    %p110 = por %p108, %p109
    %p111 = scmp.ne.s32.totalorder %s100, %s101
    %p112 = scmp.eq.s32.totalorder %s18, 0
    %p113 = por %p111, %p112
    %p114 = scmp.ne.s32.totalorder %s100, %s101
    %p115 = scmp.eq.s32.totalorder %s19, 15
    %p116 = por %p114, %p115
    %p118 = scmp.ne.s32.totalorder %s101, %s117
    %p119 = scmp.eq.s32.totalorder %s19, 0
    %p120 = por %p118, %p119
    %s122 = sadd.s32 %s121, 1
    %p125 = scmp.eq.s32.totalorder %s13, 15
    %p126 = scmp.ne.s32.totalorder %s121, %s123
    %p127 = scmp.eq.s32.totalorder %s13, 0
    %p128 = por %p126, %p127
    %p129 = scmp.ne.s32.totalorder %s121, %s123
    %p130 = scmp.eq.s32.totalorder %s18, 15
    %p131 = por %p129, %p130
    %p132 = scmp.ne.s32.totalorder %s123, %s124
    %p133 = scmp.eq.s32.totalorder %s18, 0
    %p134 = por %p132, %p133
    %p135 = scmp.ne.s32.totalorder %s123, %s124
    %p136 = scmp.eq.s32.totalorder %s19, 15
    %p137 = por %p135, %p136
    %p139 = scmp.ne.s32.totalorder %s124, %s138
    %p140 = scmp.eq.s32.totalorder %s19, 0
    %p141 = por %p139, %p140
    %s142 = ssub.s32 %s20, %s32
    %s143 = ssub.s32 %s21, %s28
    %s144 = sor.u32 %s142, %s143
    %p145 = scmp.eq.s32.totalorder %s144, 0
    %s147 = sadd.s32 %s146, 1
    %s148 = scalar_select %p145, %s146, %s147
    %p151 = pneg %p145
    %p152 = scmp.eq.s32.totalorder %s13, 15
    %p153 = por %p151, %p152
    %p154 = scmp.ne.s32.totalorder %s146, %s149
    %p155 = scmp.eq.s32.totalorder %s13, 0
    %p156 = por %p154, %p155
    %p157 = scmp.ne.s32.totalorder %s146, %s149
    %p158 = scmp.eq.s32.totalorder %s18, 15
    %p159 = por %p157, %p158
    %p160 = scmp.ne.s32.totalorder %s149, %s150
    %p161 = scmp.eq.s32.totalorder %s18, 0
    %p162 = por %p160, %p161
    %p163 = scmp.ne.s32.totalorder %s149, %s150
    %p164 = scmp.eq.s32.totalorder %s19, 15
    %p165 = por %p163, %p164
    %p167 = scmp.ne.s32.totalorder %s150, %s166
    %p168 = scmp.eq.s32.totalorder %s19, 0
    %p169 = por %p167, %p168
    %s170 = ssub.s32 %s20, %s32
    %s171 = ssub.s32 %s21, %s28
    %s172 = sor.u32 %s170, %s171
    %p173 = scmp.eq.s32.totalorder %s172, 0
    %s175 = sadd.s32 %s174, 1
    %s176 = scalar_select %p173, %s174, %s175
    %p179 = pneg %p173
    %p180 = scmp.eq.s32.totalorder %s13, 15
    %p181 = por %p179, %p180
    %p182 = scmp.ne.s32.totalorder %s174, %s177
    %p183 = scmp.eq.s32.totalorder %s13, 0
    %p184 = por %p182, %p183
    %p185 = scmp.ne.s32.totalorder %s174, %s177
    %p186 = scmp.eq.s32.totalorder %s18, 15
    %p187 = por %p185, %p186
    %p188 = scmp.ne.s32.totalorder %s177, %s178
    %p189 = scmp.eq.s32.totalorder %s18, 0
    %p190 = por %p188, %p189
    %p191 = scmp.ne.s32.totalorder %s177, %s178
    %p192 = scmp.eq.s32.totalorder %s19, 15
    %p193 = por %p191, %p192
    %p195 = scmp.ne.s32.totalorder %s178, %s194
    %p196 = scmp.eq.s32.totalorder %s19, 0
    %p197 = por %p195, %p196
    %s198 = ssub.s32 %s20, %s32
    %s199 = ssub.s32 %s21, %s28
    %s200 = sor.u32 %s198, %s199
    %p201 = scmp.eq.s32.totalorder %s200, 0
    %s203 = sadd.s32 %s202, 1
    %s204 = scalar_select %p201, %s202, %s203
    %p207 = pneg %p201
    %p208 = scmp.eq.s32.totalorder %s13, 15
    %p209 = por %p207, %p208
    %p210 = scmp.ne.s32.totalorder %s202, %s205
    %p211 = scmp.eq.s32.totalorder %s13, 0
    %p212 = por %p210, %p211
    %p213 = scmp.ne.s32.totalorder %s202, %s205
    %p214 = scmp.eq.s32.totalorder %s18, 15
    %p215 = por %p213, %p214
    %p216 = scmp.ne.s32.totalorder %s205, %s206
    %p217 = scmp.eq.s32.totalorder %s18, 0
    %p218 = por %p216, %p217
    %p219 = scmp.ne.s32.totalorder %s205, %s206
    %p220 = scmp.eq.s32.totalorder %s19, 15
    %p221 = por %p219, %p220
    %p223 = scmp.ne.s32.totalorder %s206, %s222
    %p224 = scmp.eq.s32.totalorder %s19, 0
    %p225 = por %p223, %p224
    %p226 = scmp.le.s32.totalorder 1, %s13
    %p227 = scmp.lt.s32.totalorder %s13, 17
    %p228 = pnand %p226, %p227
    %p229 = pneg %p228
    // Predicated region
    $region9: #{basic_block_forward.4} parent=5 // pred_check
      _
    $region10: #{basic_block_forward.4} parent=5 // pred_check_branch
      %231 = sbr.rel (%p228) target = $region12
    $region11: #{basic_block_forward.4} parent=5 // pred_region
      %s232 = ssub.s32 %s13, 1
      // Predicated region
      $region13: #{basic_block_forward.4} parent=11 // pred_check
        %p233 = pneg %p134
      $region14: #{basic_block_forward.4} parent=11 // pred_check_branch
        %235 = sbr.rel (%p233) target = $region16
      $region15: #{basic_block_forward.4} parent=11 // pred_region
        _
      $region16: #{basic_block_forward.4} parent=11 // pred_fallthru
        _
    $region12: #{basic_block_forward.4} parent=5 // pred_fallthru
      _
    %p236 = scmp.lt.s32.totalorder %s13, 16
    // Predicated region
    $region17: #{basic_block_forward.4} parent=5 // pred_check
      %p237 = pneg %p236
    $region18: #{basic_block_forward.4} parent=5 // pred_check_branch
      %239 = sbr.rel (%p237) target = $region20
    $region19: #{basic_block_forward.4} parent=5 // pred_region
      // Predicated region
      $region21: #{basic_block_forward.4} parent=19 // pred_check
        %p240 = pneg %p47
      $region22: #{basic_block_forward.4} parent=19 // pred_check_branch
        %242 = sbr.rel (%p240) target = $region24
      $region23: #{basic_block_forward.4} parent=19 // pred_region
        %p243 = scmp.lt.s32.totalorder %s20, 1
        %s244 = scalar_select %p243, %s20, 1
        %p245 = scmp.lt.s32.totalorder %s21, 9
        %s246 = scalar_select %p245, %s21, 9
        %s247 = smul.addr %s246, 14
        %s248 = smul.addr %s244, 140
        %s249 = sadd.s32 %s247, %s248
        %s250 = smul.addr %s249, 4
        %s251 = scalar_lea.vmem %s0, %s250
      $region24: #{basic_block_forward.4} parent=19 // pred_fallthru
        _
      // Predicated region
      $region25: #{basic_block_forward.4} parent=19 // pred_check
        %p252 = pneg %p77
      $region26: #{basic_block_forward.4} parent=19 // pred_check_branch
        %254 = sbr.rel (%p252) target = $region28
      $region27: #{basic_block_forward.4} parent=19 // pred_region
        %s255 = sadd.s32 %s21, 1
        %p256 = scmp.lt.s32.totalorder %s20, 1
        %s257 = scalar_select %p256, %s20, 1
        %p258 = scmp.lt.s32.totalorder %s255, 9
        %s259 = scalar_select %p258, %s255, 9
        %s260 = smul.addr %s259, 14
        %s261 = smul.addr %s257, 140
        %s262 = sadd.s32 %s260, %s261
        %s263 = smul.addr %s262, 4
        %s264 = scalar_lea.vmem %s1, %s263
        %s265 = sadd.s32 %s21, 1
      $region28: #{basic_block_forward.4} parent=19 // pred_fallthru
        _
      // Predicated region
      $region29: #{basic_block_forward.4} parent=19 // pred_check
        %p266 = pneg %p107
      $region30: #{basic_block_forward.4} parent=19 // pred_check_branch
        %268 = sbr.rel (%p266) target = $region32
      $region31: #{basic_block_forward.4} parent=19 // pred_region
        %s269 = sadd.s32 %s21, 2
        %p270 = scmp.lt.s32.totalorder %s20, 1
        %s271 = scalar_select %p270, %s20, 1
        %p272 = scmp.lt.s32.totalorder %s269, 9
        %s273 = scalar_select %p272, %s269, 9
        %s274 = smul.addr %s273, 14
        %s275 = smul.addr %s271, 140
        %s276 = sadd.s32 %s274, %s275
        %s277 = smul.addr %s276, 4
        %s278 = scalar_lea.vmem %s2, %s277
        %s279 = sadd.s32 %s21, 2
      $region32: #{basic_block_forward.4} parent=19 // pred_fallthru
        _
    $region20: #{basic_block_forward.4} parent=5 // pred_fallthru
      _
    %p280 = scmp.le.s32.totalorder 1, %s13
    %p281 = scmp.lt.s32.totalorder %s13, 17
    %p282 = pnand %p280, %p281
    %p283 = pneg %p282
    // Predicated region
    $region33: #{basic_block_forward.4} parent=5 // pred_check
      _
    $region34: #{basic_block_forward.4} parent=5 // pred_check_branch
      %285 = sbr.rel (%p282) target = $region36
    $region35: #{basic_block_forward.4} parent=5 // pred_region
      %s286 = ssub.s32 %s13, 1
      %p287 = scmp.lt.s32.totalorder %s22, 1
      %s288 = scalar_select %p287, %s22, 1
      %p289 = scmp.lt.s32.totalorder %s23, 9
      %s290 = scalar_select %p289, %s23, 9
      %s291 = smul.addr %s290, 14
      %s292 = smul.addr %s288, 140
      %s293 = sadd.s32 %s291, %s292
      %s294 = smul.addr %s293, 4
      %s295 = scalar_lea.vmem %s0, %s294
      %p296 = pneg %p53
      %p297 = pneg %p50
      %s298 = sadd.s32 %s23, 1
      %p299 = scmp.lt.s32.totalorder %s22, 1
      %s300 = scalar_select %p299, %s22, 1
      %p301 = scmp.lt.s32.totalorder %s298, 9
      %s302 = scalar_select %p301, %s298, 9
      %s303 = smul.addr %s302, 14
      %s304 = smul.addr %s300, 140
      %s305 = sadd.s32 %s303, %s304
      %s306 = smul.addr %s305, 4
      %s307 = scalar_lea.vmem %s1, %s306
      %p308 = pneg %p83
      %p309 = pneg %p80
      %s310 = sadd.s32 %s23, 2
      %p311 = scmp.lt.s32.totalorder %s22, 1
      %s312 = scalar_select %p311, %s22, 1
      %p313 = scmp.lt.s32.totalorder %s310, 9
      %s314 = scalar_select %p313, %s310, 9
      %s315 = smul.addr %s314, 14
      %s316 = smul.addr %s312, 140
      %s317 = sadd.s32 %s315, %s316
      %s318 = smul.addr %s317, 4
      %s319 = scalar_lea.vmem %s2, %s318
      %p320 = pneg %p113
      %p321 = pneg %p110
      %p322 = pneg %p134
      %p323 = pneg %p131
      %p324 = pneg %p162
      %p325 = pneg %p159
      %p326 = scmp.lt.s32.totalorder %s22, 1
      %s327 = scalar_select %p326, %s22, 1
      %p328 = scmp.lt.s32.totalorder %s23, 7
      %s329 = scalar_select %p328, %s23, 7
      %s330 = smul.addr %s329, 10
      %s331 = smul.addr %s327, 80
      %s332 = sadd.s32 %s330, %s331
      %s333 = smul.addr %s332, 8
      %s334 = scalar_lea.vmem %s4, %s333
      %p335 = pneg %p190
      %p336 = pneg %p187
      %p337 = scmp.lt.s32.totalorder %s22, 1
      %s338 = scalar_select %p337, %s22, 1
      %p339 = scmp.lt.s32.totalorder %s23, 7
      %s340 = scalar_select %p339, %s23, 7
      %s341 = smul.addr %s338, 8
      %s342 = sadd.s32 %s340, %s341
      %s343 = scalar_lea.vmem %s5, %s342
      %p344 = pneg %p218
      %p345 = pneg %p215
      %p346 = scmp.lt.s32.totalorder %s22, 1
      %s347 = scalar_select %p346, %s22, 1
      %p348 = scmp.lt.s32.totalorder %s23, 7
      %s349 = scalar_select %p348, %s23, 7
      %s350 = smul.addr %s347, 8
      %s351 = sadd.s32 %s349, %s350
      %s352 = scalar_lea.vmem %s6, %s351
      %p353 = scmp.lt.s32.totalorder %s22, 1
      %s354 = scalar_select %p353, %s22, 1
      %p355 = scmp.lt.s32.totalorder %s23, 9
      %s356 = scalar_select %p355, %s23, 9
      %s357 = smul.addr %s356, 14
      %s358 = smul.addr %s354, 140
      %s359 = sadd.s32 %s357, %s358
      %s360 = smul.addr %s359, 4
      %s361 = scalar_lea.vmem %s0, %s360
      %s362 = sadd.s32 %s23, 1
      %p363 = scmp.lt.s32.totalorder %s22, 1
      %s364 = scalar_select %p363, %s22, 1
      %p365 = scmp.lt.s32.totalorder %s362, 9
      %s366 = scalar_select %p365, %s362, 9
      %s367 = smul.addr %s366, 14
      %s368 = smul.addr %s364, 140
      %s369 = sadd.s32 %s367, %s368
      %s370 = smul.addr %s369, 4
      %s371 = scalar_lea.vmem %s1, %s370
      %s372 = sadd.s32 %s23, 1
      %s373 = sadd.s32 %s23, 2
      %p374 = scmp.lt.s32.totalorder %s22, 1
      %s375 = scalar_select %p374, %s22, 1
      %p376 = scmp.lt.s32.totalorder %s373, 9
      %s377 = scalar_select %p376, %s373, 9
      %s378 = smul.addr %s377, 14
      %s379 = smul.addr %s375, 140
      %s380 = sadd.s32 %s378, %s379
      %s381 = smul.addr %s380, 4
      %s382 = scalar_lea.vmem %s2, %s381
      %s383 = sadd.s32 %s23, 2
      %p384 = scmp.lt.s32.totalorder %s22, 1
      %s385 = scalar_select %p384, %s22, 1
      %p386 = scmp.lt.s32.totalorder %s23, 7
      %s387 = scalar_select %p386, %s23, 7
      %s388 = smul.addr %s387, 10
      %s389 = smul.addr %s385, 80
      %s390 = sadd.s32 %s388, %s389
      %s391 = smul.addr %s390, 8
      %s392 = scalar_lea.vmem %s4, %s391
      %p393 = scmp.lt.s32.totalorder %s22, 1
      %s394 = scalar_select %p393, %s22, 1
      %p395 = scmp.lt.s32.totalorder %s23, 7
      %s396 = scalar_select %p395, %s23, 7
      %s397 = smul.addr %s394, 8
      %s398 = sadd.s32 %s396, %s397
      %s399 = scalar_lea.vmem %s5, %s398
      %p400 = scmp.lt.s32.totalorder %s22, 1
      %s401 = scalar_select %p400, %s22, 1
      %p402 = scmp.lt.s32.totalorder %s23, 7
      %s403 = scalar_select %p402, %s23, 7
      %s404 = smul.addr %s401, 8
      %s405 = sadd.s32 %s403, %s404
      %s406 = scalar_lea.vmem %s6, %s405
      %v408 = vld [vmem:[%s361] sm:$0xf]
      %v409 = vld [vmem:[%s361 + $0x4] sm:$0xf]
      %v410 = vld [vmem:[%s361 + $0x8] sm:$0xf]
      %v411 = vld [vmem:[%s361 + $0xc] sm:$0xf]
      %v412 = vld [vmem:[%s361 + $0x10] sm:$0xf]
      %v413 = vld [vmem:[%s361 + $0x14] sm:$0xf]
      %v414 = vld [vmem:[%s361 + $0x18] sm:$0xf]
      %v415 = vld [vmem:[%s361 + $0x1c] sm:$0xf]
      %v416 = vld [vmem:[%s361 + $0x20] sm:$0xf]
      %v417 = vld [vmem:[%s361 + $0x24] sm:$0xf]
      %v418 = vld [vmem:[%s361 + $0x28] sm:$0xf]
      %v419 = vld [vmem:[%s361 + $0x2c] sm:$0xf]
      %v420 = vld [vmem:[%s361 + $0x30] sm:$0xf]
      %v421 = vld [vmem:[%s371] sm:$0xf]
      %v422 = vld [vmem:[%s371 + $0x4] sm:$0xf]
      %v423 = vld [vmem:[%s371 + $0x8] sm:$0xf]
      %v424 = vld [vmem:[%s371 + $0xc] sm:$0xf]
      %v425 = vld [vmem:[%s371 + $0x10] sm:$0xf]
      %v426 = vld [vmem:[%s371 + $0x14] sm:$0xf]
      %v427 = vld [vmem:[%s371 + $0x18] sm:$0xf]
      %v428 = vld [vmem:[%s371 + $0x1c] sm:$0xf]
      %v429 = vld [vmem:[%s371 + $0x20] sm:$0xf]
      %v430 = vld [vmem:[%s371 + $0x24] sm:$0xf]
      %v431 = vld [vmem:[%s371 + $0x28] sm:$0xf]
      %v432 = vld [vmem:[%s371 + $0x2c] sm:$0xf]
      %v433 = vld [vmem:[%s371 + $0x30] sm:$0xf]
      %v434 = vld [vmem:[%s382] sm:$0xf]
      %v435 = vld [vmem:[%s382 + $0x4] sm:$0xf]
      %v436 = vld [vmem:[%s382 + $0x8] sm:$0xf]
      %v437 = vld [vmem:[%s382 + $0xc] sm:$0xf]
      %v438 = vld [vmem:[%s382 + $0x10] sm:$0xf]
      %v439 = vld [vmem:[%s382 + $0x14] sm:$0xf]
      %v440 = vld [vmem:[%s382 + $0x18] sm:$0xf]
      %v441 = vld [vmem:[%s382 + $0x1c] sm:$0xf]
      %v442 = vld [vmem:[%s382 + $0x20] sm:$0xf]
      %v443 = vld [vmem:[%s382 + $0x24] sm:$0xf]
      %v444 = vld [vmem:[%s382 + $0x28] sm:$0xf]
      %v445 = vld [vmem:[%s382 + $0x2c] sm:$0xf]
      %v446 = vld [vmem:[%s382 + $0x30] sm:$0xf]
      %v447 = vld [vmem:[%s3] sm:$0xf]
      %v448 = vld [vmem:[%s3 + $0x4] sm:$0xf]
      %v449 = vld [vmem:[%s3 + $0x8] sm:$0xf]
      %v450 = vld [vmem:[%s3 + $0xc] sm:$0xf]
      %v451 = vld [vmem:[%s3 + $0x10] sm:$0xf]
      %v452 = vld [vmem:[%s3 + $0x14] sm:$0xf]
      %v453 = vld [vmem:[%s3 + $0x18] sm:$0xf]
      %v454 = vld [vmem:[%s3 + $0x1c] sm:$0xf]
      %v455 = vld [vmem:[%s3 + $0x20] sm:$0xf]
      %v456 = vld [vmem:[%s3 + $0x24] sm:$0xf]
      %v457 = vld [vmem:[%s3 + $0x28] sm:$0xf]
      %v458 = vld [vmem:[%s3 + $0x2c] sm:$0xf]
      %v459 = vld [vmem:[%s3 + $0x30] sm:$0xf]
      %v460 = vld [vmem:[%s3 + $0x34] sm:$0xf]
      %v461 = vld [vmem:[%s3 + $0x38] sm:$0xf]
      %v462 = vld [vmem:[%s3 + $0x3c] sm:$0xf]
      %s463 = scalar_lea.vmem %s3, 64
      %v464 = vld [vmem:[%s463] sm:$0xf]
      %v465 = vld [vmem:[%s463 + $0x4] sm:$0xf]
      %v466 = vld [vmem:[%s463 + $0x8] sm:$0xf]
      %v467 = vld [vmem:[%s463 + $0xc] sm:$0xf]
      %v468 = vld [vmem:[%s463 + $0x10] sm:$0xf]
      %v469 = vld [vmem:[%s463 + $0x14] sm:$0xf]
      %v470 = vld [vmem:[%s463 + $0x18] sm:$0xf]
      %v471 = vld [vmem:[%s463 + $0x1c] sm:$0xf]
      %v472 = vld [vmem:[%s463 + $0x20] sm:$0xf]
      %v473 = vld [vmem:[%s463 + $0x24] sm:$0xf]
      %v474 = vld [vmem:[%s463 + $0x28] sm:$0xf]
      %v475 = vld [vmem:[%s463 + $0x2c] sm:$0xf]
      %v476 = vld [vmem:[%s463 + $0x30] sm:$0xf]
      %v477 = vld [vmem:[%s463 + $0x34] sm:$0xf]
      %v478 = vld [vmem:[%s463 + $0x38] sm:$0xf]
      %v479 = vld [vmem:[%s463 + $0x3c] sm:$0xf]
      %v491 = vunpack.c.l.b16 %v408
      %v492 = vunpack.c.l.b16 %v409
      %v493 = vunpack.c.l.b16 %v410
      %v494 = vunpack.c.l.b16 %v411
      %v495 = vunpack.c.l.b16 %v412
      %v496 = vunpack.c.l.b16 %v413
      %v497 = vunpack.c.l.b16 %v414
      %v498 = vunpack.c.l.b16 %v415
      %v499 = vunpack.c.l.b16 %v416
      %v500 = vunpack.c.l.b16 %v417
      %v501 = vunpack.c.l.b16 %v418
      %v502 = vpack.c.b16 %v492, %v491
      %v503 = vpack.c.b16 %v494, %v493
      %v504 = vpack.c.b16 %v496, %v495
      %v505 = vpack.c.b16 %v498, %v497
      %v506 = vpack.c.b16 %v500, %v499
      %v507 = vpack.c.b16 %v501, %v501
      %vm508 = vsmask.f32 7424
      %v510 = vshrl.u32 %v502, 16
      %v512 = vshll.u32 %v502, 16
      %v514 = vrot.slane %v512, 1
      %v515 = vor.u32 %v510, %v514
      %v517 = vshll.u32 %v503, 16
      %v519 = vrot.slane %v517, 1
      %v520 = vsel %vm508, %v515, %v519
      %v521 = vshrl.u32 %v503, 16
      %v523 = vor.u32 %v521, %v519
      %v525 = vshll.u32 %v504, 16
      %v527 = vrot.slane %v525, 1
      %v528 = vsel %vm508, %v523, %v527
      %v529 = vshrl.u32 %v504, 16
      %v531 = vor.u32 %v529, %v527
      %v533 = vshll.u32 %v505, 16
      %v535 = vrot.slane %v533, 1
      %v536 = vsel %vm508, %v531, %v535
      %v537 = vshrl.u32 %v505, 16
      %v539 = vor.u32 %v537, %v535
      %v541 = vshll.u32 %v506, 16
      %v543 = vrot.slane %v541, 1
      %v544 = vsel %vm508, %v539, %v543
      %v545 = vshrl.u32 %v506, 16
      %v547 = vor.u32 %v545, %v543
      %v549 = vshll.u32 %v507, 16
      %v551 = vrot.slane %v549, 1
      %v552 = vsel %vm508, %v547, %v551
      %v574 = vunpack.c.l.b16 %v464
      %v575 = vunpack.c.l.b16 %v465
      %v576 = vunpack.c.l.b16 %v466
      %v577 = vunpack.c.l.b16 %v467
      %v578 = vunpack.c.l.b16 %v468
      %v579 = vunpack.c.l.b16 %v469
      %v580 = vunpack.c.l.b16 %v470
      %v581 = vunpack.c.l.b16 %v471
      %v582 = vunpack.c.l.b16 %v472
      %v583 = vunpack.c.l.b16 %v473
      %v584 = vunpack.c.l.b16 %v474
      %v585 = vunpack.c.l.b16 %v475
      %v586 = vunpack.c.l.b16 %v476
      %v587 = vunpack.c.l.b16 %v477
      %v588 = vunpack.c.l.b16 %v478
      %v589 = vunpack.c.l.b16 %v479
      %v590 = vpack.c.b16 %v575, %v574
      %v591 = vpack.c.b16 %v577, %v576
      %v592 = vpack.c.b16 %v579, %v578
      %v593 = vpack.c.b16 %v581, %v580
      %v594 = vpack.c.b16 %v583, %v582
      %v595 = vpack.c.b16 %v585, %v584
      %v596 = vpack.c.b16 %v587, %v586
      %v597 = vpack.c.b16 %v589, %v588
      %606 = vmatprep.subr.bf16.mxu0 0
      %607 = vmatpush1.bf16.msra.mxu0 %v590
      %608 = vmatprep.subr.bf16.mxu0 0
      %609 = vmatpush1.bf16.msra.mxu0 %v591
      %610 = vmatprep.subr.bf16.mxu0 0
      %611 = vmatpush1.bf16.msra.mxu0 %v592
      %612 = vmatprep.subr.bf16.mxu0 0
      %613 = vmatpush1.bf16.msra.mxu0 %v593
      %614 = vmatprep.subr.bf16.mxu0 0
      %615 = vmatpush1.bf16.msra.mxu0 %v594
      %616 = vmatprep.subr.bf16.mxu0 0
      %617 = vmatpush1.bf16.msra.mxu0 %v595
      %618 = vmatprep.subr.bf16.mxu0 0
      %619 = vmatpush1.bf16.msra.mxu0 %v596
      %620 = vmatprep.subr.bf16.mxu0 0
      %621 = vmatpush1.bf16.msra.mxu0 %v597
      %622 = vmatprep.subr.bf16.mxu0 0
      %623 = vmatpush1.bf16.msra.mxu0 0
      %624 = vmatprep.subr.bf16.mxu0 0
      %625 = vmatpush1.bf16.msra.mxu0 0
      %626 = vmatprep.subr.bf16.mxu0 0
      %627 = vmatpush1.bf16.msra.mxu0 0
      %628 = vmatprep.subr.bf16.mxu0 0
      %629 = vmatpush1.bf16.msra.mxu0 0
      %630 = vmatprep.subr.bf16.mxu0 0
      %631 = vmatpush1.bf16.msra.mxu0 0
      %632 = vmatprep.subr.bf16.mxu0 0
      %633 = vmatpush1.bf16.msra.mxu0 0
      %634 = vmatprep.subr.bf16.mxu0 0
      %635 = vmatpush1.bf16.msra.mxu0 0
      %636 = vmatprep.subr.bf16.mxu0 0
      %637 = vmatpush1.bf16.msra.mxu0 0
      %638 = vmatprep.mubr.bf16.mxu0 0
      %639 = vmatmul.mubr.bf16.gmra.mrb[0].mxu0 %v520
      %v640 = vpop.f32.mrb[0].mxu0
      %v641 = vadd.f32 0.0, %v640
      %v642 = vpop.f32.mrb[0].mxu0
      %v643 = vpop.f32.mrb[0].mxu0
      %v644 = vadd.f32 0.0, %v643
      %v645 = vpop.f32.mrb[0].mxu0
      %646 = vmatprep.mubr.bf16.mxu0 0
      %647 = vmatmul.mubr.bf16.gmra.mrb[0].mxu0 %v528
      %v648 = vpop.f32.mrb[0].mxu0
      %v649 = vadd.f32 0.0, %v648
      %v650 = vpop.f32.mrb[0].mxu0
      %v651 = vpop.f32.mrb[0].mxu0
      %v652 = vadd.f32 0.0, %v651
      %v653 = vpop.f32.mrb[0].mxu0
      %654 = vmatprep.mubr.bf16.mxu0 0
      %655 = vmatmul.mubr.bf16.gmra.mrb[0].mxu0 %v536
      %v656 = vpop.f32.mrb[0].mxu0
      %v657 = vadd.f32 0.0, %v656
      %v658 = vpop.f32.mrb[0].mxu0
      %v659 = vpop.f32.mrb[0].mxu0
      %v660 = vadd.f32 0.0, %v659
      %v661 = vpop.f32.mrb[0].mxu0
      %662 = vmatprep.mubr.bf16.mxu0 0
      %663 = vmatmul.mubr.bf16.gmra.mrb[0].mxu0 %v544
      %v664 = vpop.f32.mrb[0].mxu0
      %v665 = vadd.f32 0.0, %v664
      %v666 = vpop.f32.mrb[0].mxu0
      %v667 = vpop.f32.mrb[0].mxu0
      %v668 = vadd.f32 0.0, %v667
      %v669 = vpop.f32.mrb[0].mxu0
      %670 = vmatprep.mubr.bf16.mxu0 0
      %671 = vmatmul.mubr.bf16.gmra.mrb[0].mxu0 %v552
      %v672 = vpop.f32.mrb[0].mxu0
      %v673 = vadd.f32 0.0, %v672
      %v674 = vpop.f32.mrb[0].mxu0
      %v675 = vpop.f32.mrb[0].mxu0
      %v676 = vadd.f32 0.0, %v675
      %v677 = vpop.f32.mrb[0].mxu0
      %678 = vdwg.mxu0
      %v700 = vunpack.c.l.b16 %v447
      %v701 = vunpack.c.l.b16 %v448
      %v702 = vunpack.c.l.b16 %v449
      %v703 = vunpack.c.l.b16 %v450
      %v704 = vunpack.c.l.b16 %v451
      %v705 = vunpack.c.l.b16 %v452
      %v706 = vunpack.c.l.b16 %v453
      %v707 = vunpack.c.l.b16 %v454
      %v708 = vunpack.c.l.b16 %v455
      %v709 = vunpack.c.l.b16 %v456
      %v710 = vunpack.c.l.b16 %v457
      %v711 = vunpack.c.l.b16 %v458
      %v712 = vunpack.c.l.b16 %v459
      %v713 = vunpack.c.l.b16 %v460
      %v714 = vunpack.c.l.b16 %v461
      %v715 = vunpack.c.l.b16 %v462
      %v716 = vpack.c.b16 %v701, %v700
      %v717 = vpack.c.b16 %v703, %v702
      %v718 = vpack.c.b16 %v705, %v704
      %v719 = vpack.c.b16 %v707, %v706
      %v720 = vpack.c.b16 %v709, %v708
      %v721 = vpack.c.b16 %v711, %v710
      %v722 = vpack.c.b16 %v713, %v712
      %v723 = vpack.c.b16 %v715, %v714
      %732 = vmatprep.subr.bf16.mxu0 0
      %733 = vmatpush1.bf16.msra.mxu0 %v716
      %734 = vmatprep.subr.bf16.mxu0 0
      %735 = vmatpush1.bf16.msra.mxu0 %v717
      %736 = vmatprep.subr.bf16.mxu0 0
      %737 = vmatpush1.bf16.msra.mxu0 %v718
      %738 = vmatprep.subr.bf16.mxu0 0
      %739 = vmatpush1.bf16.msra.mxu0 %v719
      %740 = vmatprep.subr.bf16.mxu0 0
      %741 = vmatpush1.bf16.msra.mxu0 %v720
      %742 = vmatprep.subr.bf16.mxu0 0
      %743 = vmatpush1.bf16.msra.mxu0 %v721
      %744 = vmatprep.subr.bf16.mxu0 0
      %745 = vmatpush1.bf16.msra.mxu0 %v722
      %746 = vmatprep.subr.bf16.mxu0 0
      %747 = vmatpush1.bf16.msra.mxu0 %v723
      %748 = vmatprep.subr.bf16.mxu0 0
      %749 = vmatpush1.bf16.msra.mxu0 0
      %750 = vmatprep.subr.bf16.mxu0 0
      %751 = vmatpush1.bf16.msra.mxu0 0
      %752 = vmatprep.subr.bf16.mxu0 0
      %753 = vmatpush1.bf16.msra.mxu0 0
      %754 = vmatprep.subr.bf16.mxu0 0
      %755 = vmatpush1.bf16.msra.mxu0 0
      %756 = vmatprep.subr.bf16.mxu0 0
      %757 = vmatpush1.bf16.msra.mxu0 0
      %758 = vmatprep.subr.bf16.mxu0 0
      %759 = vmatpush1.bf16.msra.mxu0 0
      %760 = vmatprep.subr.bf16.mxu0 0
      %761 = vmatpush1.bf16.msra.mxu0 0
      %762 = vmatprep.subr.bf16.mxu0 0
      %763 = vmatpush1.bf16.msra.mxu0 0
      %764 = vmatprep.mubr.bf16.mxu0 0
      %765 = vmatmul.mubr.bf16.gmra.mrb[0].mxu0 %v502
      %v766 = vpop.f32.mrb[0].mxu0
      %v767 = vadd.f32 %v641, %v766
      %v768 = vpop.f32.mrb[0].mxu0
      %v769 = vpop.f32.mrb[0].mxu0
      %v770 = vadd.f32 %v644, %v769
      %v771 = vpop.f32.mrb[0].mxu0
      %772 = vmatprep.mubr.bf16.mxu0 0
      %773 = vmatmul.mubr.bf16.gmra.mrb[0].mxu0 %v503
      %v774 = vpop.f32.mrb[0].mxu0
      %v775 = vadd.f32 %v649, %v774
      %v776 = vpop.f32.mrb[0].mxu0
      %v777 = vpop.f32.mrb[0].mxu0
      %v778 = vadd.f32 %v652, %v777
      %v779 = vpop.f32.mrb[0].mxu0
      %780 = vmatprep.mubr.bf16.mxu0 0
      %781 = vmatmul.mubr.bf16.gmra.mrb[0].mxu0 %v504
      %v782 = vpop.f32.mrb[0].mxu0
      %v783 = vadd.f32 %v657, %v782
      %v784 = vpop.f32.mrb[0].mxu0
      %v785 = vpop.f32.mrb[0].mxu0
      %v786 = vadd.f32 %v660, %v785
      %v787 = vpop.f32.mrb[0].mxu0
      %788 = vmatprep.mubr.bf16.mxu0 0
      %789 = vmatmul.mubr.bf16.gmra.mrb[0].mxu0 %v505
      %v790 = vpop.f32.mrb[0].mxu0
      %v791 = vadd.f32 %v665, %v790
      %v792 = vpop.f32.mrb[0].mxu0
      %v793 = vpop.f32.mrb[0].mxu0
      %v794 = vadd.f32 %v668, %v793
      %v795 = vpop.f32.mrb[0].mxu0
      %796 = vmatprep.mubr.bf16.mxu0 0
      %797 = vmatmul.mubr.bf16.gmra.mrb[0].mxu0 %v506
      %v798 = vpop.f32.mrb[0].mxu0
      %v799 = vadd.f32 %v673, %v798
      %v800 = vpop.f32.mrb[0].mxu0
      %v801 = vpop.f32.mrb[0].mxu0
      %v802 = vadd.f32 %v676, %v801
      %v803 = vpop.f32.mrb[0].mxu0
      %804 = vdwg.mxu0
      %s805 = scalar_lea.vmem %s3, 128
      %v806 = vld [vmem:[%s805] sm:$0xf]
      %v807 = vld [vmem:[%s805 + $0x4] sm:$0xf]
      %v808 = vld [vmem:[%s805 + $0x8] sm:$0xf]
      %v809 = vld [vmem:[%s805 + $0xc] sm:$0xf]
      %v810 = vld [vmem:[%s805 + $0x10] sm:$0xf]
      %v811 = vld [vmem:[%s805 + $0x14] sm:$0xf]
      %v812 = vld [vmem:[%s805 + $0x18] sm:$0xf]
      %v813 = vld [vmem:[%s805 + $0x1c] sm:$0xf]
      %v814 = vld [vmem:[%s805 + $0x20] sm:$0xf]
      %v815 = vld [vmem:[%s805 + $0x24] sm:$0xf]
      %v816 = vld [vmem:[%s805 + $0x28] sm:$0xf]
      %v817 = vld [vmem:[%s805 + $0x2c] sm:$0xf]
      %v818 = vld [vmem:[%s805 + $0x30] sm:$0xf]
      %v819 = vld [vmem:[%s805 + $0x34] sm:$0xf]
      %v820 = vld [vmem:[%s805 + $0x38] sm:$0xf]
      %v821 = vld [vmem:[%s805 + $0x3c] sm:$0xf]
      %vm822 = vcmask 1046528
      %v823 = vrot.slane %v502, 1
      %v824 = vrot.slane %v503, 1
      %v825 = vsel %vm822, %v823, %v824
      %v826 = vrot.slane %v504, 1
      %v827 = vsel %vm822, %v824, %v826
      %v828 = vrot.slane %v505, 1
      %v829 = vsel %vm822, %v826, %v828
      %v830 = vrot.slane %v506, 1
      %v831 = vsel %vm822, %v828, %v830
      %v832 = vrot.slane %v507, 1
      %v833 = vsel %vm822, %v830, %v832
      %v855 = vunpack.c.l.b16 %v806
      %v856 = vunpack.c.l.b16 %v807
      %v857 = vunpack.c.l.b16 %v808
      %v858 = vunpack.c.l.b16 %v809
      %v859 = vunpack.c.l.b16 %v810
      %v860 = vunpack.c.l.b16 %v811
      %v861 = vunpack.c.l.b16 %v812
      %v862 = vunpack.c.l.b16 %v813
      %v863 = vunpack.c.l.b16 %v814
      %v864 = vunpack.c.l.b16 %v815
      %v865 = vunpack.c.l.b16 %v816
      %v866 = vunpack.c.l.b16 %v817
      %v867 = vunpack.c.l.b16 %v818
      %v868 = vunpack.c.l.b16 %v819
      %v869 = vunpack.c.l.b16 %v820
      %v870 = vunpack.c.l.b16 %v821
      %v871 = vpack.c.b16 %v856, %v855
      %v872 = vpack.c.b16 %v858, %v857
      %v873 = vpack.c.b16 %v860, %v859
      %v874 = vpack.c.b16 %v862, %v861
      %v875 = vpack.c.b16 %v864, %v863
      %v876 = vpack.c.b16 %v866, %v865
      %v877 = vpack.c.b16 %v868, %v867
      %v878 = vpack.c.b16 %v870, %v869
      %887 = vmatprep.subr.bf16.mxu0 0
      %888 = vmatpush1.bf16.msra.mxu0 %v871
      %889 = vmatprep.subr.bf16.mxu0 0
      %890 = vmatpush1.bf16.msra.mxu0 %v872
      %891 = vmatprep.subr.bf16.mxu0 0
      %892 = vmatpush1.bf16.msra.mxu0 %v873
      %893 = vmatprep.subr.bf16.mxu0 0
      %894 = vmatpush1.bf16.msra.mxu0 %v874
      %895 = vmatprep.subr.bf16.mxu0 0
      %896 = vmatpush1.bf16.msra.mxu0 %v875
      %897 = vmatprep.subr.bf16.mxu0 0
      %898 = vmatpush1.bf16.msra.mxu0 %v876
      %899 = vmatprep.subr.bf16.mxu0 0
      %900 = vmatpush1.bf16.msra.mxu0 %v877
      %901 = vmatprep.subr.bf16.mxu0 0
      %902 = vmatpush1.bf16.msra.mxu0 %v878
      %903 = vmatprep.subr.bf16.mxu0 0
      %904 = vmatpush1.bf16.msra.mxu0 0
      %905 = vmatprep.subr.bf16.mxu0 0
      %906 = vmatpush1.bf16.msra.mxu0 0
      %907 = vmatprep.subr.bf16.mxu0 0
      %908 = vmatpush1.bf16.msra.mxu0 0
      %909 = vmatprep.subr.bf16.mxu0 0
      %910 = vmatpush1.bf16.msra.mxu0 0
      %911 = vmatprep.subr.bf16.mxu0 0
      %912 = vmatpush1.bf16.msra.mxu0 0
      %913 = vmatprep.subr.bf16.mxu0 0
      %914 = vmatpush1.bf16.msra.mxu0 0
      %915 = vmatprep.subr.bf16.mxu0 0
      %916 = vmatpush1.bf16.msra.mxu0 0
      %917 = vmatprep.subr.bf16.mxu0 0
      %918 = vmatpush1.bf16.msra.mxu0 0
      %919 = vmatprep.mubr.bf16.mxu0 0
      %920 = vmatmul.mubr.bf16.gmra.mrb[0].mxu0 %v825
      %v921 = vpop.f32.mrb[0].mxu0
      %v922 = vadd.f32 0.0, %v921
      %v923 = vpop.f32.mrb[0].mxu0
      %v924 = vpop.f32.mrb[0].mxu0
      %v925 = vadd.f32 0.0, %v924
      %v926 = vpop.f32.mrb[0].mxu0
      %927 = vmatprep.mubr.bf16.mxu0 0
      %928 = vmatmul.mubr.bf16.gmra.mrb[0].mxu0 %v827
      %v929 = vpop.f32.mrb[0].mxu0
      %v930 = vadd.f32 0.0, %v929
      %v931 = vpop.f32.mrb[0].mxu0
      %v932 = vpop.f32.mrb[0].mxu0
      %v933 = vadd.f32 0.0, %v932
      %v934 = vpop.f32.mrb[0].mxu0
      %935 = vmatprep.mubr.bf16.mxu0 0
      %936 = vmatmul.mubr.bf16.gmra.mrb[0].mxu0 %v829
      %v937 = vpop.f32.mrb[0].mxu0
      %v938 = vadd.f32 0.0, %v937
      %v939 = vpop.f32.mrb[0].mxu0
      %v940 = vpop.f32.mrb[0].mxu0
      %v941 = vadd.f32 0.0, %v940
      %v942 = vpop.f32.mrb[0].mxu0
      %943 = vmatprep.mubr.bf16.mxu0 0
      %944 = vmatmul.mubr.bf16.gmra.mrb[0].mxu0 %v831
      %v945 = vpop.f32.mrb[0].mxu0
      %v946 = vadd.f32 0.0, %v945
      %v947 = vpop.f32.mrb[0].mxu0
      %v948 = vpop.f32.mrb[0].mxu0
      %v949 = vadd.f32 0.0, %v948
      %v950 = vpop.f32.mrb[0].mxu0
      %951 = vmatprep.mubr.bf16.mxu0 0
      %952 = vmatmul.mubr.bf16.gmra.mrb[0].mxu0 %v833
      %v953 = vpop.f32.mrb[0].mxu0
      %v954 = vadd.f32 0.0, %v953
      %v955 = vpop.f32.mrb[0].mxu0
      %v956 = vpop.f32.mrb[0].mxu0
      %v957 = vadd.f32 0.0, %v956
      %v958 = vpop.f32.mrb[0].mxu0
      %959 = vdwg.mxu0
      %v960 = vadd.f32 %v767, %v922
      %v961 = vadd.f32 %v770, %v925
      %v962 = vadd.f32 %v775, %v930
      %v963 = vadd.f32 %v778, %v933
      %v964 = vadd.f32 %v783, %v938
      %v965 = vadd.f32 %v786, %v941
      %v966 = vadd.f32 %v791, %v946
      %v967 = vadd.f32 %v794, %v949
      %v968 = vadd.f32 %v799, %v954
      %v969 = vadd.f32 %v802, %v957
      %s970 = scalar_lea.vmem %s3, 192
      %v971 = vld [vmem:[%s970] sm:$0xf]
      %v972 = vld [vmem:[%s970 + $0x4] sm:$0xf]
      %v973 = vld [vmem:[%s970 + $0x8] sm:$0xf]
      %v974 = vld [vmem:[%s970 + $0xc] sm:$0xf]
      %v975 = vld [vmem:[%s970 + $0x10] sm:$0xf]
      %v976 = vld [vmem:[%s970 + $0x14] sm:$0xf]
      %v977 = vld [vmem:[%s970 + $0x18] sm:$0xf]
      %v978 = vld [vmem:[%s970 + $0x1c] sm:$0xf]
      %v979 = vld [vmem:[%s970 + $0x20] sm:$0xf]
      %v980 = vld [vmem:[%s970 + $0x24] sm:$0xf]
      %v981 = vld [vmem:[%s970 + $0x28] sm:$0xf]
      %v982 = vld [vmem:[%s970 + $0x2c] sm:$0xf]
      %v983 = vld [vmem:[%s970 + $0x30] sm:$0xf]
      %v984 = vld [vmem:[%s970 + $0x34] sm:$0xf]
      %v985 = vld [vmem:[%s970 + $0x38] sm:$0xf]
      %v986 = vld [vmem:[%s970 + $0x3c] sm:$0xf]
      %v988 = vunpack.c.l.b16 %v419
      %v989 = vpack.c.b16 %v493, %v492
      %v990 = vpack.c.b16 %v495, %v494
      %v991 = vpack.c.b16 %v497, %v496
      %v992 = vpack.c.b16 %v499, %v498
      %v993 = vpack.c.b16 %v501, %v500
      %v994 = vpack.c.b16 %v988, %v988
      %v995 = vrot.slane %v989, 1
      %v996 = vrot.slane %v990, 1
      %v997 = vsel %vm822, %v995, %v996
      %v998 = vrot.slane %v991, 1
      %v999 = vsel %vm822, %v996, %v998
      %v1000 = vrot.slane %v992, 1
      %v1001 = vsel %vm822, %v998, %v1000
      %v1002 = vrot.slane %v993, 1
      %v1003 = vsel %vm822, %v1000, %v1002
      %v1004 = vrot.slane %v994, 1
      %v1005 = vsel %vm822, %v1002, %v1004
      %v1027 = vunpack.c.l.b16 %v971
      %v1028 = vunpack.c.l.b16 %v972
      %v1029 = vunpack.c.l.b16 %v973
      %v1030 = vunpack.c.l.b16 %v974
      %v1031 = vunpack.c.l.b16 %v975
      %v1032 = vunpack.c.l.b16 %v976
      %v1033 = vunpack.c.l.b16 %v977
      %v1034 = vunpack.c.l.b16 %v978
      %v1035 = vunpack.c.l.b16 %v979
      %v1036 = vunpack.c.l.b16 %v980
      %v1037 = vunpack.c.l.b16 %v981
      %v1038 = vunpack.c.l.b16 %v982
      %v1039 = vunpack.c.l.b16 %v983
      %v1040 = vunpack.c.l.b16 %v984
      %v1041 = vunpack.c.l.b16 %v985
      %v1042 = vunpack.c.l.b16 %v986
      %v1043 = vpack.c.b16 %v1028, %v1027
      %v1044 = vpack.c.b16 %v1030, %v1029
      %v1045 = vpack.c.b16 %v1032, %v1031
      %v1046 = vpack.c.b16 %v1034, %v1033
      %v1047 = vpack.c.b16 %v1036, %v1035
      %v1048 = vpack.c.b16 %v1038, %v1037
      %v1049 = vpack.c.b16 %v1040, %v1039
      %v1050 = vpack.c.b16 %v1042, %v1041
      %1059 = vmatprep.subr.bf16.mxu0 0
      %1060 = vmatpush1.bf16.msra.mxu0 %v1043
      %1061 = vmatprep.subr.bf16.mxu0 0
      %1062 = vmatpush1.bf16.msra.mxu0 %v1044
      %1063 = vmatprep.subr.bf16.mxu0 0
      %1064 = vmatpush1.bf16.msra.mxu0 %v1045
      %1065 = vmatprep.subr.bf16.mxu0 0
      %1066 = vmatpush1.bf16.msra.mxu0 %v1046
      %1067 = vmatprep.subr.bf16.mxu0 0
      %1068 = vmatpush1.bf16.msra.mxu0 %v1047
      %1069 = vmatprep.subr.bf16.mxu0 0
      %1070 = vmatpush1.bf16.msra.mxu0 %v1048
      %1071 = vmatprep.subr.bf16.mxu0 0
      %1072 = vmatpush1.bf16.msra.mxu0 %v1049
      %1073 = vmatprep.subr.bf16.mxu0 0
      %1074 = vmatpush1.bf16.msra.mxu0 %v1050
      %1075 = vmatprep.subr.bf16.mxu0 0
      %1076 = vmatpush1.bf16.msra.mxu0 0
      %1077 = vmatprep.subr.bf16.mxu0 0
      %1078 = vmatpush1.bf16.msra.mxu0 0
      %1079 = vmatprep.subr.bf16.mxu0 0
      %1080 = vmatpush1.bf16.msra.mxu0 0
      %1081 = vmatprep.subr.bf16.mxu0 0
      %1082 = vmatpush1.bf16.msra.mxu0 0
      %1083 = vmatprep.subr.bf16.mxu0 0
      %1084 = vmatpush1.bf16.msra.mxu0 0
      %1085 = vmatprep.subr.bf16.mxu0 0
      %1086 = vmatpush1.bf16.msra.mxu0 0
      %1087 = vmatprep.subr.bf16.mxu0 0
      %1088 = vmatpush1.bf16.msra.mxu0 0
      %1089 = vmatprep.subr.bf16.mxu0 0
      %1090 = vmatpush1.bf16.msra.mxu0 0
      %1091 = vmatprep.mubr.bf16.mxu0 0
      %1092 = vmatmul.mubr.bf16.gmra.mrb[0].mxu0 %v997
      %v1093 = vpop.f32.mrb[0].mxu0
      %v1094 = vadd.f32 0.0, %v1093
      %v1095 = vpop.f32.mrb[0].mxu0
      %v1096 = vpop.f32.mrb[0].mxu0
      %v1097 = vadd.f32 0.0, %v1096
      %v1098 = vpop.f32.mrb[0].mxu0
      %1099 = vmatprep.mubr.bf16.mxu0 0
      %1100 = vmatmul.mubr.bf16.gmra.mrb[0].mxu0 %v999
      %v1101 = vpop.f32.mrb[0].mxu0
      %v1102 = vadd.f32 0.0, %v1101
      %v1103 = vpop.f32.mrb[0].mxu0
      %v1104 = vpop.f32.mrb[0].mxu0
      %v1105 = vadd.f32 0.0, %v1104
      %v1106 = vpop.f32.mrb[0].mxu0
      %1107 = vmatprep.mubr.bf16.mxu0 0
      %1108 = vmatmul.mubr.bf16.gmra.mrb[0].mxu0 %v1001
      %v1109 = vpop.f32.mrb[0].mxu0
      %v1110 = vadd.f32 0.0, %v1109
      %v1111 = vpop.f32.mrb[0].mxu0
      %v1112 = vpop.f32.mrb[0].mxu0
      %v1113 = vadd.f32 0.0, %v1112
      %v1114 = vpop.f32.mrb[0].mxu0
      %1115 = vmatprep.mubr.bf16.mxu0 0
      %1116 = vmatmul.mubr.bf16.gmra.mrb[0].mxu0 %v1003
      %v1117 = vpop.f32.mrb[0].mxu0
      %v1118 = vadd.f32 0.0, %v1117
      %v1119 = vpop.f32.mrb[0].mxu0
      %v1120 = vpop.f32.mrb[0].mxu0
      %v1121 = vadd.f32 0.0, %v1120
      %v1122 = vpop.f32.mrb[0].mxu0
      %1123 = vmatprep.mubr.bf16.mxu0 0
      %1124 = vmatmul.mubr.bf16.gmra.mrb[0].mxu0 %v1005
      %v1125 = vpop.f32.mrb[0].mxu0
      %v1126 = vadd.f32 0.0, %v1125
      %v1127 = vpop.f32.mrb[0].mxu0
      %v1128 = vpop.f32.mrb[0].mxu0
      %v1129 = vadd.f32 0.0, %v1128
      %v1130 = vpop.f32.mrb[0].mxu0
      %1131 = vdwg.mxu0
      %v1132 = vadd.f32 %v960, %v1094
      %v1133 = vadd.f32 %v961, %v1097
      %v1134 = vadd.f32 %v962, %v1102
      %v1135 = vadd.f32 %v963, %v1105
      %v1136 = vadd.f32 %v964, %v1110
      %v1137 = vadd.f32 %v965, %v1113
      %v1138 = vadd.f32 %v966, %v1118
      %v1139 = vadd.f32 %v967, %v1121
      %v1140 = vadd.f32 %v968, %v1126
      %v1141 = vadd.f32 %v969, %v1129
      %s1142 = scalar_lea.vmem %s3, 256
      %v1143 = vld [vmem:[%s1142] sm:$0xf]
      %v1144 = vld [vmem:[%s1142 + $0x4] sm:$0xf]
      %v1145 = vld [vmem:[%s1142 + $0x8] sm:$0xf]
      %v1146 = vld [vmem:[%s1142 + $0xc] sm:$0xf]
      %v1147 = vld [vmem:[%s1142 + $0x10] sm:$0xf]
      %v1148 = vld [vmem:[%s1142 + $0x14] sm:$0xf]
      %v1149 = vld [vmem:[%s1142 + $0x18] sm:$0xf]
      %v1150 = vld [vmem:[%s1142 + $0x1c] sm:$0xf]
      %v1151 = vld [vmem:[%s1142 + $0x20] sm:$0xf]
      %v1152 = vld [vmem:[%s1142 + $0x24] sm:$0xf]
      %v1153 = vld [vmem:[%s1142 + $0x28] sm:$0xf]
      %v1154 = vld [vmem:[%s1142 + $0x2c] sm:$0xf]
      %v1155 = vld [vmem:[%s1142 + $0x30] sm:$0xf]
      %v1156 = vld [vmem:[%s1142 + $0x34] sm:$0xf]
      %v1157 = vld [vmem:[%s1142 + $0x38] sm:$0xf]
      %v1158 = vld [vmem:[%s1142 + $0x3c] sm:$0xf]
      %vm1159 = vsmask.f32 6400
      %v1161 = vshrl.u32 %v989, 16
      %v1163 = vrot.slane %v1161, 1
      %v1164 = vshll.u32 %v989, 16
      %v1166 = vrot.slane %v1164, 2
      %v1167 = vor.u32 %v1163, %v1166
      %v1169 = vshrl.u32 %v990, 16
      %v1171 = vrot.slane %v1169, 1
      %v1172 = vshll.u32 %v990, 16
      %v1174 = vrot.slane %v1172, 2
      %v1175 = vor.u32 %v1171, %v1174
      %v1176 = vsel %vm1159, %v1167, %v1175
      %v1178 = vshrl.u32 %v991, 16
      %v1180 = vrot.slane %v1178, 1
      %v1181 = vshll.u32 %v991, 16
      %v1183 = vrot.slane %v1181, 2
      %v1184 = vor.u32 %v1180, %v1183
      %v1185 = vsel %vm1159, %v1175, %v1184
      %v1187 = vshrl.u32 %v992, 16
      %v1189 = vrot.slane %v1187, 1
      %v1190 = vshll.u32 %v992, 16
      %v1192 = vrot.slane %v1190, 2
      %v1193 = vor.u32 %v1189, %v1192
      %v1194 = vsel %vm1159, %v1184, %v1193
      %v1196 = vshrl.u32 %v993, 16
      %v1198 = vrot.slane %v1196, 1
      %v1199 = vshll.u32 %v993, 16
      %v1201 = vrot.slane %v1199, 2
      %v1202 = vor.u32 %v1198, %v1201
      %v1203 = vsel %vm1159, %v1193, %v1202
      %v1205 = vshrl.u32 %v994, 16
      %v1207 = vrot.slane %v1205, 1
      %v1208 = vshll.u32 %v994, 16
      %v1210 = vrot.slane %v1208, 2
      %v1211 = vor.u32 %v1207, %v1210
      %v1212 = vsel %vm1159, %v1202, %v1211
      %v1234 = vunpack.c.l.b16 %v1143
      %v1235 = vunpack.c.l.b16 %v1144
      %v1236 = vunpack.c.l.b16 %v1145
      %v1237 = vunpack.c.l.b16 %v1146
      %v1238 = vunpack.c.l.b16 %v1147
      %v1239 = vunpack.c.l.b16 %v1148
      %v1240 = vunpack.c.l.b16 %v1149
      %v1241 = vunpack.c.l.b16 %v1150
      %v1242 = vunpack.c.l.b16 %v1151
      %v1243 = vunpack.c.l.b16 %v1152
      %v1244 = vunpack.c.l.b16 %v1153
      %v1245 = vunpack.c.l.b16 %v1154
      %v1246 = vunpack.c.l.b16 %v1155
      %v1247 = vunpack.c.l.b16 %v1156
      %v1248 = vunpack.c.l.b16 %v1157
      %v1249 = vunpack.c.l.b16 %v1158
      %v1250 = vpack.c.b16 %v1235, %v1234
      %v1251 = vpack.c.b16 %v1237, %v1236
      %v1252 = vpack.c.b16 %v1239, %v1238
      %v1253 = vpack.c.b16 %v1241, %v1240
      %v1254 = vpack.c.b16 %v1243, %v1242
      %v1255 = vpack.c.b16 %v1245, %v1244
      %v1256 = vpack.c.b16 %v1247, %v1246
      %v1257 = vpack.c.b16 %v1249, %v1248
      %1266 = vmatprep.subr.bf16.mxu0 0
      %1267 = vmatpush1.bf16.msra.mxu0 %v1250
      %1268 = vmatprep.subr.bf16.mxu0 0
      %1269 = vmatpush1.bf16.msra.mxu0 %v1251
      %1270 = vmatprep.subr.bf16.mxu0 0
      %1271 = vmatpush1.bf16.msra.mxu0 %v1252
      %1272 = vmatprep.subr.bf16.mxu0 0
      %1273 = vmatpush1.bf16.msra.mxu0 %v1253
      %1274 = vmatprep.subr.bf16.mxu0 0
      %1275 = vmatpush1.bf16.msra.mxu0 %v1254
      %1276 = vmatprep.subr.bf16.mxu0 0
      %1277 = vmatpush1.bf16.msra.mxu0 %v1255
      %1278 = vmatprep.subr.bf16.mxu0 0
      %1279 = vmatpush1.bf16.msra.mxu0 %v1256
      %1280 = vmatprep.subr.bf16.mxu0 0
      %1281 = vmatpush1.bf16.msra.mxu0 %v1257
      %1282 = vmatprep.subr.bf16.mxu0 0
      %1283 = vmatpush1.bf16.msra.mxu0 0
      %1284 = vmatprep.subr.bf16.mxu0 0
      %1285 = vmatpush1.bf16.msra.mxu0 0
      %1286 = vmatprep.subr.bf16.mxu0 0
      %1287 = vmatpush1.bf16.msra.mxu0 0
      %1288 = vmatprep.subr.bf16.mxu0 0
      %1289 = vmatpush1.bf16.msra.mxu0 0
      %1290 = vmatprep.subr.bf16.mxu0 0
      %1291 = vmatpush1.bf16.msra.mxu0 0
      %1292 = vmatprep.subr.bf16.mxu0 0
      %1293 = vmatpush1.bf16.msra.mxu0 0
      %1294 = vmatprep.subr.bf16.mxu0 0
      %1295 = vmatpush1.bf16.msra.mxu0 0
      %1296 = vmatprep.subr.bf16.mxu0 0
      %1297 = vmatpush1.bf16.msra.mxu0 0
      %1298 = vmatprep.mubr.bf16.mxu0 0
      %1299 = vmatmul.mubr.bf16.gmra.mrb[0].mxu0 %v1176
      %v1300 = vpop.f32.mrb[0].mxu0
      %v1301 = vadd.f32 0.0, %v1300
      %v1302 = vpop.f32.mrb[0].mxu0
      %v1303 = vpop.f32.mrb[0].mxu0
      %v1304 = vadd.f32 0.0, %v1303
      %v1305 = vpop.f32.mrb[0].mxu0
      %1306 = vmatprep.mubr.bf16.mxu0 0
      %1307 = vmatmul.mubr.bf16.gmra.mrb[0].mxu0 %v1185
      %v1308 = vpop.f32.mrb[0].mxu0
      %v1309 = vadd.f32 0.0, %v1308
      %v1310 = vpop.f32.mrb[0].mxu0
      %v1311 = vpop.f32.mrb[0].mxu0
      %v1312 = vadd.f32 0.0, %v1311
      %v1313 = vpop.f32.mrb[0].mxu0
      %1314 = vmatprep.mubr.bf16.mxu0 0
      %1315 = vmatmul.mubr.bf16.gmra.mrb[0].mxu0 %v1194
      %v1316 = vpop.f32.mrb[0].mxu0
      %v1317 = vadd.f32 0.0, %v1316
      %v1318 = vpop.f32.mrb[0].mxu0
      %v1319 = vpop.f32.mrb[0].mxu0
      %v1320 = vadd.f32 0.0, %v1319
      %v1321 = vpop.f32.mrb[0].mxu0
      %1322 = vmatprep.mubr.bf16.mxu0 0
      %1323 = vmatmul.mubr.bf16.gmra.mrb[0].mxu0 %v1203
      %v1324 = vpop.f32.mrb[0].mxu0
      %v1325 = vadd.f32 0.0, %v1324
      %v1326 = vpop.f32.mrb[0].mxu0
      %v1327 = vpop.f32.mrb[0].mxu0
      %v1328 = vadd.f32 0.0, %v1327
      %v1329 = vpop.f32.mrb[0].mxu0
      %1330 = vmatprep.mubr.bf16.mxu0 0
      %1331 = vmatmul.mubr.bf16.gmra.mrb[0].mxu0 %v1212
      %v1332 = vpop.f32.mrb[0].mxu0
      %v1333 = vadd.f32 0.0, %v1332
      %v1334 = vpop.f32.mrb[0].mxu0
      %v1335 = vpop.f32.mrb[0].mxu0
      %v1336 = vadd.f32 0.0, %v1335
      %v1337 = vpop.f32.mrb[0].mxu0
      %1338 = vdwg.mxu0
      %v1339 = vadd.f32 %v1132, %v1301
      %v1340 = vadd.f32 %v1133, %v1304
      %v1341 = vadd.f32 %v1134, %v1309
      %v1342 = vadd.f32 %v1135, %v1312
      %v1343 = vadd.f32 %v1136, %v1317
      %v1344 = vadd.f32 %v1137, %v1320
      %v1345 = vadd.f32 %v1138, %v1325
      %v1346 = vadd.f32 %v1139, %v1328
      %v1347 = vadd.f32 %v1140, %v1333
      %v1348 = vadd.f32 %v1141, %v1336
      %s1349 = scalar_lea.vmem %s3, 320
      %v1350 = vld [vmem:[%s1349] sm:$0xf]
      %v1351 = vld [vmem:[%s1349 + $0x4] sm:$0xf]
      %v1352 = vld [vmem:[%s1349 + $0x8] sm:$0xf]
      %v1353 = vld [vmem:[%s1349 + $0xc] sm:$0xf]
      %v1354 = vld [vmem:[%s1349 + $0x10] sm:$0xf]
      %v1355 = vld [vmem:[%s1349 + $0x14] sm:$0xf]
      %v1356 = vld [vmem:[%s1349 + $0x18] sm:$0xf]
      %v1357 = vld [vmem:[%s1349 + $0x1c] sm:$0xf]
      %v1358 = vld [vmem:[%s1349 + $0x20] sm:$0xf]
      %v1359 = vld [vmem:[%s1349 + $0x24] sm:$0xf]
      %v1360 = vld [vmem:[%s1349 + $0x28] sm:$0xf]
      %v1361 = vld [vmem:[%s1349 + $0x2c] sm:$0xf]
      %v1362 = vld [vmem:[%s1349 + $0x30] sm:$0xf]
      %v1363 = vld [vmem:[%s1349 + $0x34] sm:$0xf]
      %v1364 = vld [vmem:[%s1349 + $0x38] sm:$0xf]
      %v1365 = vld [vmem:[%s1349 + $0x3c] sm:$0xf]
      %vm1366 = vcmask 1045504
      %v1367 = vrot.slane %v989, 2
      %v1368 = vrot.slane %v990, 2
      %v1369 = vsel %vm1366, %v1367, %v1368
      %v1370 = vrot.slane %v991, 2
      %v1371 = vsel %vm1366, %v1368, %v1370
      %v1372 = vrot.slane %v992, 2
      %v1373 = vsel %vm1366, %v1370, %v1372
      %v1374 = vrot.slane %v993, 2
      %v1375 = vsel %vm1366, %v1372, %v1374
      %v1376 = vrot.slane %v994, 2
      %v1377 = vsel %vm1366, %v1374, %v1376
      %v1399 = vunpack.c.l.b16 %v1350
      %v1400 = vunpack.c.l.b16 %v1351
      %v1401 = vunpack.c.l.b16 %v1352
      %v1402 = vunpack.c.l.b16 %v1353
      %v1403 = vunpack.c.l.b16 %v1354
      %v1404 = vunpack.c.l.b16 %v1355
      %v1405 = vunpack.c.l.b16 %v1356
      %v1406 = vunpack.c.l.b16 %v1357
      %v1407 = vunpack.c.l.b16 %v1358
      %v1408 = vunpack.c.l.b16 %v1359
      %v1409 = vunpack.c.l.b16 %v1360
      %v1410 = vunpack.c.l.b16 %v1361
      %v1411 = vunpack.c.l.b16 %v1362
      %v1412 = vunpack.c.l.b16 %v1363
      %v1413 = vunpack.c.l.b16 %v1364
      %v1414 = vunpack.c.l.b16 %v1365
      %v1415 = vpack.c.b16 %v1400, %v1399
      %v1416 = vpack.c.b16 %v1402, %v1401
      %v1417 = vpack.c.b16 %v1404, %v1403
      %v1418 = vpack.c.b16 %v1406, %v1405
      %v1419 = vpack.c.b16 %v1408, %v1407
      %v1420 = vpack.c.b16 %v1410, %v1409
      %v1421 = vpack.c.b16 %v1412, %v1411
      %v1422 = vpack.c.b16 %v1414, %v1413
      %1431 = vmatprep.subr.bf16.mxu0 0
      %1432 = vmatpush1.bf16.msra.mxu0 %v1415
      %1433 = vmatprep.subr.bf16.mxu0 0
      %1434 = vmatpush1.bf16.msra.mxu0 %v1416
      %1435 = vmatprep.subr.bf16.mxu0 0
      %1436 = vmatpush1.bf16.msra.mxu0 %v1417
      %1437 = vmatprep.subr.bf16.mxu0 0
      %1438 = vmatpush1.bf16.msra.mxu0 %v1418
      %1439 = vmatprep.subr.bf16.mxu0 0
      %1440 = vmatpush1.bf16.msra.mxu0 %v1419
      %1441 = vmatprep.subr.bf16.mxu0 0
      %1442 = vmatpush1.bf16.msra.mxu0 %v1420
      %1443 = vmatprep.subr.bf16.mxu0 0
      %1444 = vmatpush1.bf16.msra.mxu0 %v1421
      %1445 = vmatprep.subr.bf16.mxu0 0
      %1446 = vmatpush1.bf16.msra.mxu0 %v1422
      %1447 = vmatprep.subr.bf16.mxu0 0
      %1448 = vmatpush1.bf16.msra.mxu0 0
      %1449 = vmatprep.subr.bf16.mxu0 0
      %1450 = vmatpush1.bf16.msra.mxu0 0
      %1451 = vmatprep.subr.bf16.mxu0 0
      %1452 = vmatpush1.bf16.msra.mxu0 0
      %1453 = vmatprep.subr.bf16.mxu0 0
      %1454 = vmatpush1.bf16.msra.mxu0 0
      %1455 = vmatprep.subr.bf16.mxu0 0
      %1456 = vmatpush1.bf16.msra.mxu0 0
      %1457 = vmatprep.subr.bf16.mxu0 0
      %1458 = vmatpush1.bf16.msra.mxu0 0
      %1459 = vmatprep.subr.bf16.mxu0 0
      %1460 = vmatpush1.bf16.msra.mxu0 0
      %1461 = vmatprep.subr.bf16.mxu0 0
      %1462 = vmatpush1.bf16.msra.mxu0 0
      %1463 = vmatprep.mubr.bf16.mxu0 0
      %1464 = vmatmul.mubr.bf16.gmra.mrb[0].mxu0 %v1369
      %v1465 = vpop.f32.mrb[0].mxu0
      %v1466 = vadd.f32 0.0, %v1465
      %v1467 = vpop.f32.mrb[0].mxu0
      %v1468 = vpop.f32.mrb[0].mxu0
      %v1469 = vadd.f32 0.0, %v1468
      %v1470 = vpop.f32.mrb[0].mxu0
      %1471 = vmatprep.mubr.bf16.mxu0 0
      %1472 = vmatmul.mubr.bf16.gmra.mrb[0].mxu0 %v1371
      %v1473 = vpop.f32.mrb[0].mxu0
      %v1474 = vadd.f32 0.0, %v1473
      %v1475 = vpop.f32.mrb[0].mxu0
      %v1476 = vpop.f32.mrb[0].mxu0
      %v1477 = vadd.f32 0.0, %v1476
      %v1478 = vpop.f32.mrb[0].mxu0
      %1479 = vmatprep.mubr.bf16.mxu0 0
      %1480 = vmatmul.mubr.bf16.gmra.mrb[0].mxu0 %v1373
      %v1481 = vpop.f32.mrb[0].mxu0
      %v1482 = vadd.f32 0.0, %v1481
      %v1483 = vpop.f32.mrb[0].mxu0
      %v1484 = vpop.f32.mrb[0].mxu0
      %v1485 = vadd.f32 0.0, %v1484
      %v1486 = vpop.f32.mrb[0].mxu0
      %1487 = vmatprep.mubr.bf16.mxu0 0
      %1488 = vmatmul.mubr.bf16.gmra.mrb[0].mxu0 %v1375
      %v1489 = vpop.f32.mrb[0].mxu0
      %v1490 = vadd.f32 0.0, %v1489
      %v1491 = vpop.f32.mrb[0].mxu0
      %v1492 = vpop.f32.mrb[0].mxu0
      %v1493 = vadd.f32 0.0, %v1492
      %v1494 = vpop.f32.mrb[0].mxu0
      %1495 = vmatprep.mubr.bf16.mxu0 0
      %1496 = vmatmul.mubr.bf16.gmra.mrb[0].mxu0 %v1377
      %v1497 = vpop.f32.mrb[0].mxu0
      %v1498 = vadd.f32 0.0, %v1497
      %v1499 = vpop.f32.mrb[0].mxu0
      %v1500 = vpop.f32.mrb[0].mxu0
      %v1501 = vadd.f32 0.0, %v1500
      %v1502 = vpop.f32.mrb[0].mxu0
      %1503 = vdwg.mxu0
      %v1504 = vadd.f32 %v1339, %v1466
      %v1505 = vadd.f32 %v1340, %v1469
      %v1506 = vadd.f32 %v1341, %v1474
      %v1507 = vadd.f32 %v1342, %v1477
      %v1508 = vadd.f32 %v1343, %v1482
      %v1509 = vadd.f32 %v1344, %v1485
      %v1510 = vadd.f32 %v1345, %v1490
      %v1511 = vadd.f32 %v1346, %v1493
      %v1512 = vadd.f32 %v1347, %v1498
      %v1513 = vadd.f32 %v1348, %v1501
      %s1514 = scalar_lea.vmem %s3, 384
      %v1515 = vld [vmem:[%s1514] sm:$0xf]
      %v1516 = vld [vmem:[%s1514 + $0x4] sm:$0xf]
      %v1517 = vld [vmem:[%s1514 + $0x8] sm:$0xf]
      %v1518 = vld [vmem:[%s1514 + $0xc] sm:$0xf]
      %v1519 = vld [vmem:[%s1514 + $0x10] sm:$0xf]
      %v1520 = vld [vmem:[%s1514 + $0x14] sm:$0xf]
      %v1521 = vld [vmem:[%s1514 + $0x18] sm:$0xf]
      %v1522 = vld [vmem:[%s1514 + $0x1c] sm:$0xf]
      %v1523 = vld [vmem:[%s1514 + $0x20] sm:$0xf]
      %v1524 = vld [vmem:[%s1514 + $0x24] sm:$0xf]
      %v1525 = vld [vmem:[%s1514 + $0x28] sm:$0xf]
      %v1526 = vld [vmem:[%s1514 + $0x2c] sm:$0xf]
      %v1527 = vld [vmem:[%s1514 + $0x30] sm:$0xf]
      %v1528 = vld [vmem:[%s1514 + $0x34] sm:$0xf]
      %v1529 = vld [vmem:[%s1514 + $0x38] sm:$0xf]
      %v1530 = vld [vmem:[%s1514 + $0x3c] sm:$0xf]
      %v1532 = vunpack.c.l.b16 %v420
      %v1533 = vpack.c.b16 %v988, %v501
      %v1534 = vpack.c.b16 %v1532, %v1532
      %v1535 = vrot.slane %v503, 2
      %v1536 = vrot.slane %v504, 2
      %v1537 = vsel %vm1366, %v1535, %v1536
      %v1538 = vrot.slane %v505, 2
      %v1539 = vsel %vm1366, %v1536, %v1538
      %v1540 = vrot.slane %v506, 2
      %v1541 = vsel %vm1366, %v1538, %v1540
      %v1542 = vrot.slane %v1533, 2
      %v1543 = vsel %vm1366, %v1540, %v1542
      %v1544 = vrot.slane %v1534, 2
      %v1545 = vsel %vm1366, %v1542, %v1544
      %v1567 = vunpack.c.l.b16 %v1515
      %v1568 = vunpack.c.l.b16 %v1516
      %v1569 = vunpack.c.l.b16 %v1517
      %v1570 = vunpack.c.l.b16 %v1518
      %v1571 = vunpack.c.l.b16 %v1519
      %v1572 = vunpack.c.l.b16 %v1520
      %v1573 = vunpack.c.l.b16 %v1521
      %v1574 = vunpack.c.l.b16 %v1522
      %v1575 = vunpack.c.l.b16 %v1523
      %v1576 = vunpack.c.l.b16 %v1524
      %v1577 = vunpack.c.l.b16 %v1525
      %v1578 = vunpack.c.l.b16 %v1526
      %v1579 = vunpack.c.l.b16 %v1527
      %v1580 = vunpack.c.l.b16 %v1528
      %v1581 = vunpack.c.l.b16 %v1529
      %v1582 = vunpack.c.l.b16 %v1530
      %v1583 = vpack.c.b16 %v1568, %v1567
      %v1584 = vpack.c.b16 %v1570, %v1569
      %v1585 = vpack.c.b16 %v1572, %v1571
      %v1586 = vpack.c.b16 %v1574, %v1573
      %v1587 = vpack.c.b16 %v1576, %v1575
      %v1588 = vpack.c.b16 %v1578, %v1577
      %v1589 = vpack.c.b16 %v1580, %v1579
      %v1590 = vpack.c.b16 %v1582, %v1581
      %1599 = vmatprep.subr.bf16.mxu0 0
      %1600 = vmatpush1.bf16.msra.mxu0 %v1583
      %1601 = vmatprep.subr.bf16.mxu0 0
      %1602 = vmatpush1.bf16.msra.mxu0 %v1584
      %1603 = vmatprep.subr.bf16.mxu0 0
      %1604 = vmatpush1.bf16.msra.mxu0 %v1585
      %1605 = vmatprep.subr.bf16.mxu0 0
      %1606 = vmatpush1.bf16.msra.mxu0 %v1586
      %1607 = vmatprep.subr.bf16.mxu0 0
      %1608 = vmatpush1.bf16.msra.mxu0 %v1587
      %1609 = vmatprep.subr.bf16.mxu0 0
      %1610 = vmatpush1.bf16.msra.mxu0 %v1588
      %1611 = vmatprep.subr.bf16.mxu0 0
      %1612 = vmatpush1.bf16.msra.mxu0 %v1589
      %1613 = vmatprep.subr.bf16.mxu0 0
      %1614 = vmatpush1.bf16.msra.mxu0 %v1590
      %1615 = vmatprep.subr.bf16.mxu0 0
      %1616 = vmatpush1.bf16.msra.mxu0 0
      %1617 = vmatprep.subr.bf16.mxu0 0
      %1618 = vmatpush1.bf16.msra.mxu0 0
      %1619 = vmatprep.subr.bf16.mxu0 0
      %1620 = vmatpush1.bf16.msra.mxu0 0
      %1621 = vmatprep.subr.bf16.mxu0 0
      %1622 = vmatpush1.bf16.msra.mxu0 0
      %1623 = vmatprep.subr.bf16.mxu0 0
      %1624 = vmatpush1.bf16.msra.mxu0 0
      %1625 = vmatprep.subr.bf16.mxu0 0
      %1626 = vmatpush1.bf16.msra.mxu0 0
      %1627 = vmatprep.subr.bf16.mxu0 0
      %1628 = vmatpush1.bf16.msra.mxu0 0
      %1629 = vmatprep.subr.bf16.mxu0 0
      %1630 = vmatpush1.bf16.msra.mxu0 0
      %1631 = vmatprep.mubr.bf16.mxu0 0
      %1632 = vmatmul.mubr.bf16.gmra.mrb[0].mxu0 %v1537
      %v1633 = vpop.f32.mrb[0].mxu0
      %v1634 = vadd.f32 0.0, %v1633
      %v1635 = vpop.f32.mrb[0].mxu0
      %v1636 = vpop.f32.mrb[0].mxu0
      %v1637 = vadd.f32 0.0, %v1636
      %v1638 = vpop.f32.mrb[0].mxu0
      %1639 = vmatprep.mubr.bf16.mxu0 0
      %1640 = vmatmul.mubr.bf16.gmra.mrb[0].mxu0 %v1539
      %v1641 = vpop.f32.mrb[0].mxu0
      %v1642 = vadd.f32 0.0, %v1641
      %v1643 = vpop.f32.mrb[0].mxu0
      %v1644 = vpop.f32.mrb[0].mxu0
      %v1645 = vadd.f32 0.0, %v1644
      %v1646 = vpop.f32.mrb[0].mxu0
      %1647 = vmatprep.mubr.bf16.mxu0 0
      %1648 = vmatmul.mubr.bf16.gmra.mrb[0].mxu0 %v1541
      %v1649 = vpop.f32.mrb[0].mxu0
      %v1650 = vadd.f32 0.0, %v1649
      %v1651 = vpop.f32.mrb[0].mxu0
      %v1652 = vpop.f32.mrb[0].mxu0
      %v1653 = vadd.f32 0.0, %v1652
      %v1654 = vpop.f32.mrb[0].mxu0
      %1655 = vmatprep.mubr.bf16.mxu0 0
      %1656 = vmatmul.mubr.bf16.gmra.mrb[0].mxu0 %v1543
      %v1657 = vpop.f32.mrb[0].mxu0
      %v1658 = vadd.f32 0.0, %v1657
      %v1659 = vpop.f32.mrb[0].mxu0
      %v1660 = vpop.f32.mrb[0].mxu0
      %v1661 = vadd.f32 0.0, %v1660
      %v1662 = vpop.f32.mrb[0].mxu0
      %1663 = vmatprep.mubr.bf16.mxu0 0
      %1664 = vmatmul.mubr.bf16.gmra.mrb[0].mxu0 %v1545
      %v1665 = vpop.f32.mrb[0].mxu0
      %v1666 = vadd.f32 0.0, %v1665
      %v1667 = vpop.f32.mrb[0].mxu0
      %v1668 = vpop.f32.mrb[0].mxu0
      %v1669 = vadd.f32 0.0, %v1668
      %v1670 = vpop.f32.mrb[0].mxu0
      %1671 = vdwg.mxu0
      %v1672 = vadd.f32 %v1504, %v1634
      %v1673 = vadd.f32 %v1505, %v1637
      %v1674 = vadd.f32 %v1506, %v1642
      %v1675 = vadd.f32 %v1507, %v1645
      %v1676 = vadd.f32 %v1508, %v1650
      %v1677 = vadd.f32 %v1509, %v1653
      %v1678 = vadd.f32 %v1510, %v1658
      %v1679 = vadd.f32 %v1511, %v1661
      %v1680 = vadd.f32 %v1512, %v1666
      %v1681 = vadd.f32 %v1513, %v1669
      %s1682 = scalar_lea.vmem %s3, 448
      %v1683 = vld [vmem:[%s1682] sm:$0xf]
      %v1684 = vld [vmem:[%s1682 + $0x4] sm:$0xf]
      %v1685 = vld [vmem:[%s1682 + $0x8] sm:$0xf]
      %v1686 = vld [vmem:[%s1682 + $0xc] sm:$0xf]
      %v1687 = vld [vmem:[%s1682 + $0x10] sm:$0xf]
      %v1688 = vld [vmem:[%s1682 + $0x14] sm:$0xf]
      %v1689 = vld [vmem:[%s1682 + $0x18] sm:$0xf]
      %v1690 = vld [vmem:[%s1682 + $0x1c] sm:$0xf]
      %v1691 = vld [vmem:[%s1682 + $0x20] sm:$0xf]
      %v1692 = vld [vmem:[%s1682 + $0x24] sm:$0xf]
      %v1693 = vld [vmem:[%s1682 + $0x28] sm:$0xf]
      %v1694 = vld [vmem:[%s1682 + $0x2c] sm:$0xf]
      %v1695 = vld [vmem:[%s1682 + $0x30] sm:$0xf]
      %v1696 = vld [vmem:[%s1682 + $0x34] sm:$0xf]
      %v1697 = vld [vmem:[%s1682 + $0x38] sm:$0xf]
      %v1698 = vld [vmem:[%s1682 + $0x3c] sm:$0xf]
      %vm1699 = vsmask.f32 5376
      %v1700 = vrot.slane %v521, 2
      %v1701 = vrot.slane %v517, 3
      %v1702 = vor.u32 %v1700, %v1701
      %v1703 = vrot.slane %v529, 2
      %v1704 = vrot.slane %v525, 3
      %v1705 = vor.u32 %v1703, %v1704
      %v1706 = vsel %vm1699, %v1702, %v1705
      %v1707 = vrot.slane %v537, 2
      %v1708 = vrot.slane %v533, 3
      %v1709 = vor.u32 %v1707, %v1708
      %v1710 = vsel %vm1699, %v1705, %v1709
      %v1711 = vrot.slane %v545, 2
      %v1712 = vrot.slane %v541, 3
      %v1713 = vor.u32 %v1711, %v1712
      %v1714 = vsel %vm1699, %v1709, %v1713
      %v1716 = vshrl.u32 %v1533, 16
      %v1718 = vrot.slane %v1716, 2
      %v1719 = vshll.u32 %v1533, 16
      %v1721 = vrot.slane %v1719, 3
      %v1722 = vor.u32 %v1718, %v1721
      %v1723 = vsel %vm1699, %v1713, %v1722
      %v1725 = vshrl.u32 %v1534, 16
      %v1727 = vrot.slane %v1725, 2
      %v1728 = vshll.u32 %v1534, 16
      %v1730 = vrot.slane %v1728, 3
      %v1731 = vor.u32 %v1727, %v1730
      %v1732 = vsel %vm1699, %v1722, %v1731
      %v1754 = vunpack.c.l.b16 %v1683
      %v1755 = vunpack.c.l.b16 %v1684
      %v1756 = vunpack.c.l.b16 %v1685
      %v1757 = vunpack.c.l.b16 %v1686
      %v1758 = vunpack.c.l.b16 %v1687
      %v1759 = vunpack.c.l.b16 %v1688
      %v1760 = vunpack.c.l.b16 %v1689
      %v1761 = vunpack.c.l.b16 %v1690
      %v1762 = vunpack.c.l.b16 %v1691
      %v1763 = vunpack.c.l.b16 %v1692
      %v1764 = vunpack.c.l.b16 %v1693
      %v1765 = vunpack.c.l.b16 %v1694
      %v1766 = vunpack.c.l.b16 %v1695
      %v1767 = vunpack.c.l.b16 %v1696
      %v1768 = vunpack.c.l.b16 %v1697
      %v1769 = vunpack.c.l.b16 %v1698
      %v1770 = vpack.c.b16 %v1755, %v1754
      %v1771 = vpack.c.b16 %v1757, %v1756
      %v1772 = vpack.c.b16 %v1759, %v1758
      %v1773 = vpack.c.b16 %v1761, %v1760
      %v1774 = vpack.c.b16 %v1763, %v1762
      %v1775 = vpack.c.b16 %v1765, %v1764
      %v1776 = vpack.c.b16 %v1767, %v1766
      %v1777 = vpack.c.b16 %v1769, %v1768
      %1786 = vmatprep.subr.bf16.mxu0 0
      %1787 = vmatpush1.bf16.msra.mxu0 %v1770
      %1788 = vmatprep.subr.bf16.mxu0 0
      %1789 = vmatpush1.bf16.msra.mxu0 %v1771
      %1790 = vmatprep.subr.bf16.mxu0 0
      %1791 = vmatpush1.bf16.msra.mxu0 %v1772
      %1792 = vmatprep.subr.bf16.mxu0 0
      %1793 = vmatpush1.bf16.msra.mxu0 %v1773
      %1794 = vmatprep.subr.bf16.mxu0 0
      %1795 = vmatpush1.bf16.msra.mxu0 %v1774
      %1796 = vmatprep.subr.bf16.mxu0 0
      %1797 = vmatpush1.bf16.msra.mxu0 %v1775
      %1798 = vmatprep.subr.bf16.mxu0 0
      %1799 = vmatpush1.bf16.msra.mxu0 %v1776
      %1800 = vmatprep.subr.bf16.mxu0 0
      %1801 = vmatpush1.bf16.msra.mxu0 %v1777
      %1802 = vmatprep.subr.bf16.mxu0 0
      %1803 = vmatpush1.bf16.msra.mxu0 0
      %1804 = vmatprep.subr.bf16.mxu0 0
      %1805 = vmatpush1.bf16.msra.mxu0 0
      %1806 = vmatprep.subr.bf16.mxu0 0
      %1807 = vmatpush1.bf16.msra.mxu0 0
      %1808 = vmatprep.subr.bf16.mxu0 0
      %1809 = vmatpush1.bf16.msra.mxu0 0
      %1810 = vmatprep.subr.bf16.mxu0 0
      %1811 = vmatpush1.bf16.msra.mxu0 0
      %1812 = vmatprep.subr.bf16.mxu0 0
      %1813 = vmatpush1.bf16.msra.mxu0 0
      %1814 = vmatprep.subr.bf16.mxu0 0
      %1815 = vmatpush1.bf16.msra.mxu0 0
      %1816 = vmatprep.subr.bf16.mxu0 0
      %1817 = vmatpush1.bf16.msra.mxu0 0
      %1818 = vmatprep.mubr.bf16.mxu0 0
      %1819 = vmatmul.mubr.bf16.gmra.mrb[0].mxu0 %v1706
      %v1820 = vpop.f32.mrb[0].mxu0
      %v1821 = vadd.f32 0.0, %v1820
      %v1822 = vpop.f32.mrb[0].mxu0
      %v1823 = vpop.f32.mrb[0].mxu0
      %v1824 = vadd.f32 0.0, %v1823
      %v1825 = vpop.f32.mrb[0].mxu0
      %1826 = vmatprep.mubr.bf16.mxu0 0
      %1827 = vmatmul.mubr.bf16.gmra.mrb[0].mxu0 %v1710
      %v1828 = vpop.f32.mrb[0].mxu0
      %v1829 = vadd.f32 0.0, %v1828
      %v1830 = vpop.f32.mrb[0].mxu0
      %v1831 = vpop.f32.mrb[0].mxu0
      %v1832 = vadd.f32 0.0, %v1831
      %v1833 = vpop.f32.mrb[0].mxu0
      %1834 = vmatprep.mubr.bf16.mxu0 0
      %1835 = vmatmul.mubr.bf16.gmra.mrb[0].mxu0 %v1714
      %v1836 = vpop.f32.mrb[0].mxu0
      %v1837 = vadd.f32 0.0, %v1836
      %v1838 = vpop.f32.mrb[0].mxu0
      %v1839 = vpop.f32.mrb[0].mxu0
      %v1840 = vadd.f32 0.0, %v1839
      %v1841 = vpop.f32.mrb[0].mxu0
      %1842 = vmatprep.mubr.bf16.mxu0 0
      %1843 = vmatmul.mubr.bf16.gmra.mrb[0].mxu0 %v1723
      %v1844 = vpop.f32.mrb[0].mxu0
      %v1845 = vadd.f32 0.0, %v1844
      %v1846 = vpop.f32.mrb[0].mxu0
      %v1847 = vpop.f32.mrb[0].mxu0
      %v1848 = vadd.f32 0.0, %v1847
      %v1849 = vpop.f32.mrb[0].mxu0
      %1850 = vmatprep.mubr.bf16.mxu0 0
      %1851 = vmatmul.mubr.bf16.gmra.mrb[0].mxu0 %v1732
      %v1852 = vpop.f32.mrb[0].mxu0
      %v1853 = vadd.f32 0.0, %v1852
      %v1854 = vpop.f32.mrb[0].mxu0
      %v1855 = vpop.f32.mrb[0].mxu0
      %v1856 = vadd.f32 0.0, %v1855
      %v1857 = vpop.f32.mrb[0].mxu0
      %1858 = vdwg.mxu0
      %v1859 = vadd.f32 %v1672, %v1821
      %v1860 = vadd.f32 %v1673, %v1824
      %v1861 = vadd.f32 %v1674, %v1829
      %v1862 = vadd.f32 %v1675, %v1832
      %v1863 = vadd.f32 %v1676, %v1837
      %v1864 = vadd.f32 %v1677, %v1840
      %v1865 = vadd.f32 %v1678, %v1845
      %v1866 = vadd.f32 %v1679, %v1848
      %v1867 = vadd.f32 %v1680, %v1853
      %v1868 = vadd.f32 %v1681, %v1856
      %s1869 = scalar_lea.vmem %s3, 512
      %v1870 = vld [vmem:[%s1869] sm:$0xf]
      %v1871 = vld [vmem:[%s1869 + $0x4] sm:$0xf]
      %v1872 = vld [vmem:[%s1869 + $0x8] sm:$0xf]
      %v1873 = vld [vmem:[%s1869 + $0xc] sm:$0xf]
      %v1874 = vld [vmem:[%s1869 + $0x10] sm:$0xf]
      %v1875 = vld [vmem:[%s1869 + $0x14] sm:$0xf]
      %v1876 = vld [vmem:[%s1869 + $0x18] sm:$0xf]
      %v1877 = vld [vmem:[%s1869 + $0x1c] sm:$0xf]
      %v1878 = vld [vmem:[%s1869 + $0x20] sm:$0xf]
      %v1879 = vld [vmem:[%s1869 + $0x24] sm:$0xf]
      %v1880 = vld [vmem:[%s1869 + $0x28] sm:$0xf]
      %v1881 = vld [vmem:[%s1869 + $0x2c] sm:$0xf]
      %v1882 = vld [vmem:[%s1869 + $0x30] sm:$0xf]
      %v1883 = vld [vmem:[%s1869 + $0x34] sm:$0xf]
      %v1884 = vld [vmem:[%s1869 + $0x38] sm:$0xf]
      %v1885 = vld [vmem:[%s1869 + $0x3c] sm:$0xf]
      %vm1886 = vcmask 1044480
      %v1887 = vrot.slane %v503, 3
      %v1888 = vrot.slane %v504, 3
      %v1889 = vsel %vm1886, %v1887, %v1888
      %v1890 = vrot.slane %v505, 3
      %v1891 = vsel %vm1886, %v1888, %v1890
      %v1892 = vrot.slane %v506, 3
      %v1893 = vsel %vm1886, %v1890, %v1892
      %v1894 = vrot.slane %v1533, 3
      %v1895 = vsel %vm1886, %v1892, %v1894
      %v1896 = vrot.slane %v1534, 3
      %v1897 = vsel %vm1886, %v1894, %v1896
      %v1919 = vunpack.c.l.b16 %v1870
      %v1920 = vunpack.c.l.b16 %v1871
      %v1921 = vunpack.c.l.b16 %v1872
      %v1922 = vunpack.c.l.b16 %v1873
      %v1923 = vunpack.c.l.b16 %v1874
      %v1924 = vunpack.c.l.b16 %v1875
      %v1925 = vunpack.c.l.b16 %v1876
      %v1926 = vunpack.c.l.b16 %v1877
      %v1927 = vunpack.c.l.b16 %v1878
      %v1928 = vunpack.c.l.b16 %v1879
      %v1929 = vunpack.c.l.b16 %v1880
      %v1930 = vunpack.c.l.b16 %v1881
      %v1931 = vunpack.c.l.b16 %v1882
      %v1932 = vunpack.c.l.b16 %v1883
      %v1933 = vunpack.c.l.b16 %v1884
      %v1934 = vunpack.c.l.b16 %v1885
      %v1935 = vpack.c.b16 %v1920, %v1919
      %v1936 = vpack.c.b16 %v1922, %v1921
      %v1937 = vpack.c.b16 %v1924, %v1923
      %v1938 = vpack.c.b16 %v1926, %v1925
      %v1939 = vpack.c.b16 %v1928, %v1927
      %v1940 = vpack.c.b16 %v1930, %v1929
      %v1941 = vpack.c.b16 %v1932, %v1931
      %v1942 = vpack.c.b16 %v1934, %v1933
      %1951 = vmatprep.subr.bf16.mxu0 0
      %1952 = vmatpush1.bf16.msra.mxu0 %v1935
      %1953 = vmatprep.subr.bf16.mxu0 0
      %1954 = vmatpush1.bf16.msra.mxu0 %v1936
      %1955 = vmatprep.subr.bf16.mxu0 0
      %1956 = vmatpush1.bf16.msra.mxu0 %v1937
      %1957 = vmatprep.subr.bf16.mxu0 0
      %1958 = vmatpush1.bf16.msra.mxu0 %v1938
      %1959 = vmatprep.subr.bf16.mxu0 0
      %1960 = vmatpush1.bf16.msra.mxu0 %v1939
      %1961 = vmatprep.subr.bf16.mxu0 0
      %1962 = vmatpush1.bf16.msra.mxu0 %v1940
      %1963 = vmatprep.subr.bf16.mxu0 0
      %1964 = vmatpush1.bf16.msra.mxu0 %v1941
      %1965 = vmatprep.subr.bf16.mxu0 0
      %1966 = vmatpush1.bf16.msra.mxu0 %v1942
      %1967 = vmatprep.subr.bf16.mxu0 0
      %1968 = vmatpush1.bf16.msra.mxu0 0
      %1969 = vmatprep.subr.bf16.mxu0 0
      %1970 = vmatpush1.bf16.msra.mxu0 0
      %1971 = vmatprep.subr.bf16.mxu0 0
      %1972 = vmatpush1.bf16.msra.mxu0 0
      %1973 = vmatprep.subr.bf16.mxu0 0
      %1974 = vmatpush1.bf16.msra.mxu0 0
      %1975 = vmatprep.subr.bf16.mxu0 0
      %1976 = vmatpush1.bf16.msra.mxu0 0
      %1977 = vmatprep.subr.bf16.mxu0 0
      %1978 = vmatpush1.bf16.msra.mxu0 0
      %1979 = vmatprep.subr.bf16.mxu0 0
      %1980 = vmatpush1.bf16.msra.mxu0 0
      %1981 = vmatprep.subr.bf16.mxu0 0
      %1982 = vmatpush1.bf16.msra.mxu0 0
      %1983 = vmatprep.mubr.bf16.mxu0 0
      %1984 = vmatmul.mubr.bf16.gmra.mrb[0].mxu0 %v1889
      %v1985 = vpop.f32.mrb[0].mxu0
      %v1986 = vadd.f32 0.0, %v1985
      %v1987 = vpop.f32.mrb[0].mxu0
      %v1988 = vpop.f32.mrb[0].mxu0
      %v1989 = vadd.f32 0.0, %v1988
      %v1990 = vpop.f32.mrb[0].mxu0
      %1991 = vmatprep.mubr.bf16.mxu0 0
      %1992 = vmatmul.mubr.bf16.gmra.mrb[0].mxu0 %v1891
      %v1993 = vpop.f32.mrb[0].mxu0
      %v1994 = vadd.f32 0.0, %v1993
      %v1995 = vpop.f32.mrb[0].mxu0
      %v1996 = vpop.f32.mrb[0].mxu0
      %v1997 = vadd.f32 0.0, %v1996
      %v1998 = vpop.f32.mrb[0].mxu0
      %1999 = vmatprep.mubr.bf16.mxu0 0
      %2000 = vmatmul.mubr.bf16.gmra.mrb[0].mxu0 %v1893
      %v2001 = vpop.f32.mrb[0].mxu0
      %v2002 = vadd.f32 0.0, %v2001
      %v2003 = vpop.f32.mrb[0].mxu0
      %v2004 = vpop.f32.mrb[0].mxu0
      %v2005 = vadd.f32 0.0, %v2004
      %v2006 = vpop.f32.mrb[0].mxu0
      %2007 = vmatprep.mubr.bf16.mxu0 0
      %2008 = vmatmul.mubr.bf16.gmra.mrb[0].mxu0 %v1895
      %v2009 = vpop.f32.mrb[0].mxu0
      %v2010 = vadd.f32 0.0, %v2009
      %v2011 = vpop.f32.mrb[0].mxu0
      %v2012 = vpop.f32.mrb[0].mxu0
      %v2013 = vadd.f32 0.0, %v2012
      %v2014 = vpop.f32.mrb[0].mxu0
      %2015 = vmatprep.mubr.bf16.mxu0 0
      %2016 = vmatmul.mubr.bf16.gmra.mrb[0].mxu0 %v1897
      %v2017 = vpop.f32.mrb[0].mxu0
      %v2018 = vadd.f32 0.0, %v2017
      %v2019 = vpop.f32.mrb[0].mxu0
      %v2020 = vpop.f32.mrb[0].mxu0
      %v2021 = vadd.f32 0.0, %v2020
      %v2022 = vpop.f32.mrb[0].mxu0
      %2023 = vdwg.mxu0
      %v2024 = vadd.f32 %v1859, %v1986
      %v2025 = vadd.f32 %v1860, %v1989
      %v2026 = vadd.f32 %v1861, %v1994
      %v2027 = vadd.f32 %v1862, %v1997
      %v2028 = vadd.f32 %v1863, %v2002
      %v2029 = vadd.f32 %v1864, %v2005
      %v2030 = vadd.f32 %v1865, %v2010
      %v2031 = vadd.f32 %v1866, %v2013
      %v2032 = vadd.f32 %v1867, %v2018
      %v2033 = vadd.f32 %v1868, %v2021
      %s2034 = scalar_lea.vmem %s3, 576
      %v2035 = vld [vmem:[%s2034] sm:$0xf]
      %v2036 = vld [vmem:[%s2034 + $0x4] sm:$0xf]
      %v2037 = vld [vmem:[%s2034 + $0x8] sm:$0xf]
      %v2038 = vld [vmem:[%s2034 + $0xc] sm:$0xf]
      %v2039 = vld [vmem:[%s2034 + $0x10] sm:$0xf]
      %v2040 = vld [vmem:[%s2034 + $0x14] sm:$0xf]
      %v2041 = vld [vmem:[%s2034 + $0x18] sm:$0xf]
      %v2042 = vld [vmem:[%s2034 + $0x1c] sm:$0xf]
      %v2043 = vld [vmem:[%s2034 + $0x20] sm:$0xf]
      %v2044 = vld [vmem:[%s2034 + $0x24] sm:$0xf]
      %v2045 = vld [vmem:[%s2034 + $0x28] sm:$0xf]
      %v2046 = vld [vmem:[%s2034 + $0x2c] sm:$0xf]
      %v2047 = vld [vmem:[%s2034 + $0x30] sm:$0xf]
      %v2048 = vld [vmem:[%s2034 + $0x34] sm:$0xf]
      %v2049 = vld [vmem:[%s2034 + $0x38] sm:$0xf]
      %v2050 = vld [vmem:[%s2034 + $0x3c] sm:$0xf]
      %v2061 = vunpack.c.l.b16 %v421
      %v2062 = vunpack.c.l.b16 %v422
      %v2063 = vunpack.c.l.b16 %v423
      %v2064 = vunpack.c.l.b16 %v424
      %v2065 = vunpack.c.l.b16 %v425
      %v2066 = vunpack.c.l.b16 %v426
      %v2067 = vunpack.c.l.b16 %v427
      %v2068 = vunpack.c.l.b16 %v428
      %v2069 = vunpack.c.l.b16 %v429
      %v2070 = vunpack.c.l.b16 %v430
      %v2071 = vpack.c.b16 %v2062, %v2061
      %v2072 = vpack.c.b16 %v2064, %v2063
      %v2073 = vpack.c.b16 %v2066, %v2065
      %v2074 = vpack.c.b16 %v2068, %v2067
      %v2075 = vpack.c.b16 %v2070, %v2069
      %v2097 = vunpack.c.l.b16 %v2035
      %v2098 = vunpack.c.l.b16 %v2036
      %v2099 = vunpack.c.l.b16 %v2037
      %v2100 = vunpack.c.l.b16 %v2038
      %v2101 = vunpack.c.l.b16 %v2039
      %v2102 = vunpack.c.l.b16 %v2040
      %v2103 = vunpack.c.l.b16 %v2041
      %v2104 = vunpack.c.l.b16 %v2042
      %v2105 = vunpack.c.l.b16 %v2043
      %v2106 = vunpack.c.l.b16 %v2044
      %v2107 = vunpack.c.l.b16 %v2045
      %v2108 = vunpack.c.l.b16 %v2046
      %v2109 = vunpack.c.l.b16 %v2047
      %v2110 = vunpack.c.l.b16 %v2048
      %v2111 = vunpack.c.l.b16 %v2049
      %v2112 = vunpack.c.l.b16 %v2050
      %v2113 = vpack.c.b16 %v2098, %v2097
      %v2114 = vpack.c.b16 %v2100, %v2099
      %v2115 = vpack.c.b16 %v2102, %v2101
      %v2116 = vpack.c.b16 %v2104, %v2103
      %v2117 = vpack.c.b16 %v2106, %v2105
      %v2118 = vpack.c.b16 %v2108, %v2107
      %v2119 = vpack.c.b16 %v2110, %v2109
      %v2120 = vpack.c.b16 %v2112, %v2111
      %2129 = vmatprep.subr.bf16.mxu0 0
      %2130 = vmatpush1.bf16.msra.mxu0 %v2113
      %2131 = vmatprep.subr.bf16.mxu0 0
      %2132 = vmatpush1.bf16.msra.mxu0 %v2114
      %2133 = vmatprep.subr.bf16.mxu0 0
      %2134 = vmatpush1.bf16.msra.mxu0 %v2115
      %2135 = vmatprep.subr.bf16.mxu0 0
      %2136 = vmatpush1.bf16.msra.mxu0 %v2116
      %2137 = vmatprep.subr.bf16.mxu0 0
      %2138 = vmatpush1.bf16.msra.mxu0 %v2117
      %2139 = vmatprep.subr.bf16.mxu0 0
      %2140 = vmatpush1.bf16.msra.mxu0 %v2118
      %2141 = vmatprep.subr.bf16.mxu0 0
      %2142 = vmatpush1.bf16.msra.mxu0 %v2119
      %2143 = vmatprep.subr.bf16.mxu0 0
      %2144 = vmatpush1.bf16.msra.mxu0 %v2120
      %2145 = vmatprep.subr.bf16.mxu0 0
      %2146 = vmatpush1.bf16.msra.mxu0 0
      %2147 = vmatprep.subr.bf16.mxu0 0
      %2148 = vmatpush1.bf16.msra.mxu0 0
      %2149 = vmatprep.subr.bf16.mxu0 0
      %2150 = vmatpush1.bf16.msra.mxu0 0
      %2151 = vmatprep.subr.bf16.mxu0 0
      %2152 = vmatpush1.bf16.msra.mxu0 0
      %2153 = vmatprep.subr.bf16.mxu0 0
      %2154 = vmatpush1.bf16.msra.mxu0 0
      %2155 = vmatprep.subr.bf16.mxu0 0
      %2156 = vmatpush1.bf16.msra.mxu0 0
      %2157 = vmatprep.subr.bf16.mxu0 0
      %2158 = vmatpush1.bf16.msra.mxu0 0
      %2159 = vmatprep.subr.bf16.mxu0 0
      %2160 = vmatpush1.bf16.msra.mxu0 0
      %2161 = vmatprep.mubr.bf16.mxu0 0
      %2162 = vmatmul.mubr.bf16.gmra.mrb[0].mxu0 %v2071
      %v2163 = vpop.f32.mrb[0].mxu0
      %v2164 = vadd.f32 0.0, %v2163
      %v2165 = vpop.f32.mrb[0].mxu0
      %v2166 = vpop.f32.mrb[0].mxu0
      %v2167 = vadd.f32 0.0, %v2166
      %v2168 = vpop.f32.mrb[0].mxu0
      %2169 = vmatprep.mubr.bf16.mxu0 0
      %2170 = vmatmul.mubr.bf16.gmra.mrb[0].mxu0 %v2072
      %v2171 = vpop.f32.mrb[0].mxu0
      %v2172 = vadd.f32 0.0, %v2171
      %v2173 = vpop.f32.mrb[0].mxu0
      %v2174 = vpop.f32.mrb[0].mxu0
      %v2175 = vadd.f32 0.0, %v2174
      %v2176 = vpop.f32.mrb[0].mxu0
      %2177 = vmatprep.mubr.bf16.mxu0 0
      %2178 = vmatmul.mubr.bf16.gmra.mrb[0].mxu0 %v2073
      %v2179 = vpop.f32.mrb[0].mxu0
      %v2180 = vadd.f32 0.0, %v2179
      %v2181 = vpop.f32.mrb[0].mxu0
      %v2182 = vpop.f32.mrb[0].mxu0
      %v2183 = vadd.f32 0.0, %v2182
      %v2184 = vpop.f32.mrb[0].mxu0
      %2185 = vmatprep.mubr.bf16.mxu0 0
      %2186 = vmatmul.mubr.bf16.gmra.mrb[0].mxu0 %v2074
      %v2187 = vpop.f32.mrb[0].mxu0
      %v2188 = vadd.f32 0.0, %v2187
      %v2189 = vpop.f32.mrb[0].mxu0
      %v2190 = vpop.f32.mrb[0].mxu0
      %v2191 = vadd.f32 0.0, %v2190
      %v2192 = vpop.f32.mrb[0].mxu0
      %2193 = vmatprep.mubr.bf16.mxu0 0
      %2194 = vmatmul.mubr.bf16.gmra.mrb[0].mxu0 %v2075
      %v2195 = vpop.f32.mrb[0].mxu0
      %v2196 = vadd.f32 0.0, %v2195
      %v2197 = vpop.f32.mrb[0].mxu0
      %v2198 = vpop.f32.mrb[0].mxu0
      %v2199 = vadd.f32 0.0, %v2198
      %v2200 = vpop.f32.mrb[0].mxu0
      %2201 = vdwg.mxu0
      %v2202 = vadd.f32 %v2024, %v2164
      %v2203 = vadd.f32 %v2025, %v2167
      %v2204 = vadd.f32 %v2026, %v2172
      %v2205 = vadd.f32 %v2027, %v2175
      %v2206 = vadd.f32 %v2028, %v2180
      %v2207 = vadd.f32 %v2029, %v2183
      %v2208 = vadd.f32 %v2030, %v2188
      %v2209 = vadd.f32 %v2031, %v2191
      %v2210 = vadd.f32 %v2032, %v2196
      %v2211 = vadd.f32 %v2033, %v2199
      %s2212 = scalar_lea.vmem %s3, 640
      %v2213 = vld [vmem:[%s2212] sm:$0xf]
      %v2214 = vld [vmem:[%s2212 + $0x4] sm:$0xf]
      %v2215 = vld [vmem:[%s2212 + $0x8] sm:$0xf]
      %v2216 = vld [vmem:[%s2212 + $0xc] sm:$0xf]
      %v2217 = vld [vmem:[%s2212 + $0x10] sm:$0xf]
      %v2218 = vld [vmem:[%s2212 + $0x14] sm:$0xf]
      %v2219 = vld [vmem:[%s2212 + $0x18] sm:$0xf]
      %v2220 = vld [vmem:[%s2212 + $0x1c] sm:$0xf]
      %v2221 = vld [vmem:[%s2212 + $0x20] sm:$0xf]
      %v2222 = vld [vmem:[%s2212 + $0x24] sm:$0xf]
      %v2223 = vld [vmem:[%s2212 + $0x28] sm:$0xf]
      %v2224 = vld [vmem:[%s2212 + $0x2c] sm:$0xf]
      %v2225 = vld [vmem:[%s2212 + $0x30] sm:$0xf]
      %v2226 = vld [vmem:[%s2212 + $0x34] sm:$0xf]
      %v2227 = vld [vmem:[%s2212 + $0x38] sm:$0xf]
      %v2228 = vld [vmem:[%s2212 + $0x3c] sm:$0xf]
      %v2230 = vunpack.c.l.b16 %v431
      %v2231 = vpack.c.b16 %v2230, %v2230
      %v2233 = vshrl.u32 %v2071, 16
      %v2235 = vshll.u32 %v2071, 16
      %v2237 = vrot.slane %v2235, 1
      %v2238 = vor.u32 %v2233, %v2237
      %v2240 = vshll.u32 %v2072, 16
      %v2242 = vrot.slane %v2240, 1
      %v2243 = vsel %vm508, %v2238, %v2242
      %v2244 = vshrl.u32 %v2072, 16
      %v2246 = vor.u32 %v2244, %v2242
      %v2248 = vshll.u32 %v2073, 16
      %v2250 = vrot.slane %v2248, 1
      %v2251 = vsel %vm508, %v2246, %v2250
      %v2252 = vshrl.u32 %v2073, 16
      %v2254 = vor.u32 %v2252, %v2250
      %v2256 = vshll.u32 %v2074, 16
      %v2258 = vrot.slane %v2256, 1
      %v2259 = vsel %vm508, %v2254, %v2258
      %v2260 = vshrl.u32 %v2074, 16
      %v2262 = vor.u32 %v2260, %v2258
      %v2264 = vshll.u32 %v2075, 16
      %v2266 = vrot.slane %v2264, 1
      %v2267 = vsel %vm508, %v2262, %v2266
      %v2268 = vshrl.u32 %v2075, 16
      %v2270 = vor.u32 %v2268, %v2266
      %v2272 = vshll.u32 %v2231, 16
      %v2274 = vrot.slane %v2272, 1
      %v2275 = vsel %vm508, %v2270, %v2274
      %v2297 = vunpack.c.l.b16 %v2213
      %v2298 = vunpack.c.l.b16 %v2214
      %v2299 = vunpack.c.l.b16 %v2215
      %v2300 = vunpack.c.l.b16 %v2216
      %v2301 = vunpack.c.l.b16 %v2217
      %v2302 = vunpack.c.l.b16 %v2218
      %v2303 = vunpack.c.l.b16 %v2219
      %v2304 = vunpack.c.l.b16 %v2220
      %v2305 = vunpack.c.l.b16 %v2221
      %v2306 = vunpack.c.l.b16 %v2222
      %v2307 = vunpack.c.l.b16 %v2223
      %v2308 = vunpack.c.l.b16 %v2224
      %v2309 = vunpack.c.l.b16 %v2225
      %v2310 = vunpack.c.l.b16 %v2226
      %v2311 = vunpack.c.l.b16 %v2227
      %v2312 = vunpack.c.l.b16 %v2228
      %v2313 = vpack.c.b16 %v2298, %v2297
      %v2314 = vpack.c.b16 %v2300, %v2299
      %v2315 = vpack.c.b16 %v2302, %v2301
      %v2316 = vpack.c.b16 %v2304, %v2303
      %v2317 = vpack.c.b16 %v2306, %v2305
      %v2318 = vpack.c.b16 %v2308, %v2307
      %v2319 = vpack.c.b16 %v2310, %v2309
      %v2320 = vpack.c.b16 %v2312, %v2311
      %2329 = vmatprep.subr.bf16.mxu0 0
      %2330 = vmatpush1.bf16.msra.mxu0 %v2313
      %2331 = vmatprep.subr.bf16.mxu0 0
      %2332 = vmatpush1.bf16.msra.mxu0 %v2314
      %2333 = vmatprep.subr.bf16.mxu0 0
      %2334 = vmatpush1.bf16.msra.mxu0 %v2315
      %2335 = vmatprep.subr.bf16.mxu0 0
      %2336 = vmatpush1.bf16.msra.mxu0 %v2316
      %2337 = vmatprep.subr.bf16.mxu0 0
      %2338 = vmatpush1.bf16.msra.mxu0 %v2317
      %2339 = vmatprep.subr.bf16.mxu0 0
      %2340 = vmatpush1.bf16.msra.mxu0 %v2318
      %2341 = vmatprep.subr.bf16.mxu0 0
      %2342 = vmatpush1.bf16.msra.mxu0 %v2319
      %2343 = vmatprep.subr.bf16.mxu0 0
      %2344 = vmatpush1.bf16.msra.mxu0 %v2320
      %2345 = vmatprep.subr.bf16.mxu0 0
      %2346 = vmatpush1.bf16.msra.mxu0 0
      %2347 = vmatprep.subr.bf16.mxu0 0
      %2348 = vmatpush1.bf16.msra.mxu0 0
      %2349 = vmatprep.subr.bf16.mxu0 0
      %2350 = vmatpush1.bf16.msra.mxu0 0
      %2351 = vmatprep.subr.bf16.mxu0 0
      %2352 = vmatpush1.bf16.msra.mxu0 0
      %2353 = vmatprep.subr.bf16.mxu0 0
      %2354 = vmatpush1.bf16.msra.mxu0 0
      %2355 = vmatprep.subr.bf16.mxu0 0
      %2356 = vmatpush1.bf16.msra.mxu0 0
      %2357 = vmatprep.subr.bf16.mxu0 0
      %2358 = vmatpush1.bf16.msra.mxu0 0
      %2359 = vmatprep.subr.bf16.mxu0 0
      %2360 = vmatpush1.bf16.msra.mxu0 0
      %2361 = vmatprep.mubr.bf16.mxu0 0
      %2362 = vmatmul.mubr.bf16.gmra.mrb[0].mxu0 %v2243
      %v2363 = vpop.f32.mrb[0].mxu0
      %v2364 = vadd.f32 0.0, %v2363
      %v2365 = vpop.f32.mrb[0].mxu0
      %v2366 = vpop.f32.mrb[0].mxu0
      %v2367 = vadd.f32 0.0, %v2366
      %v2368 = vpop.f32.mrb[0].mxu0
      %2369 = vmatprep.mubr.bf16.mxu0 0
      %2370 = vmatmul.mubr.bf16.gmra.mrb[0].mxu0 %v2251
      %v2371 = vpop.f32.mrb[0].mxu0
      %v2372 = vadd.f32 0.0, %v2371
      %v2373 = vpop.f32.mrb[0].mxu0
      %v2374 = vpop.f32.mrb[0].mxu0
      %v2375 = vadd.f32 0.0, %v2374
      %v2376 = vpop.f32.mrb[0].mxu0
      %2377 = vmatprep.mubr.bf16.mxu0 0
      %2378 = vmatmul.mubr.bf16.gmra.mrb[0].mxu0 %v2259
      %v2379 = vpop.f32.mrb[0].mxu0
      %v2380 = vadd.f32 0.0, %v2379
      %v2381 = vpop.f32.mrb[0].mxu0
      %v2382 = vpop.f32.mrb[0].mxu0
      %v2383 = vadd.f32 0.0, %v2382
      %v2384 = vpop.f32.mrb[0].mxu0
      %2385 = vmatprep.mubr.bf16.mxu0 0
      %2386 = vmatmul.mubr.bf16.gmra.mrb[0].mxu0 %v2267
      %v2387 = vpop.f32.mrb[0].mxu0
      %v2388 = vadd.f32 0.0, %v2387
      %v2389 = vpop.f32.mrb[0].mxu0
      %v2390 = vpop.f32.mrb[0].mxu0
      %v2391 = vadd.f32 0.0, %v2390
      %v2392 = vpop.f32.mrb[0].mxu0
      %2393 = vmatprep.mubr.bf16.mxu0 0
      %2394 = vmatmul.mubr.bf16.gmra.mrb[0].mxu0 %v2275
      %v2395 = vpop.f32.mrb[0].mxu0
      %v2396 = vadd.f32 0.0, %v2395
      %v2397 = vpop.f32.mrb[0].mxu0
      %v2398 = vpop.f32.mrb[0].mxu0
      %v2399 = vadd.f32 0.0, %v2398
      %v2400 = vpop.f32.mrb[0].mxu0
      %2401 = vdwg.mxu0
      %v2402 = vadd.f32 %v2202, %v2364
      %v2403 = vadd.f32 %v2203, %v2367
      %v2404 = vadd.f32 %v2204, %v2372
      %v2405 = vadd.f32 %v2205, %v2375
      %v2406 = vadd.f32 %v2206, %v2380
      %v2407 = vadd.f32 %v2207, %v2383
      %v2408 = vadd.f32 %v2208, %v2388
      %v2409 = vadd.f32 %v2209, %v2391
      %v2410 = vadd.f32 %v2210, %v2396
      %v2411 = vadd.f32 %v2211, %v2399
      %s2412 = scalar_lea.vmem %s3, 704
      %v2413 = vld [vmem:[%s2412] sm:$0xf]
      %v2414 = vld [vmem:[%s2412 + $0x4] sm:$0xf]
      %v2415 = vld [vmem:[%s2412 + $0x8] sm:$0xf]
      %v2416 = vld [vmem:[%s2412 + $0xc] sm:$0xf]
      %v2417 = vld [vmem:[%s2412 + $0x10] sm:$0xf]
      %v2418 = vld [vmem:[%s2412 + $0x14] sm:$0xf]
      %v2419 = vld [vmem:[%s2412 + $0x18] sm:$0xf]
      %v2420 = vld [vmem:[%s2412 + $0x1c] sm:$0xf]
      %v2421 = vld [vmem:[%s2412 + $0x20] sm:$0xf]
      %v2422 = vld [vmem:[%s2412 + $0x24] sm:$0xf]
      %v2423 = vld [vmem:[%s2412 + $0x28] sm:$0xf]
      %v2424 = vld [vmem:[%s2412 + $0x2c] sm:$0xf]
      %v2425 = vld [vmem:[%s2412 + $0x30] sm:$0xf]
      %v2426 = vld [vmem:[%s2412 + $0x34] sm:$0xf]
      %v2427 = vld [vmem:[%s2412 + $0x38] sm:$0xf]
      %v2428 = vld [vmem:[%s2412 + $0x3c] sm:$0xf]
      %v2429 = vrot.slane %v2071, 1
      %v2430 = vrot.slane %v2072, 1
      %v2431 = vsel %vm822, %v2429, %v2430
      %v2432 = vrot.slane %v2073, 1
      %v2433 = vsel %vm822, %v2430, %v2432
      %v2434 = vrot.slane %v2074, 1
      %v2435 = vsel %vm822, %v2432, %v2434
      %v2436 = vrot.slane %v2075, 1
      %v2437 = vsel %vm822, %v2434, %v2436
      %v2438 = vrot.slane %v2231, 1
      %v2439 = vsel %vm822, %v2436, %v2438
      %v2461 = vunpack.c.l.b16 %v2413
      %v2462 = vunpack.c.l.b16 %v2414
      %v2463 = vunpack.c.l.b16 %v2415
      %v2464 = vunpack.c.l.b16 %v2416
      %v2465 = vunpack.c.l.b16 %v2417
      %v2466 = vunpack.c.l.b16 %v2418
      %v2467 = vunpack.c.l.b16 %v2419
      %v2468 = vunpack.c.l.b16 %v2420
      %v2469 = vunpack.c.l.b16 %v2421
      %v2470 = vunpack.c.l.b16 %v2422
      %v2471 = vunpack.c.l.b16 %v2423
      %v2472 = vunpack.c.l.b16 %v2424
      %v2473 = vunpack.c.l.b16 %v2425
      %v2474 = vunpack.c.l.b16 %v2426
      %v2475 = vunpack.c.l.b16 %v2427
      %v2476 = vunpack.c.l.b16 %v2428
      %v2477 = vpack.c.b16 %v2462, %v2461
      %v2478 = vpack.c.b16 %v2464, %v2463
      %v2479 = vpack.c.b16 %v2466, %v2465
      %v2480 = vpack.c.b16 %v2468, %v2467
      %v2481 = vpack.c.b16 %v2470, %v2469
      %v2482 = vpack.c.b16 %v2472, %v2471
      %v2483 = vpack.c.b16 %v2474, %v2473
      %v2484 = vpack.c.b16 %v2476, %v2475
      %2493 = vmatprep.subr.bf16.mxu0 0
      %2494 = vmatpush1.bf16.msra.mxu0 %v2477
      %2495 = vmatprep.subr.bf16.mxu0 0
      %2496 = vmatpush1.bf16.msra.mxu0 %v2478
      %2497 = vmatprep.subr.bf16.mxu0 0
      %2498 = vmatpush1.bf16.msra.mxu0 %v2479
      %2499 = vmatprep.subr.bf16.mxu0 0
      %2500 = vmatpush1.bf16.msra.mxu0 %v2480
      %2501 = vmatprep.subr.bf16.mxu0 0
      %2502 = vmatpush1.bf16.msra.mxu0 %v2481
      %2503 = vmatprep.subr.bf16.mxu0 0
      %2504 = vmatpush1.bf16.msra.mxu0 %v2482
      %2505 = vmatprep.subr.bf16.mxu0 0
      %2506 = vmatpush1.bf16.msra.mxu0 %v2483
      %2507 = vmatprep.subr.bf16.mxu0 0
      %2508 = vmatpush1.bf16.msra.mxu0 %v2484
      %2509 = vmatprep.subr.bf16.mxu0 0
      %2510 = vmatpush1.bf16.msra.mxu0 0
      %2511 = vmatprep.subr.bf16.mxu0 0
      %2512 = vmatpush1.bf16.msra.mxu0 0
      %2513 = vmatprep.subr.bf16.mxu0 0
      %2514 = vmatpush1.bf16.msra.mxu0 0
      %2515 = vmatprep.subr.bf16.mxu0 0
      %2516 = vmatpush1.bf16.msra.mxu0 0
      %2517 = vmatprep.subr.bf16.mxu0 0
      %2518 = vmatpush1.bf16.msra.mxu0 0
      %2519 = vmatprep.subr.bf16.mxu0 0
      %2520 = vmatpush1.bf16.msra.mxu0 0
      %2521 = vmatprep.subr.bf16.mxu0 0
      %2522 = vmatpush1.bf16.msra.mxu0 0
      %2523 = vmatprep.subr.bf16.mxu0 0
      %2524 = vmatpush1.bf16.msra.mxu0 0
      %2525 = vmatprep.mubr.bf16.mxu0 0
      %2526 = vmatmul.mubr.bf16.gmra.mrb[0].mxu0 %v2431
      %v2527 = vpop.f32.mrb[0].mxu0
      %v2528 = vadd.f32 0.0, %v2527
      %v2529 = vpop.f32.mrb[0].mxu0
      %v2530 = vpop.f32.mrb[0].mxu0
      %v2531 = vadd.f32 0.0, %v2530
      %v2532 = vpop.f32.mrb[0].mxu0
      %2533 = vmatprep.mubr.bf16.mxu0 0
      %2534 = vmatmul.mubr.bf16.gmra.mrb[0].mxu0 %v2433
      %v2535 = vpop.f32.mrb[0].mxu0
      %v2536 = vadd.f32 0.0, %v2535
      %v2537 = vpop.f32.mrb[0].mxu0
      %v2538 = vpop.f32.mrb[0].mxu0
      %v2539 = vadd.f32 0.0, %v2538
      %v2540 = vpop.f32.mrb[0].mxu0
      %2541 = vmatprep.mubr.bf16.mxu0 0
      %2542 = vmatmul.mubr.bf16.gmra.mrb[0].mxu0 %v2435
      %v2543 = vpop.f32.mrb[0].mxu0
      %v2544 = vadd.f32 0.0, %v2543
      %v2545 = vpop.f32.mrb[0].mxu0
      %v2546 = vpop.f32.mrb[0].mxu0
      %v2547 = vadd.f32 0.0, %v2546
      %v2548 = vpop.f32.mrb[0].mxu0
      %2549 = vmatprep.mubr.bf16.mxu0 0
      %2550 = vmatmul.mubr.bf16.gmra.mrb[0].mxu0 %v2437
      %v2551 = vpop.f32.mrb[0].mxu0
      %v2552 = vadd.f32 0.0, %v2551
      %v2553 = vpop.f32.mrb[0].mxu0
      %v2554 = vpop.f32.mrb[0].mxu0
      %v2555 = vadd.f32 0.0, %v2554
      %v2556 = vpop.f32.mrb[0].mxu0
      %2557 = vmatprep.mubr.bf16.mxu0 0
      %2558 = vmatmul.mubr.bf16.gmra.mrb[0].mxu0 %v2439
      %v2559 = vpop.f32.mrb[0].mxu0
      %v2560 = vadd.f32 0.0, %v2559
      %v2561 = vpop.f32.mrb[0].mxu0
      %v2562 = vpop.f32.mrb[0].mxu0
      %v2563 = vadd.f32 0.0, %v2562
      %v2564 = vpop.f32.mrb[0].mxu0
      %2565 = vdwg.mxu0
      %v2566 = vadd.f32 %v2402, %v2528
      %v2567 = vadd.f32 %v2403, %v2531
      %v2568 = vadd.f32 %v2404, %v2536
      %v2569 = vadd.f32 %v2405, %v2539
      %v2570 = vadd.f32 %v2406, %v2544
      %v2571 = vadd.f32 %v2407, %v2547
      %v2572 = vadd.f32 %v2408, %v2552
      %v2573 = vadd.f32 %v2409, %v2555
      %v2574 = vadd.f32 %v2410, %v2560
      %v2575 = vadd.f32 %v2411, %v2563
      %s2576 = scalar_lea.vmem %s3, 768
      %v2577 = vld [vmem:[%s2576] sm:$0xf]
      %v2578 = vld [vmem:[%s2576 + $0x4] sm:$0xf]
      %v2579 = vld [vmem:[%s2576 + $0x8] sm:$0xf]
      %v2580 = vld [vmem:[%s2576 + $0xc] sm:$0xf]
      %v2581 = vld [vmem:[%s2576 + $0x10] sm:$0xf]
      %v2582 = vld [vmem:[%s2576 + $0x14] sm:$0xf]
      %v2583 = vld [vmem:[%s2576 + $0x18] sm:$0xf]
      %v2584 = vld [vmem:[%s2576 + $0x1c] sm:$0xf]
      %v2585 = vld [vmem:[%s2576 + $0x20] sm:$0xf]
      %v2586 = vld [vmem:[%s2576 + $0x24] sm:$0xf]
      %v2587 = vld [vmem:[%s2576 + $0x28] sm:$0xf]
      %v2588 = vld [vmem:[%s2576 + $0x2c] sm:$0xf]
      %v2589 = vld [vmem:[%s2576 + $0x30] sm:$0xf]
      %v2590 = vld [vmem:[%s2576 + $0x34] sm:$0xf]
      %v2591 = vld [vmem:[%s2576 + $0x38] sm:$0xf]
      %v2592 = vld [vmem:[%s2576 + $0x3c] sm:$0xf]
      %v2594 = vunpack.c.l.b16 %v432
      %v2595 = vpack.c.b16 %v2063, %v2062
      %v2596 = vpack.c.b16 %v2065, %v2064
      %v2597 = vpack.c.b16 %v2067, %v2066
      %v2598 = vpack.c.b16 %v2069, %v2068
      %v2599 = vpack.c.b16 %v2230, %v2070
      %v2600 = vpack.c.b16 %v2594, %v2594
      %v2601 = vrot.slane %v2595, 1
      %v2602 = vrot.slane %v2596, 1
      %v2603 = vsel %vm822, %v2601, %v2602
      %v2604 = vrot.slane %v2597, 1
      %v2605 = vsel %vm822, %v2602, %v2604
      %v2606 = vrot.slane %v2598, 1
      %v2607 = vsel %vm822, %v2604, %v2606
      %v2608 = vrot.slane %v2599, 1
      %v2609 = vsel %vm822, %v2606, %v2608
      %v2610 = vrot.slane %v2600, 1
      %v2611 = vsel %vm822, %v2608, %v2610
      %v2633 = vunpack.c.l.b16 %v2577
      %v2634 = vunpack.c.l.b16 %v2578
      %v2635 = vunpack.c.l.b16 %v2579
      %v2636 = vunpack.c.l.b16 %v2580
      %v2637 = vunpack.c.l.b16 %v2581
      %v2638 = vunpack.c.l.b16 %v2582
      %v2639 = vunpack.c.l.b16 %v2583
      %v2640 = vunpack.c.l.b16 %v2584
      %v2641 = vunpack.c.l.b16 %v2585
      %v2642 = vunpack.c.l.b16 %v2586
      %v2643 = vunpack.c.l.b16 %v2587
      %v2644 = vunpack.c.l.b16 %v2588
      %v2645 = vunpack.c.l.b16 %v2589
      %v2646 = vunpack.c.l.b16 %v2590
      %v2647 = vunpack.c.l.b16 %v2591
      %v2648 = vunpack.c.l.b16 %v2592
      %v2649 = vpack.c.b16 %v2634, %v2633
      %v2650 = vpack.c.b16 %v2636, %v2635
      %v2651 = vpack.c.b16 %v2638, %v2637
      %v2652 = vpack.c.b16 %v2640, %v2639
      %v2653 = vpack.c.b16 %v2642, %v2641
      %v2654 = vpack.c.b16 %v2644, %v2643
      %v2655 = vpack.c.b16 %v2646, %v2645
      %v2656 = vpack.c.b16 %v2648, %v2647
      %2665 = vmatprep.subr.bf16.mxu0 0
      %2666 = vmatpush1.bf16.msra.mxu0 %v2649
      %2667 = vmatprep.subr.bf16.mxu0 0
      %2668 = vmatpush1.bf16.msra.mxu0 %v2650
      %2669 = vmatprep.subr.bf16.mxu0 0
      %2670 = vmatpush1.bf16.msra.mxu0 %v2651
      %2671 = vmatprep.subr.bf16.mxu0 0
      %2672 = vmatpush1.bf16.msra.mxu0 %v2652
      %2673 = vmatprep.subr.bf16.mxu0 0
      %2674 = vmatpush1.bf16.msra.mxu0 %v2653
      %2675 = vmatprep.subr.bf16.mxu0 0
      %2676 = vmatpush1.bf16.msra.mxu0 %v2654
      %2677 = vmatprep.subr.bf16.mxu0 0
      %2678 = vmatpush1.bf16.msra.mxu0 %v2655
      %2679 = vmatprep.subr.bf16.mxu0 0
      %2680 = vmatpush1.bf16.msra.mxu0 %v2656
      %2681 = vmatprep.subr.bf16.mxu0 0
      %2682 = vmatpush1.bf16.msra.mxu0 0
      %2683 = vmatprep.subr.bf16.mxu0 0
      %2684 = vmatpush1.bf16.msra.mxu0 0
      %2685 = vmatprep.subr.bf16.mxu0 0
      %2686 = vmatpush1.bf16.msra.mxu0 0
      %2687 = vmatprep.subr.bf16.mxu0 0
      %2688 = vmatpush1.bf16.msra.mxu0 0
      %2689 = vmatprep.subr.bf16.mxu0 0
      %2690 = vmatpush1.bf16.msra.mxu0 0
      %2691 = vmatprep.subr.bf16.mxu0 0
      %2692 = vmatpush1.bf16.msra.mxu0 0
      %2693 = vmatprep.subr.bf16.mxu0 0
      %2694 = vmatpush1.bf16.msra.mxu0 0
      %2695 = vmatprep.subr.bf16.mxu0 0
      %2696 = vmatpush1.bf16.msra.mxu0 0
      %2697 = vmatprep.mubr.bf16.mxu0 0
      %2698 = vmatmul.mubr.bf16.gmra.mrb[0].mxu0 %v2603
      %v2699 = vpop.f32.mrb[0].mxu0
      %v2700 = vadd.f32 0.0, %v2699
      %v2701 = vpop.f32.mrb[0].mxu0
      %v2702 = vpop.f32.mrb[0].mxu0
      %v2703 = vadd.f32 0.0, %v2702
      %v2704 = vpop.f32.mrb[0].mxu0
      %2705 = vmatprep.mubr.bf16.mxu0 0
      %2706 = vmatmul.mubr.bf16.gmra.mrb[0].mxu0 %v2605
      %v2707 = vpop.f32.mrb[0].mxu0
      %v2708 = vadd.f32 0.0, %v2707
      %v2709 = vpop.f32.mrb[0].mxu0
      %v2710 = vpop.f32.mrb[0].mxu0
      %v2711 = vadd.f32 0.0, %v2710
      %v2712 = vpop.f32.mrb[0].mxu0
      %2713 = vmatprep.mubr.bf16.mxu0 0
      %2714 = vmatmul.mubr.bf16.gmra.mrb[0].mxu0 %v2607
      %v2715 = vpop.f32.mrb[0].mxu0
      %v2716 = vadd.f32 0.0, %v2715
      %v2717 = vpop.f32.mrb[0].mxu0
      %v2718 = vpop.f32.mrb[0].mxu0
      %v2719 = vadd.f32 0.0, %v2718
      %v2720 = vpop.f32.mrb[0].mxu0
      %2721 = vmatprep.mubr.bf16.mxu0 0
      %2722 = vmatmul.mubr.bf16.gmra.mrb[0].mxu0 %v2609
      %v2723 = vpop.f32.mrb[0].mxu0
      %v2724 = vadd.f32 0.0, %v2723
      %v2725 = vpop.f32.mrb[0].mxu0
      %v2726 = vpop.f32.mrb[0].mxu0
      %v2727 = vadd.f32 0.0, %v2726
      %v2728 = vpop.f32.mrb[0].mxu0
      %2729 = vmatprep.mubr.bf16.mxu0 0
      %2730 = vmatmul.mubr.bf16.gmra.mrb[0].mxu0 %v2611
      %v2731 = vpop.f32.mrb[0].mxu0
      %v2732 = vadd.f32 0.0, %v2731
      %v2733 = vpop.f32.mrb[0].mxu0
      %v2734 = vpop.f32.mrb[0].mxu0
      %v2735 = vadd.f32 0.0, %v2734
      %v2736 = vpop.f32.mrb[0].mxu0
      %2737 = vdwg.mxu0
      %v2738 = vadd.f32 %v2566, %v2700
      %v2739 = vadd.f32 %v2567, %v2703
      %v2740 = vadd.f32 %v2568, %v2708
      %v2741 = vadd.f32 %v2569, %v2711
      %v2742 = vadd.f32 %v2570, %v2716
      %v2743 = vadd.f32 %v2571, %v2719
      %v2744 = vadd.f32 %v2572, %v2724
      %v2745 = vadd.f32 %v2573, %v2727
      %v2746 = vadd.f32 %v2574, %v2732
      %v2747 = vadd.f32 %v2575, %v2735
      %s2748 = scalar_lea.vmem %s3, 832
      %v2749 = vld [vmem:[%s2748] sm:$0xf]
      %v2750 = vld [vmem:[%s2748 + $0x4] sm:$0xf]
      %v2751 = vld [vmem:[%s2748 + $0x8] sm:$0xf]
      %v2752 = vld [vmem:[%s2748 + $0xc] sm:$0xf]
      %v2753 = vld [vmem:[%s2748 + $0x10] sm:$0xf]
      %v2754 = vld [vmem:[%s2748 + $0x14] sm:$0xf]
      %v2755 = vld [vmem:[%s2748 + $0x18] sm:$0xf]
      %v2756 = vld [vmem:[%s2748 + $0x1c] sm:$0xf]
      %v2757 = vld [vmem:[%s2748 + $0x20] sm:$0xf]
      %v2758 = vld [vmem:[%s2748 + $0x24] sm:$0xf]
      %v2759 = vld [vmem:[%s2748 + $0x28] sm:$0xf]
      %v2760 = vld [vmem:[%s2748 + $0x2c] sm:$0xf]
      %v2761 = vld [vmem:[%s2748 + $0x30] sm:$0xf]
      %v2762 = vld [vmem:[%s2748 + $0x34] sm:$0xf]
      %v2763 = vld [vmem:[%s2748 + $0x38] sm:$0xf]
      %v2764 = vld [vmem:[%s2748 + $0x3c] sm:$0xf]
      %v2766 = vshrl.u32 %v2595, 16
      %v2768 = vrot.slane %v2766, 1
      %v2769 = vshll.u32 %v2595, 16
      %v2771 = vrot.slane %v2769, 2
      %v2772 = vor.u32 %v2768, %v2771
      %v2774 = vshrl.u32 %v2596, 16
      %v2776 = vrot.slane %v2774, 1
      %v2777 = vshll.u32 %v2596, 16
      %v2779 = vrot.slane %v2777, 2
      %v2780 = vor.u32 %v2776, %v2779
      %v2781 = vsel %vm1159, %v2772, %v2780
      %v2783 = vshrl.u32 %v2597, 16
      %v2785 = vrot.slane %v2783, 1
      %v2786 = vshll.u32 %v2597, 16
      %v2788 = vrot.slane %v2786, 2
      %v2789 = vor.u32 %v2785, %v2788
      %v2790 = vsel %vm1159, %v2780, %v2789
      %v2792 = vshrl.u32 %v2598, 16
      %v2794 = vrot.slane %v2792, 1
      %v2795 = vshll.u32 %v2598, 16
      %v2797 = vrot.slane %v2795, 2
      %v2798 = vor.u32 %v2794, %v2797
      %v2799 = vsel %vm1159, %v2789, %v2798
      %v2801 = vshrl.u32 %v2599, 16
      %v2803 = vrot.slane %v2801, 1
      %v2804 = vshll.u32 %v2599, 16
      %v2806 = vrot.slane %v2804, 2
      %v2807 = vor.u32 %v2803, %v2806
      %v2808 = vsel %vm1159, %v2798, %v2807
      %v2810 = vshrl.u32 %v2600, 16
      %v2812 = vrot.slane %v2810, 1
      %v2813 = vshll.u32 %v2600, 16
      %v2815 = vrot.slane %v2813, 2
      %v2816 = vor.u32 %v2812, %v2815
      %v2817 = vsel %vm1159, %v2807, %v2816
      %v2839 = vunpack.c.l.b16 %v2749
      %v2840 = vunpack.c.l.b16 %v2750
      %v2841 = vunpack.c.l.b16 %v2751
      %v2842 = vunpack.c.l.b16 %v2752
      %v2843 = vunpack.c.l.b16 %v2753
      %v2844 = vunpack.c.l.b16 %v2754
      %v2845 = vunpack.c.l.b16 %v2755
      %v2846 = vunpack.c.l.b16 %v2756
      %v2847 = vunpack.c.l.b16 %v2757
      %v2848 = vunpack.c.l.b16 %v2758
      %v2849 = vunpack.c.l.b16 %v2759
      %v2850 = vunpack.c.l.b16 %v2760
      %v2851 = vunpack.c.l.b16 %v2761
      %v2852 = vunpack.c.l.b16 %v2762
      %v2853 = vunpack.c.l.b16 %v2763
      %v2854 = vunpack.c.l.b16 %v2764
      %v2855 = vpack.c.b16 %v2840, %v2839
      %v2856 = vpack.c.b16 %v2842, %v2841
      %v2857 = vpack.c.b16 %v2844, %v2843
      %v2858 = vpack.c.b16 %v2846, %v2845
      %v2859 = vpack.c.b16 %v2848, %v2847
      %v2860 = vpack.c.b16 %v2850, %v2849
      %v2861 = vpack.c.b16 %v2852, %v2851
      %v2862 = vpack.c.b16 %v2854, %v2853
      %2871 = vmatprep.subr.bf16.mxu0 0
      %2872 = vmatpush1.bf16.msra.mxu0 %v2855
      %2873 = vmatprep.subr.bf16.mxu0 0
      %2874 = vmatpush1.bf16.msra.mxu0 %v2856
      %2875 = vmatprep.subr.bf16.mxu0 0
      %2876 = vmatpush1.bf16.msra.mxu0 %v2857
      %2877 = vmatprep.subr.bf16.mxu0 0
      %2878 = vmatpush1.bf16.msra.mxu0 %v2858
      %2879 = vmatprep.subr.bf16.mxu0 0
      %2880 = vmatpush1.bf16.msra.mxu0 %v2859
      %2881 = vmatprep.subr.bf16.mxu0 0
      %2882 = vmatpush1.bf16.msra.mxu0 %v2860
      %2883 = vmatprep.subr.bf16.mxu0 0
      %2884 = vmatpush1.bf16.msra.mxu0 %v2861
      %2885 = vmatprep.subr.bf16.mxu0 0
      %2886 = vmatpush1.bf16.msra.mxu0 %v2862
      %2887 = vmatprep.subr.bf16.mxu0 0
      %2888 = vmatpush1.bf16.msra.mxu0 0
      %2889 = vmatprep.subr.bf16.mxu0 0
      %2890 = vmatpush1.bf16.msra.mxu0 0
      %2891 = vmatprep.subr.bf16.mxu0 0
      %2892 = vmatpush1.bf16.msra.mxu0 0
      %2893 = vmatprep.subr.bf16.mxu0 0
      %2894 = vmatpush1.bf16.msra.mxu0 0
      %2895 = vmatprep.subr.bf16.mxu0 0
      %2896 = vmatpush1.bf16.msra.mxu0 0
      %2897 = vmatprep.subr.bf16.mxu0 0
      %2898 = vmatpush1.bf16.msra.mxu0 0
      %2899 = vmatprep.subr.bf16.mxu0 0
      %2900 = vmatpush1.bf16.msra.mxu0 0
      %2901 = vmatprep.subr.bf16.mxu0 0
      %2902 = vmatpush1.bf16.msra.mxu0 0
      %2903 = vmatprep.mubr.bf16.mxu0 0
      %2904 = vmatmul.mubr.bf16.gmra.mrb[0].mxu0 %v2781
      %v2905 = vpop.f32.mrb[0].mxu0
      %v2906 = vadd.f32 0.0, %v2905
      %v2907 = vpop.f32.mrb[0].mxu0
      %v2908 = vpop.f32.mrb[0].mxu0
      %v2909 = vadd.f32 0.0, %v2908
      %v2910 = vpop.f32.mrb[0].mxu0
      %2911 = vmatprep.mubr.bf16.mxu0 0
      %2912 = vmatmul.mubr.bf16.gmra.mrb[0].mxu0 %v2790
      %v2913 = vpop.f32.mrb[0].mxu0
      %v2914 = vadd.f32 0.0, %v2913
      %v2915 = vpop.f32.mrb[0].mxu0
      %v2916 = vpop.f32.mrb[0].mxu0
      %v2917 = vadd.f32 0.0, %v2916
      %v2918 = vpop.f32.mrb[0].mxu0
      %2919 = vmatprep.mubr.bf16.mxu0 0
      %2920 = vmatmul.mubr.bf16.gmra.mrb[0].mxu0 %v2799
      %v2921 = vpop.f32.mrb[0].mxu0
      %v2922 = vadd.f32 0.0, %v2921
      %v2923 = vpop.f32.mrb[0].mxu0
      %v2924 = vpop.f32.mrb[0].mxu0
      %v2925 = vadd.f32 0.0, %v2924
      %v2926 = vpop.f32.mrb[0].mxu0
      %2927 = vmatprep.mubr.bf16.mxu0 0
      %2928 = vmatmul.mubr.bf16.gmra.mrb[0].mxu0 %v2808
      %v2929 = vpop.f32.mrb[0].mxu0
      %v2930 = vadd.f32 0.0, %v2929
      %v2931 = vpop.f32.mrb[0].mxu0
      %v2932 = vpop.f32.mrb[0].mxu0
      %v2933 = vadd.f32 0.0, %v2932
      %v2934 = vpop.f32.mrb[0].mxu0
      %2935 = vmatprep.mubr.bf16.mxu0 0
      %2936 = vmatmul.mubr.bf16.gmra.mrb[0].mxu0 %v2817
      %v2937 = vpop.f32.mrb[0].mxu0
      %v2938 = vadd.f32 0.0, %v2937
      %v2939 = vpop.f32.mrb[0].mxu0
      %v2940 = vpop.f32.mrb[0].mxu0
      %v2941 = vadd.f32 0.0, %v2940
      %v2942 = vpop.f32.mrb[0].mxu0
      %2943 = vdwg.mxu0
      %v2944 = vadd.f32 %v2738, %v2906
      %v2945 = vadd.f32 %v2739, %v2909
      %v2946 = vadd.f32 %v2740, %v2914
      %v2947 = vadd.f32 %v2741, %v2917
      %v2948 = vadd.f32 %v2742, %v2922
      %v2949 = vadd.f32 %v2743, %v2925
      %v2950 = vadd.f32 %v2744, %v2930
      %v2951 = vadd.f32 %v2745, %v2933
      %v2952 = vadd.f32 %v2746, %v2938
      %v2953 = vadd.f32 %v2747, %v2941
      %s2954 = scalar_lea.vmem %s3, 896
      %v2955 = vld [vmem:[%s2954] sm:$0xf]
      %v2956 = vld [vmem:[%s2954 + $0x4] sm:$0xf]
      %v2957 = vld [vmem:[%s2954 + $0x8] sm:$0xf]
      %v2958 = vld [vmem:[%s2954 + $0xc] sm:$0xf]
      %v2959 = vld [vmem:[%s2954 + $0x10] sm:$0xf]
      %v2960 = vld [vmem:[%s2954 + $0x14] sm:$0xf]
      %v2961 = vld [vmem:[%s2954 + $0x18] sm:$0xf]
      %v2962 = vld [vmem:[%s2954 + $0x1c] sm:$0xf]
      %v2963 = vld [vmem:[%s2954 + $0x20] sm:$0xf]
      %v2964 = vld [vmem:[%s2954 + $0x24] sm:$0xf]
      %v2965 = vld [vmem:[%s2954 + $0x28] sm:$0xf]
      %v2966 = vld [vmem:[%s2954 + $0x2c] sm:$0xf]
      %v2967 = vld [vmem:[%s2954 + $0x30] sm:$0xf]
      %v2968 = vld [vmem:[%s2954 + $0x34] sm:$0xf]
      %v2969 = vld [vmem:[%s2954 + $0x38] sm:$0xf]
      %v2970 = vld [vmem:[%s2954 + $0x3c] sm:$0xf]
      %v2971 = vrot.slane %v2595, 2
      %v2972 = vrot.slane %v2596, 2
      %v2973 = vsel %vm1366, %v2971, %v2972
      %v2974 = vrot.slane %v2597, 2
      %v2975 = vsel %vm1366, %v2972, %v2974
      %v2976 = vrot.slane %v2598, 2
      %v2977 = vsel %vm1366, %v2974, %v2976
      %v2978 = vrot.slane %v2599, 2
      %v2979 = vsel %vm1366, %v2976, %v2978
      %v2980 = vrot.slane %v2600, 2
      %v2981 = vsel %vm1366, %v2978, %v2980
      %v3003 = vunpack.c.l.b16 %v2955
      %v3004 = vunpack.c.l.b16 %v2956
      %v3005 = vunpack.c.l.b16 %v2957
      %v3006 = vunpack.c.l.b16 %v2958
      %v3007 = vunpack.c.l.b16 %v2959
      %v3008 = vunpack.c.l.b16 %v2960
      %v3009 = vunpack.c.l.b16 %v2961
      %v3010 = vunpack.c.l.b16 %v2962
      %v3011 = vunpack.c.l.b16 %v2963
      %v3012 = vunpack.c.l.b16 %v2964
      %v3013 = vunpack.c.l.b16 %v2965
      %v3014 = vunpack.c.l.b16 %v2966
      %v3015 = vunpack.c.l.b16 %v2967
      %v3016 = vunpack.c.l.b16 %v2968
      %v3017 = vunpack.c.l.b16 %v2969
      %v3018 = vunpack.c.l.b16 %v2970
      %v3019 = vpack.c.b16 %v3004, %v3003
      %v3020 = vpack.c.b16 %v3006, %v3005
      %v3021 = vpack.c.b16 %v3008, %v3007
      %v3022 = vpack.c.b16 %v3010, %v3009
      %v3023 = vpack.c.b16 %v3012, %v3011
      %v3024 = vpack.c.b16 %v3014, %v3013
      %v3025 = vpack.c.b16 %v3016, %v3015
      %v3026 = vpack.c.b16 %v3018, %v3017
      %3035 = vmatprep.subr.bf16.mxu0 0
      %3036 = vmatpush1.bf16.msra.mxu0 %v3019
      %3037 = vmatprep.subr.bf16.mxu0 0
      %3038 = vmatpush1.bf16.msra.mxu0 %v3020
      %3039 = vmatprep.subr.bf16.mxu0 0
      %3040 = vmatpush1.bf16.msra.mxu0 %v3021
      %3041 = vmatprep.subr.bf16.mxu0 0
      %3042 = vmatpush1.bf16.msra.mxu0 %v3022
      %3043 = vmatprep.subr.bf16.mxu0 0
      %3044 = vmatpush1.bf16.msra.mxu0 %v3023
      %3045 = vmatprep.subr.bf16.mxu0 0
      %3046 = vmatpush1.bf16.msra.mxu0 %v3024
      %3047 = vmatprep.subr.bf16.mxu0 0
      %3048 = vmatpush1.bf16.msra.mxu0 %v3025
      %3049 = vmatprep.subr.bf16.mxu0 0
      %3050 = vmatpush1.bf16.msra.mxu0 %v3026
      %3051 = vmatprep.subr.bf16.mxu0 0
      %3052 = vmatpush1.bf16.msra.mxu0 0
      %3053 = vmatprep.subr.bf16.mxu0 0
      %3054 = vmatpush1.bf16.msra.mxu0 0
      %3055 = vmatprep.subr.bf16.mxu0 0
      %3056 = vmatpush1.bf16.msra.mxu0 0
      %3057 = vmatprep.subr.bf16.mxu0 0
      %3058 = vmatpush1.bf16.msra.mxu0 0
      %3059 = vmatprep.subr.bf16.mxu0 0
      %3060 = vmatpush1.bf16.msra.mxu0 0
      %3061 = vmatprep.subr.bf16.mxu0 0
      %3062 = vmatpush1.bf16.msra.mxu0 0
      %3063 = vmatprep.subr.bf16.mxu0 0
      %3064 = vmatpush1.bf16.msra.mxu0 0
      %3065 = vmatprep.subr.bf16.mxu0 0
      %3066 = vmatpush1.bf16.msra.mxu0 0
      %3067 = vmatprep.mubr.bf16.mxu0 0
      %3068 = vmatmul.mubr.bf16.gmra.mrb[0].mxu0 %v2973
      %v3069 = vpop.f32.mrb[0].mxu0
      %v3070 = vadd.f32 0.0, %v3069
      %v3071 = vpop.f32.mrb[0].mxu0
      %v3072 = vpop.f32.mrb[0].mxu0
      %v3073 = vadd.f32 0.0, %v3072
      %v3074 = vpop.f32.mrb[0].mxu0
      %3075 = vmatprep.mubr.bf16.mxu0 0
      %3076 = vmatmul.mubr.bf16.gmra.mrb[0].mxu0 %v2975
      %v3077 = vpop.f32.mrb[0].mxu0
      %v3078 = vadd.f32 0.0, %v3077
      %v3079 = vpop.f32.mrb[0].mxu0
      %v3080 = vpop.f32.mrb[0].mxu0
      %v3081 = vadd.f32 0.0, %v3080
      %v3082 = vpop.f32.mrb[0].mxu0
      %3083 = vmatprep.mubr.bf16.mxu0 0
      %3084 = vmatmul.mubr.bf16.gmra.mrb[0].mxu0 %v2977
      %v3085 = vpop.f32.mrb[0].mxu0
      %v3086 = vadd.f32 0.0, %v3085
      %v3087 = vpop.f32.mrb[0].mxu0
      %v3088 = vpop.f32.mrb[0].mxu0
      %v3089 = vadd.f32 0.0, %v3088
      %v3090 = vpop.f32.mrb[0].mxu0
      %3091 = vmatprep.mubr.bf16.mxu0 0
      %3092 = vmatmul.mubr.bf16.gmra.mrb[0].mxu0 %v2979
      %v3093 = vpop.f32.mrb[0].mxu0
      %v3094 = vadd.f32 0.0, %v3093
      %v3095 = vpop.f32.mrb[0].mxu0
      %v3096 = vpop.f32.mrb[0].mxu0
      %v3097 = vadd.f32 0.0, %v3096
      %v3098 = vpop.f32.mrb[0].mxu0
      %3099 = vmatprep.mubr.bf16.mxu0 0
      %3100 = vmatmul.mubr.bf16.gmra.mrb[0].mxu0 %v2981
      %v3101 = vpop.f32.mrb[0].mxu0
      %v3102 = vadd.f32 0.0, %v3101
      %v3103 = vpop.f32.mrb[0].mxu0
      %v3104 = vpop.f32.mrb[0].mxu0
      %v3105 = vadd.f32 0.0, %v3104
      %v3106 = vpop.f32.mrb[0].mxu0
      %3107 = vdwg.mxu0
      %v3108 = vadd.f32 %v2944, %v3070
      %v3109 = vadd.f32 %v2945, %v3073
      %v3110 = vadd.f32 %v2946, %v3078
      %v3111 = vadd.f32 %v2947, %v3081
      %v3112 = vadd.f32 %v2948, %v3086
      %v3113 = vadd.f32 %v2949, %v3089
      %v3114 = vadd.f32 %v2950, %v3094
      %v3115 = vadd.f32 %v2951, %v3097
      %v3116 = vadd.f32 %v2952, %v3102
      %v3117 = vadd.f32 %v2953, %v3105
      %s3118 = scalar_lea.vmem %s3, 960
      %v3119 = vld [vmem:[%s3118] sm:$0xf]
      %v3120 = vld [vmem:[%s3118 + $0x4] sm:$0xf]
      %v3121 = vld [vmem:[%s3118 + $0x8] sm:$0xf]
      %v3122 = vld [vmem:[%s3118 + $0xc] sm:$0xf]
      %v3123 = vld [vmem:[%s3118 + $0x10] sm:$0xf]
      %v3124 = vld [vmem:[%s3118 + $0x14] sm:$0xf]
      %v3125 = vld [vmem:[%s3118 + $0x18] sm:$0xf]
      %v3126 = vld [vmem:[%s3118 + $0x1c] sm:$0xf]
      %v3127 = vld [vmem:[%s3118 + $0x20] sm:$0xf]
      %v3128 = vld [vmem:[%s3118 + $0x24] sm:$0xf]
      %v3129 = vld [vmem:[%s3118 + $0x28] sm:$0xf]
      %v3130 = vld [vmem:[%s3118 + $0x2c] sm:$0xf]
      %v3131 = vld [vmem:[%s3118 + $0x30] sm:$0xf]
      %v3132 = vld [vmem:[%s3118 + $0x34] sm:$0xf]
      %v3133 = vld [vmem:[%s3118 + $0x38] sm:$0xf]
      %v3134 = vld [vmem:[%s3118 + $0x3c] sm:$0xf]
      %v3136 = vunpack.c.l.b16 %v433
      %v3137 = vpack.c.b16 %v2594, %v2230
      %v3138 = vpack.c.b16 %v3136, %v3136
      %v3139 = vrot.slane %v2072, 2
      %v3140 = vrot.slane %v2073, 2
      %v3141 = vsel %vm1366, %v3139, %v3140
      %v3142 = vrot.slane %v2074, 2
      %v3143 = vsel %vm1366, %v3140, %v3142
      %v3144 = vrot.slane %v2075, 2
      %v3145 = vsel %vm1366, %v3142, %v3144
      %v3146 = vrot.slane %v3137, 2
      %v3147 = vsel %vm1366, %v3144, %v3146
      %v3148 = vrot.slane %v3138, 2
      %v3149 = vsel %vm1366, %v3146, %v3148
      %v3171 = vunpack.c.l.b16 %v3119
      %v3172 = vunpack.c.l.b16 %v3120
      %v3173 = vunpack.c.l.b16 %v3121
      %v3174 = vunpack.c.l.b16 %v3122
      %v3175 = vunpack.c.l.b16 %v3123
      %v3176 = vunpack.c.l.b16 %v3124
      %v3177 = vunpack.c.l.b16 %v3125
      %v3178 = vunpack.c.l.b16 %v3126
      %v3179 = vunpack.c.l.b16 %v3127
      %v3180 = vunpack.c.l.b16 %v3128
      %v3181 = vunpack.c.l.b16 %v3129
      %v3182 = vunpack.c.l.b16 %v3130
      %v3183 = vunpack.c.l.b16 %v3131
      %v3184 = vunpack.c.l.b16 %v3132
      %v3185 = vunpack.c.l.b16 %v3133
      %v3186 = vunpack.c.l.b16 %v3134
      %v3187 = vpack.c.b16 %v3172, %v3171
      %v3188 = vpack.c.b16 %v3174, %v3173
      %v3189 = vpack.c.b16 %v3176, %v3175
      %v3190 = vpack.c.b16 %v3178, %v3177
      %v3191 = vpack.c.b16 %v3180, %v3179
      %v3192 = vpack.c.b16 %v3182, %v3181
      %v3193 = vpack.c.b16 %v3184, %v3183
      %v3194 = vpack.c.b16 %v3186, %v3185
      %3203 = vmatprep.subr.bf16.mxu0 0
      %3204 = vmatpush1.bf16.msra.mxu0 %v3187
      %3205 = vmatprep.subr.bf16.mxu0 0
      %3206 = vmatpush1.bf16.msra.mxu0 %v3188
      %3207 = vmatprep.subr.bf16.mxu0 0
      %3208 = vmatpush1.bf16.msra.mxu0 %v3189
      %3209 = vmatprep.subr.bf16.mxu0 0
      %3210 = vmatpush1.bf16.msra.mxu0 %v3190
      %3211 = vmatprep.subr.bf16.mxu0 0
      %3212 = vmatpush1.bf16.msra.mxu0 %v3191
      %3213 = vmatprep.subr.bf16.mxu0 0
      %3214 = vmatpush1.bf16.msra.mxu0 %v3192
      %3215 = vmatprep.subr.bf16.mxu0 0
      %3216 = vmatpush1.bf16.msra.mxu0 %v3193
      %3217 = vmatprep.subr.bf16.mxu0 0
      %3218 = vmatpush1.bf16.msra.mxu0 %v3194
      %3219 = vmatprep.subr.bf16.mxu0 0
      %3220 = vmatpush1.bf16.msra.mxu0 0
      %3221 = vmatprep.subr.bf16.mxu0 0
      %3222 = vmatpush1.bf16.msra.mxu0 0
      %3223 = vmatprep.subr.bf16.mxu0 0
      %3224 = vmatpush1.bf16.msra.mxu0 0
      %3225 = vmatprep.subr.bf16.mxu0 0
      %3226 = vmatpush1.bf16.msra.mxu0 0
      %3227 = vmatprep.subr.bf16.mxu0 0
      %3228 = vmatpush1.bf16.msra.mxu0 0
      %3229 = vmatprep.subr.bf16.mxu0 0
      %3230 = vmatpush1.bf16.msra.mxu0 0
      %3231 = vmatprep.subr.bf16.mxu0 0
      %3232 = vmatpush1.bf16.msra.mxu0 0
      %3233 = vmatprep.subr.bf16.mxu0 0
      %3234 = vmatpush1.bf16.msra.mxu0 0
      %3235 = vmatprep.mubr.bf16.mxu0 0
      %3236 = vmatmul.mubr.bf16.gmra.mrb[0].mxu0 %v3141
      %v3237 = vpop.f32.mrb[0].mxu0
      %v3238 = vadd.f32 0.0, %v3237
      %v3239 = vpop.f32.mrb[0].mxu0
      %v3240 = vpop.f32.mrb[0].mxu0
      %v3241 = vadd.f32 0.0, %v3240
      %v3242 = vpop.f32.mrb[0].mxu0
      %3243 = vmatprep.mubr.bf16.mxu0 0
      %3244 = vmatmul.mubr.bf16.gmra.mrb[0].mxu0 %v3143
      %v3245 = vpop.f32.mrb[0].mxu0
      %v3246 = vadd.f32 0.0, %v3245
      %v3247 = vpop.f32.mrb[0].mxu0
      %v3248 = vpop.f32.mrb[0].mxu0
      %v3249 = vadd.f32 0.0, %v3248
      %v3250 = vpop.f32.mrb[0].mxu0
      %3251 = vmatprep.mubr.bf16.mxu0 0
      %3252 = vmatmul.mubr.bf16.gmra.mrb[0].mxu0 %v3145
      %v3253 = vpop.f32.mrb[0].mxu0
      %v3254 = vadd.f32 0.0, %v3253
      %v3255 = vpop.f32.mrb[0].mxu0
      %v3256 = vpop.f32.mrb[0].mxu0
      %v3257 = vadd.f32 0.0, %v3256
      %v3258 = vpop.f32.mrb[0].mxu0
      %3259 = vmatprep.mubr.bf16.mxu0 0
      %3260 = vmatmul.mubr.bf16.gmra.mrb[0].mxu0 %v3147
      %v3261 = vpop.f32.mrb[0].mxu0
      %v3262 = vadd.f32 0.0, %v3261
      %v3263 = vpop.f32.mrb[0].mxu0
      %v3264 = vpop.f32.mrb[0].mxu0
      %v3265 = vadd.f32 0.0, %v3264
      %v3266 = vpop.f32.mrb[0].mxu0
      %3267 = vmatprep.mubr.bf16.mxu0 0
      %3268 = vmatmul.mubr.bf16.gmra.mrb[0].mxu0 %v3149
      %v3269 = vpop.f32.mrb[0].mxu0
      %v3270 = vadd.f32 0.0, %v3269
      %v3271 = vpop.f32.mrb[0].mxu0
      %v3272 = vpop.f32.mrb[0].mxu0
      %v3273 = vadd.f32 0.0, %v3272
      %v3274 = vpop.f32.mrb[0].mxu0
      %3275 = vdwg.mxu0
      %v3276 = vadd.f32 %v3108, %v3238
      %v3277 = vadd.f32 %v3109, %v3241
      %v3278 = vadd.f32 %v3110, %v3246
      %v3279 = vadd.f32 %v3111, %v3249
      %v3280 = vadd.f32 %v3112, %v3254
      %v3281 = vadd.f32 %v3113, %v3257
      %v3282 = vadd.f32 %v3114, %v3262
      %v3283 = vadd.f32 %v3115, %v3265
      %v3284 = vadd.f32 %v3116, %v3270
      %v3285 = vadd.f32 %v3117, %v3273
      %s3286 = scalar_lea.vmem %s3, 1024
      %v3287 = vld [vmem:[%s3286] sm:$0xf]
      %v3288 = vld [vmem:[%s3286 + $0x4] sm:$0xf]
      %v3289 = vld [vmem:[%s3286 + $0x8] sm:$0xf]
      %v3290 = vld [vmem:[%s3286 + $0xc] sm:$0xf]
      %v3291 = vld [vmem:[%s3286 + $0x10] sm:$0xf]
      %v3292 = vld [vmem:[%s3286 + $0x14] sm:$0xf]
      %v3293 = vld [vmem:[%s3286 + $0x18] sm:$0xf]
      %v3294 = vld [vmem:[%s3286 + $0x1c] sm:$0xf]
      %v3295 = vld [vmem:[%s3286 + $0x20] sm:$0xf]
      %v3296 = vld [vmem:[%s3286 + $0x24] sm:$0xf]
      %v3297 = vld [vmem:[%s3286 + $0x28] sm:$0xf]
      %v3298 = vld [vmem:[%s3286 + $0x2c] sm:$0xf]
      %v3299 = vld [vmem:[%s3286 + $0x30] sm:$0xf]
      %v3300 = vld [vmem:[%s3286 + $0x34] sm:$0xf]
      %v3301 = vld [vmem:[%s3286 + $0x38] sm:$0xf]
      %v3302 = vld [vmem:[%s3286 + $0x3c] sm:$0xf]
      %v3303 = vrot.slane %v2244, 2
      %v3304 = vrot.slane %v2240, 3
      %v3305 = vor.u32 %v3303, %v3304
      %v3306 = vrot.slane %v2252, 2
      %v3307 = vrot.slane %v2248, 3
      %v3308 = vor.u32 %v3306, %v3307
      %v3309 = vsel %vm1699, %v3305, %v3308
      %v3310 = vrot.slane %v2260, 2
      %v3311 = vrot.slane %v2256, 3
      %v3312 = vor.u32 %v3310, %v3311
      %v3313 = vsel %vm1699, %v3308, %v3312
      %v3314 = vrot.slane %v2268, 2
      %v3315 = vrot.slane %v2264, 3
      %v3316 = vor.u32 %v3314, %v3315
      %v3317 = vsel %vm1699, %v3312, %v3316
      %v3319 = vshrl.u32 %v3137, 16
      %v3321 = vrot.slane %v3319, 2
      %v3322 = vshll.u32 %v3137, 16
      %v3324 = vrot.slane %v3322, 3
      %v3325 = vor.u32 %v3321, %v3324
      %v3326 = vsel %vm1699, %v3316, %v3325
      %v3328 = vshrl.u32 %v3138, 16
      %v3330 = vrot.slane %v3328, 2
      %v3331 = vshll.u32 %v3138, 16
      %v3333 = vrot.slane %v3331, 3
      %v3334 = vor.u32 %v3330, %v3333
      %v3335 = vsel %vm1699, %v3325, %v3334
      %v3357 = vunpack.c.l.b16 %v3287
      %v3358 = vunpack.c.l.b16 %v3288
      %v3359 = vunpack.c.l.b16 %v3289
      %v3360 = vunpack.c.l.b16 %v3290
      %v3361 = vunpack.c.l.b16 %v3291
      %v3362 = vunpack.c.l.b16 %v3292
      %v3363 = vunpack.c.l.b16 %v3293
      %v3364 = vunpack.c.l.b16 %v3294
      %v3365 = vunpack.c.l.b16 %v3295
      %v3366 = vunpack.c.l.b16 %v3296
      %v3367 = vunpack.c.l.b16 %v3297
      %v3368 = vunpack.c.l.b16 %v3298
      %v3369 = vunpack.c.l.b16 %v3299
      %v3370 = vunpack.c.l.b16 %v3300
      %v3371 = vunpack.c.l.b16 %v3301
      %v3372 = vunpack.c.l.b16 %v3302
      %v3373 = vpack.c.b16 %v3358, %v3357
      %v3374 = vpack.c.b16 %v3360, %v3359
      %v3375 = vpack.c.b16 %v3362, %v3361
      %v3376 = vpack.c.b16 %v3364, %v3363
      %v3377 = vpack.c.b16 %v3366, %v3365
      %v3378 = vpack.c.b16 %v3368, %v3367
      %v3379 = vpack.c.b16 %v3370, %v3369
      %v3380 = vpack.c.b16 %v3372, %v3371
      %3389 = vmatprep.subr.bf16.mxu0 0
      %3390 = vmatpush1.bf16.msra.mxu0 %v3373
      %3391 = vmatprep.subr.bf16.mxu0 0
      %3392 = vmatpush1.bf16.msra.mxu0 %v3374
      %3393 = vmatprep.subr.bf16.mxu0 0
      %3394 = vmatpush1.bf16.msra.mxu0 %v3375
      %3395 = vmatprep.subr.bf16.mxu0 0
      %3396 = vmatpush1.bf16.msra.mxu0 %v3376
      %3397 = vmatprep.subr.bf16.mxu0 0
      %3398 = vmatpush1.bf16.msra.mxu0 %v3377
      %3399 = vmatprep.subr.bf16.mxu0 0
      %3400 = vmatpush1.bf16.msra.mxu0 %v3378
      %3401 = vmatprep.subr.bf16.mxu0 0
      %3402 = vmatpush1.bf16.msra.mxu0 %v3379
      %3403 = vmatprep.subr.bf16.mxu0 0
      %3404 = vmatpush1.bf16.msra.mxu0 %v3380
      %3405 = vmatprep.subr.bf16.mxu0 0
      %3406 = vmatpush1.bf16.msra.mxu0 0
      %3407 = vmatprep.subr.bf16.mxu0 0
      %3408 = vmatpush1.bf16.msra.mxu0 0
      %3409 = vmatprep.subr.bf16.mxu0 0
      %3410 = vmatpush1.bf16.msra.mxu0 0
      %3411 = vmatprep.subr.bf16.mxu0 0
      %3412 = vmatpush1.bf16.msra.mxu0 0
      %3413 = vmatprep.subr.bf16.mxu0 0
      %3414 = vmatpush1.bf16.msra.mxu0 0
      %3415 = vmatprep.subr.bf16.mxu0 0
      %3416 = vmatpush1.bf16.msra.mxu0 0
      %3417 = vmatprep.subr.bf16.mxu0 0
      %3418 = vmatpush1.bf16.msra.mxu0 0
      %3419 = vmatprep.subr.bf16.mxu0 0
      %3420 = vmatpush1.bf16.msra.mxu0 0
      %3421 = vmatprep.mubr.bf16.mxu0 0
      %3422 = vmatmul.mubr.bf16.gmra.mrb[0].mxu0 %v3309
      %v3423 = vpop.f32.mrb[0].mxu0
      %v3424 = vadd.f32 0.0, %v3423
      %v3425 = vpop.f32.mrb[0].mxu0
      %v3426 = vpop.f32.mrb[0].mxu0
      %v3427 = vadd.f32 0.0, %v3426
      %v3428 = vpop.f32.mrb[0].mxu0
      %3429 = vmatprep.mubr.bf16.mxu0 0
      %3430 = vmatmul.mubr.bf16.gmra.mrb[0].mxu0 %v3313
      %v3431 = vpop.f32.mrb[0].mxu0
      %v3432 = vadd.f32 0.0, %v3431
      %v3433 = vpop.f32.mrb[0].mxu0
      %v3434 = vpop.f32.mrb[0].mxu0
      %v3435 = vadd.f32 0.0, %v3434
      %v3436 = vpop.f32.mrb[0].mxu0
      %3437 = vmatprep.mubr.bf16.mxu0 0
      %3438 = vmatmul.mubr.bf16.gmra.mrb[0].mxu0 %v3317
      %v3439 = vpop.f32.mrb[0].mxu0
      %v3440 = vadd.f32 0.0, %v3439
      %v3441 = vpop.f32.mrb[0].mxu0
      %v3442 = vpop.f32.mrb[0].mxu0
      %v3443 = vadd.f32 0.0, %v3442
      %v3444 = vpop.f32.mrb[0].mxu0
      %3445 = vmatprep.mubr.bf16.mxu0 0
      %3446 = vmatmul.mubr.bf16.gmra.mrb[0].mxu0 %v3326
      %v3447 = vpop.f32.mrb[0].mxu0
      %v3448 = vadd.f32 0.0, %v3447
      %v3449 = vpop.f32.mrb[0].mxu0
      %v3450 = vpop.f32.mrb[0].mxu0
      %v3451 = vadd.f32 0.0, %v3450
      %v3452 = vpop.f32.mrb[0].mxu0
      %3453 = vmatprep.mubr.bf16.mxu0 0
      %3454 = vmatmul.mubr.bf16.gmra.mrb[0].mxu0 %v3335
      %v3455 = vpop.f32.mrb[0].mxu0
      %v3456 = vadd.f32 0.0, %v3455
      %v3457 = vpop.f32.mrb[0].mxu0
      %v3458 = vpop.f32.mrb[0].mxu0
      %v3459 = vadd.f32 0.0, %v3458
      %v3460 = vpop.f32.mrb[0].mxu0
      %3461 = vdwg.mxu0
      %v3462 = vadd.f32 %v3276, %v3424
      %v3463 = vadd.f32 %v3277, %v3427
      %v3464 = vadd.f32 %v3278, %v3432
      %v3465 = vadd.f32 %v3279, %v3435
      %v3466 = vadd.f32 %v3280, %v3440
      %v3467 = vadd.f32 %v3281, %v3443
      %v3468 = vadd.f32 %v3282, %v3448
      %v3469 = vadd.f32 %v3283, %v3451
      %v3470 = vadd.f32 %v3284, %v3456
      %v3471 = vadd.f32 %v3285, %v3459
      %s3472 = scalar_lea.vmem %s3, 1088
      %v3473 = vld [vmem:[%s3472] sm:$0xf]
      %v3474 = vld [vmem:[%s3472 + $0x4] sm:$0xf]
      %v3475 = vld [vmem:[%s3472 + $0x8] sm:$0xf]
      %v3476 = vld [vmem:[%s3472 + $0xc] sm:$0xf]
      %v3477 = vld [vmem:[%s3472 + $0x10] sm:$0xf]
      %v3478 = vld [vmem:[%s3472 + $0x14] sm:$0xf]
      %v3479 = vld [vmem:[%s3472 + $0x18] sm:$0xf]
      %v3480 = vld [vmem:[%s3472 + $0x1c] sm:$0xf]
      %v3481 = vld [vmem:[%s3472 + $0x20] sm:$0xf]
      %v3482 = vld [vmem:[%s3472 + $0x24] sm:$0xf]
      %v3483 = vld [vmem:[%s3472 + $0x28] sm:$0xf]
      %v3484 = vld [vmem:[%s3472 + $0x2c] sm:$0xf]
      %v3485 = vld [vmem:[%s3472 + $0x30] sm:$0xf]
      %v3486 = vld [vmem:[%s3472 + $0x34] sm:$0xf]
      %v3487 = vld [vmem:[%s3472 + $0x38] sm:$0xf]
      %v3488 = vld [vmem:[%s3472 + $0x3c] sm:$0xf]
      %v3489 = vrot.slane %v2072, 3
      %v3490 = vrot.slane %v2073, 3
      %v3491 = vsel %vm1886, %v3489, %v3490
      %v3492 = vrot.slane %v2074, 3
      %v3493 = vsel %vm1886, %v3490, %v3492
      %v3494 = vrot.slane %v2075, 3
      %v3495 = vsel %vm1886, %v3492, %v3494
      %v3496 = vrot.slane %v3137, 3
      %v3497 = vsel %vm1886, %v3494, %v3496
      %v3498 = vrot.slane %v3138, 3
      %v3499 = vsel %vm1886, %v3496, %v3498
      %v3521 = vunpack.c.l.b16 %v3473
      %v3522 = vunpack.c.l.b16 %v3474
      %v3523 = vunpack.c.l.b16 %v3475
      %v3524 = vunpack.c.l.b16 %v3476
      %v3525 = vunpack.c.l.b16 %v3477
      %v3526 = vunpack.c.l.b16 %v3478
      %v3527 = vunpack.c.l.b16 %v3479
      %v3528 = vunpack.c.l.b16 %v3480
      %v3529 = vunpack.c.l.b16 %v3481
      %v3530 = vunpack.c.l.b16 %v3482
      %v3531 = vunpack.c.l.b16 %v3483
      %v3532 = vunpack.c.l.b16 %v3484
      %v3533 = vunpack.c.l.b16 %v3485
      %v3534 = vunpack.c.l.b16 %v3486
      %v3535 = vunpack.c.l.b16 %v3487
      %v3536 = vunpack.c.l.b16 %v3488
      %v3537 = vpack.c.b16 %v3522, %v3521
      %v3538 = vpack.c.b16 %v3524, %v3523
      %v3539 = vpack.c.b16 %v3526, %v3525
      %v3540 = vpack.c.b16 %v3528, %v3527
      %v3541 = vpack.c.b16 %v3530, %v3529
      %v3542 = vpack.c.b16 %v3532, %v3531
      %v3543 = vpack.c.b16 %v3534, %v3533
      %v3544 = vpack.c.b16 %v3536, %v3535
      %3553 = vmatprep.subr.bf16.mxu0 0
      %3554 = vmatpush1.bf16.msra.mxu0 %v3537
      %3555 = vmatprep.subr.bf16.mxu0 0
      %3556 = vmatpush1.bf16.msra.mxu0 %v3538
      %3557 = vmatprep.subr.bf16.mxu0 0
      %3558 = vmatpush1.bf16.msra.mxu0 %v3539
      %3559 = vmatprep.subr.bf16.mxu0 0
      %3560 = vmatpush1.bf16.msra.mxu0 %v3540
      %3561 = vmatprep.subr.bf16.mxu0 0
      %3562 = vmatpush1.bf16.msra.mxu0 %v3541
      %3563 = vmatprep.subr.bf16.mxu0 0
      %3564 = vmatpush1.bf16.msra.mxu0 %v3542
      %3565 = vmatprep.subr.bf16.mxu0 0
      %3566 = vmatpush1.bf16.msra.mxu0 %v3543
      %3567 = vmatprep.subr.bf16.mxu0 0
      %3568 = vmatpush1.bf16.msra.mxu0 %v3544
      %3569 = vmatprep.subr.bf16.mxu0 0
      %3570 = vmatpush1.bf16.msra.mxu0 0
      %3571 = vmatprep.subr.bf16.mxu0 0
      %3572 = vmatpush1.bf16.msra.mxu0 0
      %3573 = vmatprep.subr.bf16.mxu0 0
      %3574 = vmatpush1.bf16.msra.mxu0 0
      %3575 = vmatprep.subr.bf16.mxu0 0
      %3576 = vmatpush1.bf16.msra.mxu0 0
      %3577 = vmatprep.subr.bf16.mxu0 0
      %3578 = vmatpush1.bf16.msra.mxu0 0
      %3579 = vmatprep.subr.bf16.mxu0 0
      %3580 = vmatpush1.bf16.msra.mxu0 0
      %3581 = vmatprep.subr.bf16.mxu0 0
      %3582 = vmatpush1.bf16.msra.mxu0 0
      %3583 = vmatprep.subr.bf16.mxu0 0
      %3584 = vmatpush1.bf16.msra.mxu0 0
      %3585 = vmatprep.mubr.bf16.mxu0 0
      %3586 = vmatmul.mubr.bf16.gmra.mrb[0].mxu0 %v3491
      %v3587 = vpop.f32.mrb[0].mxu0
      %v3588 = vadd.f32 0.0, %v3587
      %v3589 = vpop.f32.mrb[0].mxu0
      %v3590 = vpop.f32.mrb[0].mxu0
      %v3591 = vadd.f32 0.0, %v3590
      %v3592 = vpop.f32.mrb[0].mxu0
      %3593 = vmatprep.mubr.bf16.mxu0 0
      %3594 = vmatmul.mubr.bf16.gmra.mrb[0].mxu0 %v3493
      %v3595 = vpop.f32.mrb[0].mxu0
      %v3596 = vadd.f32 0.0, %v3595
      %v3597 = vpop.f32.mrb[0].mxu0
      %v3598 = vpop.f32.mrb[0].mxu0
      %v3599 = vadd.f32 0.0, %v3598
      %v3600 = vpop.f32.mrb[0].mxu0
      %3601 = vmatprep.mubr.bf16.mxu0 0
      %3602 = vmatmul.mubr.bf16.gmra.mrb[0].mxu0 %v3495
      %v3603 = vpop.f32.mrb[0].mxu0
      %v3604 = vadd.f32 0.0, %v3603
      %v3605 = vpop.f32.mrb[0].mxu0
      %v3606 = vpop.f32.mrb[0].mxu0
      %v3607 = vadd.f32 0.0, %v3606
      %v3608 = vpop.f32.mrb[0].mxu0
      %3609 = vmatprep.mubr.bf16.mxu0 0
      %3610 = vmatmul.mubr.bf16.gmra.mrb[0].mxu0 %v3497
      %v3611 = vpop.f32.mrb[0].mxu0
      %v3612 = vadd.f32 0.0, %v3611
      %v3613 = vpop.f32.mrb[0].mxu0
      %v3614 = vpop.f32.mrb[0].mxu0
      %v3615 = vadd.f32 0.0, %v3614
      %v3616 = vpop.f32.mrb[0].mxu0
      %3617 = vmatprep.mubr.bf16.mxu0 0
      %3618 = vmatmul.mubr.bf16.gmra.mrb[0].mxu0 %v3499
      %v3619 = vpop.f32.mrb[0].mxu0
      %v3620 = vadd.f32 0.0, %v3619
      %v3621 = vpop.f32.mrb[0].mxu0
      %v3622 = vpop.f32.mrb[0].mxu0
      %v3623 = vadd.f32 0.0, %v3622
      %v3624 = vpop.f32.mrb[0].mxu0
      %3625 = vdwg.mxu0
      %v3626 = vadd.f32 %v3462, %v3588
      %v3627 = vadd.f32 %v3463, %v3591
      %v3628 = vadd.f32 %v3464, %v3596
      %v3629 = vadd.f32 %v3465, %v3599
      %v3630 = vadd.f32 %v3466, %v3604
      %v3631 = vadd.f32 %v3467, %v3607
      %v3632 = vadd.f32 %v3468, %v3612
      %v3633 = vadd.f32 %v3469, %v3615
      %v3634 = vadd.f32 %v3470, %v3620
      %v3635 = vadd.f32 %v3471, %v3623
      %s3636 = scalar_lea.vmem %s3, 1152
      %v3637 = vld [vmem:[%s3636] sm:$0xf]
      %v3638 = vld [vmem:[%s3636 + $0x4] sm:$0xf]
      %v3639 = vld [vmem:[%s3636 + $0x8] sm:$0xf]
      %v3640 = vld [vmem:[%s3636 + $0xc] sm:$0xf]
      %v3641 = vld [vmem:[%s3636 + $0x10] sm:$0xf]
      %v3642 = vld [vmem:[%s3636 + $0x14] sm:$0xf]
      %v3643 = vld [vmem:[%s3636 + $0x18] sm:$0xf]
      %v3644 = vld [vmem:[%s3636 + $0x1c] sm:$0xf]
      %v3645 = vld [vmem:[%s3636 + $0x20] sm:$0xf]
      %v3646 = vld [vmem:[%s3636 + $0x24] sm:$0xf]
      %v3647 = vld [vmem:[%s3636 + $0x28] sm:$0xf]
      %v3648 = vld [vmem:[%s3636 + $0x2c] sm:$0xf]
      %v3649 = vld [vmem:[%s3636 + $0x30] sm:$0xf]
      %v3650 = vld [vmem:[%s3636 + $0x34] sm:$0xf]
      %v3651 = vld [vmem:[%s3636 + $0x38] sm:$0xf]
      %v3652 = vld [vmem:[%s3636 + $0x3c] sm:$0xf]
      %v3663 = vunpack.c.l.b16 %v434
      %v3664 = vunpack.c.l.b16 %v435
      %v3665 = vunpack.c.l.b16 %v436
      %v3666 = vunpack.c.l.b16 %v437
      %v3667 = vunpack.c.l.b16 %v438
      %v3668 = vunpack.c.l.b16 %v439
      %v3669 = vunpack.c.l.b16 %v440
      %v3670 = vunpack.c.l.b16 %v441
      %v3671 = vunpack.c.l.b16 %v442
      %v3672 = vunpack.c.l.b16 %v443
      %v3673 = vpack.c.b16 %v3664, %v3663
      %v3674 = vpack.c.b16 %v3666, %v3665
      %v3675 = vpack.c.b16 %v3668, %v3667
      %v3676 = vpack.c.b16 %v3670, %v3669
      %v3677 = vpack.c.b16 %v3672, %v3671
      %v3699 = vunpack.c.l.b16 %v3637
      %v3700 = vunpack.c.l.b16 %v3638
      %v3701 = vunpack.c.l.b16 %v3639
      %v3702 = vunpack.c.l.b16 %v3640
      %v3703 = vunpack.c.l.b16 %v3641
      %v3704 = vunpack.c.l.b16 %v3642
      %v3705 = vunpack.c.l.b16 %v3643
      %v3706 = vunpack.c.l.b16 %v3644
      %v3707 = vunpack.c.l.b16 %v3645
      %v3708 = vunpack.c.l.b16 %v3646
      %v3709 = vunpack.c.l.b16 %v3647
      %v3710 = vunpack.c.l.b16 %v3648
      %v3711 = vunpack.c.l.b16 %v3649
      %v3712 = vunpack.c.l.b16 %v3650
      %v3713 = vunpack.c.l.b16 %v3651
      %v3714 = vunpack.c.l.b16 %v3652
      %v3715 = vpack.c.b16 %v3700, %v3699
      %v3716 = vpack.c.b16 %v3702, %v3701
      %v3717 = vpack.c.b16 %v3704, %v3703
      %v3718 = vpack.c.b16 %v3706, %v3705
      %v3719 = vpack.c.b16 %v3708, %v3707
      %v3720 = vpack.c.b16 %v3710, %v3709
      %v3721 = vpack.c.b16 %v3712, %v3711
      %v3722 = vpack.c.b16 %v3714, %v3713
      %3731 = vmatprep.subr.bf16.mxu0 0
      %3732 = vmatpush1.bf16.msra.mxu0 %v3715
      %3733 = vmatprep.subr.bf16.mxu0 0
      %3734 = vmatpush1.bf16.msra.mxu0 %v3716
      %3735 = vmatprep.subr.bf16.mxu0 0
      %3736 = vmatpush1.bf16.msra.mxu0 %v3717
      %3737 = vmatprep.subr.bf16.mxu0 0
      %3738 = vmatpush1.bf16.msra.mxu0 %v3718
      %3739 = vmatprep.subr.bf16.mxu0 0
      %3740 = vmatpush1.bf16.msra.mxu0 %v3719
      %3741 = vmatprep.subr.bf16.mxu0 0
      %3742 = vmatpush1.bf16.msra.mxu0 %v3720
      %3743 = vmatprep.subr.bf16.mxu0 0
      %3744 = vmatpush1.bf16.msra.mxu0 %v3721
      %3745 = vmatprep.subr.bf16.mxu0 0
      %3746 = vmatpush1.bf16.msra.mxu0 %v3722
      %3747 = vmatprep.subr.bf16.mxu0 0
      %3748 = vmatpush1.bf16.msra.mxu0 0
      %3749 = vmatprep.subr.bf16.mxu0 0
      %3750 = vmatpush1.bf16.msra.mxu0 0
      %3751 = vmatprep.subr.bf16.mxu0 0
      %3752 = vmatpush1.bf16.msra.mxu0 0
      %3753 = vmatprep.subr.bf16.mxu0 0
      %3754 = vmatpush1.bf16.msra.mxu0 0
      %3755 = vmatprep.subr.bf16.mxu0 0
      %3756 = vmatpush1.bf16.msra.mxu0 0
      %3757 = vmatprep.subr.bf16.mxu0 0
      %3758 = vmatpush1.bf16.msra.mxu0 0
      %3759 = vmatprep.subr.bf16.mxu0 0
      %3760 = vmatpush1.bf16.msra.mxu0 0
      %3761 = vmatprep.subr.bf16.mxu0 0
      %3762 = vmatpush1.bf16.msra.mxu0 0
      %3763 = vmatprep.mubr.bf16.mxu0 0
      %3764 = vmatmul.mubr.bf16.gmra.mrb[0].mxu0 %v3673
      %v3765 = vpop.f32.mrb[0].mxu0
      %v3766 = vadd.f32 0.0, %v3765
      %v3767 = vpop.f32.mrb[0].mxu0
      %v3768 = vpop.f32.mrb[0].mxu0
      %v3769 = vadd.f32 0.0, %v3768
      %v3770 = vpop.f32.mrb[0].mxu0
      %3771 = vmatprep.mubr.bf16.mxu0 0
      %3772 = vmatmul.mubr.bf16.gmra.mrb[0].mxu0 %v3674
      %v3773 = vpop.f32.mrb[0].mxu0
      %v3774 = vadd.f32 0.0, %v3773
      %v3775 = vpop.f32.mrb[0].mxu0
      %v3776 = vpop.f32.mrb[0].mxu0
      %v3777 = vadd.f32 0.0, %v3776
      %v3778 = vpop.f32.mrb[0].mxu0
      %3779 = vmatprep.mubr.bf16.mxu0 0
      %3780 = vmatmul.mubr.bf16.gmra.mrb[0].mxu0 %v3675
      %v3781 = vpop.f32.mrb[0].mxu0
      %v3782 = vadd.f32 0.0, %v3781
      %v3783 = vpop.f32.mrb[0].mxu0
      %v3784 = vpop.f32.mrb[0].mxu0
      %v3785 = vadd.f32 0.0, %v3784
      %v3786 = vpop.f32.mrb[0].mxu0
      %3787 = vmatprep.mubr.bf16.mxu0 0
      %3788 = vmatmul.mubr.bf16.gmra.mrb[0].mxu0 %v3676
      %v3789 = vpop.f32.mrb[0].mxu0
      %v3790 = vadd.f32 0.0, %v3789
      %v3791 = vpop.f32.mrb[0].mxu0
      %v3792 = vpop.f32.mrb[0].mxu0
      %v3793 = vadd.f32 0.0, %v3792
      %v3794 = vpop.f32.mrb[0].mxu0
      %3795 = vmatprep.mubr.bf16.mxu0 0
      %3796 = vmatmul.mubr.bf16.gmra.mrb[0].mxu0 %v3677
      %v3797 = vpop.f32.mrb[0].mxu0
      %v3798 = vadd.f32 0.0, %v3797
      %v3799 = vpop.f32.mrb[0].mxu0
      %v3800 = vpop.f32.mrb[0].mxu0
      %v3801 = vadd.f32 0.0, %v3800
      %v3802 = vpop.f32.mrb[0].mxu0
      %3803 = vdwg.mxu0
      %v3804 = vadd.f32 %v3626, %v3766
      %v3805 = vadd.f32 %v3627, %v3769
      %v3806 = vadd.f32 %v3628, %v3774
      %v3807 = vadd.f32 %v3629, %v3777
      %v3808 = vadd.f32 %v3630, %v3782
      %v3809 = vadd.f32 %v3631, %v3785
      %v3810 = vadd.f32 %v3632, %v3790
      %v3811 = vadd.f32 %v3633, %v3793
      %v3812 = vadd.f32 %v3634, %v3798
      %v3813 = vadd.f32 %v3635, %v3801
      %s3814 = scalar_lea.vmem %s3, 1216
      %v3815 = vld [vmem:[%s3814] sm:$0xf]
      %v3816 = vld [vmem:[%s3814 + $0x4] sm:$0xf]
      %v3817 = vld [vmem:[%s3814 + $0x8] sm:$0xf]
      %v3818 = vld [vmem:[%s3814 + $0xc] sm:$0xf]
      %v3819 = vld [vmem:[%s3814 + $0x10] sm:$0xf]
      %v3820 = vld [vmem:[%s3814 + $0x14] sm:$0xf]
      %v3821 = vld [vmem:[%s3814 + $0x18] sm:$0xf]
      %v3822 = vld [vmem:[%s3814 + $0x1c] sm:$0xf]
      %v3823 = vld [vmem:[%s3814 + $0x20] sm:$0xf]
      %v3824 = vld [vmem:[%s3814 + $0x24] sm:$0xf]
      %v3825 = vld [vmem:[%s3814 + $0x28] sm:$0xf]
      %v3826 = vld [vmem:[%s3814 + $0x2c] sm:$0xf]
      %v3827 = vld [vmem:[%s3814 + $0x30] sm:$0xf]
      %v3828 = vld [vmem:[%s3814 + $0x34] sm:$0xf]
      %v3829 = vld [vmem:[%s3814 + $0x38] sm:$0xf]
      %v3830 = vld [vmem:[%s3814 + $0x3c] sm:$0xf]
      %v3832 = vunpack.c.l.b16 %v444
      %v3833 = vpack.c.b16 %v3832, %v3832
      %v3835 = vshrl.u32 %v3673, 16
      %v3837 = vshll.u32 %v3673, 16
      %v3839 = vrot.slane %v3837, 1
      %v3840 = vor.u32 %v3835, %v3839
      %v3842 = vshll.u32 %v3674, 16
      %v3844 = vrot.slane %v3842, 1
      %v3845 = vsel %vm508, %v3840, %v3844
      %v3846 = vshrl.u32 %v3674, 16
      %v3848 = vor.u32 %v3846, %v3844
      %v3850 = vshll.u32 %v3675, 16
      %v3852 = vrot.slane %v3850, 1
      %v3853 = vsel %vm508, %v3848, %v3852
      %v3854 = vshrl.u32 %v3675, 16
      %v3856 = vor.u32 %v3854, %v3852
      %v3858 = vshll.u32 %v3676, 16
      %v3860 = vrot.slane %v3858, 1
      %v3861 = vsel %vm508, %v3856, %v3860
      %v3862 = vshrl.u32 %v3676, 16
      %v3864 = vor.u32 %v3862, %v3860
      %v3866 = vshll.u32 %v3677, 16
      %v3868 = vrot.slane %v3866, 1
      %v3869 = vsel %vm508, %v3864, %v3868
      %v3870 = vshrl.u32 %v3677, 16
      %v3872 = vor.u32 %v3870, %v3868
      %v3874 = vshll.u32 %v3833, 16
      %v3876 = vrot.slane %v3874, 1
      %v3877 = vsel %vm508, %v3872, %v3876
      %v3899 = vunpack.c.l.b16 %v3815
      %v3900 = vunpack.c.l.b16 %v3816
      %v3901 = vunpack.c.l.b16 %v3817
      %v3902 = vunpack.c.l.b16 %v3818
      %v3903 = vunpack.c.l.b16 %v3819
      %v3904 = vunpack.c.l.b16 %v3820
      %v3905 = vunpack.c.l.b16 %v3821
      %v3906 = vunpack.c.l.b16 %v3822
      %v3907 = vunpack.c.l.b16 %v3823
      %v3908 = vunpack.c.l.b16 %v3824
      %v3909 = vunpack.c.l.b16 %v3825
      %v3910 = vunpack.c.l.b16 %v3826
      %v3911 = vunpack.c.l.b16 %v3827
      %v3912 = vunpack.c.l.b16 %v3828
      %v3913 = vunpack.c.l.b16 %v3829
      %v3914 = vunpack.c.l.b16 %v3830
      %v3915 = vpack.c.b16 %v3900, %v3899
      %v3916 = vpack.c.b16 %v3902, %v3901
      %v3917 = vpack.c.b16 %v3904, %v3903
      %v3918 = vpack.c.b16 %v3906, %v3905
      %v3919 = vpack.c.b16 %v3908, %v3907
      %v3920 = vpack.c.b16 %v3910, %v3909
      %v3921 = vpack.c.b16 %v3912, %v3911
      %v3922 = vpack.c.b16 %v3914, %v3913
      %3931 = vmatprep.subr.bf16.mxu0 0
      %3932 = vmatpush1.bf16.msra.mxu0 %v3915
      %3933 = vmatprep.subr.bf16.mxu0 0
      %3934 = vmatpush1.bf16.msra.mxu0 %v3916
      %3935 = vmatprep.subr.bf16.mxu0 0
      %3936 = vmatpush1.bf16.msra.mxu0 %v3917
      %3937 = vmatprep.subr.bf16.mxu0 0
      %3938 = vmatpush1.bf16.msra.mxu0 %v3918
      %3939 = vmatprep.subr.bf16.mxu0 0
      %3940 = vmatpush1.bf16.msra.mxu0 %v3919
      %3941 = vmatprep.subr.bf16.mxu0 0
      %3942 = vmatpush1.bf16.msra.mxu0 %v3920
      %3943 = vmatprep.subr.bf16.mxu0 0
      %3944 = vmatpush1.bf16.msra.mxu0 %v3921
      %3945 = vmatprep.subr.bf16.mxu0 0
      %3946 = vmatpush1.bf16.msra.mxu0 %v3922
      %3947 = vmatprep.subr.bf16.mxu0 0
      %3948 = vmatpush1.bf16.msra.mxu0 0
      %3949 = vmatprep.subr.bf16.mxu0 0
      %3950 = vmatpush1.bf16.msra.mxu0 0
      %3951 = vmatprep.subr.bf16.mxu0 0
      %3952 = vmatpush1.bf16.msra.mxu0 0
      %3953 = vmatprep.subr.bf16.mxu0 0
      %3954 = vmatpush1.bf16.msra.mxu0 0
      %3955 = vmatprep.subr.bf16.mxu0 0
      %3956 = vmatpush1.bf16.msra.mxu0 0
      %3957 = vmatprep.subr.bf16.mxu0 0
      %3958 = vmatpush1.bf16.msra.mxu0 0
      %3959 = vmatprep.subr.bf16.mxu0 0
      %3960 = vmatpush1.bf16.msra.mxu0 0
      %3961 = vmatprep.subr.bf16.mxu0 0
      %3962 = vmatpush1.bf16.msra.mxu0 0
      %3963 = vmatprep.mubr.bf16.mxu0 0
      %3964 = vmatmul.mubr.bf16.gmra.mrb[0].mxu0 %v3845
      %v3965 = vpop.f32.mrb[0].mxu0
      %v3966 = vadd.f32 0.0, %v3965
      %v3967 = vpop.f32.mrb[0].mxu0
      %v3968 = vpop.f32.mrb[0].mxu0
      %v3969 = vadd.f32 0.0, %v3968
      %v3970 = vpop.f32.mrb[0].mxu0
      %3971 = vmatprep.mubr.bf16.mxu0 0
      %3972 = vmatmul.mubr.bf16.gmra.mrb[0].mxu0 %v3853
      %v3973 = vpop.f32.mrb[0].mxu0
      %v3974 = vadd.f32 0.0, %v3973
      %v3975 = vpop.f32.mrb[0].mxu0
      %v3976 = vpop.f32.mrb[0].mxu0
      %v3977 = vadd.f32 0.0, %v3976
      %v3978 = vpop.f32.mrb[0].mxu0
      %3979 = vmatprep.mubr.bf16.mxu0 0
      %3980 = vmatmul.mubr.bf16.gmra.mrb[0].mxu0 %v3861
      %v3981 = vpop.f32.mrb[0].mxu0
      %v3982 = vadd.f32 0.0, %v3981
      %v3983 = vpop.f32.mrb[0].mxu0
      %v3984 = vpop.f32.mrb[0].mxu0
      %v3985 = vadd.f32 0.0, %v3984
      %v3986 = vpop.f32.mrb[0].mxu0
      %3987 = vmatprep.mubr.bf16.mxu0 0
      %3988 = vmatmul.mubr.bf16.gmra.mrb[0].mxu0 %v3869
      %v3989 = vpop.f32.mrb[0].mxu0
      %v3990 = vadd.f32 0.0, %v3989
      %v3991 = vpop.f32.mrb[0].mxu0
      %v3992 = vpop.f32.mrb[0].mxu0
      %v3993 = vadd.f32 0.0, %v3992
      %v3994 = vpop.f32.mrb[0].mxu0
      %3995 = vmatprep.mubr.bf16.mxu0 0
      %3996 = vmatmul.mubr.bf16.gmra.mrb[0].mxu0 %v3877
      %v3997 = vpop.f32.mrb[0].mxu0
      %v3998 = vadd.f32 0.0, %v3997
      %v3999 = vpop.f32.mrb[0].mxu0
      %v4000 = vpop.f32.mrb[0].mxu0
      %v4001 = vadd.f32 0.0, %v4000
      %v4002 = vpop.f32.mrb[0].mxu0
      %4003 = vdwg.mxu0
      %v4004 = vadd.f32 %v3804, %v3966
      %v4005 = vadd.f32 %v3805, %v3969
      %v4006 = vadd.f32 %v3806, %v3974
      %v4007 = vadd.f32 %v3807, %v3977
      %v4008 = vadd.f32 %v3808, %v3982
      %v4009 = vadd.f32 %v3809, %v3985
      %v4010 = vadd.f32 %v3810, %v3990
      %v4011 = vadd.f32 %v3811, %v3993
      %v4012 = vadd.f32 %v3812, %v3998
      %v4013 = vadd.f32 %v3813, %v4001
      %s4014 = scalar_lea.vmem %s3, 1280
      %v4015 = vld [vmem:[%s4014] sm:$0xf]
      %v4016 = vld [vmem:[%s4014 + $0x4] sm:$0xf]
      %v4017 = vld [vmem:[%s4014 + $0x8] sm:$0xf]
      %v4018 = vld [vmem:[%s4014 + $0xc] sm:$0xf]
      %v4019 = vld [vmem:[%s4014 + $0x10] sm:$0xf]
      %v4020 = vld [vmem:[%s4014 + $0x14] sm:$0xf]
      %v4021 = vld [vmem:[%s4014 + $0x18] sm:$0xf]
      %v4022 = vld [vmem:[%s4014 + $0x1c] sm:$0xf]
      %v4023 = vld [vmem:[%s4014 + $0x20] sm:$0xf]
      %v4024 = vld [vmem:[%s4014 + $0x24] sm:$0xf]
      %v4025 = vld [vmem:[%s4014 + $0x28] sm:$0xf]
      %v4026 = vld [vmem:[%s4014 + $0x2c] sm:$0xf]
      %v4027 = vld [vmem:[%s4014 + $0x30] sm:$0xf]
      %v4028 = vld [vmem:[%s4014 + $0x34] sm:$0xf]
      %v4029 = vld [vmem:[%s4014 + $0x38] sm:$0xf]
      %v4030 = vld [vmem:[%s4014 + $0x3c] sm:$0xf]
      %v4031 = vrot.slane %v3673, 1
      %v4032 = vrot.slane %v3674, 1
      %v4033 = vsel %vm822, %v4031, %v4032
      %v4034 = vrot.slane %v3675, 1
      %v4035 = vsel %vm822, %v4032, %v4034
      %v4036 = vrot.slane %v3676, 1
      %v4037 = vsel %vm822, %v4034, %v4036
      %v4038 = vrot.slane %v3677, 1
      %v4039 = vsel %vm822, %v4036, %v4038
      %v4040 = vrot.slane %v3833, 1
      %v4041 = vsel %vm822, %v4038, %v4040
      %v4063 = vunpack.c.l.b16 %v4015
      %v4064 = vunpack.c.l.b16 %v4016
      %v4065 = vunpack.c.l.b16 %v4017
      %v4066 = vunpack.c.l.b16 %v4018
      %v4067 = vunpack.c.l.b16 %v4019
      %v4068 = vunpack.c.l.b16 %v4020
      %v4069 = vunpack.c.l.b16 %v4021
      %v4070 = vunpack.c.l.b16 %v4022
      %v4071 = vunpack.c.l.b16 %v4023
      %v4072 = vunpack.c.l.b16 %v4024
      %v4073 = vunpack.c.l.b16 %v4025
      %v4074 = vunpack.c.l.b16 %v4026
      %v4075 = vunpack.c.l.b16 %v4027
      %v4076 = vunpack.c.l.b16 %v4028
      %v4077 = vunpack.c.l.b16 %v4029
      %v4078 = vunpack.c.l.b16 %v4030
      %v4079 = vpack.c.b16 %v4064, %v4063
      %v4080 = vpack.c.b16 %v4066, %v4065
      %v4081 = vpack.c.b16 %v4068, %v4067
      %v4082 = vpack.c.b16 %v4070, %v4069
      %v4083 = vpack.c.b16 %v4072, %v4071
      %v4084 = vpack.c.b16 %v4074, %v4073
      %v4085 = vpack.c.b16 %v4076, %v4075
      %v4086 = vpack.c.b16 %v4078, %v4077
      %4095 = vmatprep.subr.bf16.mxu0 0
      %4096 = vmatpush1.bf16.msra.mxu0 %v4079
      %4097 = vmatprep.subr.bf16.mxu0 0
      %4098 = vmatpush1.bf16.msra.mxu0 %v4080
      %4099 = vmatprep.subr.bf16.mxu0 0
      %4100 = vmatpush1.bf16.msra.mxu0 %v4081
      %4101 = vmatprep.subr.bf16.mxu0 0
      %4102 = vmatpush1.bf16.msra.mxu0 %v4082
      %4103 = vmatprep.subr.bf16.mxu0 0
      %4104 = vmatpush1.bf16.msra.mxu0 %v4083
      %4105 = vmatprep.subr.bf16.mxu0 0
      %4106 = vmatpush1.bf16.msra.mxu0 %v4084
      %4107 = vmatprep.subr.bf16.mxu0 0
      %4108 = vmatpush1.bf16.msra.mxu0 %v4085
      %4109 = vmatprep.subr.bf16.mxu0 0
      %4110 = vmatpush1.bf16.msra.mxu0 %v4086
      %4111 = vmatprep.subr.bf16.mxu0 0
      %4112 = vmatpush1.bf16.msra.mxu0 0
      %4113 = vmatprep.subr.bf16.mxu0 0
      %4114 = vmatpush1.bf16.msra.mxu0 0
      %4115 = vmatprep.subr.bf16.mxu0 0
      %4116 = vmatpush1.bf16.msra.mxu0 0
      %4117 = vmatprep.subr.bf16.mxu0 0
      %4118 = vmatpush1.bf16.msra.mxu0 0
      %4119 = vmatprep.subr.bf16.mxu0 0
      %4120 = vmatpush1.bf16.msra.mxu0 0
      %4121 = vmatprep.subr.bf16.mxu0 0
      %4122 = vmatpush1.bf16.msra.mxu0 0
      %4123 = vmatprep.subr.bf16.mxu0 0
      %4124 = vmatpush1.bf16.msra.mxu0 0
      %4125 = vmatprep.subr.bf16.mxu0 0
      %4126 = vmatpush1.bf16.msra.mxu0 0
      %4127 = vmatprep.mubr.bf16.mxu0 0
      %4128 = vmatmul.mubr.bf16.gmra.mrb[0].mxu0 %v4033
      %v4129 = vpop.f32.mrb[0].mxu0
      %v4130 = vadd.f32 0.0, %v4129
      %v4131 = vpop.f32.mrb[0].mxu0
      %v4132 = vpop.f32.mrb[0].mxu0
      %v4133 = vadd.f32 0.0, %v4132
      %v4134 = vpop.f32.mrb[0].mxu0
      %4135 = vmatprep.mubr.bf16.mxu0 0
      %4136 = vmatmul.mubr.bf16.gmra.mrb[0].mxu0 %v4035
      %v4137 = vpop.f32.mrb[0].mxu0
      %v4138 = vadd.f32 0.0, %v4137
      %v4139 = vpop.f32.mrb[0].mxu0
      %v4140 = vpop.f32.mrb[0].mxu0
      %v4141 = vadd.f32 0.0, %v4140
      %v4142 = vpop.f32.mrb[0].mxu0
      %4143 = vmatprep.mubr.bf16.mxu0 0
      %4144 = vmatmul.mubr.bf16.gmra.mrb[0].mxu0 %v4037
      %v4145 = vpop.f32.mrb[0].mxu0
      %v4146 = vadd.f32 0.0, %v4145
      %v4147 = vpop.f32.mrb[0].mxu0
      %v4148 = vpop.f32.mrb[0].mxu0
      %v4149 = vadd.f32 0.0, %v4148
      %v4150 = vpop.f32.mrb[0].mxu0
      %4151 = vmatprep.mubr.bf16.mxu0 0
      %4152 = vmatmul.mubr.bf16.gmra.mrb[0].mxu0 %v4039
      %v4153 = vpop.f32.mrb[0].mxu0
      %v4154 = vadd.f32 0.0, %v4153
      %v4155 = vpop.f32.mrb[0].mxu0
      %v4156 = vpop.f32.mrb[0].mxu0
      %v4157 = vadd.f32 0.0, %v4156
      %v4158 = vpop.f32.mrb[0].mxu0
      %4159 = vmatprep.mubr.bf16.mxu0 0
      %4160 = vmatmul.mubr.bf16.gmra.mrb[0].mxu0 %v4041
      %v4161 = vpop.f32.mrb[0].mxu0
      %v4162 = vadd.f32 0.0, %v4161
      %v4163 = vpop.f32.mrb[0].mxu0
      %v4164 = vpop.f32.mrb[0].mxu0
      %v4165 = vadd.f32 0.0, %v4164
      %v4166 = vpop.f32.mrb[0].mxu0
      %4167 = vdwg.mxu0
      %v4168 = vadd.f32 %v4004, %v4130
      %v4169 = vadd.f32 %v4005, %v4133
      %v4170 = vadd.f32 %v4006, %v4138
      %v4171 = vadd.f32 %v4007, %v4141
      %v4172 = vadd.f32 %v4008, %v4146
      %v4173 = vadd.f32 %v4009, %v4149
      %v4174 = vadd.f32 %v4010, %v4154
      %v4175 = vadd.f32 %v4011, %v4157
      %v4176 = vadd.f32 %v4012, %v4162
      %v4177 = vadd.f32 %v4013, %v4165
      %s4178 = scalar_lea.vmem %s3, 1344
      %v4179 = vld [vmem:[%s4178] sm:$0xf]
      %v4180 = vld [vmem:[%s4178 + $0x4] sm:$0xf]
      %v4181 = vld [vmem:[%s4178 + $0x8] sm:$0xf]
      %v4182 = vld [vmem:[%s4178 + $0xc] sm:$0xf]
      %v4183 = vld [vmem:[%s4178 + $0x10] sm:$0xf]
      %v4184 = vld [vmem:[%s4178 + $0x14] sm:$0xf]
      %v4185 = vld [vmem:[%s4178 + $0x18] sm:$0xf]
      %v4186 = vld [vmem:[%s4178 + $0x1c] sm:$0xf]
      %v4187 = vld [vmem:[%s4178 + $0x20] sm:$0xf]
      %v4188 = vld [vmem:[%s4178 + $0x24] sm:$0xf]
      %v4189 = vld [vmem:[%s4178 + $0x28] sm:$0xf]
      %v4190 = vld [vmem:[%s4178 + $0x2c] sm:$0xf]
      %v4191 = vld [vmem:[%s4178 + $0x30] sm:$0xf]
      %v4192 = vld [vmem:[%s4178 + $0x34] sm:$0xf]
      %v4193 = vld [vmem:[%s4178 + $0x38] sm:$0xf]
      %v4194 = vld [vmem:[%s4178 + $0x3c] sm:$0xf]
      %v4196 = vunpack.c.l.b16 %v445
      %v4197 = vpack.c.b16 %v3665, %v3664
      %v4198 = vpack.c.b16 %v3667, %v3666
      %v4199 = vpack.c.b16 %v3669, %v3668
      %v4200 = vpack.c.b16 %v3671, %v3670
      %v4201 = vpack.c.b16 %v3832, %v3672
      %v4202 = vpack.c.b16 %v4196, %v4196
      %v4203 = vrot.slane %v4197, 1
      %v4204 = vrot.slane %v4198, 1
      %v4205 = vsel %vm822, %v4203, %v4204
      %v4206 = vrot.slane %v4199, 1
      %v4207 = vsel %vm822, %v4204, %v4206
      %v4208 = vrot.slane %v4200, 1
      %v4209 = vsel %vm822, %v4206, %v4208
      %v4210 = vrot.slane %v4201, 1
      %v4211 = vsel %vm822, %v4208, %v4210
      %v4212 = vrot.slane %v4202, 1
      %v4213 = vsel %vm822, %v4210, %v4212
      %v4235 = vunpack.c.l.b16 %v4179
      %v4236 = vunpack.c.l.b16 %v4180
      %v4237 = vunpack.c.l.b16 %v4181
      %v4238 = vunpack.c.l.b16 %v4182
      %v4239 = vunpack.c.l.b16 %v4183
      %v4240 = vunpack.c.l.b16 %v4184
      %v4241 = vunpack.c.l.b16 %v4185
      %v4242 = vunpack.c.l.b16 %v4186
      %v4243 = vunpack.c.l.b16 %v4187
      %v4244 = vunpack.c.l.b16 %v4188
      %v4245 = vunpack.c.l.b16 %v4189
      %v4246 = vunpack.c.l.b16 %v4190
      %v4247 = vunpack.c.l.b16 %v4191
      %v4248 = vunpack.c.l.b16 %v4192
      %v4249 = vunpack.c.l.b16 %v4193
      %v4250 = vunpack.c.l.b16 %v4194
      %v4251 = vpack.c.b16 %v4236, %v4235
      %v4252 = vpack.c.b16 %v4238, %v4237
      %v4253 = vpack.c.b16 %v4240, %v4239
      %v4254 = vpack.c.b16 %v4242, %v4241
      %v4255 = vpack.c.b16 %v4244, %v4243
      %v4256 = vpack.c.b16 %v4246, %v4245
      %v4257 = vpack.c.b16 %v4248, %v4247
      %v4258 = vpack.c.b16 %v4250, %v4249
      %4267 = vmatprep.subr.bf16.mxu0 0
      %4268 = vmatpush1.bf16.msra.mxu0 %v4251
      %4269 = vmatprep.subr.bf16.mxu0 0
      %4270 = vmatpush1.bf16.msra.mxu0 %v4252
      %4271 = vmatprep.subr.bf16.mxu0 0
      %4272 = vmatpush1.bf16.msra.mxu0 %v4253
      %4273 = vmatprep.subr.bf16.mxu0 0
      %4274 = vmatpush1.bf16.msra.mxu0 %v4254
      %4275 = vmatprep.subr.bf16.mxu0 0
      %4276 = vmatpush1.bf16.msra.mxu0 %v4255
      %4277 = vmatprep.subr.bf16.mxu0 0
      %4278 = vmatpush1.bf16.msra.mxu0 %v4256
      %4279 = vmatprep.subr.bf16.mxu0 0
      %4280 = vmatpush1.bf16.msra.mxu0 %v4257
      %4281 = vmatprep.subr.bf16.mxu0 0
      %4282 = vmatpush1.bf16.msra.mxu0 %v4258
      %4283 = vmatprep.subr.bf16.mxu0 0
      %4284 = vmatpush1.bf16.msra.mxu0 0
      %4285 = vmatprep.subr.bf16.mxu0 0
      %4286 = vmatpush1.bf16.msra.mxu0 0
      %4287 = vmatprep.subr.bf16.mxu0 0
      %4288 = vmatpush1.bf16.msra.mxu0 0
      %4289 = vmatprep.subr.bf16.mxu0 0
      %4290 = vmatpush1.bf16.msra.mxu0 0
      %4291 = vmatprep.subr.bf16.mxu0 0
      %4292 = vmatpush1.bf16.msra.mxu0 0
      %4293 = vmatprep.subr.bf16.mxu0 0
      %4294 = vmatpush1.bf16.msra.mxu0 0
      %4295 = vmatprep.subr.bf16.mxu0 0
      %4296 = vmatpush1.bf16.msra.mxu0 0
      %4297 = vmatprep.subr.bf16.mxu0 0
      %4298 = vmatpush1.bf16.msra.mxu0 0
      %4299 = vmatprep.mubr.bf16.mxu0 0
      %4300 = vmatmul.mubr.bf16.gmra.mrb[0].mxu0 %v4205
      %v4301 = vpop.f32.mrb[0].mxu0
      %v4302 = vadd.f32 0.0, %v4301
      %v4303 = vpop.f32.mrb[0].mxu0
      %v4304 = vpop.f32.mrb[0].mxu0
      %v4305 = vadd.f32 0.0, %v4304
      %v4306 = vpop.f32.mrb[0].mxu0
      %4307 = vmatprep.mubr.bf16.mxu0 0
      %4308 = vmatmul.mubr.bf16.gmra.mrb[0].mxu0 %v4207
      %v4309 = vpop.f32.mrb[0].mxu0
      %v4310 = vadd.f32 0.0, %v4309
      %v4311 = vpop.f32.mrb[0].mxu0
      %v4312 = vpop.f32.mrb[0].mxu0
      %v4313 = vadd.f32 0.0, %v4312
      %v4314 = vpop.f32.mrb[0].mxu0
      %4315 = vmatprep.mubr.bf16.mxu0 0
      %4316 = vmatmul.mubr.bf16.gmra.mrb[0].mxu0 %v4209
      %v4317 = vpop.f32.mrb[0].mxu0
      %v4318 = vadd.f32 0.0, %v4317
      %v4319 = vpop.f32.mrb[0].mxu0
      %v4320 = vpop.f32.mrb[0].mxu0
      %v4321 = vadd.f32 0.0, %v4320
      %v4322 = vpop.f32.mrb[0].mxu0
      %4323 = vmatprep.mubr.bf16.mxu0 0
      %4324 = vmatmul.mubr.bf16.gmra.mrb[0].mxu0 %v4211
      %v4325 = vpop.f32.mrb[0].mxu0
      %v4326 = vadd.f32 0.0, %v4325
      %v4327 = vpop.f32.mrb[0].mxu0
      %v4328 = vpop.f32.mrb[0].mxu0
      %v4329 = vadd.f32 0.0, %v4328
      %v4330 = vpop.f32.mrb[0].mxu0
      %4331 = vmatprep.mubr.bf16.mxu0 0
      %4332 = vmatmul.mubr.bf16.gmra.mrb[0].mxu0 %v4213
      %v4333 = vpop.f32.mrb[0].mxu0
      %v4334 = vadd.f32 0.0, %v4333
      %v4335 = vpop.f32.mrb[0].mxu0
      %v4336 = vpop.f32.mrb[0].mxu0
      %v4337 = vadd.f32 0.0, %v4336
      %v4338 = vpop.f32.mrb[0].mxu0
      %4339 = vdwg.mxu0
      %v4340 = vadd.f32 %v4168, %v4302
      %v4341 = vadd.f32 %v4169, %v4305
      %v4342 = vadd.f32 %v4170, %v4310
      %v4343 = vadd.f32 %v4171, %v4313
      %v4344 = vadd.f32 %v4172, %v4318
      %v4345 = vadd.f32 %v4173, %v4321
      %v4346 = vadd.f32 %v4174, %v4326
      %v4347 = vadd.f32 %v4175, %v4329
      %v4348 = vadd.f32 %v4176, %v4334
      %v4349 = vadd.f32 %v4177, %v4337
      %s4350 = scalar_lea.vmem %s3, 1408
      %v4351 = vld [vmem:[%s4350] sm:$0xf]
      %v4352 = vld [vmem:[%s4350 + $0x4] sm:$0xf]
      %v4353 = vld [vmem:[%s4350 + $0x8] sm:$0xf]
      %v4354 = vld [vmem:[%s4350 + $0xc] sm:$0xf]
      %v4355 = vld [vmem:[%s4350 + $0x10] sm:$0xf]
      %v4356 = vld [vmem:[%s4350 + $0x14] sm:$0xf]
      %v4357 = vld [vmem:[%s4350 + $0x18] sm:$0xf]
      %v4358 = vld [vmem:[%s4350 + $0x1c] sm:$0xf]
      %v4359 = vld [vmem:[%s4350 + $0x20] sm:$0xf]
      %v4360 = vld [vmem:[%s4350 + $0x24] sm:$0xf]
      %v4361 = vld [vmem:[%s4350 + $0x28] sm:$0xf]
      %v4362 = vld [vmem:[%s4350 + $0x2c] sm:$0xf]
      %v4363 = vld [vmem:[%s4350 + $0x30] sm:$0xf]
      %v4364 = vld [vmem:[%s4350 + $0x34] sm:$0xf]
      %v4365 = vld [vmem:[%s4350 + $0x38] sm:$0xf]
      %v4366 = vld [vmem:[%s4350 + $0x3c] sm:$0xf]
      %v4368 = vshrl.u32 %v4197, 16
      %v4370 = vrot.slane %v4368, 1
      %v4371 = vshll.u32 %v4197, 16
      %v4373 = vrot.slane %v4371, 2
      %v4374 = vor.u32 %v4370, %v4373
      %v4376 = vshrl.u32 %v4198, 16
      %v4378 = vrot.slane %v4376, 1
      %v4379 = vshll.u32 %v4198, 16
      %v4381 = vrot.slane %v4379, 2
      %v4382 = vor.u32 %v4378, %v4381
      %v4383 = vsel %vm1159, %v4374, %v4382
      %v4385 = vshrl.u32 %v4199, 16
      %v4387 = vrot.slane %v4385, 1
      %v4388 = vshll.u32 %v4199, 16
      %v4390 = vrot.slane %v4388, 2
      %v4391 = vor.u32 %v4387, %v4390
      %v4392 = vsel %vm1159, %v4382, %v4391
      %v4394 = vshrl.u32 %v4200, 16
      %v4396 = vrot.slane %v4394, 1
      %v4397 = vshll.u32 %v4200, 16
      %v4399 = vrot.slane %v4397, 2
      %v4400 = vor.u32 %v4396, %v4399
      %v4401 = vsel %vm1159, %v4391, %v4400
      %v4403 = vshrl.u32 %v4201, 16
      %v4405 = vrot.slane %v4403, 1
      %v4406 = vshll.u32 %v4201, 16
      %v4408 = vrot.slane %v4406, 2
      %v4409 = vor.u32 %v4405, %v4408
      %v4410 = vsel %vm1159, %v4400, %v4409
      %v4412 = vshrl.u32 %v4202, 16
      %v4414 = vrot.slane %v4412, 1
      %v4415 = vshll.u32 %v4202, 16
      %v4417 = vrot.slane %v4415, 2
      %v4418 = vor.u32 %v4414, %v4417
      %v4419 = vsel %vm1159, %v4409, %v4418
      %v4441 = vunpack.c.l.b16 %v4351
      %v4442 = vunpack.c.l.b16 %v4352
      %v4443 = vunpack.c.l.b16 %v4353
      %v4444 = vunpack.c.l.b16 %v4354
      %v4445 = vunpack.c.l.b16 %v4355
      %v4446 = vunpack.c.l.b16 %v4356
      %v4447 = vunpack.c.l.b16 %v4357
      %v4448 = vunpack.c.l.b16 %v4358
      %v4449 = vunpack.c.l.b16 %v4359
      %v4450 = vunpack.c.l.b16 %v4360
      %v4451 = vunpack.c.l.b16 %v4361
      %v4452 = vunpack.c.l.b16 %v4362
      %v4453 = vunpack.c.l.b16 %v4363
      %v4454 = vunpack.c.l.b16 %v4364
      %v4455 = vunpack.c.l.b16 %v4365
      %v4456 = vunpack.c.l.b16 %v4366
      %v4457 = vpack.c.b16 %v4442, %v4441
      %v4458 = vpack.c.b16 %v4444, %v4443
      %v4459 = vpack.c.b16 %v4446, %v4445
      %v4460 = vpack.c.b16 %v4448, %v4447
      %v4461 = vpack.c.b16 %v4450, %v4449
      %v4462 = vpack.c.b16 %v4452, %v4451
      %v4463 = vpack.c.b16 %v4454, %v4453
      %v4464 = vpack.c.b16 %v4456, %v4455
      %4473 = vmatprep.subr.bf16.mxu0 0
      %4474 = vmatpush1.bf16.msra.mxu0 %v4457
      %4475 = vmatprep.subr.bf16.mxu0 0
      %4476 = vmatpush1.bf16.msra.mxu0 %v4458
      %4477 = vmatprep.subr.bf16.mxu0 0
      %4478 = vmatpush1.bf16.msra.mxu0 %v4459
      %4479 = vmatprep.subr.bf16.mxu0 0
      %4480 = vmatpush1.bf16.msra.mxu0 %v4460
      %4481 = vmatprep.subr.bf16.mxu0 0
      %4482 = vmatpush1.bf16.msra.mxu0 %v4461
      %4483 = vmatprep.subr.bf16.mxu0 0
      %4484 = vmatpush1.bf16.msra.mxu0 %v4462
      %4485 = vmatprep.subr.bf16.mxu0 0
      %4486 = vmatpush1.bf16.msra.mxu0 %v4463
      %4487 = vmatprep.subr.bf16.mxu0 0
      %4488 = vmatpush1.bf16.msra.mxu0 %v4464
      %4489 = vmatprep.subr.bf16.mxu0 0
      %4490 = vmatpush1.bf16.msra.mxu0 0
      %4491 = vmatprep.subr.bf16.mxu0 0
      %4492 = vmatpush1.bf16.msra.mxu0 0
      %4493 = vmatprep.subr.bf16.mxu0 0
      %4494 = vmatpush1.bf16.msra.mxu0 0
      %4495 = vmatprep.subr.bf16.mxu0 0
      %4496 = vmatpush1.bf16.msra.mxu0 0
      %4497 = vmatprep.subr.bf16.mxu0 0
      %4498 = vmatpush1.bf16.msra.mxu0 0
      %4499 = vmatprep.subr.bf16.mxu0 0
      %4500 = vmatpush1.bf16.msra.mxu0 0
      %4501 = vmatprep.subr.bf16.mxu0 0
      %4502 = vmatpush1.bf16.msra.mxu0 0
      %4503 = vmatprep.subr.bf16.mxu0 0
      %4504 = vmatpush1.bf16.msra.mxu0 0
      %4505 = vmatprep.mubr.bf16.mxu0 0
      %4506 = vmatmul.mubr.bf16.gmra.mrb[0].mxu0 %v4383
      %v4507 = vpop.f32.mrb[0].mxu0
      %v4508 = vadd.f32 0.0, %v4507
      %v4509 = vpop.f32.mrb[0].mxu0
      %v4510 = vpop.f32.mrb[0].mxu0
      %v4511 = vadd.f32 0.0, %v4510
      %v4512 = vpop.f32.mrb[0].mxu0
      %4513 = vmatprep.mubr.bf16.mxu0 0
      %4514 = vmatmul.mubr.bf16.gmra.mrb[0].mxu0 %v4392
      %v4515 = vpop.f32.mrb[0].mxu0
      %v4516 = vadd.f32 0.0, %v4515
      %v4517 = vpop.f32.mrb[0].mxu0
      %v4518 = vpop.f32.mrb[0].mxu0
      %v4519 = vadd.f32 0.0, %v4518
      %v4520 = vpop.f32.mrb[0].mxu0
      %4521 = vmatprep.mubr.bf16.mxu0 0
      %4522 = vmatmul.mubr.bf16.gmra.mrb[0].mxu0 %v4401
      %v4523 = vpop.f32.mrb[0].mxu0
      %v4524 = vadd.f32 0.0, %v4523
      %v4525 = vpop.f32.mrb[0].mxu0
      %v4526 = vpop.f32.mrb[0].mxu0
      %v4527 = vadd.f32 0.0, %v4526
      %v4528 = vpop.f32.mrb[0].mxu0
      %4529 = vmatprep.mubr.bf16.mxu0 0
      %4530 = vmatmul.mubr.bf16.gmra.mrb[0].mxu0 %v4410
      %v4531 = vpop.f32.mrb[0].mxu0
      %v4532 = vadd.f32 0.0, %v4531
      %v4533 = vpop.f32.mrb[0].mxu0
      %v4534 = vpop.f32.mrb[0].mxu0
      %v4535 = vadd.f32 0.0, %v4534
      %v4536 = vpop.f32.mrb[0].mxu0
      %4537 = vmatprep.mubr.bf16.mxu0 0
      %4538 = vmatmul.mubr.bf16.gmra.mrb[0].mxu0 %v4419
      %v4539 = vpop.f32.mrb[0].mxu0
      %v4540 = vadd.f32 0.0, %v4539
      %v4541 = vpop.f32.mrb[0].mxu0
      %v4542 = vpop.f32.mrb[0].mxu0
      %v4543 = vadd.f32 0.0, %v4542
      %v4544 = vpop.f32.mrb[0].mxu0
      %4545 = vdwg.mxu0
      %v4546 = vadd.f32 %v4340, %v4508
      %v4547 = vadd.f32 %v4341, %v4511
      %v4548 = vadd.f32 %v4342, %v4516
      %v4549 = vadd.f32 %v4343, %v4519
      %v4550 = vadd.f32 %v4344, %v4524
      %v4551 = vadd.f32 %v4345, %v4527
      %v4552 = vadd.f32 %v4346, %v4532
      %v4553 = vadd.f32 %v4347, %v4535
      %v4554 = vadd.f32 %v4348, %v4540
      %v4555 = vadd.f32 %v4349, %v4543
      %s4556 = scalar_lea.vmem %s3, 1472
      %v4557 = vld [vmem:[%s4556] sm:$0xf]
      %v4558 = vld [vmem:[%s4556 + $0x4] sm:$0xf]
      %v4559 = vld [vmem:[%s4556 + $0x8] sm:$0xf]
      %v4560 = vld [vmem:[%s4556 + $0xc] sm:$0xf]
      %v4561 = vld [vmem:[%s4556 + $0x10] sm:$0xf]
      %v4562 = vld [vmem:[%s4556 + $0x14] sm:$0xf]
      %v4563 = vld [vmem:[%s4556 + $0x18] sm:$0xf]
      %v4564 = vld [vmem:[%s4556 + $0x1c] sm:$0xf]
      %v4565 = vld [vmem:[%s4556 + $0x20] sm:$0xf]
      %v4566 = vld [vmem:[%s4556 + $0x24] sm:$0xf]
      %v4567 = vld [vmem:[%s4556 + $0x28] sm:$0xf]
      %v4568 = vld [vmem:[%s4556 + $0x2c] sm:$0xf]
      %v4569 = vld [vmem:[%s4556 + $0x30] sm:$0xf]
      %v4570 = vld [vmem:[%s4556 + $0x34] sm:$0xf]
      %v4571 = vld [vmem:[%s4556 + $0x38] sm:$0xf]
      %v4572 = vld [vmem:[%s4556 + $0x3c] sm:$0xf]
      %v4573 = vrot.slane %v4197, 2
      %v4574 = vrot.slane %v4198, 2
      %v4575 = vsel %vm1366, %v4573, %v4574
      %v4576 = vrot.slane %v4199, 2
      %v4577 = vsel %vm1366, %v4574, %v4576
      %v4578 = vrot.slane %v4200, 2
      %v4579 = vsel %vm1366, %v4576, %v4578
      %v4580 = vrot.slane %v4201, 2
      %v4581 = vsel %vm1366, %v4578, %v4580
      %v4582 = vrot.slane %v4202, 2
      %v4583 = vsel %vm1366, %v4580, %v4582
      %v4605 = vunpack.c.l.b16 %v4557
      %v4606 = vunpack.c.l.b16 %v4558
      %v4607 = vunpack.c.l.b16 %v4559
      %v4608 = vunpack.c.l.b16 %v4560
      %v4609 = vunpack.c.l.b16 %v4561
      %v4610 = vunpack.c.l.b16 %v4562
      %v4611 = vunpack.c.l.b16 %v4563
      %v4612 = vunpack.c.l.b16 %v4564
      %v4613 = vunpack.c.l.b16 %v4565
      %v4614 = vunpack.c.l.b16 %v4566
      %v4615 = vunpack.c.l.b16 %v4567
      %v4616 = vunpack.c.l.b16 %v4568
      %v4617 = vunpack.c.l.b16 %v4569
      %v4618 = vunpack.c.l.b16 %v4570
      %v4619 = vunpack.c.l.b16 %v4571
      %v4620 = vunpack.c.l.b16 %v4572
      %v4621 = vpack.c.b16 %v4606, %v4605
      %v4622 = vpack.c.b16 %v4608, %v4607
      %v4623 = vpack.c.b16 %v4610, %v4609
      %v4624 = vpack.c.b16 %v4612, %v4611
      %v4625 = vpack.c.b16 %v4614, %v4613
      %v4626 = vpack.c.b16 %v4616, %v4615
      %v4627 = vpack.c.b16 %v4618, %v4617
      %v4628 = vpack.c.b16 %v4620, %v4619
      %4637 = vmatprep.subr.bf16.mxu0 0
      %4638 = vmatpush1.bf16.msra.mxu0 %v4621
      %4639 = vmatprep.subr.bf16.mxu0 0
      %4640 = vmatpush1.bf16.msra.mxu0 %v4622
      %4641 = vmatprep.subr.bf16.mxu0 0
      %4642 = vmatpush1.bf16.msra.mxu0 %v4623
      %4643 = vmatprep.subr.bf16.mxu0 0
      %4644 = vmatpush1.bf16.msra.mxu0 %v4624
      %4645 = vmatprep.subr.bf16.mxu0 0
      %4646 = vmatpush1.bf16.msra.mxu0 %v4625
      %4647 = vmatprep.subr.bf16.mxu0 0
      %4648 = vmatpush1.bf16.msra.mxu0 %v4626
      %4649 = vmatprep.subr.bf16.mxu0 0
      %4650 = vmatpush1.bf16.msra.mxu0 %v4627
      %4651 = vmatprep.subr.bf16.mxu0 0
      %4652 = vmatpush1.bf16.msra.mxu0 %v4628
      %4653 = vmatprep.subr.bf16.mxu0 0
      %4654 = vmatpush1.bf16.msra.mxu0 0
      %4655 = vmatprep.subr.bf16.mxu0 0
      %4656 = vmatpush1.bf16.msra.mxu0 0
      %4657 = vmatprep.subr.bf16.mxu0 0
      %4658 = vmatpush1.bf16.msra.mxu0 0
      %4659 = vmatprep.subr.bf16.mxu0 0
      %4660 = vmatpush1.bf16.msra.mxu0 0
      %4661 = vmatprep.subr.bf16.mxu0 0
      %4662 = vmatpush1.bf16.msra.mxu0 0
      %4663 = vmatprep.subr.bf16.mxu0 0
      %4664 = vmatpush1.bf16.msra.mxu0 0
      %4665 = vmatprep.subr.bf16.mxu0 0
      %4666 = vmatpush1.bf16.msra.mxu0 0
      %4667 = vmatprep.subr.bf16.mxu0 0
      %4668 = vmatpush1.bf16.msra.mxu0 0
      %4669 = vmatprep.mubr.bf16.mxu0 0
      %4670 = vmatmul.mubr.bf16.gmra.mrb[0].mxu0 %v4575
      %v4671 = vpop.f32.mrb[0].mxu0
      %v4672 = vadd.f32 0.0, %v4671
      %v4673 = vpop.f32.mrb[0].mxu0
      %v4674 = vpop.f32.mrb[0].mxu0
      %v4675 = vadd.f32 0.0, %v4674
      %v4676 = vpop.f32.mrb[0].mxu0
      %4677 = vmatprep.mubr.bf16.mxu0 0
      %4678 = vmatmul.mubr.bf16.gmra.mrb[0].mxu0 %v4577
      %v4679 = vpop.f32.mrb[0].mxu0
      %v4680 = vadd.f32 0.0, %v4679
      %v4681 = vpop.f32.mrb[0].mxu0
      %v4682 = vpop.f32.mrb[0].mxu0
      %v4683 = vadd.f32 0.0, %v4682
      %v4684 = vpop.f32.mrb[0].mxu0
      %4685 = vmatprep.mubr.bf16.mxu0 0
      %4686 = vmatmul.mubr.bf16.gmra.mrb[0].mxu0 %v4579
      %v4687 = vpop.f32.mrb[0].mxu0
      %v4688 = vadd.f32 0.0, %v4687
      %v4689 = vpop.f32.mrb[0].mxu0
      %v4690 = vpop.f32.mrb[0].mxu0
      %v4691 = vadd.f32 0.0, %v4690
      %v4692 = vpop.f32.mrb[0].mxu0
      %4693 = vmatprep.mubr.bf16.mxu0 0
      %4694 = vmatmul.mubr.bf16.gmra.mrb[0].mxu0 %v4581
      %v4695 = vpop.f32.mrb[0].mxu0
      %v4696 = vadd.f32 0.0, %v4695
      %v4697 = vpop.f32.mrb[0].mxu0
      %v4698 = vpop.f32.mrb[0].mxu0
      %v4699 = vadd.f32 0.0, %v4698
      %v4700 = vpop.f32.mrb[0].mxu0
      %4701 = vmatprep.mubr.bf16.mxu0 0
      %4702 = vmatmul.mubr.bf16.gmra.mrb[0].mxu0 %v4583
      %v4703 = vpop.f32.mrb[0].mxu0
      %v4704 = vadd.f32 0.0, %v4703
      %v4705 = vpop.f32.mrb[0].mxu0
      %v4706 = vpop.f32.mrb[0].mxu0
      %v4707 = vadd.f32 0.0, %v4706
      %v4708 = vpop.f32.mrb[0].mxu0
      %4709 = vdwg.mxu0
      %v4710 = vadd.f32 %v4546, %v4672
      %v4711 = vadd.f32 %v4547, %v4675
      %v4712 = vadd.f32 %v4548, %v4680
      %v4713 = vadd.f32 %v4549, %v4683
      %v4714 = vadd.f32 %v4550, %v4688
      %v4715 = vadd.f32 %v4551, %v4691
      %v4716 = vadd.f32 %v4552, %v4696
      %v4717 = vadd.f32 %v4553, %v4699
      %v4718 = vadd.f32 %v4554, %v4704
      %v4719 = vadd.f32 %v4555, %v4707
      %s4720 = scalar_lea.vmem %s3, 1536
      %v4721 = vld [vmem:[%s4720] sm:$0xf]
      %v4722 = vld [vmem:[%s4720 + $0x4] sm:$0xf]
      %v4723 = vld [vmem:[%s4720 + $0x8] sm:$0xf]
      %v4724 = vld [vmem:[%s4720 + $0xc] sm:$0xf]
      %v4725 = vld [vmem:[%s4720 + $0x10] sm:$0xf]
      %v4726 = vld [vmem:[%s4720 + $0x14] sm:$0xf]
      %v4727 = vld [vmem:[%s4720 + $0x18] sm:$0xf]
      %v4728 = vld [vmem:[%s4720 + $0x1c] sm:$0xf]
      %v4729 = vld [vmem:[%s4720 + $0x20] sm:$0xf]
      %v4730 = vld [vmem:[%s4720 + $0x24] sm:$0xf]
      %v4731 = vld [vmem:[%s4720 + $0x28] sm:$0xf]
      %v4732 = vld [vmem:[%s4720 + $0x2c] sm:$0xf]
      %v4733 = vld [vmem:[%s4720 + $0x30] sm:$0xf]
      %v4734 = vld [vmem:[%s4720 + $0x34] sm:$0xf]
      %v4735 = vld [vmem:[%s4720 + $0x38] sm:$0xf]
      %v4736 = vld [vmem:[%s4720 + $0x3c] sm:$0xf]
      %v4738 = vunpack.c.l.b16 %v446
      %v4739 = vpack.c.b16 %v4196, %v3832
      %v4740 = vpack.c.b16 %v4738, %v4738
      %v4741 = vrot.slane %v3674, 2
      %v4742 = vrot.slane %v3675, 2
      %v4743 = vsel %vm1366, %v4741, %v4742
      %v4744 = vrot.slane %v3676, 2
      %v4745 = vsel %vm1366, %v4742, %v4744
      %v4746 = vrot.slane %v3677, 2
      %v4747 = vsel %vm1366, %v4744, %v4746
      %v4748 = vrot.slane %v4739, 2
      %v4749 = vsel %vm1366, %v4746, %v4748
      %v4750 = vrot.slane %v4740, 2
      %v4751 = vsel %vm1366, %v4748, %v4750
      %v4773 = vunpack.c.l.b16 %v4721
      %v4774 = vunpack.c.l.b16 %v4722
      %v4775 = vunpack.c.l.b16 %v4723
      %v4776 = vunpack.c.l.b16 %v4724
      %v4777 = vunpack.c.l.b16 %v4725
      %v4778 = vunpack.c.l.b16 %v4726
      %v4779 = vunpack.c.l.b16 %v4727
      %v4780 = vunpack.c.l.b16 %v4728
      %v4781 = vunpack.c.l.b16 %v4729
      %v4782 = vunpack.c.l.b16 %v4730
      %v4783 = vunpack.c.l.b16 %v4731
      %v4784 = vunpack.c.l.b16 %v4732
      %v4785 = vunpack.c.l.b16 %v4733
      %v4786 = vunpack.c.l.b16 %v4734
      %v4787 = vunpack.c.l.b16 %v4735
      %v4788 = vunpack.c.l.b16 %v4736
      %v4789 = vpack.c.b16 %v4774, %v4773
      %v4790 = vpack.c.b16 %v4776, %v4775
      %v4791 = vpack.c.b16 %v4778, %v4777
      %v4792 = vpack.c.b16 %v4780, %v4779
      %v4793 = vpack.c.b16 %v4782, %v4781
      %v4794 = vpack.c.b16 %v4784, %v4783
      %v4795 = vpack.c.b16 %v4786, %v4785
      %v4796 = vpack.c.b16 %v4788, %v4787
      %4805 = vmatprep.subr.bf16.mxu0 0
      %4806 = vmatpush1.bf16.msra.mxu0 %v4789
      %4807 = vmatprep.subr.bf16.mxu0 0
      %4808 = vmatpush1.bf16.msra.mxu0 %v4790
      %4809 = vmatprep.subr.bf16.mxu0 0
      %4810 = vmatpush1.bf16.msra.mxu0 %v4791
      %4811 = vmatprep.subr.bf16.mxu0 0
      %4812 = vmatpush1.bf16.msra.mxu0 %v4792
      %4813 = vmatprep.subr.bf16.mxu0 0
      %4814 = vmatpush1.bf16.msra.mxu0 %v4793
      %4815 = vmatprep.subr.bf16.mxu0 0
      %4816 = vmatpush1.bf16.msra.mxu0 %v4794
      %4817 = vmatprep.subr.bf16.mxu0 0
      %4818 = vmatpush1.bf16.msra.mxu0 %v4795
      %4819 = vmatprep.subr.bf16.mxu0 0
      %4820 = vmatpush1.bf16.msra.mxu0 %v4796
      %4821 = vmatprep.subr.bf16.mxu0 0
      %4822 = vmatpush1.bf16.msra.mxu0 0
      %4823 = vmatprep.subr.bf16.mxu0 0
      %4824 = vmatpush1.bf16.msra.mxu0 0
      %4825 = vmatprep.subr.bf16.mxu0 0
      %4826 = vmatpush1.bf16.msra.mxu0 0
      %4827 = vmatprep.subr.bf16.mxu0 0
      %4828 = vmatpush1.bf16.msra.mxu0 0
      %4829 = vmatprep.subr.bf16.mxu0 0
      %4830 = vmatpush1.bf16.msra.mxu0 0
      %4831 = vmatprep.subr.bf16.mxu0 0
      %4832 = vmatpush1.bf16.msra.mxu0 0
      %4833 = vmatprep.subr.bf16.mxu0 0
      %4834 = vmatpush1.bf16.msra.mxu0 0
      %4835 = vmatprep.subr.bf16.mxu0 0
      %4836 = vmatpush1.bf16.msra.mxu0 0
      %4837 = vmatprep.mubr.bf16.mxu0 0
      %4838 = vmatmul.mubr.bf16.gmra.mrb[0].mxu0 %v4743
      %v4839 = vpop.f32.mrb[0].mxu0
      %v4840 = vadd.f32 0.0, %v4839
      %v4841 = vpop.f32.mrb[0].mxu0
      %v4842 = vpop.f32.mrb[0].mxu0
      %v4843 = vadd.f32 0.0, %v4842
      %v4844 = vpop.f32.mrb[0].mxu0
      %4845 = vmatprep.mubr.bf16.mxu0 0
      %4846 = vmatmul.mubr.bf16.gmra.mrb[0].mxu0 %v4745
      %v4847 = vpop.f32.mrb[0].mxu0
      %v4848 = vadd.f32 0.0, %v4847
      %v4849 = vpop.f32.mrb[0].mxu0
      %v4850 = vpop.f32.mrb[0].mxu0
      %v4851 = vadd.f32 0.0, %v4850
      %v4852 = vpop.f32.mrb[0].mxu0
      %4853 = vmatprep.mubr.bf16.mxu0 0
      %4854 = vmatmul.mubr.bf16.gmra.mrb[0].mxu0 %v4747
      %v4855 = vpop.f32.mrb[0].mxu0
      %v4856 = vadd.f32 0.0, %v4855
      %v4857 = vpop.f32.mrb[0].mxu0
      %v4858 = vpop.f32.mrb[0].mxu0
      %v4859 = vadd.f32 0.0, %v4858
      %v4860 = vpop.f32.mrb[0].mxu0
      %4861 = vmatprep.mubr.bf16.mxu0 0
      %4862 = vmatmul.mubr.bf16.gmra.mrb[0].mxu0 %v4749
      %v4863 = vpop.f32.mrb[0].mxu0
      %v4864 = vadd.f32 0.0, %v4863
      %v4865 = vpop.f32.mrb[0].mxu0
      %v4866 = vpop.f32.mrb[0].mxu0
      %v4867 = vadd.f32 0.0, %v4866
      %v4868 = vpop.f32.mrb[0].mxu0
      %4869 = vmatprep.mubr.bf16.mxu0 0
      %4870 = vmatmul.mubr.bf16.gmra.mrb[0].mxu0 %v4751
      %v4871 = vpop.f32.mrb[0].mxu0
      %v4872 = vadd.f32 0.0, %v4871
      %v4873 = vpop.f32.mrb[0].mxu0
      %v4874 = vpop.f32.mrb[0].mxu0
      %v4875 = vadd.f32 0.0, %v4874
      %v4876 = vpop.f32.mrb[0].mxu0
      %4877 = vdwg.mxu0
      %v4878 = vadd.f32 %v4710, %v4840
      %v4879 = vadd.f32 %v4711, %v4843
      %v4880 = vadd.f32 %v4712, %v4848
      %v4881 = vadd.f32 %v4713, %v4851
      %v4882 = vadd.f32 %v4714, %v4856
      %v4883 = vadd.f32 %v4715, %v4859
      %v4884 = vadd.f32 %v4716, %v4864
      %v4885 = vadd.f32 %v4717, %v4867
      %v4886 = vadd.f32 %v4718, %v4872
      %v4887 = vadd.f32 %v4719, %v4875
      %s4888 = scalar_lea.vmem %s3, 1600
      %v4889 = vld [vmem:[%s4888] sm:$0xf]
      %v4890 = vld [vmem:[%s4888 + $0x4] sm:$0xf]
      %v4891 = vld [vmem:[%s4888 + $0x8] sm:$0xf]
      %v4892 = vld [vmem:[%s4888 + $0xc] sm:$0xf]
      %v4893 = vld [vmem:[%s4888 + $0x10] sm:$0xf]
      %v4894 = vld [vmem:[%s4888 + $0x14] sm:$0xf]
      %v4895 = vld [vmem:[%s4888 + $0x18] sm:$0xf]
      %v4896 = vld [vmem:[%s4888 + $0x1c] sm:$0xf]
      %v4897 = vld [vmem:[%s4888 + $0x20] sm:$0xf]
      %v4898 = vld [vmem:[%s4888 + $0x24] sm:$0xf]
      %v4899 = vld [vmem:[%s4888 + $0x28] sm:$0xf]
      %v4900 = vld [vmem:[%s4888 + $0x2c] sm:$0xf]
      %v4901 = vld [vmem:[%s4888 + $0x30] sm:$0xf]
      %v4902 = vld [vmem:[%s4888 + $0x34] sm:$0xf]
      %v4903 = vld [vmem:[%s4888 + $0x38] sm:$0xf]
      %v4904 = vld [vmem:[%s4888 + $0x3c] sm:$0xf]
      %v4905 = vrot.slane %v3846, 2
      %v4906 = vrot.slane %v3842, 3
      %v4907 = vor.u32 %v4905, %v4906
      %v4908 = vrot.slane %v3854, 2
      %v4909 = vrot.slane %v3850, 3
      %v4910 = vor.u32 %v4908, %v4909
      %v4911 = vsel %vm1699, %v4907, %v4910
      %v4912 = vrot.slane %v3862, 2
      %v4913 = vrot.slane %v3858, 3
      %v4914 = vor.u32 %v4912, %v4913
      %v4915 = vsel %vm1699, %v4910, %v4914
      %v4916 = vrot.slane %v3870, 2
      %v4917 = vrot.slane %v3866, 3
      %v4918 = vor.u32 %v4916, %v4917
      %v4919 = vsel %vm1699, %v4914, %v4918
      %v4921 = vshrl.u32 %v4739, 16
      %v4923 = vrot.slane %v4921, 2
      %v4924 = vshll.u32 %v4739, 16
      %v4926 = vrot.slane %v4924, 3
      %v4927 = vor.u32 %v4923, %v4926
      %v4928 = vsel %vm1699, %v4918, %v4927
      %v4930 = vshrl.u32 %v4740, 16
      %v4932 = vrot.slane %v4930, 2
      %v4933 = vshll.u32 %v4740, 16
      %v4935 = vrot.slane %v4933, 3
      %v4936 = vor.u32 %v4932, %v4935
      %v4937 = vsel %vm1699, %v4927, %v4936
      %v4959 = vunpack.c.l.b16 %v4889
      %v4960 = vunpack.c.l.b16 %v4890
      %v4961 = vunpack.c.l.b16 %v4891
      %v4962 = vunpack.c.l.b16 %v4892
      %v4963 = vunpack.c.l.b16 %v4893
      %v4964 = vunpack.c.l.b16 %v4894
      %v4965 = vunpack.c.l.b16 %v4895
      %v4966 = vunpack.c.l.b16 %v4896
      %v4967 = vunpack.c.l.b16 %v4897
      %v4968 = vunpack.c.l.b16 %v4898
      %v4969 = vunpack.c.l.b16 %v4899
      %v4970 = vunpack.c.l.b16 %v4900
      %v4971 = vunpack.c.l.b16 %v4901
      %v4972 = vunpack.c.l.b16 %v4902
      %v4973 = vunpack.c.l.b16 %v4903
      %v4974 = vunpack.c.l.b16 %v4904
      %v4975 = vpack.c.b16 %v4960, %v4959
      %v4976 = vpack.c.b16 %v4962, %v4961
      %v4977 = vpack.c.b16 %v4964, %v4963
      %v4978 = vpack.c.b16 %v4966, %v4965
      %v4979 = vpack.c.b16 %v4968, %v4967
      %v4980 = vpack.c.b16 %v4970, %v4969
      %v4981 = vpack.c.b16 %v4972, %v4971
      %v4982 = vpack.c.b16 %v4974, %v4973
      %4991 = vmatprep.subr.bf16.mxu0 0
      %4992 = vmatpush1.bf16.msra.mxu0 %v4975
      %4993 = vmatprep.subr.bf16.mxu0 0
      %4994 = vmatpush1.bf16.msra.mxu0 %v4976
      %4995 = vmatprep.subr.bf16.mxu0 0
      %4996 = vmatpush1.bf16.msra.mxu0 %v4977
      %4997 = vmatprep.subr.bf16.mxu0 0
      %4998 = vmatpush1.bf16.msra.mxu0 %v4978
      %4999 = vmatprep.subr.bf16.mxu0 0
      %5000 = vmatpush1.bf16.msra.mxu0 %v4979
      %5001 = vmatprep.subr.bf16.mxu0 0
      %5002 = vmatpush1.bf16.msra.mxu0 %v4980
      %5003 = vmatprep.subr.bf16.mxu0 0
      %5004 = vmatpush1.bf16.msra.mxu0 %v4981
      %5005 = vmatprep.subr.bf16.mxu0 0
      %5006 = vmatpush1.bf16.msra.mxu0 %v4982
      %5007 = vmatprep.subr.bf16.mxu0 0
      %5008 = vmatpush1.bf16.msra.mxu0 0
      %5009 = vmatprep.subr.bf16.mxu0 0
      %5010 = vmatpush1.bf16.msra.mxu0 0
      %5011 = vmatprep.subr.bf16.mxu0 0
      %5012 = vmatpush1.bf16.msra.mxu0 0
      %5013 = vmatprep.subr.bf16.mxu0 0
      %5014 = vmatpush1.bf16.msra.mxu0 0
      %5015 = vmatprep.subr.bf16.mxu0 0
      %5016 = vmatpush1.bf16.msra.mxu0 0
      %5017 = vmatprep.subr.bf16.mxu0 0
      %5018 = vmatpush1.bf16.msra.mxu0 0
      %5019 = vmatprep.subr.bf16.mxu0 0
      %5020 = vmatpush1.bf16.msra.mxu0 0
      %5021 = vmatprep.subr.bf16.mxu0 0
      %5022 = vmatpush1.bf16.msra.mxu0 0
      %5023 = vmatprep.mubr.bf16.mxu0 0
      %5024 = vmatmul.mubr.bf16.gmra.mrb[0].mxu0 %v4911
      %v5025 = vpop.f32.mrb[0].mxu0
      %v5026 = vadd.f32 0.0, %v5025
      %v5027 = vpop.f32.mrb[0].mxu0
      %v5028 = vpop.f32.mrb[0].mxu0
      %v5029 = vadd.f32 0.0, %v5028
      %v5030 = vpop.f32.mrb[0].mxu0
      %5031 = vmatprep.mubr.bf16.mxu0 0
      %5032 = vmatmul.mubr.bf16.gmra.mrb[0].mxu0 %v4915
      %v5033 = vpop.f32.mrb[0].mxu0
      %v5034 = vadd.f32 0.0, %v5033
      %v5035 = vpop.f32.mrb[0].mxu0
      %v5036 = vpop.f32.mrb[0].mxu0
      %v5037 = vadd.f32 0.0, %v5036
      %v5038 = vpop.f32.mrb[0].mxu0
      %5039 = vmatprep.mubr.bf16.mxu0 0
      %5040 = vmatmul.mubr.bf16.gmra.mrb[0].mxu0 %v4919
      %v5041 = vpop.f32.mrb[0].mxu0
      %v5042 = vadd.f32 0.0, %v5041
      %v5043 = vpop.f32.mrb[0].mxu0
      %v5044 = vpop.f32.mrb[0].mxu0
      %v5045 = vadd.f32 0.0, %v5044
      %v5046 = vpop.f32.mrb[0].mxu0
      %5047 = vmatprep.mubr.bf16.mxu0 0
      %5048 = vmatmul.mubr.bf16.gmra.mrb[0].mxu0 %v4928
      %v5049 = vpop.f32.mrb[0].mxu0
      %v5050 = vadd.f32 0.0, %v5049
      %v5051 = vpop.f32.mrb[0].mxu0
      %v5052 = vpop.f32.mrb[0].mxu0
      %v5053 = vadd.f32 0.0, %v5052
      %v5054 = vpop.f32.mrb[0].mxu0
      %5055 = vmatprep.mubr.bf16.mxu0 0
      %5056 = vmatmul.mubr.bf16.gmra.mrb[0].mxu0 %v4937
      %v5057 = vpop.f32.mrb[0].mxu0
      %v5058 = vadd.f32 0.0, %v5057
      %v5059 = vpop.f32.mrb[0].mxu0
      %v5060 = vpop.f32.mrb[0].mxu0
      %v5061 = vadd.f32 0.0, %v5060
      %v5062 = vpop.f32.mrb[0].mxu0
      %5063 = vdwg.mxu0
      %v5064 = vadd.f32 %v4878, %v5026
      %v5065 = vadd.f32 %v4879, %v5029
      %v5066 = vadd.f32 %v4880, %v5034
      %v5067 = vadd.f32 %v4881, %v5037
      %v5068 = vadd.f32 %v4882, %v5042
      %v5069 = vadd.f32 %v4883, %v5045
      %v5070 = vadd.f32 %v4884, %v5050
      %v5071 = vadd.f32 %v4885, %v5053
      %v5072 = vadd.f32 %v4886, %v5058
      %v5073 = vadd.f32 %v4887, %v5061
      %s5074 = scalar_lea.vmem %s3, 1664
      %v5075 = vld [vmem:[%s5074] sm:$0xf]
      %v5076 = vld [vmem:[%s5074 + $0x4] sm:$0xf]
      %v5077 = vld [vmem:[%s5074 + $0x8] sm:$0xf]
      %v5078 = vld [vmem:[%s5074 + $0xc] sm:$0xf]
      %v5079 = vld [vmem:[%s5074 + $0x10] sm:$0xf]
      %v5080 = vld [vmem:[%s5074 + $0x14] sm:$0xf]
      %v5081 = vld [vmem:[%s5074 + $0x18] sm:$0xf]
      %v5082 = vld [vmem:[%s5074 + $0x1c] sm:$0xf]
      %v5083 = vld [vmem:[%s5074 + $0x20] sm:$0xf]
      %v5084 = vld [vmem:[%s5074 + $0x24] sm:$0xf]
      %v5085 = vld [vmem:[%s5074 + $0x28] sm:$0xf]
      %v5086 = vld [vmem:[%s5074 + $0x2c] sm:$0xf]
      %v5087 = vld [vmem:[%s5074 + $0x30] sm:$0xf]
      %v5088 = vld [vmem:[%s5074 + $0x34] sm:$0xf]
      %v5089 = vld [vmem:[%s5074 + $0x38] sm:$0xf]
      %v5090 = vld [vmem:[%s5074 + $0x3c] sm:$0xf]
      %v5091 = vrot.slane %v3674, 3
      %v5092 = vrot.slane %v3675, 3
      %v5093 = vsel %vm1886, %v5091, %v5092
      %v5094 = vrot.slane %v3676, 3
      %v5095 = vsel %vm1886, %v5092, %v5094
      %v5096 = vrot.slane %v3677, 3
      %v5097 = vsel %vm1886, %v5094, %v5096
      %v5098 = vrot.slane %v4739, 3
      %v5099 = vsel %vm1886, %v5096, %v5098
      %v5100 = vrot.slane %v4740, 3
      %v5101 = vsel %vm1886, %v5098, %v5100
      %v5123 = vunpack.c.l.b16 %v5075
      %v5124 = vunpack.c.l.b16 %v5076
      %v5125 = vunpack.c.l.b16 %v5077
      %v5126 = vunpack.c.l.b16 %v5078
      %v5127 = vunpack.c.l.b16 %v5079
      %v5128 = vunpack.c.l.b16 %v5080
      %v5129 = vunpack.c.l.b16 %v5081
      %v5130 = vunpack.c.l.b16 %v5082
      %v5131 = vunpack.c.l.b16 %v5083
      %v5132 = vunpack.c.l.b16 %v5084
      %v5133 = vunpack.c.l.b16 %v5085
      %v5134 = vunpack.c.l.b16 %v5086
      %v5135 = vunpack.c.l.b16 %v5087
      %v5136 = vunpack.c.l.b16 %v5088
      %v5137 = vunpack.c.l.b16 %v5089
      %v5138 = vunpack.c.l.b16 %v5090
      %v5139 = vpack.c.b16 %v5124, %v5123
      %v5140 = vpack.c.b16 %v5126, %v5125
      %v5141 = vpack.c.b16 %v5128, %v5127
      %v5142 = vpack.c.b16 %v5130, %v5129
      %v5143 = vpack.c.b16 %v5132, %v5131
      %v5144 = vpack.c.b16 %v5134, %v5133
      %v5145 = vpack.c.b16 %v5136, %v5135
      %v5146 = vpack.c.b16 %v5138, %v5137
      %5155 = vmatprep.subr.bf16.mxu0 0
      %5156 = vmatpush1.bf16.msra.mxu0 %v5139
      %5157 = vmatprep.subr.bf16.mxu0 0
      %5158 = vmatpush1.bf16.msra.mxu0 %v5140
      %5159 = vmatprep.subr.bf16.mxu0 0
      %5160 = vmatpush1.bf16.msra.mxu0 %v5141
      %5161 = vmatprep.subr.bf16.mxu0 0
      %5162 = vmatpush1.bf16.msra.mxu0 %v5142
      %5163 = vmatprep.subr.bf16.mxu0 0
      %5164 = vmatpush1.bf16.msra.mxu0 %v5143
      %5165 = vmatprep.subr.bf16.mxu0 0
      %5166 = vmatpush1.bf16.msra.mxu0 %v5144
      %5167 = vmatprep.subr.bf16.mxu0 0
      %5168 = vmatpush1.bf16.msra.mxu0 %v5145
      %5169 = vmatprep.subr.bf16.mxu0 0
      %5170 = vmatpush1.bf16.msra.mxu0 %v5146
      %5171 = vmatprep.subr.bf16.mxu0 0
      %5172 = vmatpush1.bf16.msra.mxu0 0
      %5173 = vmatprep.subr.bf16.mxu0 0
      %5174 = vmatpush1.bf16.msra.mxu0 0
      %5175 = vmatprep.subr.bf16.mxu0 0
      %5176 = vmatpush1.bf16.msra.mxu0 0
      %5177 = vmatprep.subr.bf16.mxu0 0
      %5178 = vmatpush1.bf16.msra.mxu0 0
      %5179 = vmatprep.subr.bf16.mxu0 0
      %5180 = vmatpush1.bf16.msra.mxu0 0
      %5181 = vmatprep.subr.bf16.mxu0 0
      %5182 = vmatpush1.bf16.msra.mxu0 0
      %5183 = vmatprep.subr.bf16.mxu0 0
      %5184 = vmatpush1.bf16.msra.mxu0 0
      %5185 = vmatprep.subr.bf16.mxu0 0
      %5186 = vmatpush1.bf16.msra.mxu0 0
      %5187 = vmatprep.mubr.bf16.mxu0 0
      %5188 = vmatmul.mubr.bf16.gmra.mrb[0].mxu0 %v5093
      %v5189 = vpop.f32.mrb[0].mxu0
      %v5190 = vadd.f32 0.0, %v5189
      %v5191 = vpop.f32.mrb[0].mxu0
      %v5192 = vpop.f32.mrb[0].mxu0
      %v5193 = vadd.f32 0.0, %v5192
      %v5194 = vpop.f32.mrb[0].mxu0
      %5195 = vmatprep.mubr.bf16.mxu0 0
      %5196 = vmatmul.mubr.bf16.gmra.mrb[0].mxu0 %v5095
      %v5197 = vpop.f32.mrb[0].mxu0
      %v5198 = vadd.f32 0.0, %v5197
      %v5199 = vpop.f32.mrb[0].mxu0
      %v5200 = vpop.f32.mrb[0].mxu0
      %v5201 = vadd.f32 0.0, %v5200
      %v5202 = vpop.f32.mrb[0].mxu0
      %5203 = vmatprep.mubr.bf16.mxu0 0
      %5204 = vmatmul.mubr.bf16.gmra.mrb[0].mxu0 %v5097
      %v5205 = vpop.f32.mrb[0].mxu0
      %v5206 = vadd.f32 0.0, %v5205
      %v5207 = vpop.f32.mrb[0].mxu0
      %v5208 = vpop.f32.mrb[0].mxu0
      %v5209 = vadd.f32 0.0, %v5208
      %v5210 = vpop.f32.mrb[0].mxu0
      %5211 = vmatprep.mubr.bf16.mxu0 0
      %5212 = vmatmul.mubr.bf16.gmra.mrb[0].mxu0 %v5099
      %v5213 = vpop.f32.mrb[0].mxu0
      %v5214 = vadd.f32 0.0, %v5213
      %v5215 = vpop.f32.mrb[0].mxu0
      %v5216 = vpop.f32.mrb[0].mxu0
      %v5217 = vadd.f32 0.0, %v5216
      %v5218 = vpop.f32.mrb[0].mxu0
      %5219 = vmatprep.mubr.bf16.mxu0 0
      %5220 = vmatmul.mubr.bf16.gmra.mrb[0].mxu0 %v5101
      %v5221 = vpop.f32.mrb[0].mxu0
      %v5222 = vadd.f32 0.0, %v5221
      %v5223 = vpop.f32.mrb[0].mxu0
      %v5224 = vpop.f32.mrb[0].mxu0
      %v5225 = vadd.f32 0.0, %v5224
      %v5226 = vpop.f32.mrb[0].mxu0
      %5227 = vdwg.mxu0
      %v5228 = vadd.f32 %v5064, %v5190
      %v5229 = vadd.f32 %v5065, %v5193
      %v5230 = vadd.f32 %v5066, %v5198
      %v5231 = vadd.f32 %v5067, %v5201
      %v5232 = vadd.f32 %v5068, %v5206
      %v5233 = vadd.f32 %v5069, %v5209
      %v5234 = vadd.f32 %v5070, %v5214
      %v5235 = vadd.f32 %v5071, %v5217
      %v5236 = vadd.f32 %v5072, %v5222
      %v5237 = vadd.f32 %v5073, %v5225
      %v5238 = vlaneseq
      %v5239 = vshrl.u32 %v5238, 7
      %v5240 = vadd.s32 %v5239, 8
      %v5241 = vadd.s32 %v5239, 16
      %v5242 = vadd.s32 %v5239, 24
      %v5243 = vadd.s32 %v5239, 32
      %v5244 = vadd.s32 %v5239, 40
      %v5245 = vadd.s32 %v5239, 48
      %v5246 = vadd.s32 %v5239, 56
      %v5247 = vadd.s32 %v5239, 64
      %v5248 = vadd.s32 %v5239, 72
      %vm5249 = vcmp.lt.s32.totalorder %v5239, 0
      %v5250 = vsub.s32 0, %v5239
      %v5251 = vsel %vm5249, %v5250, %v5239
      %v5252 = vmul.u32.u64.compose %v5251, 3435973837
      %v5253 = vextract.low.u32 %v5252
      %v5254 = vextract.high.u32 %v5252
      %v5255 = vshrl.u32 %v5254, 3
      %v5256 = vmul.u32 %v5255, 10
      %v5257 = vsub.s32 %v5251, %v5256
      %v5258 = vsub.s32 0, %v5257
      %v5259 = vsel %vm5249, %v5258, %v5257
      %vm5260 = vcmp.lt.s32.totalorder %v5240, 0
      %v5261 = vsub.s32 0, %v5240
      %v5262 = vsel %vm5260, %v5261, %v5240
      %v5263 = vmul.u32.u64.compose %v5262, 3435973837
      %v5264 = vextract.low.u32 %v5263
      %v5265 = vextract.high.u32 %v5263
      %v5266 = vshrl.u32 %v5265, 3
      %v5267 = vmul.u32 %v5266, 10
      %v5268 = vsub.s32 %v5262, %v5267
      %v5269 = vsub.s32 0, %v5268
      %v5270 = vsel %vm5260, %v5269, %v5268
      %vm5271 = vcmp.lt.s32.totalorder %v5241, 0
      %v5272 = vsub.s32 0, %v5241
      %v5273 = vsel %vm5271, %v5272, %v5241
      %v5274 = vmul.u32.u64.compose %v5273, 3435973837
      %v5275 = vextract.low.u32 %v5274
      %v5276 = vextract.high.u32 %v5274
      %v5277 = vshrl.u32 %v5276, 3
      %v5278 = vmul.u32 %v5277, 10
      %v5279 = vsub.s32 %v5273, %v5278
      %v5280 = vsub.s32 0, %v5279
      %v5281 = vsel %vm5271, %v5280, %v5279
      %vm5282 = vcmp.lt.s32.totalorder %v5242, 0
      %v5283 = vsub.s32 0, %v5242
      %v5284 = vsel %vm5282, %v5283, %v5242
      %v5285 = vmul.u32.u64.compose %v5284, 3435973837
      %v5286 = vextract.low.u32 %v5285
      %v5287 = vextract.high.u32 %v5285
      %v5288 = vshrl.u32 %v5287, 3
      %v5289 = vmul.u32 %v5288, 10
      %v5290 = vsub.s32 %v5284, %v5289
      %v5291 = vsub.s32 0, %v5290
      %v5292 = vsel %vm5282, %v5291, %v5290
      %vm5293 = vcmp.lt.s32.totalorder %v5243, 0
      %v5294 = vsub.s32 0, %v5243
      %v5295 = vsel %vm5293, %v5294, %v5243
      %v5296 = vmul.u32.u64.compose %v5295, 3435973837
      %v5297 = vextract.low.u32 %v5296
      %v5298 = vextract.high.u32 %v5296
      %v5299 = vshrl.u32 %v5298, 3
      %v5300 = vmul.u32 %v5299, 10
      %v5301 = vsub.s32 %v5295, %v5300
      %v5302 = vsub.s32 0, %v5301
      %v5303 = vsel %vm5293, %v5302, %v5301
      %vm5304 = vcmp.lt.s32.totalorder %v5244, 0
      %v5305 = vsub.s32 0, %v5244
      %v5306 = vsel %vm5304, %v5305, %v5244
      %v5307 = vmul.u32.u64.compose %v5306, 3435973837
      %v5308 = vextract.low.u32 %v5307
      %v5309 = vextract.high.u32 %v5307
      %v5310 = vshrl.u32 %v5309, 3
      %v5311 = vmul.u32 %v5310, 10
      %v5312 = vsub.s32 %v5306, %v5311
      %v5313 = vsub.s32 0, %v5312
      %v5314 = vsel %vm5304, %v5313, %v5312
      %vm5315 = vcmp.lt.s32.totalorder %v5245, 0
      %v5316 = vsub.s32 0, %v5245
      %v5317 = vsel %vm5315, %v5316, %v5245
      %v5318 = vmul.u32.u64.compose %v5317, 3435973837
      %v5319 = vextract.low.u32 %v5318
      %v5320 = vextract.high.u32 %v5318
      %v5321 = vshrl.u32 %v5320, 3
      %v5322 = vmul.u32 %v5321, 10
      %v5323 = vsub.s32 %v5317, %v5322
      %v5324 = vsub.s32 0, %v5323
      %v5325 = vsel %vm5315, %v5324, %v5323
      %vm5326 = vcmp.lt.s32.totalorder %v5246, 0
      %v5327 = vsub.s32 0, %v5246
      %v5328 = vsel %vm5326, %v5327, %v5246
      %v5329 = vmul.u32.u64.compose %v5328, 3435973837
      %v5330 = vextract.low.u32 %v5329
      %v5331 = vextract.high.u32 %v5329
      %v5332 = vshrl.u32 %v5331, 3
      %v5333 = vmul.u32 %v5332, 10
      %v5334 = vsub.s32 %v5328, %v5333
      %v5335 = vsub.s32 0, %v5334
      %v5336 = vsel %vm5326, %v5335, %v5334
      %vm5337 = vcmp.lt.s32.totalorder %v5247, 0
      %v5338 = vsub.s32 0, %v5247
      %v5339 = vsel %vm5337, %v5338, %v5247
      %v5340 = vmul.u32.u64.compose %v5339, 3435973837
      %v5341 = vextract.low.u32 %v5340
      %v5342 = vextract.high.u32 %v5340
      %v5343 = vshrl.u32 %v5342, 3
      %v5344 = vmul.u32 %v5343, 10
      %v5345 = vsub.s32 %v5339, %v5344
      %v5346 = vsub.s32 0, %v5345
      %v5347 = vsel %vm5337, %v5346, %v5345
      %vm5348 = vcmp.lt.s32.totalorder %v5248, 0
      %v5349 = vsub.s32 0, %v5248
      %v5350 = vsel %vm5348, %v5349, %v5248
      %v5351 = vmul.u32.u64.compose %v5350, 3435973837
      %v5352 = vextract.low.u32 %v5351
      %v5353 = vextract.high.u32 %v5351
      %v5354 = vshrl.u32 %v5353, 3
      %v5355 = vmul.u32 %v5354, 10
      %v5356 = vsub.s32 %v5350, %v5355
      %v5357 = vsub.s32 0, %v5356
      %v5358 = vsel %vm5348, %v5357, %v5356
      %vm5359 = vcmp.ne.s32.totalorder %v5259, 0
      %vm5360 = vcmp.ne.s32.totalorder %v5270, 0
      %vm5361 = vcmp.ne.s32.totalorder %v5281, 0
      %vm5362 = vcmp.ne.s32.totalorder %v5292, 0
      %vm5363 = vcmp.ne.s32.totalorder %v5303, 0
      %vm5364 = vcmp.ne.s32.totalorder %v5314, 0
      %vm5365 = vcmp.ne.s32.totalorder %v5325, 0
      %vm5366 = vcmp.ne.s32.totalorder %v5336, 0
      %vm5367 = vcmp.ne.s32.totalorder %v5347, 0
      %vm5368 = vcmp.ne.s32.totalorder %v5358, 0
      %vm5369 = vcmp.lt.s32.totalorder %v5259, 0
      %vm5370 = vcmp.lt.s32.totalorder %v5270, 0
      %vm5371 = vcmp.lt.s32.totalorder %v5281, 0
      %vm5372 = vcmp.lt.s32.totalorder %v5292, 0
      %vm5373 = vcmp.lt.s32.totalorder %v5303, 0
      %vm5374 = vcmp.lt.s32.totalorder %v5314, 0
      %vm5375 = vcmp.lt.s32.totalorder %v5325, 0
      %vm5376 = vcmp.lt.s32.totalorder %v5336, 0
      %vm5377 = vcmp.lt.s32.totalorder %v5347, 0
      %vm5378 = vcmp.lt.s32.totalorder %v5358, 0
      %vm5379 = vmand %vm5369, %vm5359
      %vm5380 = vmand %vm5370, %vm5360
      %vm5381 = vmand %vm5371, %vm5361
      %vm5382 = vmand %vm5372, %vm5362
      %vm5383 = vmand %vm5373, %vm5363
      %vm5384 = vmand %vm5374, %vm5364
      %vm5385 = vmand %vm5375, %vm5365
      %vm5386 = vmand %vm5376, %vm5366
      %vm5387 = vmand %vm5377, %vm5367
      %vm5388 = vmand %vm5378, %vm5368
      %v5389 = vadd.s32 %v5259, 10
      %v5390 = vadd.s32 %v5270, 10
      %v5391 = vadd.s32 %v5281, 10
      %v5392 = vadd.s32 %v5292, 10
      %v5393 = vadd.s32 %v5303, 10
      %v5394 = vadd.s32 %v5314, 10
      %v5395 = vadd.s32 %v5325, 10
      %v5396 = vadd.s32 %v5336, 10
      %v5397 = vadd.s32 %v5347, 10
      %v5398 = vadd.s32 %v5358, 10
      %v5399 = vsel %vm5379, %v5389, %v5259
      %v5400 = vsel %vm5380, %v5390, %v5270
      %v5401 = vsel %vm5381, %v5391, %v5281
      %v5402 = vsel %vm5382, %v5392, %v5292
      %v5403 = vsel %vm5383, %v5393, %v5303
      %v5404 = vsel %vm5384, %v5394, %v5314
      %v5405 = vsel %vm5385, %v5395, %v5325
      %v5406 = vsel %vm5386, %v5396, %v5336
      %v5407 = vsel %vm5387, %v5397, %v5347
      %v5408 = vsel %vm5388, %v5398, %v5358
      %vm5409 = vcmp.lt.s32.totalorder %v5399, 8
      %vm5410 = vcmp.lt.s32.totalorder %v5400, 8
      %vm5411 = vcmp.lt.s32.totalorder %v5401, 8
      %vm5412 = vcmp.lt.s32.totalorder %v5402, 8
      %vm5413 = vcmp.lt.s32.totalorder %v5403, 8
      %vm5414 = vcmp.lt.s32.totalorder %v5404, 8
      %vm5415 = vcmp.lt.s32.totalorder %v5405, 8
      %vm5416 = vcmp.lt.s32.totalorder %v5406, 8
      %vm5417 = vcmp.lt.s32.totalorder %v5407, 8
      %vm5418 = vcmp.lt.s32.totalorder %v5408, 8
      %v5419 = vsel %vm5409, %v5228, 0.0
      %v5420 = vsel %vm5410, %v5229, 0.0
      %v5421 = vsel %vm5411, %v5230, 0.0
      %v5422 = vsel %vm5412, %v5231, 0.0
      %v5423 = vsel %vm5413, %v5232, 0.0
      %v5424 = vsel %vm5414, %v5233, 0.0
      %v5425 = vsel %vm5415, %v5234, 0.0
      %v5426 = vsel %vm5416, %v5235, 0.0
      %v5427 = vsel %vm5417, %v5236, 0.0
      %v5428 = vsel %vm5418, %v5237, 0.0
      %5429 = vst [vmem:[%s392] sm:$0xff] %v5419
      %5430 = vst [vmem:[%s392 + $0x8] sm:$0xff] %v5420
      %5431 = vst [vmem:[%s392 + $0x10] sm:$0xff] %v5421
      %5432 = vst [vmem:[%s392 + $0x18] sm:$0xff] %v5422
      %5433 = vst [vmem:[%s392 + $0x20] sm:$0xff] %v5423
      %5434 = vst [vmem:[%s392 + $0x28] sm:$0xff] %v5424
      %5435 = vst [vmem:[%s392 + $0x30] sm:$0xff] %v5425
      %5436 = vst [vmem:[%s392 + $0x38] sm:$0xff] %v5426
      %5437 = vst [vmem:[%s392 + $0x40] sm:$0xff] %v5427
      %5438 = vst [vmem:[%s392 + $0x48] sm:$0xff] %v5428
      %v5439 = vadd.f32 %v5419, %v5420
      %v5440 = vadd.f32 %v5439, %v5421
      %v5441 = vadd.f32 %v5440, %v5422
      %v5442 = vadd.f32 %v5441, %v5423
      %v5443 = vadd.f32 %v5442, %v5424
      %v5444 = vadd.f32 %v5443, %v5425
      %v5445 = vadd.f32 %v5444, %v5426
      %v5446 = vadd.f32 %v5445, %v5427
      %v5447 = vadd.f32 %v5446, %v5428
      %v5448 = vrot.slane %v5447, 4
      %v5449 = vadd.f32 %v5447, %v5448
      %v5450 = vrot.slane %v5449, 2
      %v5451 = vadd.f32 %v5449, %v5450
      %v5452 = vrot.slane %v5451, 1
      %v5453 = vadd.f32 %v5451, %v5452
      %5454 = vst [vmem:[%s399] sm:$0x1] %v5453
      %v5455 = vmul.f32 %v5419, %v5419
      %v5456 = vmul.f32 %v5420, %v5420
      %v5457 = vmul.f32 %v5421, %v5421
      %v5458 = vmul.f32 %v5422, %v5422
      %v5459 = vmul.f32 %v5423, %v5423
      %v5460 = vmul.f32 %v5424, %v5424
      %v5461 = vmul.f32 %v5425, %v5425
      %v5462 = vmul.f32 %v5426, %v5426
      %v5463 = vmul.f32 %v5427, %v5427
      %v5464 = vmul.f32 %v5428, %v5428
      %v5465 = vadd.f32 %v5455, %v5456
      %v5466 = vadd.f32 %v5465, %v5457
      %v5467 = vadd.f32 %v5466, %v5458
      %v5468 = vadd.f32 %v5467, %v5459
      %v5469 = vadd.f32 %v5468, %v5460
      %v5470 = vadd.f32 %v5469, %v5461
      %v5471 = vadd.f32 %v5470, %v5462
      %v5472 = vadd.f32 %v5471, %v5463
      %v5473 = vadd.f32 %v5472, %v5464
      %v5474 = vrot.slane %v5473, 4
      %v5475 = vadd.f32 %v5473, %v5474
      %v5476 = vrot.slane %v5475, 2
      %v5477 = vadd.f32 %v5475, %v5476
      %v5478 = vrot.slane %v5477, 1
      %v5479 = vadd.f32 %v5477, %v5478
      %5480 = vst [vmem:[%s406] sm:$0x1] %v5479
      %p5481 = scmp.lt.s32.totalorder %s22, 1
      %s5482 = scalar_select %p5481, %s22, 1
      %p5483 = scmp.lt.s32.totalorder %s23, 7
      %s5484 = scalar_select %p5483, %s23, 7
      %s5485 = smul.addr %s5484, 10
      %s5486 = smul.addr %s5482, 80
      %s5487 = sadd.s32 %s5485, %s5486
      %s5488 = smul.addr %s5487, 8
      %s5489 = scalar_lea.vmem %s4, %s5488
      %p5490 = scmp.lt.s32.totalorder %s22, 1
      %s5491 = scalar_select %p5490, %s22, 1
      %p5492 = scmp.lt.s32.totalorder %s23, 7
      %s5493 = scalar_select %p5492, %s23, 7
      %s5494 = smul.addr %s5491, 8
      %s5495 = sadd.s32 %s5493, %s5494
      %s5496 = scalar_lea.vmem %s5, %s5495
      %p5497 = scmp.lt.s32.totalorder %s22, 1
      %s5498 = scalar_select %p5497, %s22, 1
      %p5499 = scmp.lt.s32.totalorder %s23, 7
      %s5500 = scalar_select %p5499, %s23, 7
      %s5501 = smul.addr %s5498, 8
      %s5502 = sadd.s32 %s5500, %s5501
      %s5503 = scalar_lea.vmem %s6, %s5502
      // Predicated region
      $region37: #{basic_block_forward.4} parent=35 // pred_check
        %p5504 = pneg %p159
      $region38: #{basic_block_forward.4} parent=35 // pred_check_branch
        %5506 = sbr.rel (%p5504) target = $region40
      $region39: #{basic_block_forward.4} parent=35 // pred_region
        _
      $region40: #{basic_block_forward.4} parent=35 // pred_fallthru
        _
      // Predicated region
      $region41: #{basic_block_forward.4} parent=35 // pred_check
        %p5507 = pneg %p187
      $region42: #{basic_block_forward.4} parent=35 // pred_check_branch
        %5509 = sbr.rel (%p5507) target = $region44
      $region43: #{basic_block_forward.4} parent=35 // pred_region
        _
      $region44: #{basic_block_forward.4} parent=35 // pred_fallthru
        _
      // Predicated region
      $region45: #{basic_block_forward.4} parent=35 // pred_check
        %p5510 = pneg %p215
      $region46: #{basic_block_forward.4} parent=35 // pred_check_branch
        %5512 = sbr.rel (%p5510) target = $region48
      $region47: #{basic_block_forward.4} parent=35 // pred_region
        _
      $region48: #{basic_block_forward.4} parent=35 // pred_fallthru
        _
    $region36: #{basic_block_forward.4} parent=5 // pred_fallthru
      _
    %p5513 = scmp.le.s32.totalorder 2, %s13
    // Predicated region
    $region49: #{basic_block_forward.4} parent=5 // pred_check
      %p5514 = pneg %p5513
    $region50: #{basic_block_forward.4} parent=5 // pred_check_branch
      %5516 = sbr.rel (%p5514) target = $region52
    $region51: #{basic_block_forward.4} parent=5 // pred_region
      %s5517 = ssub.s32 %s13, 2
      // Predicated region
      $region53: #{basic_block_forward.4} parent=51 // pred_check
        %p5518 = pneg %p165
      $region54: #{basic_block_forward.4} parent=51 // pred_check_branch
        %5520 = sbr.rel (%p5518) target = $region56
      $region55: #{basic_block_forward.4} parent=51 // pred_region
        %p5521 = scmp.lt.s32.totalorder %s24, 1
        %s5522 = scalar_select %p5521, %s24, 1
        %p5523 = scmp.lt.s32.totalorder %s25, 7
        %s5524 = scalar_select %p5523, %s25, 7
        %s5525 = smul.addr %s5524, 10
        %s5526 = smul.addr %s5522, 80
        %s5527 = sadd.s32 %s5525, %s5526
        %s5528 = smul.addr %s5527, 8
        %s5529 = scalar_lea.vmem %s4, %s5528
      $region56: #{basic_block_forward.4} parent=51 // pred_fallthru
        _
      // Predicated region
      $region57: #{basic_block_forward.4} parent=51 // pred_check
        %p5530 = pneg %p193
      $region58: #{basic_block_forward.4} parent=51 // pred_check_branch
        %5532 = sbr.rel (%p5530) target = $region60
      $region59: #{basic_block_forward.4} parent=51 // pred_region
        %p5533 = scmp.lt.s32.totalorder %s24, 1
        %s5534 = scalar_select %p5533, %s24, 1
        %p5535 = scmp.lt.s32.totalorder %s25, 7
        %s5536 = scalar_select %p5535, %s25, 7
        %s5537 = smul.addr %s5534, 8
        %s5538 = sadd.s32 %s5536, %s5537
        %s5539 = scalar_lea.vmem %s5, %s5538
      $region60: #{basic_block_forward.4} parent=51 // pred_fallthru
        _
      // Predicated region
      $region61: #{basic_block_forward.4} parent=51 // pred_check
        %p5540 = pneg %p221
      $region62: #{basic_block_forward.4} parent=51 // pred_check_branch
        %5542 = sbr.rel (%p5540) target = $region64
      $region63: #{basic_block_forward.4} parent=51 // pred_region
        %p5543 = scmp.lt.s32.totalorder %s24, 1
        %s5544 = scalar_select %p5543, %s24, 1
        %p5545 = scmp.lt.s32.totalorder %s25, 7
        %s5546 = scalar_select %p5545, %s25, 7
        %s5547 = smul.addr %s5544, 8
        %s5548 = sadd.s32 %s5546, %s5547
        %s5549 = scalar_lea.vmem %s6, %s5548
      $region64: #{basic_block_forward.4} parent=51 // pred_fallthru
        _
    $region52: #{basic_block_forward.4} parent=5 // pred_fallthru
      _
  $region6: #{basic_block_forward.4} parent=0 // loop_footer
    %s17 = sadd.s32 1, %s13
  $region7: #{basic_block_forward.4} parent=0 // loop_footer_branch
    %12 = sbr.rel target = $region3
  $region8: #{basic_block_forward.4} parent=0 // loop_exit
    _

// kernel: basic_block_forward.7
$region0: #{basic_block_forward.7}
  #allocation0 [shape = 'u32[]', space=smem, size = 0x4, offset = 0x4, fixed_abs, tag = 'smem constant byte address 0x4 - core index']
  #allocation1 [shape = 'u32[144,128]{1,0:T(1,128)}', space=vmem, size = 0x12000, scoped, tag = 'internal scratch']
  %s0 = inlined_call_operand.vmem [shape: f32[1280,128], index: 0, kind: input, shape index: {}]
  %s1 = inlined_call_operand.vmem [shape: f32[1,128], index: 1, kind: input, shape index: {}]
  %s2 = inlined_call_operand.vmem [shape: f32[1,128], index: 2, kind: input, shape index: {}]
  %s3 = inlined_call_operand.vmem [shape: f32[1280,128], index: 3, kind: input, shape index: {}]
  %s4 = inlined_call_operand.vmem [shape: f32[1280,128], index: 4, kind: output, shape index: {}]
  %s5 = sld [smem:[#allocation0]]
  $region49: #{basic_block_forward.7} parent=0
    _
  %s7 = ssub.s32 1, %s5
  %s8 = scalar_select 0, %s7, %s5
  loop: start=0, step=1, limit=6
  $region2: #{basic_block_forward.7} parent=0 // loop_pre_header
    _
  $region3: #{basic_block_forward.7} parent=0 // loop_header
    %s10 = sphi 0, %s14
    %p11 = scmp.ge.s32.totalorder %s10, 6
    %s20 = sphi 0, %s22
    %s23 = sphi 0, %s20
    %s24 = sphi 0, %s23
    %s40 = sphi 0, %s24
    %s44 = sphi 0, %s44
    %s46 = sphi 0, %s44
    %s47 = sphi 0, %s46
    %s61 = sphi 0, %s47
    %s65 = sphi 0, %s65
    %s67 = sphi 0, %s65
    %s68 = sphi 0, %s67
    %s82 = sphi 0, %s68
    %s88 = sphi 0, %s90
    %s91 = sphi 0, %s88
    %s92 = sphi 0, %s91
    %s108 = sphi 0, %s92
    %s114 = sphi 0, %s116
    %s117 = sphi 0, %s114
    %s118 = sphi 0, %s117
    %s134 = sphi 0, %s118
  $region4: #{basic_block_forward.7} parent=0 // loop_header_branch
    %13 = sbr.rel (%p11) target = $region8
  $region5: #{basic_block_forward.7} parent=0 // loop_body
    %s15 = ssub.s32 %s10, 1
    %s16 = ssub.s32 %s10, 2
    %s17 = sadd.s32 %s10, 1
    %s18 = ssub.s32 %s10, %s17
    %p19 = scmp.eq.s32.totalorder %s18, 0
    %s21 = sadd.s32 %s20, 1
    %s22 = scalar_select %p19, %s20, %s21
    %p25 = pneg %p19
    %p26 = scmp.eq.s32.totalorder %s10, 3
    %p27 = por %p25, %p26
    %p28 = scmp.ne.s32.totalorder %s20, %s23
    %p29 = scmp.eq.s32.totalorder %s10, 0
    %p30 = por %p28, %p29
    %p31 = scmp.ne.s32.totalorder %s20, %s23
    %p32 = scmp.eq.s32.totalorder %s15, 3
    %p33 = por %p31, %p32
    %p34 = scmp.ne.s32.totalorder %s23, %s24
    %p35 = scmp.eq.s32.totalorder %s15, 0
    %p36 = por %p34, %p35
    %p37 = scmp.ne.s32.totalorder %s23, %s24
    %p38 = scmp.eq.s32.totalorder %s16, 3
    %p39 = por %p37, %p38
    %p41 = scmp.ne.s32.totalorder %s24, %s40
    %p42 = scmp.eq.s32.totalorder %s16, 0
    %p43 = por %p41, %p42
    %s45 = sadd.s32 %s44, 1
    %p48 = scmp.eq.s32.totalorder %s10, 3
    %p49 = scmp.ne.s32.totalorder %s44, %s46
    %p50 = scmp.eq.s32.totalorder %s10, 0
    %p51 = por %p49, %p50
    %p52 = scmp.ne.s32.totalorder %s44, %s46
    %p53 = scmp.eq.s32.totalorder %s15, 3
    %p54 = por %p52, %p53
    %p55 = scmp.ne.s32.totalorder %s46, %s47
    %p56 = scmp.eq.s32.totalorder %s15, 0
    %p57 = por %p55, %p56
    %p58 = scmp.ne.s32.totalorder %s46, %s47
    %p59 = scmp.eq.s32.totalorder %s16, 3
    %p60 = por %p58, %p59
    %p62 = scmp.ne.s32.totalorder %s47, %s61
    %p63 = scmp.eq.s32.totalorder %s16, 0
    %p64 = por %p62, %p63
    %s66 = sadd.s32 %s65, 1
    %p69 = scmp.eq.s32.totalorder %s10, 3
    %p70 = scmp.ne.s32.totalorder %s65, %s67
    %p71 = scmp.eq.s32.totalorder %s10, 0
    %p72 = por %p70, %p71
    %p73 = scmp.ne.s32.totalorder %s65, %s67
    %p74 = scmp.eq.s32.totalorder %s15, 3
    %p75 = por %p73, %p74
    %p76 = scmp.ne.s32.totalorder %s67, %s68
    %p77 = scmp.eq.s32.totalorder %s15, 0
    %p78 = por %p76, %p77
    %p79 = scmp.ne.s32.totalorder %s67, %s68
    %p80 = scmp.eq.s32.totalorder %s16, 3
    %p81 = por %p79, %p80
    %p83 = scmp.ne.s32.totalorder %s68, %s82
    %p84 = scmp.eq.s32.totalorder %s16, 0
    %p85 = por %p83, %p84
    %s86 = ssub.s32 %s10, %s17
    %p87 = scmp.eq.s32.totalorder %s86, 0
    %s89 = sadd.s32 %s88, 1
    %s90 = scalar_select %p87, %s88, %s89
    %p93 = pneg %p87
    %p94 = scmp.eq.s32.totalorder %s10, 3
    %p95 = por %p93, %p94
    %p96 = scmp.ne.s32.totalorder %s88, %s91
    %p97 = scmp.eq.s32.totalorder %s10, 0
    %p98 = por %p96, %p97
    %p99 = scmp.ne.s32.totalorder %s88, %s91
    %p100 = scmp.eq.s32.totalorder %s15, 3
    %p101 = por %p99, %p100
    %p102 = scmp.ne.s32.totalorder %s91, %s92
    %p103 = scmp.eq.s32.totalorder %s15, 0
    %p104 = por %p102, %p103
    %p105 = scmp.ne.s32.totalorder %s91, %s92
    %p106 = scmp.eq.s32.totalorder %s16, 3
    %p107 = por %p105, %p106
    %p109 = scmp.ne.s32.totalorder %s92, %s108
    %p110 = scmp.eq.s32.totalorder %s16, 0
    %p111 = por %p109, %p110
    %s112 = ssub.s32 %s10, %s17
    %p113 = scmp.eq.s32.totalorder %s112, 0
    %s115 = sadd.s32 %s114, 1
    %s116 = scalar_select %p113, %s114, %s115
    %p119 = pneg %p113
    %p120 = scmp.eq.s32.totalorder %s10, 3
    %p121 = por %p119, %p120
    %p122 = scmp.ne.s32.totalorder %s114, %s117
    %p123 = scmp.eq.s32.totalorder %s10, 0
    %p124 = por %p122, %p123
    %p125 = scmp.ne.s32.totalorder %s114, %s117
    %p126 = scmp.eq.s32.totalorder %s15, 3
    %p127 = por %p125, %p126
    %p128 = scmp.ne.s32.totalorder %s117, %s118
    %p129 = scmp.eq.s32.totalorder %s15, 0
    %p130 = por %p128, %p129
    %p131 = scmp.ne.s32.totalorder %s117, %s118
    %p132 = scmp.eq.s32.totalorder %s16, 3
    %p133 = por %p131, %p132
    %p135 = scmp.ne.s32.totalorder %s118, %s134
    %p136 = scmp.eq.s32.totalorder %s16, 0
    %p137 = por %p135, %p136
    %p138 = scmp.le.s32.totalorder 1, %s10
    %p139 = scmp.lt.s32.totalorder %s10, 5
    %p140 = pnand %p138, %p139
    %p141 = pneg %p140
    // Predicated region
    $region9: #{basic_block_forward.7} parent=5 // pred_check
      _
    $region10: #{basic_block_forward.7} parent=5 // pred_check_branch
      %143 = sbr.rel (%p140) target = $region12
    $region11: #{basic_block_forward.7} parent=5 // pred_region
      %s144 = ssub.s32 %s10, 1
      // Predicated region
      $region13: #{basic_block_forward.7} parent=11 // pred_check
        %p145 = pneg %p57
      $region14: #{basic_block_forward.7} parent=11 // pred_check_branch
        %147 = sbr.rel (%p145) target = $region16
      $region15: #{basic_block_forward.7} parent=11 // pred_region
        _
      $region16: #{basic_block_forward.7} parent=11 // pred_fallthru
        _
      // Predicated region
      $region17: #{basic_block_forward.7} parent=11 // pred_check
        %p148 = pneg %p78
      $region18: #{basic_block_forward.7} parent=11 // pred_check_branch
        %150 = sbr.rel (%p148) target = $region20
      $region19: #{basic_block_forward.7} parent=11 // pred_region
        _
      $region20: #{basic_block_forward.7} parent=11 // pred_fallthru
        _
    $region12: #{basic_block_forward.7} parent=5 // pred_fallthru
      _
    %p151 = scmp.lt.s32.totalorder %s10, 4
    // Predicated region
    $region21: #{basic_block_forward.7} parent=5 // pred_check
      %p152 = pneg %p151
    $region22: #{basic_block_forward.7} parent=5 // pred_check_branch
      %154 = sbr.rel (%p152) target = $region24
    $region23: #{basic_block_forward.7} parent=5 // pred_region
      // Predicated region
      $region25: #{basic_block_forward.7} parent=23 // pred_check
        %p155 = pneg %p30
      $region26: #{basic_block_forward.7} parent=23 // pred_check_branch
        %157 = sbr.rel (%p155) target = $region28
      $region27: #{basic_block_forward.7} parent=23 // pred_region
        %s158 = smul.u32 40, %s10
        %p159 = scmp.lt.s32.totalorder %s158, 159
        %s160 = scalar_select %p159, %s158, 159
        %s161 = smul.addr %s160, 8
        %s162 = scalar_lea.vmem %s0, %s161
        %s163 = smul.u32 40, %s10
      $region28: #{basic_block_forward.7} parent=23 // pred_fallthru
        _
      // Predicated region
      $region29: #{basic_block_forward.7} parent=23 // pred_check
        %p164 = pneg %p98
      $region30: #{basic_block_forward.7} parent=23 // pred_check_branch
        %166 = sbr.rel (%p164) target = $region32
      $region31: #{basic_block_forward.7} parent=23 // pred_region
        %s167 = smul.u32 40, %s10
        %p168 = scmp.lt.s32.totalorder %s167, 159
        %s169 = scalar_select %p168, %s167, 159
        %s170 = smul.addr %s169, 8
        %s171 = scalar_lea.vmem %s3, %s170
        %s172 = smul.u32 40, %s10
      $region32: #{basic_block_forward.7} parent=23 // pred_fallthru
        _
    $region24: #{basic_block_forward.7} parent=5 // pred_fallthru
      _
    %p173 = scmp.le.s32.totalorder 1, %s10
    %p174 = scmp.lt.s32.totalorder %s10, 5
    %p175 = pnand %p173, %p174
    %p176 = pneg %p175
    // Predicated region
    $region33: #{basic_block_forward.7} parent=5 // pred_check
      _
    $region34: #{basic_block_forward.7} parent=5 // pred_check_branch
      %178 = sbr.rel (%p175) target = $region36
    $region35: #{basic_block_forward.7} parent=5 // pred_region
      %s179 = ssub.s32 %s10, 1
      %s180 = smul.u32 40, %s15
      %p181 = scmp.lt.s32.totalorder %s180, 159
      %s182 = scalar_select %p181, %s180, 159
      %s183 = smul.addr %s182, 8
      %s184 = scalar_lea.vmem %s0, %s183
      %p185 = pneg %p36
      %p186 = pneg %p33
      %p187 = pneg %p57
      %p188 = pneg %p54
      %p189 = pneg %p78
      %p190 = pneg %p75
      %s191 = smul.u32 40, %s15
      %p192 = scmp.lt.s32.totalorder %s191, 159
      %s193 = scalar_select %p192, %s191, 159
      %s194 = smul.addr %s193, 8
      %s195 = scalar_lea.vmem %s3, %s194
      %p196 = pneg %p104
      %p197 = pneg %p101
      %p198 = pneg %p130
      %p199 = pneg %p127
      %s200 = smul.u32 40, %s15
      %p201 = scmp.lt.s32.totalorder %s200, 159
      %s202 = scalar_select %p201, %s200, 159
      %s203 = smul.addr %s202, 8
      %s204 = scalar_lea.vmem %s4, %s203
      %s205 = smul.u32 40, %s15
      %p206 = scmp.lt.s32.totalorder %s205, 159
      %s207 = scalar_select %p206, %s205, 159
      %s208 = smul.addr %s207, 8
      %s209 = scalar_lea.vmem %s0, %s208
      %s210 = smul.u32 40, %s15
      %s211 = smul.u32 40, %s15
      %p212 = scmp.lt.s32.totalorder %s211, 159
      %s213 = scalar_select %p212, %s211, 159
      %s214 = smul.addr %s213, 8
      %s215 = scalar_lea.vmem %s3, %s214
      %s216 = smul.u32 40, %s15
      %s217 = smul.u32 40, %s15
      %p218 = scmp.lt.s32.totalorder %s217, 159
      %s219 = scalar_select %p218, %s217, 159
      %s220 = smul.addr %s219, 8
      %s221 = scalar_lea.vmem %s4, %s220
      %s222 = smul.u32 40, %s15
      %v223 = vld [vmem:[%s209] sm:$0xff]
      %v224 = vld [vmem:[%s209 + $0x8] sm:$0xff]
      %v225 = vld [vmem:[%s209 + $0x10] sm:$0xff]
      %v226 = vld [vmem:[%s209 + $0x18] sm:$0xff]
      %v227 = vld [vmem:[%s209 + $0x20] sm:$0xff]
      %v228 = vld [vmem:[%s209 + $0x28] sm:$0xff]
      %v229 = vld [vmem:[%s209 + $0x30] sm:$0xff]
      %v230 = vld [vmem:[%s209 + $0x38] sm:$0xff]
      %v231 = vld [vmem:[%s209 + $0x40] sm:$0xff]
      %v232 = vld [vmem:[%s209 + $0x48] sm:$0xff]
      %v233 = vld [vmem:[%s209 + $0x50] sm:$0xff]
      %v234 = vld [vmem:[%s209 + $0x58] sm:$0xff]
      %v235 = vld [vmem:[%s209 + $0x60] sm:$0xff]
      %v236 = vld [vmem:[%s209 + $0x68] sm:$0xff]
      %v237 = vld [vmem:[%s209 + $0x70] sm:$0xff]
      %v238 = vld [vmem:[%s209 + $0x78] sm:$0xff]
      %v239 = vld [vmem:[%s209 + $0x80] sm:$0xff]
      %v240 = vld [vmem:[%s209 + $0x88] sm:$0xff]
      %v241 = vld [vmem:[%s209 + $0x90] sm:$0xff]
      %v242 = vld [vmem:[%s209 + $0x98] sm:$0xff]
      %v243 = vld [vmem:[%s209 + $0xa0] sm:$0xff]
      %v244 = vld [vmem:[%s209 + $0xa8] sm:$0xff]
      %v245 = vld [vmem:[%s209 + $0xb0] sm:$0xff]
      %v246 = vld [vmem:[%s209 + $0xb8] sm:$0xff]
      %v247 = vld [vmem:[%s209 + $0xc0] sm:$0xff]
      %v248 = vld [vmem:[%s209 + $0xc8] sm:$0xff]
      %v249 = vld [vmem:[%s209 + $0xd0] sm:$0xff]
      %v250 = vld [vmem:[%s209 + $0xd8] sm:$0xff]
      %v251 = vld [vmem:[%s209 + $0xe0] sm:$0xff]
      %v252 = vld [vmem:[%s209 + $0xe8] sm:$0xff]
      %v253 = vld [vmem:[%s209 + $0xf0] sm:$0xff]
      %v254 = vld [vmem:[%s209 + $0xf8] sm:$0xff]
      %v255 = vld [vmem:[%s209 + $0x100] sm:$0xff]
      %v256 = vld [vmem:[%s209 + $0x108] sm:$0xff]
      %v257 = vld [vmem:[%s209 + $0x110] sm:$0xff]
      %v258 = vld [vmem:[%s209 + $0x118] sm:$0xff]
      %v259 = vld [vmem:[%s209 + $0x120] sm:$0xff]
      %v260 = vld [vmem:[%s209 + $0x128] sm:$0xff]
      %v261 = vld [vmem:[%s209 + $0x130] sm:$0xff]
      %v262 = vld [vmem:[%s209 + $0x138] sm:$0xff]
      %v263 = vld [vmem:[%s1] sm:$0x1]
      %v265 = vlaneseq
      %v266 = vshrl.u32 %v265, 7
      %v267 = vsub.s32 0, %v266
      %v268 = vrot.slane %v263, %v267
      %v270 = vmul.f32 %v223, %v268
      %v271 = vmul.f32 %v224, %v268
      %v272 = vmul.f32 %v225, %v268
      %v273 = vmul.f32 %v226, %v268
      %v274 = vmul.f32 %v227, %v268
      %v275 = vmul.f32 %v228, %v268
      %v276 = vmul.f32 %v229, %v268
      %v277 = vmul.f32 %v230, %v268
      %v278 = vmul.f32 %v231, %v268
      %v279 = vmul.f32 %v232, %v268
      %v280 = vmul.f32 %v233, %v268
      %v281 = vmul.f32 %v234, %v268
      %v282 = vmul.f32 %v235, %v268
      %v283 = vmul.f32 %v236, %v268
      %v284 = vmul.f32 %v237, %v268
      %v285 = vmul.f32 %v238, %v268
      %v286 = vmul.f32 %v239, %v268
      %v287 = vmul.f32 %v240, %v268
      %v288 = vmul.f32 %v241, %v268
      %v289 = vmul.f32 %v242, %v268
      %v290 = vmul.f32 %v243, %v268
      %v291 = vmul.f32 %v244, %v268
      %v292 = vmul.f32 %v245, %v268
      %v293 = vmul.f32 %v246, %v268
      %v294 = vmul.f32 %v247, %v268
      %v295 = vmul.f32 %v248, %v268
      %v296 = vmul.f32 %v249, %v268
      %v297 = vmul.f32 %v250, %v268
      %v298 = vmul.f32 %v251, %v268
      %v299 = vmul.f32 %v252, %v268
      %v300 = vmul.f32 %v253, %v268
      %v301 = vmul.f32 %v254, %v268
      %v302 = vmul.f32 %v255, %v268
      %v303 = vmul.f32 %v256, %v268
      %v304 = vmul.f32 %v257, %v268
      %v305 = vmul.f32 %v258, %v268
      %v306 = vmul.f32 %v259, %v268
      %v307 = vmul.f32 %v260, %v268
      %v308 = vmul.f32 %v261, %v268
      %v309 = vmul.f32 %v262, %v268
      %v310 = vld [vmem:[%s2] sm:$0x1]
      %v312 = vlaneseq
      %v313 = vshrl.u32 %v312, 7
      %v314 = vsub.s32 0, %v313
      %v315 = vrot.slane %v310, %v314
      %v317 = vadd.f32 %v270, %v315
      %v318 = vadd.f32 %v271, %v315
      %v319 = vadd.f32 %v272, %v315
      %v320 = vadd.f32 %v273, %v315
      %v321 = vadd.f32 %v274, %v315
      %v322 = vadd.f32 %v275, %v315
      %v323 = vadd.f32 %v276, %v315
      %v324 = vadd.f32 %v277, %v315
      %v325 = vadd.f32 %v278, %v315
      %v326 = vadd.f32 %v279, %v315
      %v327 = vadd.f32 %v280, %v315
      %v328 = vadd.f32 %v281, %v315
      %v329 = vadd.f32 %v282, %v315
      %v330 = vadd.f32 %v283, %v315
      %v331 = vadd.f32 %v284, %v315
      %v332 = vadd.f32 %v285, %v315
      %v333 = vadd.f32 %v286, %v315
      %v334 = vadd.f32 %v287, %v315
      %v335 = vadd.f32 %v288, %v315
      %v336 = vadd.f32 %v289, %v315
      %v337 = vadd.f32 %v290, %v315
      %v338 = vadd.f32 %v291, %v315
      %v339 = vadd.f32 %v292, %v315
      %v340 = vadd.f32 %v293, %v315
      %v341 = vadd.f32 %v294, %v315
      %v342 = vadd.f32 %v295, %v315
      %v343 = vadd.f32 %v296, %v315
      %v344 = vadd.f32 %v297, %v315
      %v345 = vadd.f32 %v298, %v315
      %v346 = vadd.f32 %v299, %v315
      %v347 = vadd.f32 %v300, %v315
      %v348 = vadd.f32 %v301, %v315
      %v349 = vadd.f32 %v302, %v315
      %v350 = vadd.f32 %v303, %v315
      %v351 = vadd.f32 %v304, %v315
      %v352 = vadd.f32 %v305, %v315
      %v353 = vadd.f32 %v306, %v315
      %v354 = vadd.f32 %v307, %v315
      %v355 = vadd.f32 %v308, %v315
      %v356 = vadd.f32 %v309, %v315
      %v357 = vld [vmem:[%s215] sm:$0xff]
      %v358 = vld [vmem:[%s215 + $0x8] sm:$0xff]
      %v359 = vld [vmem:[%s215 + $0x10] sm:$0xff]
      %v360 = vld [vmem:[%s215 + $0x18] sm:$0xff]
      %v361 = vld [vmem:[%s215 + $0x20] sm:$0xff]
      %v362 = vld [vmem:[%s215 + $0x28] sm:$0xff]
      %v363 = vld [vmem:[%s215 + $0x30] sm:$0xff]
      %v364 = vld [vmem:[%s215 + $0x38] sm:$0xff]
      %v365 = vld [vmem:[%s215 + $0x40] sm:$0xff]
      %v366 = vld [vmem:[%s215 + $0x48] sm:$0xff]
      %v367 = vld [vmem:[%s215 + $0x50] sm:$0xff]
      %v368 = vld [vmem:[%s215 + $0x58] sm:$0xff]
      %v369 = vld [vmem:[%s215 + $0x60] sm:$0xff]
      %v370 = vld [vmem:[%s215 + $0x68] sm:$0xff]
      %v371 = vld [vmem:[%s215 + $0x70] sm:$0xff]
      %v372 = vld [vmem:[%s215 + $0x78] sm:$0xff]
      %v373 = vld [vmem:[%s215 + $0x80] sm:$0xff]
      %v374 = vld [vmem:[%s215 + $0x88] sm:$0xff]
      %v375 = vld [vmem:[%s215 + $0x90] sm:$0xff]
      %v376 = vld [vmem:[%s215 + $0x98] sm:$0xff]
      %v377 = vld [vmem:[%s215 + $0xa0] sm:$0xff]
      %v378 = vld [vmem:[%s215 + $0xa8] sm:$0xff]
      %v379 = vld [vmem:[%s215 + $0xb0] sm:$0xff]
      %v380 = vld [vmem:[%s215 + $0xb8] sm:$0xff]
      %v381 = vld [vmem:[%s215 + $0xc0] sm:$0xff]
      %v382 = vld [vmem:[%s215 + $0xc8] sm:$0xff]
      %v383 = vld [vmem:[%s215 + $0xd0] sm:$0xff]
      %v384 = vld [vmem:[%s215 + $0xd8] sm:$0xff]
      %v385 = vld [vmem:[%s215 + $0xe0] sm:$0xff]
      %v386 = vld [vmem:[%s215 + $0xe8] sm:$0xff]
      %v387 = vld [vmem:[%s215 + $0xf0] sm:$0xff]
      %v388 = vld [vmem:[%s215 + $0xf8] sm:$0xff]
      %v389 = vld [vmem:[%s215 + $0x100] sm:$0xff]
      %v390 = vld [vmem:[%s215 + $0x108] sm:$0xff]
      %v391 = vld [vmem:[%s215 + $0x110] sm:$0xff]
      %v392 = vld [vmem:[%s215 + $0x118] sm:$0xff]
      %v393 = vld [vmem:[%s215 + $0x120] sm:$0xff]
      %v394 = vld [vmem:[%s215 + $0x128] sm:$0xff]
      %v395 = vld [vmem:[%s215 + $0x130] sm:$0xff]
      %v396 = vld [vmem:[%s215 + $0x138] sm:$0xff]
      %v397 = vadd.f32 %v317, %v357
      %v398 = vadd.f32 %v318, %v358
      %v399 = vadd.f32 %v319, %v359
      %v400 = vadd.f32 %v320, %v360
      %v401 = vadd.f32 %v321, %v361
      %v402 = vadd.f32 %v322, %v362
      %v403 = vadd.f32 %v323, %v363
      %v404 = vadd.f32 %v324, %v364
      %v405 = vadd.f32 %v325, %v365
      %v406 = vadd.f32 %v326, %v366
      %v407 = vadd.f32 %v327, %v367
      %v408 = vadd.f32 %v328, %v368
      %v409 = vadd.f32 %v329, %v369
      %v410 = vadd.f32 %v330, %v370
      %v411 = vadd.f32 %v331, %v371
      %v412 = vadd.f32 %v332, %v372
      %v413 = vadd.f32 %v333, %v373
      %v414 = vadd.f32 %v334, %v374
      %v415 = vadd.f32 %v335, %v375
      %v416 = vadd.f32 %v336, %v376
      %v417 = vadd.f32 %v337, %v377
      %v418 = vadd.f32 %v338, %v378
      %v419 = vadd.f32 %v339, %v379
      %v420 = vadd.f32 %v340, %v380
      %v421 = vadd.f32 %v341, %v381
      %v422 = vadd.f32 %v342, %v382
      %v423 = vadd.f32 %v343, %v383
      %v424 = vadd.f32 %v344, %v384
      %v425 = vadd.f32 %v345, %v385
      %v426 = vadd.f32 %v346, %v386
      %v427 = vadd.f32 %v347, %v387
      %v428 = vadd.f32 %v348, %v388
      %v429 = vadd.f32 %v349, %v389
      %v430 = vadd.f32 %v350, %v390
      %v431 = vadd.f32 %v351, %v391
      %v432 = vadd.f32 %v352, %v392
      %v433 = vadd.f32 %v353, %v393
      %v434 = vadd.f32 %v354, %v394
      %v435 = vadd.f32 %v355, %v395
      %v436 = vadd.f32 %v356, %v396
      %v437 = vmax.f32 %v397, 0.0
      %v438 = vmax.f32 %v398, 0.0
      %v439 = vmax.f32 %v399, 0.0
      %v440 = vmax.f32 %v400, 0.0
      %v441 = vmax.f32 %v401, 0.0
      %v442 = vmax.f32 %v402, 0.0
      %v443 = vmax.f32 %v403, 0.0
      %v444 = vmax.f32 %v404, 0.0
      %v445 = vmax.f32 %v405, 0.0
      %v446 = vmax.f32 %v406, 0.0
      %v447 = vmax.f32 %v407, 0.0
      %v448 = vmax.f32 %v408, 0.0
      %v449 = vmax.f32 %v409, 0.0
      %v450 = vmax.f32 %v410, 0.0
      %v451 = vmax.f32 %v411, 0.0
      %v452 = vmax.f32 %v412, 0.0
      %v453 = vmax.f32 %v413, 0.0
      %v454 = vmax.f32 %v414, 0.0
      %v455 = vmax.f32 %v415, 0.0
      %v456 = vmax.f32 %v416, 0.0
      %v457 = vmax.f32 %v417, 0.0
      %v458 = vmax.f32 %v418, 0.0
      %v459 = vmax.f32 %v419, 0.0
      %v460 = vmax.f32 %v420, 0.0
      %v461 = vmax.f32 %v421, 0.0
      %v462 = vmax.f32 %v422, 0.0
      %v463 = vmax.f32 %v423, 0.0
      %v464 = vmax.f32 %v424, 0.0
      %v465 = vmax.f32 %v425, 0.0
      %v466 = vmax.f32 %v426, 0.0
      %v467 = vmax.f32 %v427, 0.0
      %v468 = vmax.f32 %v428, 0.0
      %v469 = vmax.f32 %v429, 0.0
      %v470 = vmax.f32 %v430, 0.0
      %v471 = vmax.f32 %v431, 0.0
      %v472 = vmax.f32 %v432, 0.0
      %v473 = vmax.f32 %v433, 0.0
      %v474 = vmax.f32 %v434, 0.0
      %v475 = vmax.f32 %v435, 0.0
      %v476 = vmax.f32 %v436, 0.0
      %477 = vst [vmem:[%s221] sm:$0xff] %v437
      %478 = vst [vmem:[%s221 + $0x8] sm:$0xff] %v438
      %479 = vst [vmem:[%s221 + $0x10] sm:$0xff] %v439
      %480 = vst [vmem:[%s221 + $0x18] sm:$0xff] %v440
      %481 = vst [vmem:[%s221 + $0x20] sm:$0xff] %v441
      %482 = vst [vmem:[%s221 + $0x28] sm:$0xff] %v442
      %483 = vst [vmem:[%s221 + $0x30] sm:$0xff] %v443
      %484 = vst [vmem:[%s221 + $0x38] sm:$0xff] %v444
      %485 = vst [vmem:[%s221 + $0x40] sm:$0xff] %v445
      %486 = vst [vmem:[%s221 + $0x48] sm:$0xff] %v446
      %487 = vst [vmem:[%s221 + $0x50] sm:$0xff] %v447
      %488 = vst [vmem:[%s221 + $0x58] sm:$0xff] %v448
      %489 = vst [vmem:[%s221 + $0x60] sm:$0xff] %v449
      %490 = vst [vmem:[%s221 + $0x68] sm:$0xff] %v450
      %491 = vst [vmem:[%s221 + $0x70] sm:$0xff] %v451
      %492 = vst [vmem:[%s221 + $0x78] sm:$0xff] %v452
      %493 = vst [vmem:[%s221 + $0x80] sm:$0xff] %v453
      %494 = vst [vmem:[%s221 + $0x88] sm:$0xff] %v454
      %495 = vst [vmem:[%s221 + $0x90] sm:$0xff] %v455
      %496 = vst [vmem:[%s221 + $0x98] sm:$0xff] %v456
      %497 = vst [vmem:[%s221 + $0xa0] sm:$0xff] %v457
      %498 = vst [vmem:[%s221 + $0xa8] sm:$0xff] %v458
      %499 = vst [vmem:[%s221 + $0xb0] sm:$0xff] %v459
      %500 = vst [vmem:[%s221 + $0xb8] sm:$0xff] %v460
      %501 = vst [vmem:[%s221 + $0xc0] sm:$0xff] %v461
      %502 = vst [vmem:[%s221 + $0xc8] sm:$0xff] %v462
      %503 = vst [vmem:[%s221 + $0xd0] sm:$0xff] %v463
      %504 = vst [vmem:[%s221 + $0xd8] sm:$0xff] %v464
      %505 = vst [vmem:[%s221 + $0xe0] sm:$0xff] %v465
      %506 = vst [vmem:[%s221 + $0xe8] sm:$0xff] %v466
      %507 = vst [vmem:[%s221 + $0xf0] sm:$0xff] %v467
      %508 = vst [vmem:[%s221 + $0xf8] sm:$0xff] %v468
      %509 = vst [vmem:[%s221 + $0x100] sm:$0xff] %v469
      %510 = vst [vmem:[%s221 + $0x108] sm:$0xff] %v470
      %511 = vst [vmem:[%s221 + $0x110] sm:$0xff] %v471
      %512 = vst [vmem:[%s221 + $0x118] sm:$0xff] %v472
      %513 = vst [vmem:[%s221 + $0x120] sm:$0xff] %v473
      %514 = vst [vmem:[%s221 + $0x128] sm:$0xff] %v474
      %515 = vst [vmem:[%s221 + $0x130] sm:$0xff] %v475
      %516 = vst [vmem:[%s221 + $0x138] sm:$0xff] %v476
      %s517 = smul.u32 40, %s15
      %p518 = scmp.lt.s32.totalorder %s517, 159
      %s519 = scalar_select %p518, %s517, 159
      %s520 = smul.addr %s519, 8
      %s521 = scalar_lea.vmem %s4, %s520
      // Predicated region
      $region37: #{basic_block_forward.7} parent=35 // pred_check
        %p522 = pneg %p127
      $region38: #{basic_block_forward.7} parent=35 // pred_check_branch
        %524 = sbr.rel (%p522) target = $region40
      $region39: #{basic_block_forward.7} parent=35 // pred_region
        %s525 = smul.u32 40, %s15
      $region40: #{basic_block_forward.7} parent=35 // pred_fallthru
        _
    $region36: #{basic_block_forward.7} parent=5 // pred_fallthru
      _
    %p526 = scmp.le.s32.totalorder 2, %s10
    // Predicated region
    $region41: #{basic_block_forward.7} parent=5 // pred_check
      %p527 = pneg %p526
    $region42: #{basic_block_forward.7} parent=5 // pred_check_branch
      %529 = sbr.rel (%p527) target = $region44
    $region43: #{basic_block_forward.7} parent=5 // pred_region
      %s530 = ssub.s32 %s10, 2
      // Predicated region
      $region45: #{basic_block_forward.7} parent=43 // pred_check
        %p531 = pneg %p133
      $region46: #{basic_block_forward.7} parent=43 // pred_check_branch
        %533 = sbr.rel (%p531) target = $region48
      $region47: #{basic_block_forward.7} parent=43 // pred_region
        %s534 = smul.u32 40, %s16
        %p535 = scmp.lt.s32.totalorder %s534, 159
        %s536 = scalar_select %p535, %s534, 159
        %s537 = smul.addr %s536, 8
        %s538 = scalar_lea.vmem %s4, %s537
      $region48: #{basic_block_forward.7} parent=43 // pred_fallthru
        _
    $region44: #{basic_block_forward.7} parent=5 // pred_fallthru
      _
  $region6: #{basic_block_forward.7} parent=0 // loop_footer
    %s14 = sadd.s32 1, %s10
  $region7: #{basic_block_forward.7} parent=0 // loop_footer_branch
    %9 = sbr.rel target = $region3
  $region8: #{basic_block_forward.7} parent=0 // loop_exit
    _

</llo_original>
